<compile_context>
chip_gen: v7x
topology: tpu7x:2x2x1
jax: 0.10.0
libtpu: 0.0.40
codegen_flags: <defaults>
</compile_context>

<pallas_src>
import jax
import jax.numpy as jnp
from jax.experimental import pallas as pl
from jax.experimental.pallas import tpu as pltpu


def _round_up(x, m):
    return (x + m - 1) // m * m


def _make_fused_block_kernel(N, H, W, Cp, eps, use_bf16_mxu):
    """Fused BasicBlock kernel factory (shapes baked in as Python constants).

    Kernel refs (in order):
      x_ref  : (N, H, W, Cp)      channel-padded input (NHWC), f32
      w1_ref : (9*Cp, Cp)         conv1 weight, im2col row order (ky, kx, cin)
      g1_ref : (1, Cp)            bn1 gamma (padded with zeros)
      b1_ref : (1, Cp)            bn1 beta  (padded with zeros)
      w2_ref : (9*Cp, Cp)         conv2 weight
      g2_ref : (1, Cp)            bn2 gamma
      b2_ref : (1, Cp)            bn2 beta
      o_ref  : (N, H, W, Cp)      output, f32
      xpad   : (N, H+2, W+2, Cp)  VMEM scratch holding the spatially padded
                                  activation for the current conv stage
    """
    NHW = N * H * W
    mxu_dtype = jnp.bfloat16 if use_bf16_mxu else jnp.float32

    def _conv_bn_relu(xpad_ref, w_ref, gamma_ref, beta_ref, residual=None):
        # --- im2col: single lane-dense patch matrix, ONE MXU matmul ---------
        cols = []
        for ky in range(3):
            for kx in range(3):
                tap = xpad_ref[:, ky:ky + H, kx:kx + W, :]        # (N, H, W, Cp)
                cols.append(tap.reshape(NHW, Cp))
        patches = jnp.concatenate(cols, axis=1).astype(mxu_dtype)  # (NHW, 9*Cp)
        acc = jnp.dot(patches, w_ref[...],
                      preferred_element_type=jnp.float32)          # (NHW, Cp) f32

        # --- BatchNorm2d, training mode (per-channel biased batch stats) ----
        # Two-pass (mean, then centered variance) for numerical stability; acc
        # is a single VMEM-resident block so this costs no extra HBM traffic.
        mean = jnp.mean(acc, axis=0, keepdims=True)                 # (1, Cp)
        cen = acc - mean
        var = jnp.mean(cen * cen, axis=0, keepdims=True)
        out = cen * jax.lax.rsqrt(var + eps) * gamma_ref[...] + beta_ref[...]

        # --- residual add + ReLU --------------------------------------------
        if residual is not None:
            out = out + residual
        return jnp.maximum(out, 0.0)                                # (NHW, Cp) f32

    def kernel(x_ref, w1_ref, g1_ref, b1_ref, w2_ref, g2_ref, b2_ref,
               o_ref, xpad_ref):
        # Zero the scratch once; the halo border stays zero for both stages,
        # only the interior is rewritten per stage (in-kernel padding=1).
        xpad_ref[...] = jnp.zeros(xpad_ref.shape, xpad_ref.dtype)

        x = x_ref[...].astype(jnp.float32)                          # (N, H, W, Cp)

        # Stage 1: conv1 + bn1 + relu
        xpad_ref[:, 1:H + 1, 1:W + 1, :] = x
        h1 = _conv_bn_relu(xpad_ref, w1_ref, g1_ref, b1_ref)        # (NHW, Cp)

        # Stage 2: conv2 + bn2 + residual + relu (intermediate stays in VMEM)
        xpad_ref[:, 1:H + 1, 1:W + 1, :] = h1.reshape(N, H, W, Cp)
        res = x.reshape(NHW, Cp)
        h2 = _conv_bn_relu(xpad_ref, w2_ref, g2_ref, b2_ref, residual=res)

        o_ref[...] = h2.reshape(N, H, W, Cp).astype(o_ref.dtype)

    return kernel


def _prep_weight(w_oihw, Cp, dtype):
    """(Cout, Cin, 3, 3) -> (9*Cp, Cp) im2col weight, rows ordered (ky, kx, cin)."""
    Cout, Cin, KH, KW = w_oihw.shape
    w = jnp.transpose(w_oihw, (2, 3, 1, 0)).astype(jnp.float32)     # (3, 3, Cin, Cout)
    w = jnp.pad(w, ((0, 0), (0, 0), (0, Cp - Cin), (0, Cp - Cout)))
    return w.reshape(KH * KW * Cp, Cp).astype(dtype)


def _prep_vec(v, Cp):
    C = v.shape[0]
    return jnp.pad(v.astype(jnp.float32), (0, Cp - C)).reshape(1, Cp)


def basic_block_forward(x_nchw, params, *, eps=1e-5, use_bf16_mxu=False):
    """BasicBlock forward. x_nchw: (N, C, H, W) float32 (PyTorch layout)."""
    N, C, H, W = x_nchw.shape
    planes = params["conv1_w"].shape[0]
    assert planes == C, "default BasicBlock (downsample=None) requires inplanes == planes"

    # Lane-dense channel count (pad channels so the lane axis is full 128-wide).
    Cp = _round_up(max(C, planes), 128)

    # Layout plumbing (cheap XLA ops): NCHW -> NHWC, zero-pad channels to Cp.
    x = jnp.transpose(x_nchw, (0, 2, 3, 1)).astype(jnp.float32)
    x = jnp.pad(x, ((0, 0), (0, 0), (0, 0), (0, Cp - C)))

    w_dtype = jnp.bfloat16 if use_bf16_mxu else jnp.float32
    w1 = _prep_weight(params["conv1_w"], Cp, w_dtype)
    w2 = _prep_weight(params["conv2_w"], Cp, w_dtype)
    g1 = _prep_vec(params["bn1_gamma"], Cp)
    b1 = _prep_vec(params["bn1_beta"], Cp)
    g2 = _prep_vec(params["bn2_gamma"], Cp)
    b2 = _prep_vec(params["bn2_beta"], Cp)

    kernel = _make_fused_block_kernel(N, H, W, Cp, eps, use_bf16_mxu)

    vspec = pl.BlockSpec(memory_space=pltpu.MemorySpace.VMEM)
    out = pl.pallas_call(
        kernel,
        out_shape=jax.ShapeDtypeStruct((N, H, W, Cp), jnp.float32),
        in_specs=[vspec] * 7,
        out_specs=vspec,
        scratch_shapes=[pltpu.VMEM((N, H + 2, W + 2, Cp), jnp.float32)],
        # NOTE: no vmem_limit_bytes override — the working set (~5 MiB) fits
        # the default scoped VMEM limit on v5e/v6e/v7x; requesting 64 MiB on
        # v7x would consume the entire physical per-TC VMEM.
    )(x, w1, g1, b1, w2, g2, b2)

    # Drop channel padding, back to NCHW.
    return jnp.transpose(out[..., :C], (0, 3, 1, 2))


def _reference_forward(x_nchw, params, eps=1e-5):
    """Pure-JAX reference (lax conv + explicit training-mode batchnorm), NCHW."""
    def conv(x, w):
        return jax.lax.conv_general_dilated(
            x, w, window_strides=(1, 1), padding=((1, 1), (1, 1)),
            dimension_numbers=("NCHW", "OIHW", "NCHW"))

    def bn(x, g, b):
        mean = jnp.mean(x, axis=(0, 2, 3), keepdims=True)
        var = jnp.mean((x - mean) ** 2, axis=(0, 2, 3), keepdims=True)
        return (x - mean) * jax.lax.rsqrt(var + eps) * g.reshape(1, -1, 1, 1) \
            + b.reshape(1, -1, 1, 1)

    out = jax.nn.relu(bn(conv(x_nchw, params["conv1_w"]),
                         params["bn1_gamma"], params["bn1_beta"]))
    out = bn(conv(out, params["conv2_w"]), params["bn2_gamma"], params["bn2_beta"])
    return jax.nn.relu(out + x_nchw)


def init_params(key, inplanes, planes):
    k1, k2 = jax.random.split(key)
    # conv3x3 weights: (Cout, Cin, 3, 3), no bias.  BN: gamma=1, beta=0 (PyTorch defaults).
    return {
        "conv1_w": 0.1 * jax.random.normal(k1, (planes, inplanes, 3, 3), jnp.float32),
        "bn1_gamma": jnp.ones((planes,), jnp.float32),
        "bn1_beta": jnp.zeros((planes,), jnp.float32),
        "conv2_w": 0.1 * jax.random.normal(k2, (planes, planes, 3, 3), jnp.float32),
        "bn2_gamma": jnp.ones((planes,), jnp.float32),
        "bn2_beta": jnp.zeros((planes,), jnp.float32),
    }


if __name__ == "__main__":
    # Small shapes: batch=2, channels=4, spatial=16x16 (inplanes == planes, stride=1).
    N, C, H, W = 2, 4, 16, 16
    key = jax.random.PRNGKey(0)
    kx, kp = jax.random.split(key)

    x = jax.random.normal(kx, (N, C, H, W), jnp.float32)
    params = init_params(kp, inplanes=C, planes=C)

    ref = jax.block_until_ready(_reference_forward(x, params))

    # f32 MXU path: tight tolerance vs. the pure-JAX reference.
    out = jax.block_until_ready(basic_block_forward(x, params))
    assert out.shape == (N, C, H, W), out.shape
    assert jnp.allclose(out, ref, rtol=1e-3, atol=1e-3), float(jnp.max(jnp.abs(out - ref)))

    # bf16 MXU fast path (v6e/v7x): same kernel, bf16 matmul operands, f32 BN math.
    out_bf16 = jax.block_until_ready(basic_block_forward(x, params, use_bf16_mxu=True))
    assert jnp.allclose(out_bf16, ref, rtol=5e-2, atol=5e-2), \
        float(jnp.max(jnp.abs(out_bf16 - ref)))

    print("KERNEL_OK")
</pallas_src>

<mosaic_0001>
module attributes {stable_mosaic.version = 11 : i64} {
  func.func @kernel(%arg0: memref<2x16x16x128xf32, #tpu.memory_space<vmem>>, %arg1: memref<1152x128xf32, #tpu.memory_space<vmem>>, %arg2: memref<1x128xf32, #tpu.memory_space<vmem>>, %arg3: memref<1x128xf32, #tpu.memory_space<vmem>>, %arg4: memref<1152x128xf32, #tpu.memory_space<vmem>>, %arg5: memref<1x128xf32, #tpu.memory_space<vmem>>, %arg6: memref<1x128xf32, #tpu.memory_space<vmem>>, %arg7: memref<2x16x16x128xf32, #tpu.memory_space<vmem>>, %arg8: memref<2x18x18x128xf32, #tpu.memory_space<vmem>>) attributes {dimension_semantics = [], scalar_prefetch = 0 : i64, scratch_operands = 1 : i64, tpu.core_type = #tpu.core_type<tc>} {
    %cst = arith.constant 0.000000e+00 : f32
    %0 = vector.broadcast %cst : f32 to vector<2x18x18x128xf32>
    %c0 = arith.constant 0 : index
    %c0_0 = arith.constant 0 : index
    %c0_1 = arith.constant 0 : index
    %c0_2 = arith.constant 0 : index
    %1 = vector.load %arg8[%c0, %c0_0, %c0_1, %c0_2] : memref<2x18x18x128xf32, #tpu.memory_space<vmem>>, vector<2x18x18x128xf32>
    tpu.vector_store %arg8[%c0, %c0_0, %c0_1, %c0_2], %0 {strides = array<i32>} : memref<2x18x18x128xf32, #tpu.memory_space<vmem>>, vector<2x18x18x128xf32>,
    %c0_3 = arith.constant 0 : index
    %c0_4 = arith.constant 0 : index
    %c0_5 = arith.constant 0 : index
    %c0_6 = arith.constant 0 : index
    %2 = vector.load %arg0[%c0_3, %c0_4, %c0_5, %c0_6] : memref<2x16x16x128xf32, #tpu.memory_space<vmem>>, vector<2x16x16x128xf32>
    %c0_7 = arith.constant 0 : index
    %c1 = arith.constant 1 : index
    %c1_8 = arith.constant 1 : index
    %c0_9 = arith.constant 0 : index
    %3 = vector.load %arg8[%c0_7, %c1, %c1_8, %c0_9] : memref<2x18x18x128xf32, #tpu.memory_space<vmem>>, vector<2x16x16x128xf32>
    tpu.vector_store %arg8[%c0_7, %c1, %c1_8, %c0_9], %2 {strides = array<i32>} : memref<2x18x18x128xf32, #tpu.memory_space<vmem>>, vector<2x16x16x128xf32>,
    %c0_10 = arith.constant 0 : index
    %c0_11 = arith.constant 0 : index
    %c0_12 = arith.constant 0 : index
    %c0_13 = arith.constant 0 : index
    %4 = vector.load %arg8[%c0_10, %c0_11, %c0_12, %c0_13] : memref<2x18x18x128xf32, #tpu.memory_space<vmem>>, vector<2x16x16x128xf32>
    %5 = vector.shape_cast %4 : vector<2x16x16x128xf32> to vector<512x128xf32>
    %c0_14 = arith.constant 0 : index
    %c0_15 = arith.constant 0 : index
    %c1_16 = arith.constant 1 : index
    %c0_17 = arith.constant 0 : index
    %6 = vector.load %arg8[%c0_14, %c0_15, %c1_16, %c0_17] : memref<2x18x18x128xf32, #tpu.memory_space<vmem>>, vector<2x16x16x128xf32>
    %7 = vector.shape_cast %6 : vector<2x16x16x128xf32> to vector<512x128xf32>
    %c0_18 = arith.constant 0 : index
    %c0_19 = arith.constant 0 : index
    %c2 = arith.constant 2 : index
    %c0_20 = arith.constant 0 : index
    %8 = vector.load %arg8[%c0_18, %c0_19, %c2, %c0_20] : memref<2x18x18x128xf32, #tpu.memory_space<vmem>>, vector<2x16x16x128xf32>
    %9 = vector.shape_cast %8 : vector<2x16x16x128xf32> to vector<512x128xf32>
    %c0_21 = arith.constant 0 : index
    %c1_22 = arith.constant 1 : index
    %c0_23 = arith.constant 0 : index
    %c0_24 = arith.constant 0 : index
    %10 = vector.load %arg8[%c0_21, %c1_22, %c0_23, %c0_24] : memref<2x18x18x128xf32, #tpu.memory_space<vmem>>, vector<2x16x16x128xf32>
    %11 = vector.shape_cast %10 : vector<2x16x16x128xf32> to vector<512x128xf32>
    %c0_25 = arith.constant 0 : index
    %c1_26 = arith.constant 1 : index
    %c1_27 = arith.constant 1 : index
    %c0_28 = arith.constant 0 : index
    %12 = vector.load %arg8[%c0_25, %c1_26, %c1_27, %c0_28] : memref<2x18x18x128xf32, #tpu.memory_space<vmem>>, vector<2x16x16x128xf32>
    %13 = vector.shape_cast %12 : vector<2x16x16x128xf32> to vector<512x128xf32>
    %c0_29 = arith.constant 0 : index
    %c1_30 = arith.constant 1 : index
    %c2_31 = arith.constant 2 : index
    %c0_32 = arith.constant 0 : index
    %14 = vector.load %arg8[%c0_29, %c1_30, %c2_31, %c0_32] : memref<2x18x18x128xf32, #tpu.memory_space<vmem>>, vector<2x16x16x128xf32>
    %15 = vector.shape_cast %14 : vector<2x16x16x128xf32> to vector<512x128xf32>
    %c0_33 = arith.constant 0 : index
    %c2_34 = arith.constant 2 : index
    %c0_35 = arith.constant 0 : index
    %c0_36 = arith.constant 0 : index
    %16 = vector.load %arg8[%c0_33, %c2_34, %c0_35, %c0_36] : memref<2x18x18x128xf32, #tpu.memory_space<vmem>>, vector<2x16x16x128xf32>
    %17 = vector.shape_cast %16 : vector<2x16x16x128xf32> to vector<512x128xf32>
    %c0_37 = arith.constant 0 : index
    %c2_38 = arith.constant 2 : index
    %c1_39 = arith.constant 1 : index
    %c0_40 = arith.constant 0 : index
    %18 = vector.load %arg8[%c0_37, %c2_38, %c1_39, %c0_40] : memref<2x18x18x128xf32, #tpu.memory_space<vmem>>, vector<2x16x16x128xf32>
    %19 = vector.shape_cast %18 : vector<2x16x16x128xf32> to vector<512x128xf32>
    %c0_41 = arith.constant 0 : index
    %c2_42 = arith.constant 2 : index
    %c2_43 = arith.constant 2 : index
    %c0_44 = arith.constant 0 : index
    %20 = vector.load %arg8[%c0_41, %c2_42, %c2_43, %c0_44] : memref<2x18x18x128xf32, #tpu.memory_space<vmem>>, vector<2x16x16x128xf32>
    %21 = vector.shape_cast %20 : vector<2x16x16x128xf32> to vector<512x128xf32>
    %22 = tpu.concatenate %5, %7, %9, %11, %13, %15, %17, %19, %21 in 1 : vector<512x128xf32>, vector<512x128xf32>, vector<512x128xf32>, vector<512x128xf32>, vector<512x128xf32>, vector<512x128xf32>, vector<512x128xf32>, vector<512x128xf32>, vector<512x128xf32> -> vector<512x1152xf32>
    %c0_45 = arith.constant 0 : index
    %c0_46 = arith.constant 0 : index
    %23 = vector.load %arg1[%c0_45, %c0_46] : memref<1152x128xf32, #tpu.memory_space<vmem>>, vector<1152x128xf32>
    %cst_47 = arith.constant dense<0.000000e+00> : vector<512x128xf32>
    %24 = tpu.matmul %22, %23, %cst_47 {dimension_numbers = #tpu.dot_dimension_numbers<[1], [0], [0], [1], [0, 0, 1, 1], [], []>} : vector<512x1152xf32>, vector<1152x128xf32>, vector<512x128xf32> -> vector<512x128xf32>
    %cst_48 = arith.constant dense<0.000000e+00> : vector<128xf32>
    %25 = vector.multi_reduction <add>, %24, %cst_48 [0] : vector<512x128xf32> to vector<128xf32>
    %26 = vector.shape_cast %25 : vector<128xf32> to vector<1x128xf32>
    %cst_49 = arith.constant 5.120000e+02 : f32
    %27 = vector.broadcast %cst_49 : f32 to vector<1x128xf32>
    %28 = arith.divf %26, %27 : vector<1x128xf32>
    %29 = vector.broadcast %28 : vector<1x128xf32> to vector<512x128xf32>
    %30 = arith.subf %24, %29 : vector<512x128xf32>
    %31 = arith.mulf %30, %30 : vector<512x128xf32>
    %cst_50 = arith.constant dense<0.000000e+00> : vector<128xf32>
    %32 = vector.multi_reduction <add>, %31, %cst_50 [0] : vector<512x128xf32> to vector<128xf32>
    %33 = vector.shape_cast %32 : vector<128xf32> to vector<1x128xf32>
    %cst_51 = arith.constant 5.120000e+02 : f32
    %34 = vector.broadcast %cst_51 : f32 to vector<1x128xf32>
    %35 = arith.divf %33, %34 : vector<1x128xf32>
    %cst_52 = arith.constant 9.99999974E-6 : f32
    %36 = vector.broadcast %cst_52 : f32 to vector<1x128xf32>
    %37 = arith.addf %35, %36 : vector<1x128xf32>
    %38 = math.rsqrt %37 : vector<1x128xf32>
    %39 = vector.broadcast %38 : vector<1x128xf32> to vector<512x128xf32>
    %40 = arith.mulf %30, %39 : vector<512x128xf32>
    %c0_53 = arith.constant 0 : index
    %c0_54 = arith.constant 0 : index
    %41 = vector.load %arg2[%c0_53, %c0_54] : memref<1x128xf32, #tpu.memory_space<vmem>>, vector<1x128xf32>
    %42 = vector.broadcast %41 : vector<1x128xf32> to vector<512x128xf32>
    %43 = arith.mulf %40, %42 : vector<512x128xf32>
    %c0_55 = arith.constant 0 : index
    %c0_56 = arith.constant 0 : index
    %44 = vector.load %arg3[%c0_55, %c0_56] : memref<1x128xf32, #tpu.memory_space<vmem>>, vector<1x128xf32>
    %45 = vector.broadcast %44 : vector<1x128xf32> to vector<512x128xf32>
    %46 = arith.addf %43, %45 : vector<512x128xf32>
    %cst_57 = arith.constant 0.000000e+00 : f32
    %47 = vector.broadcast %cst_57 : f32 to vector<512x128xf32>
    %48 = arith.maximumf %46, %47 : vector<512x128xf32>
    %49 = vector.shape_cast %48 : vector<512x128xf32> to vector<2x16x16x128xf32>
    %c0_58 = arith.constant 0 : index
    %c1_59 = arith.constant 1 : index
    %c1_60 = arith.constant 1 : index
    %c0_61 = arith.constant 0 : index
    %50 = vector.load %arg8[%c0_58, %c1_59, %c1_60, %c0_61] : memref<2x18x18x128xf32, #tpu.memory_space<vmem>>, vector<2x16x16x128xf32>
    tpu.vector_store %arg8[%c0_58, %c1_59, %c1_60, %c0_61], %49 {strides = array<i32>} : memref<2x18x18x128xf32, #tpu.memory_space<vmem>>, vector<2x16x16x128xf32>,
    %51 = vector.shape_cast %2 : vector<2x16x16x128xf32> to vector<512x128xf32>
    %c0_62 = arith.constant 0 : index
    %c0_63 = arith.constant 0 : index
    %c0_64 = arith.constant 0 : index
    %c0_65 = arith.constant 0 : index
    %52 = vector.load %arg8[%c0_62, %c0_63, %c0_64, %c0_65] : memref<2x18x18x128xf32, #tpu.memory_space<vmem>>, vector<2x16x16x128xf32>
    %53 = vector.shape_cast %52 : vector<2x16x16x128xf32> to vector<512x128xf32>
    %c0_66 = arith.constant 0 : index
    %c0_67 = arith.constant 0 : index
    %c1_68 = arith.constant 1 : index
    %c0_69 = arith.constant 0 : index
    %54 = vector.load %arg8[%c0_66, %c0_67, %c1_68, %c0_69] : memref<2x18x18x128xf32, #tpu.memory_space<vmem>>, vector<2x16x16x128xf32>
    %55 = vector.shape_cast %54 : vector<2x16x16x128xf32> to vector<512x128xf32>
    %c0_70 = arith.constant 0 : index
    %c0_71 = arith.constant 0 : index
    %c2_72 = arith.constant 2 : index
    %c0_73 = arith.constant 0 : index
    %56 = vector.load %arg8[%c0_70, %c0_71, %c2_72, %c0_73] : memref<2x18x18x128xf32, #tpu.memory_space<vmem>>, vector<2x16x16x128xf32>
    %57 = vector.shape_cast %56 : vector<2x16x16x128xf32> to vector<512x128xf32>
    %c0_74 = arith.constant 0 : index
    %c1_75 = arith.constant 1 : index
    %c0_76 = arith.constant 0 : index
    %c0_77 = arith.constant 0 : index
    %58 = vector.load %arg8[%c0_74, %c1_75, %c0_76, %c0_77] : memref<2x18x18x128xf32, #tpu.memory_space<vmem>>, vector<2x16x16x128xf32>
    %59 = vector.shape_cast %58 : vector<2x16x16x128xf32> to vector<512x128xf32>
    %c0_78 = arith.constant 0 : index
    %c1_79 = arith.constant 1 : index
    %c1_80 = arith.constant 1 : index
    %c0_81 = arith.constant 0 : index
    %60 = vector.load %arg8[%c0_78, %c1_79, %c1_80, %c0_81] : memref<2x18x18x128xf32, #tpu.memory_space<vmem>>, vector<2x16x16x128xf32>
    %61 = vector.shape_cast %60 : vector<2x16x16x128xf32> to vector<512x128xf32>
    %c0_82 = arith.constant 0 : index
    %c1_83 = arith.constant 1 : index
    %c2_84 = arith.constant 2 : index
    %c0_85 = arith.constant 0 : index
    %62 = vector.load %arg8[%c0_82, %c1_83, %c2_84, %c0_85] : memref<2x18x18x128xf32, #tpu.memory_space<vmem>>, vector<2x16x16x128xf32>
    %63 = vector.shape_cast %62 : vector<2x16x16x128xf32> to vector<512x128xf32>
    %c0_86 = arith.constant 0 : index
    %c2_87 = arith.constant 2 : index
    %c0_88 = arith.constant 0 : index
    %c0_89 = arith.constant 0 : index
    %64 = vector.load %arg8[%c0_86, %c2_87, %c0_88, %c0_89] : memref<2x18x18x128xf32, #tpu.memory_space<vmem>>, vector<2x16x16x128xf32>
    %65 = vector.shape_cast %64 : vector<2x16x16x128xf32> to vector<512x128xf32>
    %c0_90 = arith.constant 0 : index
    %c2_91 = arith.constant 2 : index
    %c1_92 = arith.constant 1 : index
    %c0_93 = arith.constant 0 : index
    %66 = vector.load %arg8[%c0_90, %c2_91, %c1_92, %c0_93] : memref<2x18x18x128xf32, #tpu.memory_space<vmem>>, vector<2x16x16x128xf32>
    %67 = vector.shape_cast %66 : vector<2x16x16x128xf32> to vector<512x128xf32>
    %c0_94 = arith.constant 0 : index
    %c2_95 = arith.constant 2 : index
    %c2_96 = arith.constant 2 : index
    %c0_97 = arith.constant 0 : index
    %68 = vector.load %arg8[%c0_94, %c2_95, %c2_96, %c0_97] : memref<2x18x18x128xf32, #tpu.memory_space<vmem>>, vector<2x16x16x128xf32>
    %69 = vector.shape_cast %68 : vector<2x16x16x128xf32> to vector<512x128xf32>
    %70 = tpu.concatenate %53, %55, %57, %59, %61, %63, %65, %67, %69 in 1 : vector<512x128xf32>, vector<512x128xf32>, vector<512x128xf32>, vector<512x128xf32>, vector<512x128xf32>, vector<512x128xf32>, vector<512x128xf32>, vector<512x128xf32>, vector<512x128xf32> -> vector<512x1152xf32>
    %c0_98 = arith.constant 0 : index
    %c0_99 = arith.constant 0 : index
    %71 = vector.load %arg4[%c0_98, %c0_99] : memref<1152x128xf32, #tpu.memory_space<vmem>>, vector<1152x128xf32>
    %cst_100 = arith.constant dense<0.000000e+00> : vector<512x128xf32>
    %72 = tpu.matmul %70, %71, %cst_100 {dimension_numbers = #tpu.dot_dimension_numbers<[1], [0], [0], [1], [0, 0, 1, 1], [], []>} : vector<512x1152xf32>, vector<1152x128xf32>, vector<512x128xf32> -> vector<512x128xf32>
    %cst_101 = arith.constant dense<0.000000e+00> : vector<128xf32>
    %73 = vector.multi_reduction <add>, %72, %cst_101 [0] : vector<512x128xf32> to vector<128xf32>
    %74 = vector.shape_cast %73 : vector<128xf32> to vector<1x128xf32>
    %cst_102 = arith.constant 5.120000e+02 : f32
    %75 = vector.broadcast %cst_102 : f32 to vector<1x128xf32>
    %76 = arith.divf %74, %75 : vector<1x128xf32>
    %77 = vector.broadcast %76 : vector<1x128xf32> to vector<512x128xf32>
    %78 = arith.subf %72, %77 : vector<512x128xf32>
    %79 = arith.mulf %78, %78 : vector<512x128xf32>
    %cst_103 = arith.constant dense<0.000000e+00> : vector<128xf32>
    %80 = vector.multi_reduction <add>, %79, %cst_103 [0] : vector<512x128xf32> to vector<128xf32>
    %81 = vector.shape_cast %80 : vector<128xf32> to vector<1x128xf32>
    %cst_104 = arith.constant 5.120000e+02 : f32
    %82 = vector.broadcast %cst_104 : f32 to vector<1x128xf32>
    %83 = arith.divf %81, %82 : vector<1x128xf32>
    %cst_105 = arith.constant 9.99999974E-6 : f32
    %84 = vector.broadcast %cst_105 : f32 to vector<1x128xf32>
    %85 = arith.addf %83, %84 : vector<1x128xf32>
    %86 = math.rsqrt %85 : vector<1x128xf32>
    %87 = vector.broadcast %86 : vector<1x128xf32> to vector<512x128xf32>
    %88 = arith.mulf %78, %87 : vector<512x128xf32>
    %c0_106 = arith.constant 0 : index
    %c0_107 = arith.constant 0 : index
    %89 = vector.load %arg5[%c0_106, %c0_107] : memref<1x128xf32, #tpu.memory_space<vmem>>, vector<1x128xf32>
    %90 = vector.broadcast %89 : vector<1x128xf32> to vector<512x128xf32>
    %91 = arith.mulf %88, %90 : vector<512x128xf32>
    %c0_108 = arith.constant 0 : index
    %c0_109 = arith.constant 0 : index
    %92 = vector.load %arg6[%c0_108, %c0_109] : memref<1x128xf32, #tpu.memory_space<vmem>>, vector<1x128xf32>
    %93 = vector.broadcast %92 : vector<1x128xf32> to vector<512x128xf32>
    %94 = arith.addf %91, %93 : vector<512x128xf32>
    %95 = arith.addf %94, %51 : vector<512x128xf32>
    %cst_110 = arith.constant 0.000000e+00 : f32
    %96 = vector.broadcast %cst_110 : f32 to vector<512x128xf32>
    %97 = arith.maximumf %95, %96 : vector<512x128xf32>
    %98 = vector.shape_cast %97 : vector<512x128xf32> to vector<2x16x16x128xf32>
    %c0_111 = arith.constant 0 : index
    %c0_112 = arith.constant 0 : index
    %c0_113 = arith.constant 0 : index
    %c0_114 = arith.constant 0 : index
    %99 = vector.load %arg7[%c0_111, %c0_112, %c0_113, %c0_114] : memref<2x16x16x128xf32, #tpu.memory_space<vmem>>, vector<2x16x16x128xf32>
    tpu.vector_store %arg7[%c0_111, %c0_112, %c0_113, %c0_114], %98 {strides = array<i32>} : memref<2x16x16x128xf32, #tpu.memory_space<vmem>>, vector<2x16x16x128xf32>,
    return
  }
}

</mosaic_0001>

<llo_original>
// kernel: tpu_custom_call.1
$region0: #{tpu_custom_call.1}
  #allocation0 [shape = 'u32[]', space=smem, size = 0x4, offset = 0x4, fixed_abs, tag = 'smem constant byte address 0x4 - core index']
  #allocation1 [shape = 'u32[144,128]{1,0:T(1,128)}', space=vmem, size = 0x12000, scoped, tag = 'internal scratch']
  #allocation2 [shape = 'f32[2,18,18,128]{3,2,1,0:T(8,128)}', space=vmem, size = 0x6c000, scoped, tag = 'scratch operand']
  %s0 = inlined_call_operand.hbm [shape: f32[2,16,16,128], index: 0, kind: input, shape index: {}]
  %s1 = inlined_call_operand.hbm [shape: f32[1152,128], index: 1, kind: input, shape index: {}]
  %s2 = inlined_call_operand.vmem [shape: f32[1,128], index: 2, kind: input, shape index: {}]
  %s3 = inlined_call_operand.vmem [shape: f32[1,128], index: 3, kind: input, shape index: {}]
  %s4 = inlined_call_operand.hbm [shape: f32[1152,128], index: 4, kind: input, shape index: {}]
  %s5 = inlined_call_operand.vmem [shape: f32[1,128], index: 5, kind: input, shape index: {}]
  %s6 = inlined_call_operand.vmem [shape: f32[1,128], index: 6, kind: input, shape index: {}]
  %s7 = inlined_call_operand.hbm [shape: f32[2,16,16,128], index: 7, kind: output, shape index: {}]
  %s8 = sld [smem:[#allocation0]]
  $region50: #{tpu_custom_call.1} parent=0
    _
  %s10 = ssub.s32 1, %s8
  %s11 = scalar_select 0, %s10, %s8
  $region1: #{tpu_custom_call.1} parent=0
    #allocation3 [shape = 'u8[262144]{0}', space=vmem, size = 0x40000, scoped, tag = 'input window, operand 0, single buffered']
    #allocation4 [shape = 's32[1]{0}', space=sflag, size = 0x4, scoped, tag = 'scoped memory for tpu_custom_call.1']
    #allocation5 [shape = 's32[1]{0}', space=sflag, size = 0x4, scoped, tag = 'scoped memory for tpu_custom_call.1']
    #allocation6 [shape = 'u8[589824]{0}', space=vmem, size = 0x90000, scoped, tag = 'input window, operand 1, single buffered']
    #allocation7 [shape = 's32[1]{0}', space=sflag, size = 0x4, scoped, tag = 'scoped memory for tpu_custom_call.1']
    #allocation8 [shape = 'u8[589824]{0}', space=vmem, size = 0x90000, scoped, tag = 'input window, operand 4, single buffered']
    #allocation9 [shape = 'u8[262144]{0}', space=vmem, size = 0x40000, scoped, tag = 'output window, operand 0, single buffered']
    %12 = vsyncpa [#allocation4], 0
    %13 = vsyncpa [#allocation7], 0
    %14 = vsyncpa [#allocation5], 0
    // Predicated region
    $region2: #{tpu_custom_call.1} parent=1 // pred_check
      _
    $region3: #{tpu_custom_call.1} parent=1 // pred_check_branch
      %16 = sbr.rel (0) target = $region5
    $region4: #{tpu_custom_call.1} parent=1 // pred_region
      %s18 = ssub.s32 8192, 8192
      %19 = vsyncadd [#allocation4], %s18
      %s20 = sshll.u32 [#allocation3], 4
      %s21 = int_to_ptr.vmem [resolvable:$true] %s20
      %26 = dma.hbm_to_vmem [thread:$0]  %s0, 8192, %s21, [#allocation4], 128, 128, 8
    $region5: #{tpu_custom_call.1} parent=1 // pred_fallthru
      _
    // Predicated region
    $region6: #{tpu_custom_call.1} parent=1 // pred_check
      _
    $region7: #{tpu_custom_call.1} parent=1 // pred_check_branch
      %28 = sbr.rel (0) target = $region9
    $region8: #{tpu_custom_call.1} parent=1 // pred_region
      %s30 = ssub.s32 18432, 18432
      %31 = vsyncadd [#allocation7], %s30
      %s32 = sshll.u32 [#allocation6], 4
      %s33 = int_to_ptr.vmem [resolvable:$true] %s32
      %38 = dma.hbm_to_vmem [thread:$0]  %s1, 18432, %s33, [#allocation7], 128, 128, 8
    $region9: #{tpu_custom_call.1} parent=1 // pred_fallthru
      _
    // Predicated region
    $region10: #{tpu_custom_call.1} parent=1 // pred_check
      _
    $region11: #{tpu_custom_call.1} parent=1 // pred_check_branch
      %40 = sbr.rel (0) target = $region13
    $region12: #{tpu_custom_call.1} parent=1 // pred_region
      _
    $region13: #{tpu_custom_call.1} parent=1 // pred_fallthru
      _
    // Predicated region
    $region14: #{tpu_custom_call.1} parent=1 // pred_check
      _
    $region15: #{tpu_custom_call.1} parent=1 // pred_check_branch
      %42 = sbr.rel (0) target = $region17
    $region16: #{tpu_custom_call.1} parent=1 // pred_region
      _
    $region17: #{tpu_custom_call.1} parent=1 // pred_fallthru
      _
    // Predicated region
    $region18: #{tpu_custom_call.1} parent=1 // pred_check
      _
    $region19: #{tpu_custom_call.1} parent=1 // pred_check_branch
      %44 = sbr.rel (0) target = $region21
    $region20: #{tpu_custom_call.1} parent=1 // pred_region
      %s46 = ssub.s32 18432, 18432
      %47 = vsyncadd [#allocation7], %s46
      %s48 = sshll.u32 [#allocation8], 4
      %s49 = int_to_ptr.vmem [resolvable:$true] %s48
      %54 = dma.hbm_to_vmem [thread:$0]  %s4, 18432, %s49, [#allocation7], 128, 128, 8
    $region21: #{tpu_custom_call.1} parent=1 // pred_fallthru
      _
    // Predicated region
    $region22: #{tpu_custom_call.1} parent=1 // pred_check
      _
    $region23: #{tpu_custom_call.1} parent=1 // pred_check_branch
      %56 = sbr.rel (0) target = $region25
    $region24: #{tpu_custom_call.1} parent=1 // pred_region
      _
    $region25: #{tpu_custom_call.1} parent=1 // pred_fallthru
      _
    // Predicated region
    $region26: #{tpu_custom_call.1} parent=1 // pred_check
      _
    $region27: #{tpu_custom_call.1} parent=1 // pred_check_branch
      %58 = sbr.rel (0) target = $region29
    $region28: #{tpu_custom_call.1} parent=1 // pred_region
      _
    $region29: #{tpu_custom_call.1} parent=1 // pred_fallthru
      _
    // Predicated region
    $region30: #{tpu_custom_call.1} parent=1 // pred_check
      _
    $region31: #{tpu_custom_call.1} parent=1 // pred_check_branch
      %60 = sbr.rel (0) target = $region33
    $region32: #{tpu_custom_call.1} parent=1 // pred_region
      %61 = dma.done [#allocation4], 8192
    $region33: #{tpu_custom_call.1} parent=1 // pred_fallthru
      _
    // Predicated region
    $region34: #{tpu_custom_call.1} parent=1 // pred_check
      _
    $region35: #{tpu_custom_call.1} parent=1 // pred_check_branch
      %63 = sbr.rel (0) target = $region37
    $region36: #{tpu_custom_call.1} parent=1 // pred_region
      %64 = dma.done [#allocation7], 18432
    $region37: #{tpu_custom_call.1} parent=1 // pred_fallthru
      _
    // Predicated region
    $region38: #{tpu_custom_call.1} parent=1 // pred_check
      _
    $region39: #{tpu_custom_call.1} parent=1 // pred_check_branch
      %66 = sbr.rel (0) target = $region41
    $region40: #{tpu_custom_call.1} parent=1 // pred_region
      %67 = dma.done [#allocation7], 18432
    $region41: #{tpu_custom_call.1} parent=1 // pred_fallthru
      _
    %68 = vst [vmem:[#allocation2] sm:$0xff] 0.0
    %69 = vst [vmem:[#allocation2 + $0x8] sm:$0xff] 0.0
    %70 = vst [vmem:[#allocation2 + $0x10] sm:$0x3] 0.0
    %71 = vst [vmem:[#allocation2 + $0x18] sm:$0xff] 0.0
    %72 = vst [vmem:[#allocation2 + $0x20] sm:$0xff] 0.0
    %73 = vst [vmem:[#allocation2 + $0x28] sm:$0x3] 0.0
    %74 = vst [vmem:[#allocation2 + $0x30] sm:$0xff] 0.0
    %75 = vst [vmem:[#allocation2 + $0x38] sm:$0xff] 0.0
    %76 = vst [vmem:[#allocation2 + $0x40] sm:$0x3] 0.0
    %77 = vst [vmem:[#allocation2 + $0x48] sm:$0xff] 0.0
    %78 = vst [vmem:[#allocation2 + $0x50] sm:$0xff] 0.0
    %79 = vst [vmem:[#allocation2 + $0x58] sm:$0x3] 0.0
    %80 = vst [vmem:[#allocation2 + $0x60] sm:$0xff] 0.0
    %81 = vst [vmem:[#allocation2 + $0x68] sm:$0xff] 0.0
    %82 = vst [vmem:[#allocation2 + $0x70] sm:$0x3] 0.0
    %83 = vst [vmem:[#allocation2 + $0x78] sm:$0xff] 0.0
    %84 = vst [vmem:[#allocation2 + $0x80] sm:$0xff] 0.0
    %85 = vst [vmem:[#allocation2 + $0x88] sm:$0x3] 0.0
    %86 = vst [vmem:[#allocation2 + $0x90] sm:$0xff] 0.0
    %87 = vst [vmem:[#allocation2 + $0x98] sm:$0xff] 0.0
    %88 = vst [vmem:[#allocation2 + $0xa0] sm:$0x3] 0.0
    %89 = vst [vmem:[#allocation2 + $0xa8] sm:$0xff] 0.0
    %90 = vst [vmem:[#allocation2 + $0xb0] sm:$0xff] 0.0
    %91 = vst [vmem:[#allocation2 + $0xb8] sm:$0x3] 0.0
    %92 = vst [vmem:[#allocation2 + $0xc0] sm:$0xff] 0.0
    %93 = vst [vmem:[#allocation2 + $0xc8] sm:$0xff] 0.0
    %94 = vst [vmem:[#allocation2 + $0xd0] sm:$0x3] 0.0
    %95 = vst [vmem:[#allocation2 + $0xd8] sm:$0xff] 0.0
    %96 = vst [vmem:[#allocation2 + $0xe0] sm:$0xff] 0.0
    %97 = vst [vmem:[#allocation2 + $0xe8] sm:$0x3] 0.0
    %98 = vst [vmem:[#allocation2 + $0xf0] sm:$0xff] 0.0
    %99 = vst [vmem:[#allocation2 + $0xf8] sm:$0xff] 0.0
    %100 = vst [vmem:[#allocation2 + $0x100] sm:$0x3] 0.0
    %101 = vst [vmem:[#allocation2 + $0x108] sm:$0xff] 0.0
    %102 = vst [vmem:[#allocation2 + $0x110] sm:$0xff] 0.0
    %103 = vst [vmem:[#allocation2 + $0x118] sm:$0x3] 0.0
    %104 = vst [vmem:[#allocation2 + $0x120] sm:$0xff] 0.0
    %105 = vst [vmem:[#allocation2 + $0x128] sm:$0xff] 0.0
    %106 = vst [vmem:[#allocation2 + $0x130] sm:$0x3] 0.0
    %107 = vst [vmem:[#allocation2 + $0x138] sm:$0xff] 0.0
    %108 = vst [vmem:[#allocation2 + $0x140] sm:$0xff] 0.0
    %109 = vst [vmem:[#allocation2 + $0x148] sm:$0x3] 0.0
    %110 = vst [vmem:[#allocation2 + $0x150] sm:$0xff] 0.0
    %111 = vst [vmem:[#allocation2 + $0x158] sm:$0xff] 0.0
    %112 = vst [vmem:[#allocation2 + $0x160] sm:$0x3] 0.0
    %113 = vst [vmem:[#allocation2 + $0x168] sm:$0xff] 0.0
    %114 = vst [vmem:[#allocation2 + $0x170] sm:$0xff] 0.0
    %115 = vst [vmem:[#allocation2 + $0x178] sm:$0x3] 0.0
    %116 = vst [vmem:[#allocation2 + $0x180] sm:$0xff] 0.0
    %117 = vst [vmem:[#allocation2 + $0x188] sm:$0xff] 0.0
    %118 = vst [vmem:[#allocation2 + $0x190] sm:$0x3] 0.0
    %119 = vst [vmem:[#allocation2 + $0x198] sm:$0xff] 0.0
    %120 = vst [vmem:[#allocation2 + $0x1a0] sm:$0xff] 0.0
    %121 = vst [vmem:[#allocation2 + $0x1a8] sm:$0x3] 0.0
    %122 = vst [vmem:[#allocation2 + $0x1b0] sm:$0xff] 0.0
    %123 = vst [vmem:[#allocation2 + $0x1b8] sm:$0xff] 0.0
    %124 = vst [vmem:[#allocation2 + $0x1c0] sm:$0x3] 0.0
    %125 = vst [vmem:[#allocation2 + $0x1c8] sm:$0xff] 0.0
    %126 = vst [vmem:[#allocation2 + $0x1d0] sm:$0xff] 0.0
    %127 = vst [vmem:[#allocation2 + $0x1d8] sm:$0x3] 0.0
    %128 = vst [vmem:[#allocation2 + $0x1e0] sm:$0xff] 0.0
    %129 = vst [vmem:[#allocation2 + $0x1e8] sm:$0xff] 0.0
    %130 = vst [vmem:[#allocation2 + $0x1f0] sm:$0x3] 0.0
    %131 = vst [vmem:[#allocation2 + $0x1f8] sm:$0xff] 0.0
    %132 = vst [vmem:[#allocation2 + $0x200] sm:$0xff] 0.0
    %133 = vst [vmem:[#allocation2 + $0x208] sm:$0x3] 0.0
    %134 = vst [vmem:[#allocation2 + $0x210] sm:$0xff] 0.0
    %135 = vst [vmem:[#allocation2 + $0x218] sm:$0xff] 0.0
    %136 = vst [vmem:[#allocation2 + $0x220] sm:$0x3] 0.0
    %137 = vst [vmem:[#allocation2 + $0x228] sm:$0xff] 0.0
    %138 = vst [vmem:[#allocation2 + $0x230] sm:$0xff] 0.0
    %139 = vst [vmem:[#allocation2 + $0x238] sm:$0x3] 0.0
    %140 = vst [vmem:[#allocation2 + $0x240] sm:$0xff] 0.0
    %141 = vst [vmem:[#allocation2 + $0x248] sm:$0xff] 0.0
    %142 = vst [vmem:[#allocation2 + $0x250] sm:$0x3] 0.0
    %143 = vst [vmem:[#allocation2 + $0x258] sm:$0xff] 0.0
    %144 = vst [vmem:[#allocation2 + $0x260] sm:$0xff] 0.0
    %145 = vst [vmem:[#allocation2 + $0x268] sm:$0x3] 0.0
    %146 = vst [vmem:[#allocation2 + $0x270] sm:$0xff] 0.0
    %147 = vst [vmem:[#allocation2 + $0x278] sm:$0xff] 0.0
    %148 = vst [vmem:[#allocation2 + $0x280] sm:$0x3] 0.0
    %149 = vst [vmem:[#allocation2 + $0x288] sm:$0xff] 0.0
    %150 = vst [vmem:[#allocation2 + $0x290] sm:$0xff] 0.0
    %151 = vst [vmem:[#allocation2 + $0x298] sm:$0x3] 0.0
    %152 = vst [vmem:[#allocation2 + $0x2a0] sm:$0xff] 0.0
    %153 = vst [vmem:[#allocation2 + $0x2a8] sm:$0xff] 0.0
    %154 = vst [vmem:[#allocation2 + $0x2b0] sm:$0x3] 0.0
    %155 = vst [vmem:[#allocation2 + $0x2b8] sm:$0xff] 0.0
    %156 = vst [vmem:[#allocation2 + $0x2c0] sm:$0xff] 0.0
    %157 = vst [vmem:[#allocation2 + $0x2c8] sm:$0x3] 0.0
    %158 = vst [vmem:[#allocation2 + $0x2d0] sm:$0xff] 0.0
    %159 = vst [vmem:[#allocation2 + $0x2d8] sm:$0xff] 0.0
    %160 = vst [vmem:[#allocation2 + $0x2e0] sm:$0x3] 0.0
    %161 = vst [vmem:[#allocation2 + $0x2e8] sm:$0xff] 0.0
    %162 = vst [vmem:[#allocation2 + $0x2f0] sm:$0xff] 0.0
    %163 = vst [vmem:[#allocation2 + $0x2f8] sm:$0x3] 0.0
    %164 = vst [vmem:[#allocation2 + $0x300] sm:$0xff] 0.0
    %165 = vst [vmem:[#allocation2 + $0x308] sm:$0xff] 0.0
    %166 = vst [vmem:[#allocation2 + $0x310] sm:$0x3] 0.0
    %167 = vst [vmem:[#allocation2 + $0x318] sm:$0xff] 0.0
    %168 = vst [vmem:[#allocation2 + $0x320] sm:$0xff] 0.0
    %169 = vst [vmem:[#allocation2 + $0x328] sm:$0x3] 0.0
    %170 = vst [vmem:[#allocation2 + $0x330] sm:$0xff] 0.0
    %171 = vst [vmem:[#allocation2 + $0x338] sm:$0xff] 0.0
    %172 = vst [vmem:[#allocation2 + $0x340] sm:$0x3] 0.0
    %173 = vst [vmem:[#allocation2 + $0x348] sm:$0xff] 0.0
    %174 = vst [vmem:[#allocation2 + $0x350] sm:$0xff] 0.0
    %175 = vst [vmem:[#allocation2 + $0x358] sm:$0x3] 0.0
    %v176 = vld [vmem:[#allocation3] sm:$0xff]
    %v177 = vld [vmem:[#allocation3 + $0x8] sm:$0xff]
    %v178 = vld [vmem:[#allocation3 + $0x10] sm:$0xff]
    %v179 = vld [vmem:[#allocation3 + $0x18] sm:$0xff]
    %v180 = vld [vmem:[#allocation3 + $0x20] sm:$0xff]
    %v181 = vld [vmem:[#allocation3 + $0x28] sm:$0xff]
    %v182 = vld [vmem:[#allocation3 + $0x30] sm:$0xff]
    %v183 = vld [vmem:[#allocation3 + $0x38] sm:$0xff]
    %v184 = vld [vmem:[#allocation3 + $0x40] sm:$0xff]
    %v185 = vld [vmem:[#allocation3 + $0x48] sm:$0xff]
    %v186 = vld [vmem:[#allocation3 + $0x50] sm:$0xff]
    %v187 = vld [vmem:[#allocation3 + $0x58] sm:$0xff]
    %v188 = vld [vmem:[#allocation3 + $0x60] sm:$0xff]
    %v189 = vld [vmem:[#allocation3 + $0x68] sm:$0xff]
    %v190 = vld [vmem:[#allocation3 + $0x70] sm:$0xff]
    %v191 = vld [vmem:[#allocation3 + $0x78] sm:$0xff]
    %v192 = vld [vmem:[#allocation3 + $0x80] sm:$0xff]
    %v193 = vld [vmem:[#allocation3 + $0x88] sm:$0xff]
    %v194 = vld [vmem:[#allocation3 + $0x90] sm:$0xff]
    %v195 = vld [vmem:[#allocation3 + $0x98] sm:$0xff]
    %v196 = vld [vmem:[#allocation3 + $0xa0] sm:$0xff]
    %v197 = vld [vmem:[#allocation3 + $0xa8] sm:$0xff]
    %v198 = vld [vmem:[#allocation3 + $0xb0] sm:$0xff]
    %v199 = vld [vmem:[#allocation3 + $0xb8] sm:$0xff]
    %v200 = vld [vmem:[#allocation3 + $0xc0] sm:$0xff]
    %v201 = vld [vmem:[#allocation3 + $0xc8] sm:$0xff]
    %v202 = vld [vmem:[#allocation3 + $0xd0] sm:$0xff]
    %v203 = vld [vmem:[#allocation3 + $0xd8] sm:$0xff]
    %v204 = vld [vmem:[#allocation3 + $0xe0] sm:$0xff]
    %v205 = vld [vmem:[#allocation3 + $0xe8] sm:$0xff]
    %v206 = vld [vmem:[#allocation3 + $0xf0] sm:$0xff]
    %v207 = vld [vmem:[#allocation3 + $0xf8] sm:$0xff]
    %v208 = vld [vmem:[#allocation3 + $0x100] sm:$0xff]
    %v209 = vld [vmem:[#allocation3 + $0x108] sm:$0xff]
    %v210 = vld [vmem:[#allocation3 + $0x110] sm:$0xff]
    %v211 = vld [vmem:[#allocation3 + $0x118] sm:$0xff]
    %v212 = vld [vmem:[#allocation3 + $0x120] sm:$0xff]
    %v213 = vld [vmem:[#allocation3 + $0x128] sm:$0xff]
    %v214 = vld [vmem:[#allocation3 + $0x130] sm:$0xff]
    %v215 = vld [vmem:[#allocation3 + $0x138] sm:$0xff]
    %v216 = vld [vmem:[#allocation3 + $0x140] sm:$0xff]
    %v217 = vld [vmem:[#allocation3 + $0x148] sm:$0xff]
    %v218 = vld [vmem:[#allocation3 + $0x150] sm:$0xff]
    %v219 = vld [vmem:[#allocation3 + $0x158] sm:$0xff]
    %v220 = vld [vmem:[#allocation3 + $0x160] sm:$0xff]
    %v221 = vld [vmem:[#allocation3 + $0x168] sm:$0xff]
    %v222 = vld [vmem:[#allocation3 + $0x170] sm:$0xff]
    %v223 = vld [vmem:[#allocation3 + $0x178] sm:$0xff]
    %v224 = vld [vmem:[#allocation3 + $0x180] sm:$0xff]
    %v225 = vld [vmem:[#allocation3 + $0x188] sm:$0xff]
    %v226 = vld [vmem:[#allocation3 + $0x190] sm:$0xff]
    %v227 = vld [vmem:[#allocation3 + $0x198] sm:$0xff]
    %v228 = vld [vmem:[#allocation3 + $0x1a0] sm:$0xff]
    %v229 = vld [vmem:[#allocation3 + $0x1a8] sm:$0xff]
    %v230 = vld [vmem:[#allocation3 + $0x1b0] sm:$0xff]
    %v231 = vld [vmem:[#allocation3 + $0x1b8] sm:$0xff]
    %v232 = vld [vmem:[#allocation3 + $0x1c0] sm:$0xff]
    %v233 = vld [vmem:[#allocation3 + $0x1c8] sm:$0xff]
    %v234 = vld [vmem:[#allocation3 + $0x1d0] sm:$0xff]
    %v235 = vld [vmem:[#allocation3 + $0x1d8] sm:$0xff]
    %v236 = vld [vmem:[#allocation3 + $0x1e0] sm:$0xff]
    %v237 = vld [vmem:[#allocation3 + $0x1e8] sm:$0xff]
    %v238 = vld [vmem:[#allocation3 + $0x1f0] sm:$0xff]
    %v239 = vld [vmem:[#allocation3 + $0x1f8] sm:$0xff]
    %s240 = scalar_lea.vmem [#allocation2], 24
    %241 = vst [vmem:[%s240 + $0x1] sm:$0xff] %v176
    %242 = vst [vmem:[%s240 + $0x9] sm:$0xff] %v177
    %243 = vst [vmem:[%s240 + $0x19] sm:$0xff] %v178
    %244 = vst [vmem:[%s240 + $0x21] sm:$0xff] %v179
    %245 = vst [vmem:[%s240 + $0x31] sm:$0xff] %v180
    %246 = vst [vmem:[%s240 + $0x39] sm:$0xff] %v181
    %247 = vst [vmem:[%s240 + $0x49] sm:$0xff] %v182
    %248 = vst [vmem:[%s240 + $0x51] sm:$0xff] %v183
    %249 = vst [vmem:[%s240 + $0x61] sm:$0xff] %v184
    %250 = vst [vmem:[%s240 + $0x69] sm:$0xff] %v185
    %251 = vst [vmem:[%s240 + $0x79] sm:$0xff] %v186
    %252 = vst [vmem:[%s240 + $0x81] sm:$0xff] %v187
    %253 = vst [vmem:[%s240 + $0x91] sm:$0xff] %v188
    %254 = vst [vmem:[%s240 + $0x99] sm:$0xff] %v189
    %255 = vst [vmem:[%s240 + $0xa9] sm:$0xff] %v190
    %256 = vst [vmem:[%s240 + $0xb1] sm:$0xff] %v191
    %257 = vst [vmem:[%s240 + $0xc1] sm:$0xff] %v192
    %258 = vst [vmem:[%s240 + $0xc9] sm:$0xff] %v193
    %259 = vst [vmem:[%s240 + $0xd9] sm:$0xff] %v194
    %260 = vst [vmem:[%s240 + $0xe1] sm:$0xff] %v195
    %261 = vst [vmem:[%s240 + $0xf1] sm:$0xff] %v196
    %262 = vst [vmem:[%s240 + $0xf9] sm:$0xff] %v197
    %263 = vst [vmem:[%s240 + $0x109] sm:$0xff] %v198
    %264 = vst [vmem:[%s240 + $0x111] sm:$0xff] %v199
    %265 = vst [vmem:[%s240 + $0x121] sm:$0xff] %v200
    %266 = vst [vmem:[%s240 + $0x129] sm:$0xff] %v201
    %267 = vst [vmem:[%s240 + $0x139] sm:$0xff] %v202
    %268 = vst [vmem:[%s240 + $0x141] sm:$0xff] %v203
    %269 = vst [vmem:[%s240 + $0x151] sm:$0xff] %v204
    %270 = vst [vmem:[%s240 + $0x159] sm:$0xff] %v205
    %271 = vst [vmem:[%s240 + $0x169] sm:$0xff] %v206
    %272 = vst [vmem:[%s240 + $0x171] sm:$0xff] %v207
    %273 = vst [vmem:[%s240 + $0x1b1] sm:$0xff] %v208
    %274 = vst [vmem:[%s240 + $0x1b9] sm:$0xff] %v209
    %275 = vst [vmem:[%s240 + $0x1c9] sm:$0xff] %v210
    %276 = vst [vmem:[%s240 + $0x1d1] sm:$0xff] %v211
    %277 = vst [vmem:[%s240 + $0x1e1] sm:$0xff] %v212
    %278 = vst [vmem:[%s240 + $0x1e9] sm:$0xff] %v213
    %279 = vst [vmem:[%s240 + $0x1f9] sm:$0xff] %v214
    %280 = vst [vmem:[%s240 + $0x201] sm:$0xff] %v215
    %281 = vst [vmem:[%s240 + $0x211] sm:$0xff] %v216
    %282 = vst [vmem:[%s240 + $0x219] sm:$0xff] %v217
    %283 = vst [vmem:[%s240 + $0x229] sm:$0xff] %v218
    %284 = vst [vmem:[%s240 + $0x231] sm:$0xff] %v219
    %285 = vst [vmem:[%s240 + $0x241] sm:$0xff] %v220
    %286 = vst [vmem:[%s240 + $0x249] sm:$0xff] %v221
    %287 = vst [vmem:[%s240 + $0x259] sm:$0xff] %v222
    %288 = vst [vmem:[%s240 + $0x261] sm:$0xff] %v223
    %289 = vst [vmem:[%s240 + $0x271] sm:$0xff] %v224
    %290 = vst [vmem:[%s240 + $0x279] sm:$0xff] %v225
    %291 = vst [vmem:[%s240 + $0x289] sm:$0xff] %v226
    %292 = vst [vmem:[%s240 + $0x291] sm:$0xff] %v227
    %293 = vst [vmem:[%s240 + $0x2a1] sm:$0xff] %v228
    %294 = vst [vmem:[%s240 + $0x2a9] sm:$0xff] %v229
    %295 = vst [vmem:[%s240 + $0x2b9] sm:$0xff] %v230
    %296 = vst [vmem:[%s240 + $0x2c1] sm:$0xff] %v231
    %297 = vst [vmem:[%s240 + $0x2d1] sm:$0xff] %v232
    %298 = vst [vmem:[%s240 + $0x2d9] sm:$0xff] %v233
    %299 = vst [vmem:[%s240 + $0x2e9] sm:$0xff] %v234
    %300 = vst [vmem:[%s240 + $0x2f1] sm:$0xff] %v235
    %301 = vst [vmem:[%s240 + $0x301] sm:$0xff] %v236
    %302 = vst [vmem:[%s240 + $0x309] sm:$0xff] %v237
    %303 = vst [vmem:[%s240 + $0x319] sm:$0xff] %v238
    %304 = vst [vmem:[%s240 + $0x321] sm:$0xff] %v239
    %v305 = vld [vmem:[#allocation2] sm:$0xff]
    %v306 = vld [vmem:[#allocation2 + $0x8] sm:$0xff]
    %v307 = vld [vmem:[#allocation2 + $0x18] sm:$0xff]
    %v308 = vld [vmem:[#allocation2 + $0x20] sm:$0xff]
    %v309 = vld [vmem:[#allocation2 + $0x30] sm:$0xff]
    %v310 = vld [vmem:[#allocation2 + $0x38] sm:$0xff]
    %v311 = vld [vmem:[#allocation2 + $0x48] sm:$0xff]
    %v312 = vld [vmem:[#allocation2 + $0x50] sm:$0xff]
    %v313 = vld [vmem:[#allocation2 + $0x60] sm:$0xff]
    %v314 = vld [vmem:[#allocation2 + $0x68] sm:$0xff]
    %v315 = vld [vmem:[#allocation2 + $0x78] sm:$0xff]
    %v316 = vld [vmem:[#allocation2 + $0x80] sm:$0xff]
    %v317 = vld [vmem:[#allocation2 + $0x90] sm:$0xff]
    %v318 = vld [vmem:[#allocation2 + $0x98] sm:$0xff]
    %v319 = vld [vmem:[#allocation2 + $0xa8] sm:$0xff]
    %v320 = vld [vmem:[#allocation2 + $0xb0] sm:$0xff]
    %v321 = vld [vmem:[#allocation2 + $0xc0] sm:$0xff]
    %v322 = vld [vmem:[#allocation2 + $0xc8] sm:$0xff]
    %v323 = vld [vmem:[#allocation2 + $0xd8] sm:$0xff]
    %v324 = vld [vmem:[#allocation2 + $0xe0] sm:$0xff]
    %v325 = vld [vmem:[#allocation2 + $0xf0] sm:$0xff]
    %v326 = vld [vmem:[#allocation2 + $0xf8] sm:$0xff]
    %v327 = vld [vmem:[#allocation2 + $0x108] sm:$0xff]
    %v328 = vld [vmem:[#allocation2 + $0x110] sm:$0xff]
    %v329 = vld [vmem:[#allocation2 + $0x120] sm:$0xff]
    %v330 = vld [vmem:[#allocation2 + $0x128] sm:$0xff]
    %v331 = vld [vmem:[#allocation2 + $0x138] sm:$0xff]
    %v332 = vld [vmem:[#allocation2 + $0x140] sm:$0xff]
    %v333 = vld [vmem:[#allocation2 + $0x150] sm:$0xff]
    %v334 = vld [vmem:[#allocation2 + $0x158] sm:$0xff]
    %v335 = vld [vmem:[#allocation2 + $0x168] sm:$0xff]
    %v336 = vld [vmem:[#allocation2 + $0x170] sm:$0xff]
    %v337 = vld [vmem:[#allocation2 + $0x1b0] sm:$0xff]
    %v338 = vld [vmem:[#allocation2 + $0x1b8] sm:$0xff]
    %v339 = vld [vmem:[#allocation2 + $0x1c8] sm:$0xff]
    %v340 = vld [vmem:[#allocation2 + $0x1d0] sm:$0xff]
    %v341 = vld [vmem:[#allocation2 + $0x1e0] sm:$0xff]
    %v342 = vld [vmem:[#allocation2 + $0x1e8] sm:$0xff]
    %v343 = vld [vmem:[#allocation2 + $0x1f8] sm:$0xff]
    %v344 = vld [vmem:[#allocation2 + $0x200] sm:$0xff]
    %v345 = vld [vmem:[#allocation2 + $0x210] sm:$0xff]
    %v346 = vld [vmem:[#allocation2 + $0x218] sm:$0xff]
    %v347 = vld [vmem:[#allocation2 + $0x228] sm:$0xff]
    %v348 = vld [vmem:[#allocation2 + $0x230] sm:$0xff]
    %v349 = vld [vmem:[#allocation2 + $0x240] sm:$0xff]
    %v350 = vld [vmem:[#allocation2 + $0x248] sm:$0xff]
    %v351 = vld [vmem:[#allocation2 + $0x258] sm:$0xff]
    %v352 = vld [vmem:[#allocation2 + $0x260] sm:$0xff]
    %v353 = vld [vmem:[#allocation2 + $0x270] sm:$0xff]
    %v354 = vld [vmem:[#allocation2 + $0x278] sm:$0xff]
    %v355 = vld [vmem:[#allocation2 + $0x288] sm:$0xff]
    %v356 = vld [vmem:[#allocation2 + $0x290] sm:$0xff]
    %v357 = vld [vmem:[#allocation2 + $0x2a0] sm:$0xff]
    %v358 = vld [vmem:[#allocation2 + $0x2a8] sm:$0xff]
    %v359 = vld [vmem:[#allocation2 + $0x2b8] sm:$0xff]
    %v360 = vld [vmem:[#allocation2 + $0x2c0] sm:$0xff]
    %v361 = vld [vmem:[#allocation2 + $0x2d0] sm:$0xff]
    %v362 = vld [vmem:[#allocation2 + $0x2d8] sm:$0xff]
    %v363 = vld [vmem:[#allocation2 + $0x2e8] sm:$0xff]
    %v364 = vld [vmem:[#allocation2 + $0x2f0] sm:$0xff]
    %v365 = vld [vmem:[#allocation2 + $0x300] sm:$0xff]
    %v366 = vld [vmem:[#allocation2 + $0x308] sm:$0xff]
    %v367 = vld [vmem:[#allocation2 + $0x318] sm:$0xff]
    %v368 = vld [vmem:[#allocation2 + $0x320] sm:$0xff]
    %v369 = vld [vmem:[#allocation2 + $0x1] sm:$0xff]
    %v370 = vld [vmem:[#allocation2 + $0x9] sm:$0xff]
    %v371 = vld [vmem:[#allocation2 + $0x19] sm:$0xff]
    %v372 = vld [vmem:[#allocation2 + $0x21] sm:$0xff]
    %v373 = vld [vmem:[#allocation2 + $0x31] sm:$0xff]
    %v374 = vld [vmem:[#allocation2 + $0x39] sm:$0xff]
    %v375 = vld [vmem:[#allocation2 + $0x49] sm:$0xff]
    %v376 = vld [vmem:[#allocation2 + $0x51] sm:$0xff]
    %v377 = vld [vmem:[#allocation2 + $0x61] sm:$0xff]
    %v378 = vld [vmem:[#allocation2 + $0x69] sm:$0xff]
    %v379 = vld [vmem:[#allocation2 + $0x79] sm:$0xff]
    %v380 = vld [vmem:[#allocation2 + $0x81] sm:$0xff]
    %v381 = vld [vmem:[#allocation2 + $0x91] sm:$0xff]
    %v382 = vld [vmem:[#allocation2 + $0x99] sm:$0xff]
    %v383 = vld [vmem:[#allocation2 + $0xa9] sm:$0xff]
    %v384 = vld [vmem:[#allocation2 + $0xb1] sm:$0xff]
    %v385 = vld [vmem:[#allocation2 + $0xc1] sm:$0xff]
    %v386 = vld [vmem:[#allocation2 + $0xc9] sm:$0xff]
    %v387 = vld [vmem:[#allocation2 + $0xd9] sm:$0xff]
    %v388 = vld [vmem:[#allocation2 + $0xe1] sm:$0xff]
    %v389 = vld [vmem:[#allocation2 + $0xf1] sm:$0xff]
    %v390 = vld [vmem:[#allocation2 + $0xf9] sm:$0xff]
    %v391 = vld [vmem:[#allocation2 + $0x109] sm:$0xff]
    %v392 = vld [vmem:[#allocation2 + $0x111] sm:$0xff]
    %v393 = vld [vmem:[#allocation2 + $0x121] sm:$0xff]
    %v394 = vld [vmem:[#allocation2 + $0x129] sm:$0xff]
    %v395 = vld [vmem:[#allocation2 + $0x139] sm:$0xff]
    %v396 = vld [vmem:[#allocation2 + $0x141] sm:$0xff]
    %v397 = vld [vmem:[#allocation2 + $0x151] sm:$0xff]
    %v398 = vld [vmem:[#allocation2 + $0x159] sm:$0xff]
    %v399 = vld [vmem:[#allocation2 + $0x169] sm:$0xff]
    %v400 = vld [vmem:[#allocation2 + $0x171] sm:$0xff]
    %v401 = vld [vmem:[#allocation2 + $0x1b1] sm:$0xff]
    %v402 = vld [vmem:[#allocation2 + $0x1b9] sm:$0xff]
    %v403 = vld [vmem:[#allocation2 + $0x1c9] sm:$0xff]
    %v404 = vld [vmem:[#allocation2 + $0x1d1] sm:$0xff]
    %v405 = vld [vmem:[#allocation2 + $0x1e1] sm:$0xff]
    %v406 = vld [vmem:[#allocation2 + $0x1e9] sm:$0xff]
    %v407 = vld [vmem:[#allocation2 + $0x1f9] sm:$0xff]
    %v408 = vld [vmem:[#allocation2 + $0x201] sm:$0xff]
    %v409 = vld [vmem:[#allocation2 + $0x211] sm:$0xff]
    %v410 = vld [vmem:[#allocation2 + $0x219] sm:$0xff]
    %v411 = vld [vmem:[#allocation2 + $0x229] sm:$0xff]
    %v412 = vld [vmem:[#allocation2 + $0x231] sm:$0xff]
    %v413 = vld [vmem:[#allocation2 + $0x241] sm:$0xff]
    %v414 = vld [vmem:[#allocation2 + $0x249] sm:$0xff]
    %v415 = vld [vmem:[#allocation2 + $0x259] sm:$0xff]
    %v416 = vld [vmem:[#allocation2 + $0x261] sm:$0xff]
    %v417 = vld [vmem:[#allocation2 + $0x271] sm:$0xff]
    %v418 = vld [vmem:[#allocation2 + $0x279] sm:$0xff]
    %v419 = vld [vmem:[#allocation2 + $0x289] sm:$0xff]
    %v420 = vld [vmem:[#allocation2 + $0x291] sm:$0xff]
    %v421 = vld [vmem:[#allocation2 + $0x2a1] sm:$0xff]
    %v422 = vld [vmem:[#allocation2 + $0x2a9] sm:$0xff]
    %v423 = vld [vmem:[#allocation2 + $0x2b9] sm:$0xff]
    %v424 = vld [vmem:[#allocation2 + $0x2c1] sm:$0xff]
    %v425 = vld [vmem:[#allocation2 + $0x2d1] sm:$0xff]
    %v426 = vld [vmem:[#allocation2 + $0x2d9] sm:$0xff]
    %v427 = vld [vmem:[#allocation2 + $0x2e9] sm:$0xff]
    %v428 = vld [vmem:[#allocation2 + $0x2f1] sm:$0xff]
    %v429 = vld [vmem:[#allocation2 + $0x301] sm:$0xff]
    %v430 = vld [vmem:[#allocation2 + $0x309] sm:$0xff]
    %v431 = vld [vmem:[#allocation2 + $0x319] sm:$0xff]
    %v432 = vld [vmem:[#allocation2 + $0x321] sm:$0xff]
    %v433 = vld [vmem:[#allocation2 + $0x2] sm:$0xff]
    %v434 = vld [vmem:[#allocation2 + $0xa] sm:$0xff]
    %v435 = vld [vmem:[#allocation2 + $0x1a] sm:$0xff]
    %v436 = vld [vmem:[#allocation2 + $0x22] sm:$0xff]
    %v437 = vld [vmem:[#allocation2 + $0x32] sm:$0xff]
    %v438 = vld [vmem:[#allocation2 + $0x3a] sm:$0xff]
    %v439 = vld [vmem:[#allocation2 + $0x4a] sm:$0xff]
    %v440 = vld [vmem:[#allocation2 + $0x52] sm:$0xff]
    %v441 = vld [vmem:[#allocation2 + $0x62] sm:$0xff]
    %v442 = vld [vmem:[#allocation2 + $0x6a] sm:$0xff]
    %v443 = vld [vmem:[#allocation2 + $0x7a] sm:$0xff]
    %v444 = vld [vmem:[#allocation2 + $0x82] sm:$0xff]
    %v445 = vld [vmem:[#allocation2 + $0x92] sm:$0xff]
    %v446 = vld [vmem:[#allocation2 + $0x9a] sm:$0xff]
    %v447 = vld [vmem:[#allocation2 + $0xaa] sm:$0xff]
    %v448 = vld [vmem:[#allocation2 + $0xb2] sm:$0xff]
    %v449 = vld [vmem:[#allocation2 + $0xc2] sm:$0xff]
    %v450 = vld [vmem:[#allocation2 + $0xca] sm:$0xff]
    %v451 = vld [vmem:[#allocation2 + $0xda] sm:$0xff]
    %v452 = vld [vmem:[#allocation2 + $0xe2] sm:$0xff]
    %v453 = vld [vmem:[#allocation2 + $0xf2] sm:$0xff]
    %v454 = vld [vmem:[#allocation2 + $0xfa] sm:$0xff]
    %v455 = vld [vmem:[#allocation2 + $0x10a] sm:$0xff]
    %v456 = vld [vmem:[#allocation2 + $0x112] sm:$0xff]
    %v457 = vld [vmem:[#allocation2 + $0x122] sm:$0xff]
    %v458 = vld [vmem:[#allocation2 + $0x12a] sm:$0xff]
    %v459 = vld [vmem:[#allocation2 + $0x13a] sm:$0xff]
    %v460 = vld [vmem:[#allocation2 + $0x142] sm:$0xff]
    %v461 = vld [vmem:[#allocation2 + $0x152] sm:$0xff]
    %v462 = vld [vmem:[#allocation2 + $0x15a] sm:$0xff]
    %v463 = vld [vmem:[#allocation2 + $0x16a] sm:$0xff]
    %v464 = vld [vmem:[#allocation2 + $0x172] sm:$0xff]
    %v465 = vld [vmem:[#allocation2 + $0x1b2] sm:$0xff]
    %v466 = vld [vmem:[#allocation2 + $0x1ba] sm:$0xff]
    %v467 = vld [vmem:[#allocation2 + $0x1ca] sm:$0xff]
    %v468 = vld [vmem:[#allocation2 + $0x1d2] sm:$0xff]
    %v469 = vld [vmem:[#allocation2 + $0x1e2] sm:$0xff]
    %v470 = vld [vmem:[#allocation2 + $0x1ea] sm:$0xff]
    %v471 = vld [vmem:[#allocation2 + $0x1fa] sm:$0xff]
    %v472 = vld [vmem:[#allocation2 + $0x202] sm:$0xff]
    %v473 = vld [vmem:[#allocation2 + $0x212] sm:$0xff]
    %v474 = vld [vmem:[#allocation2 + $0x21a] sm:$0xff]
    %v475 = vld [vmem:[#allocation2 + $0x22a] sm:$0xff]
    %v476 = vld [vmem:[#allocation2 + $0x232] sm:$0xff]
    %v477 = vld [vmem:[#allocation2 + $0x242] sm:$0xff]
    %v478 = vld [vmem:[#allocation2 + $0x24a] sm:$0xff]
    %v479 = vld [vmem:[#allocation2 + $0x25a] sm:$0xff]
    %v480 = vld [vmem:[#allocation2 + $0x262] sm:$0xff]
    %v481 = vld [vmem:[#allocation2 + $0x272] sm:$0xff]
    %v482 = vld [vmem:[#allocation2 + $0x27a] sm:$0xff]
    %v483 = vld [vmem:[#allocation2 + $0x28a] sm:$0xff]
    %v484 = vld [vmem:[#allocation2 + $0x292] sm:$0xff]
    %v485 = vld [vmem:[#allocation2 + $0x2a2] sm:$0xff]
    %v486 = vld [vmem:[#allocation2 + $0x2aa] sm:$0xff]
    %v487 = vld [vmem:[#allocation2 + $0x2ba] sm:$0xff]
    %v488 = vld [vmem:[#allocation2 + $0x2c2] sm:$0xff]
    %v489 = vld [vmem:[#allocation2 + $0x2d2] sm:$0xff]
    %v490 = vld [vmem:[#allocation2 + $0x2da] sm:$0xff]
    %v491 = vld [vmem:[#allocation2 + $0x2ea] sm:$0xff]
    %v492 = vld [vmem:[#allocation2 + $0x2f2] sm:$0xff]
    %v493 = vld [vmem:[#allocation2 + $0x302] sm:$0xff]
    %v494 = vld [vmem:[#allocation2 + $0x30a] sm:$0xff]
    %v495 = vld [vmem:[#allocation2 + $0x31a] sm:$0xff]
    %v496 = vld [vmem:[#allocation2 + $0x322] sm:$0xff]
    %v497 = vld [vmem:[%s240] sm:$0xff]
    %v498 = vld [vmem:[%s240 + $0x8] sm:$0xff]
    %v499 = vld [vmem:[%s240 + $0x18] sm:$0xff]
    %v500 = vld [vmem:[%s240 + $0x20] sm:$0xff]
    %v501 = vld [vmem:[%s240 + $0x30] sm:$0xff]
    %v502 = vld [vmem:[%s240 + $0x38] sm:$0xff]
    %v503 = vld [vmem:[%s240 + $0x48] sm:$0xff]
    %v504 = vld [vmem:[%s240 + $0x50] sm:$0xff]
    %v505 = vld [vmem:[%s240 + $0x60] sm:$0xff]
    %v506 = vld [vmem:[%s240 + $0x68] sm:$0xff]
    %v507 = vld [vmem:[%s240 + $0x78] sm:$0xff]
    %v508 = vld [vmem:[%s240 + $0x80] sm:$0xff]
    %v509 = vld [vmem:[%s240 + $0x90] sm:$0xff]
    %v510 = vld [vmem:[%s240 + $0x98] sm:$0xff]
    %v511 = vld [vmem:[%s240 + $0xa8] sm:$0xff]
    %v512 = vld [vmem:[%s240 + $0xb0] sm:$0xff]
    %v513 = vld [vmem:[%s240 + $0xc0] sm:$0xff]
    %v514 = vld [vmem:[%s240 + $0xc8] sm:$0xff]
    %v515 = vld [vmem:[%s240 + $0xd8] sm:$0xff]
    %v516 = vld [vmem:[%s240 + $0xe0] sm:$0xff]
    %v517 = vld [vmem:[%s240 + $0xf0] sm:$0xff]
    %v518 = vld [vmem:[%s240 + $0xf8] sm:$0xff]
    %v519 = vld [vmem:[%s240 + $0x108] sm:$0xff]
    %v520 = vld [vmem:[%s240 + $0x110] sm:$0xff]
    %v521 = vld [vmem:[%s240 + $0x120] sm:$0xff]
    %v522 = vld [vmem:[%s240 + $0x128] sm:$0xff]
    %v523 = vld [vmem:[%s240 + $0x138] sm:$0xff]
    %v524 = vld [vmem:[%s240 + $0x140] sm:$0xff]
    %v525 = vld [vmem:[%s240 + $0x150] sm:$0xff]
    %v526 = vld [vmem:[%s240 + $0x158] sm:$0xff]
    %v527 = vld [vmem:[%s240 + $0x168] sm:$0xff]
    %v528 = vld [vmem:[%s240 + $0x170] sm:$0xff]
    %v529 = vld [vmem:[%s240 + $0x1b0] sm:$0xff]
    %v530 = vld [vmem:[%s240 + $0x1b8] sm:$0xff]
    %v531 = vld [vmem:[%s240 + $0x1c8] sm:$0xff]
    %v532 = vld [vmem:[%s240 + $0x1d0] sm:$0xff]
    %v533 = vld [vmem:[%s240 + $0x1e0] sm:$0xff]
    %v534 = vld [vmem:[%s240 + $0x1e8] sm:$0xff]
    %v535 = vld [vmem:[%s240 + $0x1f8] sm:$0xff]
    %v536 = vld [vmem:[%s240 + $0x200] sm:$0xff]
    %v537 = vld [vmem:[%s240 + $0x210] sm:$0xff]
    %v538 = vld [vmem:[%s240 + $0x218] sm:$0xff]
    %v539 = vld [vmem:[%s240 + $0x228] sm:$0xff]
    %v540 = vld [vmem:[%s240 + $0x230] sm:$0xff]
    %v541 = vld [vmem:[%s240 + $0x240] sm:$0xff]
    %v542 = vld [vmem:[%s240 + $0x248] sm:$0xff]
    %v543 = vld [vmem:[%s240 + $0x258] sm:$0xff]
    %v544 = vld [vmem:[%s240 + $0x260] sm:$0xff]
    %v545 = vld [vmem:[%s240 + $0x270] sm:$0xff]
    %v546 = vld [vmem:[%s240 + $0x278] sm:$0xff]
    %v547 = vld [vmem:[%s240 + $0x288] sm:$0xff]
    %v548 = vld [vmem:[%s240 + $0x290] sm:$0xff]
    %v549 = vld [vmem:[%s240 + $0x2a0] sm:$0xff]
    %v550 = vld [vmem:[%s240 + $0x2a8] sm:$0xff]
    %v551 = vld [vmem:[%s240 + $0x2b8] sm:$0xff]
    %v552 = vld [vmem:[%s240 + $0x2c0] sm:$0xff]
    %v553 = vld [vmem:[%s240 + $0x2d0] sm:$0xff]
    %v554 = vld [vmem:[%s240 + $0x2d8] sm:$0xff]
    %v555 = vld [vmem:[%s240 + $0x2e8] sm:$0xff]
    %v556 = vld [vmem:[%s240 + $0x2f0] sm:$0xff]
    %v557 = vld [vmem:[%s240 + $0x300] sm:$0xff]
    %v558 = vld [vmem:[%s240 + $0x308] sm:$0xff]
    %v559 = vld [vmem:[%s240 + $0x318] sm:$0xff]
    %v560 = vld [vmem:[%s240 + $0x320] sm:$0xff]
    %v561 = vld [vmem:[%s240 + $0x1] sm:$0xff]
    %v562 = vld [vmem:[%s240 + $0x9] sm:$0xff]
    %v563 = vld [vmem:[%s240 + $0x19] sm:$0xff]
    %v564 = vld [vmem:[%s240 + $0x21] sm:$0xff]
    %v565 = vld [vmem:[%s240 + $0x31] sm:$0xff]
    %v566 = vld [vmem:[%s240 + $0x39] sm:$0xff]
    %v567 = vld [vmem:[%s240 + $0x49] sm:$0xff]
    %v568 = vld [vmem:[%s240 + $0x51] sm:$0xff]
    %v569 = vld [vmem:[%s240 + $0x61] sm:$0xff]
    %v570 = vld [vmem:[%s240 + $0x69] sm:$0xff]
    %v571 = vld [vmem:[%s240 + $0x79] sm:$0xff]
    %v572 = vld [vmem:[%s240 + $0x81] sm:$0xff]
    %v573 = vld [vmem:[%s240 + $0x91] sm:$0xff]
    %v574 = vld [vmem:[%s240 + $0x99] sm:$0xff]
    %v575 = vld [vmem:[%s240 + $0xa9] sm:$0xff]
    %v576 = vld [vmem:[%s240 + $0xb1] sm:$0xff]
    %v577 = vld [vmem:[%s240 + $0xc1] sm:$0xff]
    %v578 = vld [vmem:[%s240 + $0xc9] sm:$0xff]
    %v579 = vld [vmem:[%s240 + $0xd9] sm:$0xff]
    %v580 = vld [vmem:[%s240 + $0xe1] sm:$0xff]
    %v581 = vld [vmem:[%s240 + $0xf1] sm:$0xff]
    %v582 = vld [vmem:[%s240 + $0xf9] sm:$0xff]
    %v583 = vld [vmem:[%s240 + $0x109] sm:$0xff]
    %v584 = vld [vmem:[%s240 + $0x111] sm:$0xff]
    %v585 = vld [vmem:[%s240 + $0x121] sm:$0xff]
    %v586 = vld [vmem:[%s240 + $0x129] sm:$0xff]
    %v587 = vld [vmem:[%s240 + $0x139] sm:$0xff]
    %v588 = vld [vmem:[%s240 + $0x141] sm:$0xff]
    %v589 = vld [vmem:[%s240 + $0x151] sm:$0xff]
    %v590 = vld [vmem:[%s240 + $0x159] sm:$0xff]
    %v591 = vld [vmem:[%s240 + $0x169] sm:$0xff]
    %v592 = vld [vmem:[%s240 + $0x171] sm:$0xff]
    %v593 = vld [vmem:[%s240 + $0x1b1] sm:$0xff]
    %v594 = vld [vmem:[%s240 + $0x1b9] sm:$0xff]
    %v595 = vld [vmem:[%s240 + $0x1c9] sm:$0xff]
    %v596 = vld [vmem:[%s240 + $0x1d1] sm:$0xff]
    %v597 = vld [vmem:[%s240 + $0x1e1] sm:$0xff]
    %v598 = vld [vmem:[%s240 + $0x1e9] sm:$0xff]
    %v599 = vld [vmem:[%s240 + $0x1f9] sm:$0xff]
    %v600 = vld [vmem:[%s240 + $0x201] sm:$0xff]
    %v601 = vld [vmem:[%s240 + $0x211] sm:$0xff]
    %v602 = vld [vmem:[%s240 + $0x219] sm:$0xff]
    %v603 = vld [vmem:[%s240 + $0x229] sm:$0xff]
    %v604 = vld [vmem:[%s240 + $0x231] sm:$0xff]
    %v605 = vld [vmem:[%s240 + $0x241] sm:$0xff]
    %v606 = vld [vmem:[%s240 + $0x249] sm:$0xff]
    %v607 = vld [vmem:[%s240 + $0x259] sm:$0xff]
    %v608 = vld [vmem:[%s240 + $0x261] sm:$0xff]
    %v609 = vld [vmem:[%s240 + $0x271] sm:$0xff]
    %v610 = vld [vmem:[%s240 + $0x279] sm:$0xff]
    %v611 = vld [vmem:[%s240 + $0x289] sm:$0xff]
    %v612 = vld [vmem:[%s240 + $0x291] sm:$0xff]
    %v613 = vld [vmem:[%s240 + $0x2a1] sm:$0xff]
    %v614 = vld [vmem:[%s240 + $0x2a9] sm:$0xff]
    %v615 = vld [vmem:[%s240 + $0x2b9] sm:$0xff]
    %v616 = vld [vmem:[%s240 + $0x2c1] sm:$0xff]
    %v617 = vld [vmem:[%s240 + $0x2d1] sm:$0xff]
    %v618 = vld [vmem:[%s240 + $0x2d9] sm:$0xff]
    %v619 = vld [vmem:[%s240 + $0x2e9] sm:$0xff]
    %v620 = vld [vmem:[%s240 + $0x2f1] sm:$0xff]
    %v621 = vld [vmem:[%s240 + $0x301] sm:$0xff]
    %v622 = vld [vmem:[%s240 + $0x309] sm:$0xff]
    %v623 = vld [vmem:[%s240 + $0x319] sm:$0xff]
    %v624 = vld [vmem:[%s240 + $0x321] sm:$0xff]
    %v625 = vld [vmem:[%s240 + $0x2] sm:$0xff]
    %v626 = vld [vmem:[%s240 + $0xa] sm:$0xff]
    %v627 = vld [vmem:[%s240 + $0x1a] sm:$0xff]
    %v628 = vld [vmem:[%s240 + $0x22] sm:$0xff]
    %v629 = vld [vmem:[%s240 + $0x32] sm:$0xff]
    %v630 = vld [vmem:[%s240 + $0x3a] sm:$0xff]
    %v631 = vld [vmem:[%s240 + $0x4a] sm:$0xff]
    %v632 = vld [vmem:[%s240 + $0x52] sm:$0xff]
    %v633 = vld [vmem:[%s240 + $0x62] sm:$0xff]
    %v634 = vld [vmem:[%s240 + $0x6a] sm:$0xff]
    %v635 = vld [vmem:[%s240 + $0x7a] sm:$0xff]
    %v636 = vld [vmem:[%s240 + $0x82] sm:$0xff]
    %v637 = vld [vmem:[%s240 + $0x92] sm:$0xff]
    %v638 = vld [vmem:[%s240 + $0x9a] sm:$0xff]
    %v639 = vld [vmem:[%s240 + $0xaa] sm:$0xff]
    %v640 = vld [vmem:[%s240 + $0xb2] sm:$0xff]
    %v641 = vld [vmem:[%s240 + $0xc2] sm:$0xff]
    %v642 = vld [vmem:[%s240 + $0xca] sm:$0xff]
    %v643 = vld [vmem:[%s240 + $0xda] sm:$0xff]
    %v644 = vld [vmem:[%s240 + $0xe2] sm:$0xff]
    %v645 = vld [vmem:[%s240 + $0xf2] sm:$0xff]
    %v646 = vld [vmem:[%s240 + $0xfa] sm:$0xff]
    %v647 = vld [vmem:[%s240 + $0x10a] sm:$0xff]
    %v648 = vld [vmem:[%s240 + $0x112] sm:$0xff]
    %v649 = vld [vmem:[%s240 + $0x122] sm:$0xff]
    %v650 = vld [vmem:[%s240 + $0x12a] sm:$0xff]
    %v651 = vld [vmem:[%s240 + $0x13a] sm:$0xff]
    %v652 = vld [vmem:[%s240 + $0x142] sm:$0xff]
    %v653 = vld [vmem:[%s240 + $0x152] sm:$0xff]
    %v654 = vld [vmem:[%s240 + $0x15a] sm:$0xff]
    %v655 = vld [vmem:[%s240 + $0x16a] sm:$0xff]
    %v656 = vld [vmem:[%s240 + $0x172] sm:$0xff]
    %v657 = vld [vmem:[%s240 + $0x1b2] sm:$0xff]
    %v658 = vld [vmem:[%s240 + $0x1ba] sm:$0xff]
    %v659 = vld [vmem:[%s240 + $0x1ca] sm:$0xff]
    %v660 = vld [vmem:[%s240 + $0x1d2] sm:$0xff]
    %v661 = vld [vmem:[%s240 + $0x1e2] sm:$0xff]
    %v662 = vld [vmem:[%s240 + $0x1ea] sm:$0xff]
    %v663 = vld [vmem:[%s240 + $0x1fa] sm:$0xff]
    %v664 = vld [vmem:[%s240 + $0x202] sm:$0xff]
    %v665 = vld [vmem:[%s240 + $0x212] sm:$0xff]
    %v666 = vld [vmem:[%s240 + $0x21a] sm:$0xff]
    %v667 = vld [vmem:[%s240 + $0x22a] sm:$0xff]
    %v668 = vld [vmem:[%s240 + $0x232] sm:$0xff]
    %v669 = vld [vmem:[%s240 + $0x242] sm:$0xff]
    %v670 = vld [vmem:[%s240 + $0x24a] sm:$0xff]
    %v671 = vld [vmem:[%s240 + $0x25a] sm:$0xff]
    %v672 = vld [vmem:[%s240 + $0x262] sm:$0xff]
    %v673 = vld [vmem:[%s240 + $0x272] sm:$0xff]
    %v674 = vld [vmem:[%s240 + $0x27a] sm:$0xff]
    %v675 = vld [vmem:[%s240 + $0x28a] sm:$0xff]
    %v676 = vld [vmem:[%s240 + $0x292] sm:$0xff]
    %v677 = vld [vmem:[%s240 + $0x2a2] sm:$0xff]
    %v678 = vld [vmem:[%s240 + $0x2aa] sm:$0xff]
    %v679 = vld [vmem:[%s240 + $0x2ba] sm:$0xff]
    %v680 = vld [vmem:[%s240 + $0x2c2] sm:$0xff]
    %v681 = vld [vmem:[%s240 + $0x2d2] sm:$0xff]
    %v682 = vld [vmem:[%s240 + $0x2da] sm:$0xff]
    %v683 = vld [vmem:[%s240 + $0x2ea] sm:$0xff]
    %v684 = vld [vmem:[%s240 + $0x2f2] sm:$0xff]
    %v685 = vld [vmem:[%s240 + $0x302] sm:$0xff]
    %v686 = vld [vmem:[%s240 + $0x30a] sm:$0xff]
    %v687 = vld [vmem:[%s240 + $0x31a] sm:$0xff]
    %v688 = vld [vmem:[%s240 + $0x322] sm:$0xff]
    %s689 = scalar_lea.vmem [#allocation2], 48
    %v690 = vld [vmem:[%s689] sm:$0xff]
    %v691 = vld [vmem:[%s689 + $0x8] sm:$0xff]
    %v692 = vld [vmem:[%s689 + $0x18] sm:$0xff]
    %v693 = vld [vmem:[%s689 + $0x20] sm:$0xff]
    %v694 = vld [vmem:[%s689 + $0x30] sm:$0xff]
    %v695 = vld [vmem:[%s689 + $0x38] sm:$0xff]
    %v696 = vld [vmem:[%s689 + $0x48] sm:$0xff]
    %v697 = vld [vmem:[%s689 + $0x50] sm:$0xff]
    %v698 = vld [vmem:[%s689 + $0x60] sm:$0xff]
    %v699 = vld [vmem:[%s689 + $0x68] sm:$0xff]
    %v700 = vld [vmem:[%s689 + $0x78] sm:$0xff]
    %v701 = vld [vmem:[%s689 + $0x80] sm:$0xff]
    %v702 = vld [vmem:[%s689 + $0x90] sm:$0xff]
    %v703 = vld [vmem:[%s689 + $0x98] sm:$0xff]
    %v704 = vld [vmem:[%s689 + $0xa8] sm:$0xff]
    %v705 = vld [vmem:[%s689 + $0xb0] sm:$0xff]
    %v706 = vld [vmem:[%s689 + $0xc0] sm:$0xff]
    %v707 = vld [vmem:[%s689 + $0xc8] sm:$0xff]
    %v708 = vld [vmem:[%s689 + $0xd8] sm:$0xff]
    %v709 = vld [vmem:[%s689 + $0xe0] sm:$0xff]
    %v710 = vld [vmem:[%s689 + $0xf0] sm:$0xff]
    %v711 = vld [vmem:[%s689 + $0xf8] sm:$0xff]
    %v712 = vld [vmem:[%s689 + $0x108] sm:$0xff]
    %v713 = vld [vmem:[%s689 + $0x110] sm:$0xff]
    %v714 = vld [vmem:[%s689 + $0x120] sm:$0xff]
    %v715 = vld [vmem:[%s689 + $0x128] sm:$0xff]
    %v716 = vld [vmem:[%s689 + $0x138] sm:$0xff]
    %v717 = vld [vmem:[%s689 + $0x140] sm:$0xff]
    %v718 = vld [vmem:[%s689 + $0x150] sm:$0xff]
    %v719 = vld [vmem:[%s689 + $0x158] sm:$0xff]
    %v720 = vld [vmem:[%s689 + $0x168] sm:$0xff]
    %v721 = vld [vmem:[%s689 + $0x170] sm:$0xff]
    %v722 = vld [vmem:[%s689 + $0x1b0] sm:$0xff]
    %v723 = vld [vmem:[%s689 + $0x1b8] sm:$0xff]
    %v724 = vld [vmem:[%s689 + $0x1c8] sm:$0xff]
    %v725 = vld [vmem:[%s689 + $0x1d0] sm:$0xff]
    %v726 = vld [vmem:[%s689 + $0x1e0] sm:$0xff]
    %v727 = vld [vmem:[%s689 + $0x1e8] sm:$0xff]
    %v728 = vld [vmem:[%s689 + $0x1f8] sm:$0xff]
    %v729 = vld [vmem:[%s689 + $0x200] sm:$0xff]
    %v730 = vld [vmem:[%s689 + $0x210] sm:$0xff]
    %v731 = vld [vmem:[%s689 + $0x218] sm:$0xff]
    %v732 = vld [vmem:[%s689 + $0x228] sm:$0xff]
    %v733 = vld [vmem:[%s689 + $0x230] sm:$0xff]
    %v734 = vld [vmem:[%s689 + $0x240] sm:$0xff]
    %v735 = vld [vmem:[%s689 + $0x248] sm:$0xff]
    %v736 = vld [vmem:[%s689 + $0x258] sm:$0xff]
    %v737 = vld [vmem:[%s689 + $0x260] sm:$0xff]
    %v738 = vld [vmem:[%s689 + $0x270] sm:$0xff]
    %v739 = vld [vmem:[%s689 + $0x278] sm:$0xff]
    %v740 = vld [vmem:[%s689 + $0x288] sm:$0xff]
    %v741 = vld [vmem:[%s689 + $0x290] sm:$0xff]
    %v742 = vld [vmem:[%s689 + $0x2a0] sm:$0xff]
    %v743 = vld [vmem:[%s689 + $0x2a8] sm:$0xff]
    %v744 = vld [vmem:[%s689 + $0x2b8] sm:$0xff]
    %v745 = vld [vmem:[%s689 + $0x2c0] sm:$0xff]
    %v746 = vld [vmem:[%s689 + $0x2d0] sm:$0xff]
    %v747 = vld [vmem:[%s689 + $0x2d8] sm:$0xff]
    %v748 = vld [vmem:[%s689 + $0x2e8] sm:$0xff]
    %v749 = vld [vmem:[%s689 + $0x2f0] sm:$0xff]
    %v750 = vld [vmem:[%s689 + $0x300] sm:$0xff]
    %v751 = vld [vmem:[%s689 + $0x308] sm:$0xff]
    %v752 = vld [vmem:[%s689 + $0x318] sm:$0xff]
    %v753 = vld [vmem:[%s689 + $0x320] sm:$0xff]
    %v754 = vld [vmem:[%s689 + $0x1] sm:$0xff]
    %v755 = vld [vmem:[%s689 + $0x9] sm:$0xff]
    %v756 = vld [vmem:[%s689 + $0x19] sm:$0xff]
    %v757 = vld [vmem:[%s689 + $0x21] sm:$0xff]
    %v758 = vld [vmem:[%s689 + $0x31] sm:$0xff]
    %v759 = vld [vmem:[%s689 + $0x39] sm:$0xff]
    %v760 = vld [vmem:[%s689 + $0x49] sm:$0xff]
    %v761 = vld [vmem:[%s689 + $0x51] sm:$0xff]
    %v762 = vld [vmem:[%s689 + $0x61] sm:$0xff]
    %v763 = vld [vmem:[%s689 + $0x69] sm:$0xff]
    %v764 = vld [vmem:[%s689 + $0x79] sm:$0xff]
    %v765 = vld [vmem:[%s689 + $0x81] sm:$0xff]
    %v766 = vld [vmem:[%s689 + $0x91] sm:$0xff]
    %v767 = vld [vmem:[%s689 + $0x99] sm:$0xff]
    %v768 = vld [vmem:[%s689 + $0xa9] sm:$0xff]
    %v769 = vld [vmem:[%s689 + $0xb1] sm:$0xff]
    %v770 = vld [vmem:[%s689 + $0xc1] sm:$0xff]
    %v771 = vld [vmem:[%s689 + $0xc9] sm:$0xff]
    %v772 = vld [vmem:[%s689 + $0xd9] sm:$0xff]
    %v773 = vld [vmem:[%s689 + $0xe1] sm:$0xff]
    %v774 = vld [vmem:[%s689 + $0xf1] sm:$0xff]
    %v775 = vld [vmem:[%s689 + $0xf9] sm:$0xff]
    %v776 = vld [vmem:[%s689 + $0x109] sm:$0xff]
    %v777 = vld [vmem:[%s689 + $0x111] sm:$0xff]
    %v778 = vld [vmem:[%s689 + $0x121] sm:$0xff]
    %v779 = vld [vmem:[%s689 + $0x129] sm:$0xff]
    %v780 = vld [vmem:[%s689 + $0x139] sm:$0xff]
    %v781 = vld [vmem:[%s689 + $0x141] sm:$0xff]
    %v782 = vld [vmem:[%s689 + $0x151] sm:$0xff]
    %v783 = vld [vmem:[%s689 + $0x159] sm:$0xff]
    %v784 = vld [vmem:[%s689 + $0x169] sm:$0xff]
    %v785 = vld [vmem:[%s689 + $0x171] sm:$0xff]
    %v786 = vld [vmem:[%s689 + $0x1b1] sm:$0xff]
    %v787 = vld [vmem:[%s689 + $0x1b9] sm:$0xff]
    %v788 = vld [vmem:[%s689 + $0x1c9] sm:$0xff]
    %v789 = vld [vmem:[%s689 + $0x1d1] sm:$0xff]
    %v790 = vld [vmem:[%s689 + $0x1e1] sm:$0xff]
    %v791 = vld [vmem:[%s689 + $0x1e9] sm:$0xff]
    %v792 = vld [vmem:[%s689 + $0x1f9] sm:$0xff]
    %v793 = vld [vmem:[%s689 + $0x201] sm:$0xff]
    %v794 = vld [vmem:[%s689 + $0x211] sm:$0xff]
    %v795 = vld [vmem:[%s689 + $0x219] sm:$0xff]
    %v796 = vld [vmem:[%s689 + $0x229] sm:$0xff]
    %v797 = vld [vmem:[%s689 + $0x231] sm:$0xff]
    %v798 = vld [vmem:[%s689 + $0x241] sm:$0xff]
    %v799 = vld [vmem:[%s689 + $0x249] sm:$0xff]
    %v800 = vld [vmem:[%s689 + $0x259] sm:$0xff]
    %v801 = vld [vmem:[%s689 + $0x261] sm:$0xff]
    %v802 = vld [vmem:[%s689 + $0x271] sm:$0xff]
    %v803 = vld [vmem:[%s689 + $0x279] sm:$0xff]
    %v804 = vld [vmem:[%s689 + $0x289] sm:$0xff]
    %v805 = vld [vmem:[%s689 + $0x291] sm:$0xff]
    %v806 = vld [vmem:[%s689 + $0x2a1] sm:$0xff]
    %v807 = vld [vmem:[%s689 + $0x2a9] sm:$0xff]
    %v808 = vld [vmem:[%s689 + $0x2b9] sm:$0xff]
    %v809 = vld [vmem:[%s689 + $0x2c1] sm:$0xff]
    %v810 = vld [vmem:[%s689 + $0x2d1] sm:$0xff]
    %v811 = vld [vmem:[%s689 + $0x2d9] sm:$0xff]
    %v812 = vld [vmem:[%s689 + $0x2e9] sm:$0xff]
    %v813 = vld [vmem:[%s689 + $0x2f1] sm:$0xff]
    %v814 = vld [vmem:[%s689 + $0x301] sm:$0xff]
    %v815 = vld [vmem:[%s689 + $0x309] sm:$0xff]
    %v816 = vld [vmem:[%s689 + $0x319] sm:$0xff]
    %v817 = vld [vmem:[%s689 + $0x321] sm:$0xff]
    %v818 = vld [vmem:[%s689 + $0x2] sm:$0xff]
    %v819 = vld [vmem:[%s689 + $0xa] sm:$0xff]
    %v820 = vld [vmem:[%s689 + $0x1a] sm:$0xff]
    %v821 = vld [vmem:[%s689 + $0x22] sm:$0xff]
    %v822 = vld [vmem:[%s689 + $0x32] sm:$0xff]
    %v823 = vld [vmem:[%s689 + $0x3a] sm:$0xff]
    %v824 = vld [vmem:[%s689 + $0x4a] sm:$0xff]
    %v825 = vld [vmem:[%s689 + $0x52] sm:$0xff]
    %v826 = vld [vmem:[%s689 + $0x62] sm:$0xff]
    %v827 = vld [vmem:[%s689 + $0x6a] sm:$0xff]
    %v828 = vld [vmem:[%s689 + $0x7a] sm:$0xff]
    %v829 = vld [vmem:[%s689 + $0x82] sm:$0xff]
    %v830 = vld [vmem:[%s689 + $0x92] sm:$0xff]
    %v831 = vld [vmem:[%s689 + $0x9a] sm:$0xff]
    %v832 = vld [vmem:[%s689 + $0xaa] sm:$0xff]
    %v833 = vld [vmem:[%s689 + $0xb2] sm:$0xff]
    %v834 = vld [vmem:[%s689 + $0xc2] sm:$0xff]
    %v835 = vld [vmem:[%s689 + $0xca] sm:$0xff]
    %v836 = vld [vmem:[%s689 + $0xda] sm:$0xff]
    %v837 = vld [vmem:[%s689 + $0xe2] sm:$0xff]
    %v838 = vld [vmem:[%s689 + $0xf2] sm:$0xff]
    %v839 = vld [vmem:[%s689 + $0xfa] sm:$0xff]
    %v840 = vld [vmem:[%s689 + $0x10a] sm:$0xff]
    %v841 = vld [vmem:[%s689 + $0x112] sm:$0xff]
    %v842 = vld [vmem:[%s689 + $0x122] sm:$0xff]
    %v843 = vld [vmem:[%s689 + $0x12a] sm:$0xff]
    %v844 = vld [vmem:[%s689 + $0x13a] sm:$0xff]
    %v845 = vld [vmem:[%s689 + $0x142] sm:$0xff]
    %v846 = vld [vmem:[%s689 + $0x152] sm:$0xff]
    %v847 = vld [vmem:[%s689 + $0x15a] sm:$0xff]
    %v848 = vld [vmem:[%s689 + $0x16a] sm:$0xff]
    %v849 = vld [vmem:[%s689 + $0x172] sm:$0xff]
    %v850 = vld [vmem:[%s689 + $0x1b2] sm:$0xff]
    %v851 = vld [vmem:[%s689 + $0x1ba] sm:$0xff]
    %v852 = vld [vmem:[%s689 + $0x1ca] sm:$0xff]
    %v853 = vld [vmem:[%s689 + $0x1d2] sm:$0xff]
    %v854 = vld [vmem:[%s689 + $0x1e2] sm:$0xff]
    %v855 = vld [vmem:[%s689 + $0x1ea] sm:$0xff]
    %v856 = vld [vmem:[%s689 + $0x1fa] sm:$0xff]
    %v857 = vld [vmem:[%s689 + $0x202] sm:$0xff]
    %v858 = vld [vmem:[%s689 + $0x212] sm:$0xff]
    %v859 = vld [vmem:[%s689 + $0x21a] sm:$0xff]
    %v860 = vld [vmem:[%s689 + $0x22a] sm:$0xff]
    %v861 = vld [vmem:[%s689 + $0x232] sm:$0xff]
    %v862 = vld [vmem:[%s689 + $0x242] sm:$0xff]
    %v863 = vld [vmem:[%s689 + $0x24a] sm:$0xff]
    %v864 = vld [vmem:[%s689 + $0x25a] sm:$0xff]
    %v865 = vld [vmem:[%s689 + $0x262] sm:$0xff]
    %v866 = vld [vmem:[%s689 + $0x272] sm:$0xff]
    %v867 = vld [vmem:[%s689 + $0x27a] sm:$0xff]
    %v868 = vld [vmem:[%s689 + $0x28a] sm:$0xff]
    %v869 = vld [vmem:[%s689 + $0x292] sm:$0xff]
    %v870 = vld [vmem:[%s689 + $0x2a2] sm:$0xff]
    %v871 = vld [vmem:[%s689 + $0x2aa] sm:$0xff]
    %v872 = vld [vmem:[%s689 + $0x2ba] sm:$0xff]
    %v873 = vld [vmem:[%s689 + $0x2c2] sm:$0xff]
    %v874 = vld [vmem:[%s689 + $0x2d2] sm:$0xff]
    %v875 = vld [vmem:[%s689 + $0x2da] sm:$0xff]
    %v876 = vld [vmem:[%s689 + $0x2ea] sm:$0xff]
    %v877 = vld [vmem:[%s689 + $0x2f2] sm:$0xff]
    %v878 = vld [vmem:[%s689 + $0x302] sm:$0xff]
    %v879 = vld [vmem:[%s689 + $0x30a] sm:$0xff]
    %v880 = vld [vmem:[%s689 + $0x31a] sm:$0xff]
    %v881 = vld [vmem:[%s689 + $0x322] sm:$0xff]
    %v882 = vld [vmem:[#allocation6] sm:$0xff]
    %v883 = vld [vmem:[#allocation6 + $0x8] sm:$0xff]
    %v884 = vld [vmem:[#allocation6 + $0x10] sm:$0xff]
    %v885 = vld [vmem:[#allocation6 + $0x18] sm:$0xff]
    %v886 = vld [vmem:[#allocation6 + $0x20] sm:$0xff]
    %v887 = vld [vmem:[#allocation6 + $0x28] sm:$0xff]
    %v888 = vld [vmem:[#allocation6 + $0x30] sm:$0xff]
    %v889 = vld [vmem:[#allocation6 + $0x38] sm:$0xff]
    %v890 = vld [vmem:[#allocation6 + $0x40] sm:$0xff]
    %v891 = vld [vmem:[#allocation6 + $0x48] sm:$0xff]
    %v892 = vld [vmem:[#allocation6 + $0x50] sm:$0xff]
    %v893 = vld [vmem:[#allocation6 + $0x58] sm:$0xff]
    %v894 = vld [vmem:[#allocation6 + $0x60] sm:$0xff]
    %v895 = vld [vmem:[#allocation6 + $0x68] sm:$0xff]
    %v896 = vld [vmem:[#allocation6 + $0x70] sm:$0xff]
    %v897 = vld [vmem:[#allocation6 + $0x78] sm:$0xff]
    %v898 = vld [vmem:[#allocation6 + $0x80] sm:$0xff]
    %v899 = vld [vmem:[#allocation6 + $0x88] sm:$0xff]
    %v900 = vld [vmem:[#allocation6 + $0x90] sm:$0xff]
    %v901 = vld [vmem:[#allocation6 + $0x98] sm:$0xff]
    %v902 = vld [vmem:[#allocation6 + $0xa0] sm:$0xff]
    %v903 = vld [vmem:[#allocation6 + $0xa8] sm:$0xff]
    %v904 = vld [vmem:[#allocation6 + $0xb0] sm:$0xff]
    %v905 = vld [vmem:[#allocation6 + $0xb8] sm:$0xff]
    %v906 = vld [vmem:[#allocation6 + $0xc0] sm:$0xff]
    %v907 = vld [vmem:[#allocation6 + $0xc8] sm:$0xff]
    %v908 = vld [vmem:[#allocation6 + $0xd0] sm:$0xff]
    %v909 = vld [vmem:[#allocation6 + $0xd8] sm:$0xff]
    %v910 = vld [vmem:[#allocation6 + $0xe0] sm:$0xff]
    %v911 = vld [vmem:[#allocation6 + $0xe8] sm:$0xff]
    %v912 = vld [vmem:[#allocation6 + $0xf0] sm:$0xff]
    %v913 = vld [vmem:[#allocation6 + $0xf8] sm:$0xff]
    %v914 = vld [vmem:[#allocation6 + $0x100] sm:$0xff]
    %v915 = vld [vmem:[#allocation6 + $0x108] sm:$0xff]
    %v916 = vld [vmem:[#allocation6 + $0x110] sm:$0xff]
    %v917 = vld [vmem:[#allocation6 + $0x118] sm:$0xff]
    %v918 = vld [vmem:[#allocation6 + $0x120] sm:$0xff]
    %v919 = vld [vmem:[#allocation6 + $0x128] sm:$0xff]
    %v920 = vld [vmem:[#allocation6 + $0x130] sm:$0xff]
    %v921 = vld [vmem:[#allocation6 + $0x138] sm:$0xff]
    %v922 = vld [vmem:[#allocation6 + $0x140] sm:$0xff]
    %v923 = vld [vmem:[#allocation6 + $0x148] sm:$0xff]
    %v924 = vld [vmem:[#allocation6 + $0x150] sm:$0xff]
    %v925 = vld [vmem:[#allocation6 + $0x158] sm:$0xff]
    %v926 = vld [vmem:[#allocation6 + $0x160] sm:$0xff]
    %v927 = vld [vmem:[#allocation6 + $0x168] sm:$0xff]
    %v928 = vld [vmem:[#allocation6 + $0x170] sm:$0xff]
    %v929 = vld [vmem:[#allocation6 + $0x178] sm:$0xff]
    %v930 = vld [vmem:[#allocation6 + $0x180] sm:$0xff]
    %v931 = vld [vmem:[#allocation6 + $0x188] sm:$0xff]
    %v932 = vld [vmem:[#allocation6 + $0x190] sm:$0xff]
    %v933 = vld [vmem:[#allocation6 + $0x198] sm:$0xff]
    %v934 = vld [vmem:[#allocation6 + $0x1a0] sm:$0xff]
    %v935 = vld [vmem:[#allocation6 + $0x1a8] sm:$0xff]
    %v936 = vld [vmem:[#allocation6 + $0x1b0] sm:$0xff]
    %v937 = vld [vmem:[#allocation6 + $0x1b8] sm:$0xff]
    %v938 = vld [vmem:[#allocation6 + $0x1c0] sm:$0xff]
    %v939 = vld [vmem:[#allocation6 + $0x1c8] sm:$0xff]
    %v940 = vld [vmem:[#allocation6 + $0x1d0] sm:$0xff]
    %v941 = vld [vmem:[#allocation6 + $0x1d8] sm:$0xff]
    %v942 = vld [vmem:[#allocation6 + $0x1e0] sm:$0xff]
    %v943 = vld [vmem:[#allocation6 + $0x1e8] sm:$0xff]
    %v944 = vld [vmem:[#allocation6 + $0x1f0] sm:$0xff]
    %v945 = vld [vmem:[#allocation6 + $0x1f8] sm:$0xff]
    %v946 = vld [vmem:[#allocation6 + $0x200] sm:$0xff]
    %v947 = vld [vmem:[#allocation6 + $0x208] sm:$0xff]
    %v948 = vld [vmem:[#allocation6 + $0x210] sm:$0xff]
    %v949 = vld [vmem:[#allocation6 + $0x218] sm:$0xff]
    %v950 = vld [vmem:[#allocation6 + $0x220] sm:$0xff]
    %v951 = vld [vmem:[#allocation6 + $0x228] sm:$0xff]
    %v952 = vld [vmem:[#allocation6 + $0x230] sm:$0xff]
    %v953 = vld [vmem:[#allocation6 + $0x238] sm:$0xff]
    %v954 = vld [vmem:[#allocation6 + $0x240] sm:$0xff]
    %v955 = vld [vmem:[#allocation6 + $0x248] sm:$0xff]
    %v956 = vld [vmem:[#allocation6 + $0x250] sm:$0xff]
    %v957 = vld [vmem:[#allocation6 + $0x258] sm:$0xff]
    %v958 = vld [vmem:[#allocation6 + $0x260] sm:$0xff]
    %v959 = vld [vmem:[#allocation6 + $0x268] sm:$0xff]
    %v960 = vld [vmem:[#allocation6 + $0x270] sm:$0xff]
    %v961 = vld [vmem:[#allocation6 + $0x278] sm:$0xff]
    %v962 = vld [vmem:[#allocation6 + $0x280] sm:$0xff]
    %v963 = vld [vmem:[#allocation6 + $0x288] sm:$0xff]
    %v964 = vld [vmem:[#allocation6 + $0x290] sm:$0xff]
    %v965 = vld [vmem:[#allocation6 + $0x298] sm:$0xff]
    %v966 = vld [vmem:[#allocation6 + $0x2a0] sm:$0xff]
    %v967 = vld [vmem:[#allocation6 + $0x2a8] sm:$0xff]
    %v968 = vld [vmem:[#allocation6 + $0x2b0] sm:$0xff]
    %v969 = vld [vmem:[#allocation6 + $0x2b8] sm:$0xff]
    %v970 = vld [vmem:[#allocation6 + $0x2c0] sm:$0xff]
    %v971 = vld [vmem:[#allocation6 + $0x2c8] sm:$0xff]
    %v972 = vld [vmem:[#allocation6 + $0x2d0] sm:$0xff]
    %v973 = vld [vmem:[#allocation6 + $0x2d8] sm:$0xff]
    %v974 = vld [vmem:[#allocation6 + $0x2e0] sm:$0xff]
    %v975 = vld [vmem:[#allocation6 + $0x2e8] sm:$0xff]
    %v976 = vld [vmem:[#allocation6 + $0x2f0] sm:$0xff]
    %v977 = vld [vmem:[#allocation6 + $0x2f8] sm:$0xff]
    %v978 = vld [vmem:[#allocation6 + $0x300] sm:$0xff]
    %v979 = vld [vmem:[#allocation6 + $0x308] sm:$0xff]
    %v980 = vld [vmem:[#allocation6 + $0x310] sm:$0xff]
    %v981 = vld [vmem:[#allocation6 + $0x318] sm:$0xff]
    %v982 = vld [vmem:[#allocation6 + $0x320] sm:$0xff]
    %v983 = vld [vmem:[#allocation6 + $0x328] sm:$0xff]
    %v984 = vld [vmem:[#allocation6 + $0x330] sm:$0xff]
    %v985 = vld [vmem:[#allocation6 + $0x338] sm:$0xff]
    %v986 = vld [vmem:[#allocation6 + $0x340] sm:$0xff]
    %v987 = vld [vmem:[#allocation6 + $0x348] sm:$0xff]
    %v988 = vld [vmem:[#allocation6 + $0x350] sm:$0xff]
    %v989 = vld [vmem:[#allocation6 + $0x358] sm:$0xff]
    %v990 = vld [vmem:[#allocation6 + $0x360] sm:$0xff]
    %v991 = vld [vmem:[#allocation6 + $0x368] sm:$0xff]
    %v992 = vld [vmem:[#allocation6 + $0x370] sm:$0xff]
    %v993 = vld [vmem:[#allocation6 + $0x378] sm:$0xff]
    %v994 = vld [vmem:[#allocation6 + $0x380] sm:$0xff]
    %v995 = vld [vmem:[#allocation6 + $0x388] sm:$0xff]
    %v996 = vld [vmem:[#allocation6 + $0x390] sm:$0xff]
    %v997 = vld [vmem:[#allocation6 + $0x398] sm:$0xff]
    %v998 = vld [vmem:[#allocation6 + $0x3a0] sm:$0xff]
    %v999 = vld [vmem:[#allocation6 + $0x3a8] sm:$0xff]
    %v1000 = vld [vmem:[#allocation6 + $0x3b0] sm:$0xff]
    %v1001 = vld [vmem:[#allocation6 + $0x3b8] sm:$0xff]
    %v1002 = vld [vmem:[#allocation6 + $0x3c0] sm:$0xff]
    %v1003 = vld [vmem:[#allocation6 + $0x3c8] sm:$0xff]
    %v1004 = vld [vmem:[#allocation6 + $0x3d0] sm:$0xff]
    %v1005 = vld [vmem:[#allocation6 + $0x3d8] sm:$0xff]
    %v1006 = vld [vmem:[#allocation6 + $0x3e0] sm:$0xff]
    %v1007 = vld [vmem:[#allocation6 + $0x3e8] sm:$0xff]
    %v1008 = vld [vmem:[#allocation6 + $0x3f0] sm:$0xff]
    %v1009 = vld [vmem:[#allocation6 + $0x3f8] sm:$0xff]
    %v1010 = vld [vmem:[#allocation6 + $0x400] sm:$0xff]
    %v1011 = vld [vmem:[#allocation6 + $0x408] sm:$0xff]
    %v1012 = vld [vmem:[#allocation6 + $0x410] sm:$0xff]
    %v1013 = vld [vmem:[#allocation6 + $0x418] sm:$0xff]
    %v1014 = vld [vmem:[#allocation6 + $0x420] sm:$0xff]
    %v1015 = vld [vmem:[#allocation6 + $0x428] sm:$0xff]
    %v1016 = vld [vmem:[#allocation6 + $0x430] sm:$0xff]
    %v1017 = vld [vmem:[#allocation6 + $0x438] sm:$0xff]
    %v1018 = vld [vmem:[#allocation6 + $0x440] sm:$0xff]
    %v1019 = vld [vmem:[#allocation6 + $0x448] sm:$0xff]
    %v1020 = vld [vmem:[#allocation6 + $0x450] sm:$0xff]
    %v1021 = vld [vmem:[#allocation6 + $0x458] sm:$0xff]
    %v1022 = vld [vmem:[#allocation6 + $0x460] sm:$0xff]
    %v1023 = vld [vmem:[#allocation6 + $0x468] sm:$0xff]
    %v1024 = vld [vmem:[#allocation6 + $0x470] sm:$0xff]
    %v1025 = vld [vmem:[#allocation6 + $0x478] sm:$0xff]
    %1026 = vmatprep.subr.mxu0 0.0
    %1027 = vmatpush1.msra.mxu0 %v882
    %1028 = vmatprep.subr.mxu0 0.0
    %1029 = vmatpush1.msra.mxu0 %v883
    %1030 = vmatprep.subr.mxu0 0.0
    %1031 = vmatpush1.msra.mxu0 %v884
    %1032 = vmatprep.subr.mxu0 0.0
    %1033 = vmatpush1.msra.mxu0 %v885
    %1034 = vmatprep.subr.mxu0 0.0
    %1035 = vmatpush1.msra.mxu0 %v886
    %1036 = vmatprep.subr.mxu0 0.0
    %1037 = vmatpush1.msra.mxu0 %v887
    %1038 = vmatprep.subr.mxu0 0.0
    %1039 = vmatpush1.msra.mxu0 %v888
    %1040 = vmatprep.subr.mxu0 0.0
    %1041 = vmatpush1.msra.mxu0 %v889
    %1042 = vmatprep.subr.mxu0 0.0
    %1043 = vmatpush1.msra.mxu0 %v890
    %1044 = vmatprep.subr.mxu0 0.0
    %1045 = vmatpush1.msra.mxu0 %v891
    %1046 = vmatprep.subr.mxu0 0.0
    %1047 = vmatpush1.msra.mxu0 %v892
    %1048 = vmatprep.subr.mxu0 0.0
    %1049 = vmatpush1.msra.mxu0 %v893
    %1050 = vmatprep.subr.mxu0 0.0
    %1051 = vmatpush1.msra.mxu0 %v894
    %1052 = vmatprep.subr.mxu0 0.0
    %1053 = vmatpush1.msra.mxu0 %v895
    %1054 = vmatprep.subr.mxu0 0.0
    %1055 = vmatpush1.msra.mxu0 %v896
    %1056 = vmatprep.subr.mxu0 0.0
    %1057 = vmatpush1.msra.mxu0 %v897
    %1058 = vmatprep.subr.mxu0 0.0
    %1059 = vmatpush1.msra.mxu0 %v898
    %1060 = vmatprep.subr.mxu0 0.0
    %1061 = vmatpush1.msra.mxu0 %v899
    %1062 = vmatprep.subr.mxu0 0.0
    %1063 = vmatpush1.msra.mxu0 %v900
    %1064 = vmatprep.subr.mxu0 0.0
    %1065 = vmatpush1.msra.mxu0 %v901
    %1066 = vmatprep.subr.mxu0 0.0
    %1067 = vmatpush1.msra.mxu0 %v902
    %1068 = vmatprep.subr.mxu0 0.0
    %1069 = vmatpush1.msra.mxu0 %v903
    %1070 = vmatprep.subr.mxu0 0.0
    %1071 = vmatpush1.msra.mxu0 %v904
    %1072 = vmatprep.subr.mxu0 0.0
    %1073 = vmatpush1.msra.mxu0 %v905
    %1074 = vmatprep.subr.mxu0 0.0
    %1075 = vmatpush1.msra.mxu0 %v906
    %1076 = vmatprep.subr.mxu0 0.0
    %1077 = vmatpush1.msra.mxu0 %v907
    %1078 = vmatprep.subr.mxu0 0.0
    %1079 = vmatpush1.msra.mxu0 %v908
    %1080 = vmatprep.subr.mxu0 0.0
    %1081 = vmatpush1.msra.mxu0 %v909
    %1082 = vmatprep.subr.mxu0 0.0
    %1083 = vmatpush1.msra.mxu0 %v910
    %1084 = vmatprep.subr.mxu0 0.0
    %1085 = vmatpush1.msra.mxu0 %v911
    %1086 = vmatprep.subr.mxu0 0.0
    %1087 = vmatpush1.msra.mxu0 %v912
    %1088 = vmatprep.subr.mxu0 0.0
    %1089 = vmatpush1.msra.mxu0 %v913
    %1090 = vmatprep.mubr.f32.mxu0 %v369
    %1091 = vmatmul.mubr.f32.gmra.mrb[0].mxu0 %v305
    %v1092 = vpop.f32.mrb[0].mxu0
    %v1093 = vadd.f32 0.0, %v1092
    %v1094 = vpop.f32.mrb[0].mxu0
    %1095 = vmatprep.mubr.f32.mxu0 %v370
    %1096 = vmatmul.mubr.f32.gmra.mrb[0].mxu0 %v306
    %v1097 = vpop.f32.mrb[0].mxu0
    %v1098 = vadd.f32 0.0, %v1097
    %v1099 = vpop.f32.mrb[0].mxu0
    %1100 = vmatprep.mubr.f32.mxu0 %v371
    %1101 = vmatmul.mubr.f32.gmra.mrb[0].mxu0 %v307
    %v1102 = vpop.f32.mrb[0].mxu0
    %v1103 = vadd.f32 0.0, %v1102
    %v1104 = vpop.f32.mrb[0].mxu0
    %1105 = vmatprep.mubr.f32.mxu0 %v372
    %1106 = vmatmul.mubr.f32.gmra.mrb[0].mxu0 %v308
    %v1107 = vpop.f32.mrb[0].mxu0
    %v1108 = vadd.f32 0.0, %v1107
    %v1109 = vpop.f32.mrb[0].mxu0
    %1110 = vmatprep.mubr.f32.mxu0 %v373
    %1111 = vmatmul.mubr.f32.gmra.mrb[0].mxu0 %v309
    %v1112 = vpop.f32.mrb[0].mxu0
    %v1113 = vadd.f32 0.0, %v1112
    %v1114 = vpop.f32.mrb[0].mxu0
    %1115 = vmatprep.mubr.f32.mxu0 %v374
    %1116 = vmatmul.mubr.f32.gmra.mrb[0].mxu0 %v310
    %v1117 = vpop.f32.mrb[0].mxu0
    %v1118 = vadd.f32 0.0, %v1117
    %v1119 = vpop.f32.mrb[0].mxu0
    %1120 = vmatprep.mubr.f32.mxu0 %v375
    %1121 = vmatmul.mubr.f32.gmra.mrb[0].mxu0 %v311
    %v1122 = vpop.f32.mrb[0].mxu0
    %v1123 = vadd.f32 0.0, %v1122
    %v1124 = vpop.f32.mrb[0].mxu0
    %1125 = vmatprep.mubr.f32.mxu0 %v376
    %1126 = vmatmul.mubr.f32.gmra.mrb[0].mxu0 %v312
    %v1127 = vpop.f32.mrb[0].mxu0
    %v1128 = vadd.f32 0.0, %v1127
    %v1129 = vpop.f32.mrb[0].mxu0
    %1130 = vmatprep.mubr.f32.mxu0 %v377
    %1131 = vmatmul.mubr.f32.gmra.mrb[0].mxu0 %v313
    %v1132 = vpop.f32.mrb[0].mxu0
    %v1133 = vadd.f32 0.0, %v1132
    %v1134 = vpop.f32.mrb[0].mxu0
    %1135 = vmatprep.mubr.f32.mxu0 %v378
    %1136 = vmatmul.mubr.f32.gmra.mrb[0].mxu0 %v314
    %v1137 = vpop.f32.mrb[0].mxu0
    %v1138 = vadd.f32 0.0, %v1137
    %v1139 = vpop.f32.mrb[0].mxu0
    %1140 = vmatprep.mubr.f32.mxu0 %v379
    %1141 = vmatmul.mubr.f32.gmra.mrb[0].mxu0 %v315
    %v1142 = vpop.f32.mrb[0].mxu0
    %v1143 = vadd.f32 0.0, %v1142
    %v1144 = vpop.f32.mrb[0].mxu0
    %1145 = vmatprep.mubr.f32.mxu0 %v380
    %1146 = vmatmul.mubr.f32.gmra.mrb[0].mxu0 %v316
    %v1147 = vpop.f32.mrb[0].mxu0
    %v1148 = vadd.f32 0.0, %v1147
    %v1149 = vpop.f32.mrb[0].mxu0
    %1150 = vmatprep.mubr.f32.mxu0 %v381
    %1151 = vmatmul.mubr.f32.gmra.mrb[0].mxu0 %v317
    %v1152 = vpop.f32.mrb[0].mxu0
    %v1153 = vadd.f32 0.0, %v1152
    %v1154 = vpop.f32.mrb[0].mxu0
    %1155 = vmatprep.mubr.f32.mxu0 %v382
    %1156 = vmatmul.mubr.f32.gmra.mrb[0].mxu0 %v318
    %v1157 = vpop.f32.mrb[0].mxu0
    %v1158 = vadd.f32 0.0, %v1157
    %v1159 = vpop.f32.mrb[0].mxu0
    %1160 = vmatprep.mubr.f32.mxu0 %v383
    %1161 = vmatmul.mubr.f32.gmra.mrb[0].mxu0 %v319
    %v1162 = vpop.f32.mrb[0].mxu0
    %v1163 = vadd.f32 0.0, %v1162
    %v1164 = vpop.f32.mrb[0].mxu0
    %1165 = vmatprep.mubr.f32.mxu0 %v384
    %1166 = vmatmul.mubr.f32.gmra.mrb[0].mxu0 %v320
    %v1167 = vpop.f32.mrb[0].mxu0
    %v1168 = vadd.f32 0.0, %v1167
    %v1169 = vpop.f32.mrb[0].mxu0
    %1170 = vmatprep.mubr.f32.mxu0 %v385
    %1171 = vmatmul.mubr.f32.gmra.mrb[0].mxu0 %v321
    %v1172 = vpop.f32.mrb[0].mxu0
    %v1173 = vadd.f32 0.0, %v1172
    %v1174 = vpop.f32.mrb[0].mxu0
    %1175 = vmatprep.mubr.f32.mxu0 %v386
    %1176 = vmatmul.mubr.f32.gmra.mrb[0].mxu0 %v322
    %v1177 = vpop.f32.mrb[0].mxu0
    %v1178 = vadd.f32 0.0, %v1177
    %v1179 = vpop.f32.mrb[0].mxu0
    %1180 = vmatprep.mubr.f32.mxu0 %v387
    %1181 = vmatmul.mubr.f32.gmra.mrb[0].mxu0 %v323
    %v1182 = vpop.f32.mrb[0].mxu0
    %v1183 = vadd.f32 0.0, %v1182
    %v1184 = vpop.f32.mrb[0].mxu0
    %1185 = vmatprep.mubr.f32.mxu0 %v388
    %1186 = vmatmul.mubr.f32.gmra.mrb[0].mxu0 %v324
    %v1187 = vpop.f32.mrb[0].mxu0
    %v1188 = vadd.f32 0.0, %v1187
    %v1189 = vpop.f32.mrb[0].mxu0
    %1190 = vmatprep.mubr.f32.mxu0 %v389
    %1191 = vmatmul.mubr.f32.gmra.mrb[0].mxu0 %v325
    %v1192 = vpop.f32.mrb[0].mxu0
    %v1193 = vadd.f32 0.0, %v1192
    %v1194 = vpop.f32.mrb[0].mxu0
    %1195 = vmatprep.mubr.f32.mxu0 %v390
    %1196 = vmatmul.mubr.f32.gmra.mrb[0].mxu0 %v326
    %v1197 = vpop.f32.mrb[0].mxu0
    %v1198 = vadd.f32 0.0, %v1197
    %v1199 = vpop.f32.mrb[0].mxu0
    %1200 = vmatprep.mubr.f32.mxu0 %v391
    %1201 = vmatmul.mubr.f32.gmra.mrb[0].mxu0 %v327
    %v1202 = vpop.f32.mrb[0].mxu0
    %v1203 = vadd.f32 0.0, %v1202
    %v1204 = vpop.f32.mrb[0].mxu0
    %1205 = vmatprep.mubr.f32.mxu0 %v392
    %1206 = vmatmul.mubr.f32.gmra.mrb[0].mxu0 %v328
    %v1207 = vpop.f32.mrb[0].mxu0
    %v1208 = vadd.f32 0.0, %v1207
    %v1209 = vpop.f32.mrb[0].mxu0
    %1210 = vmatprep.mubr.f32.mxu0 %v393
    %1211 = vmatmul.mubr.f32.gmra.mrb[0].mxu0 %v329
    %v1212 = vpop.f32.mrb[0].mxu0
    %v1213 = vadd.f32 0.0, %v1212
    %v1214 = vpop.f32.mrb[0].mxu0
    %1215 = vmatprep.mubr.f32.mxu0 %v394
    %1216 = vmatmul.mubr.f32.gmra.mrb[0].mxu0 %v330
    %v1217 = vpop.f32.mrb[0].mxu0
    %v1218 = vadd.f32 0.0, %v1217
    %v1219 = vpop.f32.mrb[0].mxu0
    %1220 = vmatprep.mubr.f32.mxu0 %v395
    %1221 = vmatmul.mubr.f32.gmra.mrb[0].mxu0 %v331
    %v1222 = vpop.f32.mrb[0].mxu0
    %v1223 = vadd.f32 0.0, %v1222
    %v1224 = vpop.f32.mrb[0].mxu0
    %1225 = vmatprep.mubr.f32.mxu0 %v396
    %1226 = vmatmul.mubr.f32.gmra.mrb[0].mxu0 %v332
    %v1227 = vpop.f32.mrb[0].mxu0
    %v1228 = vadd.f32 0.0, %v1227
    %v1229 = vpop.f32.mrb[0].mxu0
    %1230 = vmatprep.mubr.f32.mxu0 %v397
    %1231 = vmatmul.mubr.f32.gmra.mrb[0].mxu0 %v333
    %v1232 = vpop.f32.mrb[0].mxu0
    %v1233 = vadd.f32 0.0, %v1232
    %v1234 = vpop.f32.mrb[0].mxu0
    %1235 = vmatprep.mubr.f32.mxu0 %v398
    %1236 = vmatmul.mubr.f32.gmra.mrb[0].mxu0 %v334
    %v1237 = vpop.f32.mrb[0].mxu0
    %v1238 = vadd.f32 0.0, %v1237
    %v1239 = vpop.f32.mrb[0].mxu0
    %1240 = vmatprep.mubr.f32.mxu0 %v399
    %1241 = vmatmul.mubr.f32.gmra.mrb[0].mxu0 %v335
    %v1242 = vpop.f32.mrb[0].mxu0
    %v1243 = vadd.f32 0.0, %v1242
    %v1244 = vpop.f32.mrb[0].mxu0
    %1245 = vmatprep.mubr.f32.mxu0 %v400
    %1246 = vmatmul.mubr.f32.gmra.mrb[0].mxu0 %v336
    %v1247 = vpop.f32.mrb[0].mxu0
    %v1248 = vadd.f32 0.0, %v1247
    %v1249 = vpop.f32.mrb[0].mxu0
    %1250 = vmatprep.mubr.f32.mxu0 %v401
    %1251 = vmatmul.mubr.f32.gmra.mrb[0].mxu0 %v337
    %v1252 = vpop.f32.mrb[0].mxu0
    %v1253 = vadd.f32 0.0, %v1252
    %v1254 = vpop.f32.mrb[0].mxu0
    %1255 = vmatprep.mubr.f32.mxu0 %v402
    %1256 = vmatmul.mubr.f32.gmra.mrb[0].mxu0 %v338
    %v1257 = vpop.f32.mrb[0].mxu0
    %v1258 = vadd.f32 0.0, %v1257
    %v1259 = vpop.f32.mrb[0].mxu0
    %1260 = vmatprep.mubr.f32.mxu0 %v403
    %1261 = vmatmul.mubr.f32.gmra.mrb[0].mxu0 %v339
    %v1262 = vpop.f32.mrb[0].mxu0
    %v1263 = vadd.f32 0.0, %v1262
    %v1264 = vpop.f32.mrb[0].mxu0
    %1265 = vmatprep.mubr.f32.mxu0 %v404
    %1266 = vmatmul.mubr.f32.gmra.mrb[0].mxu0 %v340
    %v1267 = vpop.f32.mrb[0].mxu0
    %v1268 = vadd.f32 0.0, %v1267
    %v1269 = vpop.f32.mrb[0].mxu0
    %1270 = vmatprep.mubr.f32.mxu0 %v405
    %1271 = vmatmul.mubr.f32.gmra.mrb[0].mxu0 %v341
    %v1272 = vpop.f32.mrb[0].mxu0
    %v1273 = vadd.f32 0.0, %v1272
    %v1274 = vpop.f32.mrb[0].mxu0
    %1275 = vmatprep.mubr.f32.mxu0 %v406
    %1276 = vmatmul.mubr.f32.gmra.mrb[0].mxu0 %v342
    %v1277 = vpop.f32.mrb[0].mxu0
    %v1278 = vadd.f32 0.0, %v1277
    %v1279 = vpop.f32.mrb[0].mxu0
    %1280 = vmatprep.mubr.f32.mxu0 %v407
    %1281 = vmatmul.mubr.f32.gmra.mrb[0].mxu0 %v343
    %v1282 = vpop.f32.mrb[0].mxu0
    %v1283 = vadd.f32 0.0, %v1282
    %v1284 = vpop.f32.mrb[0].mxu0
    %1285 = vmatprep.mubr.f32.mxu0 %v408
    %1286 = vmatmul.mubr.f32.gmra.mrb[0].mxu0 %v344
    %v1287 = vpop.f32.mrb[0].mxu0
    %v1288 = vadd.f32 0.0, %v1287
    %v1289 = vpop.f32.mrb[0].mxu0
    %1290 = vmatprep.mubr.f32.mxu0 %v409
    %1291 = vmatmul.mubr.f32.gmra.mrb[0].mxu0 %v345
    %v1292 = vpop.f32.mrb[0].mxu0
    %v1293 = vadd.f32 0.0, %v1292
    %v1294 = vpop.f32.mrb[0].mxu0
    %1295 = vmatprep.mubr.f32.mxu0 %v410
    %1296 = vmatmul.mubr.f32.gmra.mrb[0].mxu0 %v346
    %v1297 = vpop.f32.mrb[0].mxu0
    %v1298 = vadd.f32 0.0, %v1297
    %v1299 = vpop.f32.mrb[0].mxu0
    %1300 = vmatprep.mubr.f32.mxu0 %v411
    %1301 = vmatmul.mubr.f32.gmra.mrb[0].mxu0 %v347
    %v1302 = vpop.f32.mrb[0].mxu0
    %v1303 = vadd.f32 0.0, %v1302
    %v1304 = vpop.f32.mrb[0].mxu0
    %1305 = vmatprep.mubr.f32.mxu0 %v412
    %1306 = vmatmul.mubr.f32.gmra.mrb[0].mxu0 %v348
    %v1307 = vpop.f32.mrb[0].mxu0
    %v1308 = vadd.f32 0.0, %v1307
    %v1309 = vpop.f32.mrb[0].mxu0
    %1310 = vmatprep.mubr.f32.mxu0 %v413
    %1311 = vmatmul.mubr.f32.gmra.mrb[0].mxu0 %v349
    %v1312 = vpop.f32.mrb[0].mxu0
    %v1313 = vadd.f32 0.0, %v1312
    %v1314 = vpop.f32.mrb[0].mxu0
    %1315 = vmatprep.mubr.f32.mxu0 %v414
    %1316 = vmatmul.mubr.f32.gmra.mrb[0].mxu0 %v350
    %v1317 = vpop.f32.mrb[0].mxu0
    %v1318 = vadd.f32 0.0, %v1317
    %v1319 = vpop.f32.mrb[0].mxu0
    %1320 = vmatprep.mubr.f32.mxu0 %v415
    %1321 = vmatmul.mubr.f32.gmra.mrb[0].mxu0 %v351
    %v1322 = vpop.f32.mrb[0].mxu0
    %v1323 = vadd.f32 0.0, %v1322
    %v1324 = vpop.f32.mrb[0].mxu0
    %1325 = vmatprep.mubr.f32.mxu0 %v416
    %1326 = vmatmul.mubr.f32.gmra.mrb[0].mxu0 %v352
    %v1327 = vpop.f32.mrb[0].mxu0
    %v1328 = vadd.f32 0.0, %v1327
    %v1329 = vpop.f32.mrb[0].mxu0
    %1330 = vmatprep.mubr.f32.mxu0 %v417
    %1331 = vmatmul.mubr.f32.gmra.mrb[0].mxu0 %v353
    %v1332 = vpop.f32.mrb[0].mxu0
    %v1333 = vadd.f32 0.0, %v1332
    %v1334 = vpop.f32.mrb[0].mxu0
    %1335 = vmatprep.mubr.f32.mxu0 %v418
    %1336 = vmatmul.mubr.f32.gmra.mrb[0].mxu0 %v354
    %v1337 = vpop.f32.mrb[0].mxu0
    %v1338 = vadd.f32 0.0, %v1337
    %v1339 = vpop.f32.mrb[0].mxu0
    %1340 = vmatprep.mubr.f32.mxu0 %v419
    %1341 = vmatmul.mubr.f32.gmra.mrb[0].mxu0 %v355
    %v1342 = vpop.f32.mrb[0].mxu0
    %v1343 = vadd.f32 0.0, %v1342
    %v1344 = vpop.f32.mrb[0].mxu0
    %1345 = vmatprep.mubr.f32.mxu0 %v420
    %1346 = vmatmul.mubr.f32.gmra.mrb[0].mxu0 %v356
    %v1347 = vpop.f32.mrb[0].mxu0
    %v1348 = vadd.f32 0.0, %v1347
    %v1349 = vpop.f32.mrb[0].mxu0
    %1350 = vmatprep.mubr.f32.mxu0 %v421
    %1351 = vmatmul.mubr.f32.gmra.mrb[0].mxu0 %v357
    %v1352 = vpop.f32.mrb[0].mxu0
    %v1353 = vadd.f32 0.0, %v1352
    %v1354 = vpop.f32.mrb[0].mxu0
    %1355 = vmatprep.mubr.f32.mxu0 %v422
    %1356 = vmatmul.mubr.f32.gmra.mrb[0].mxu0 %v358
    %v1357 = vpop.f32.mrb[0].mxu0
    %v1358 = vadd.f32 0.0, %v1357
    %v1359 = vpop.f32.mrb[0].mxu0
    %1360 = vmatprep.mubr.f32.mxu0 %v423
    %1361 = vmatmul.mubr.f32.gmra.mrb[0].mxu0 %v359
    %v1362 = vpop.f32.mrb[0].mxu0
    %v1363 = vadd.f32 0.0, %v1362
    %v1364 = vpop.f32.mrb[0].mxu0
    %1365 = vmatprep.mubr.f32.mxu0 %v424
    %1366 = vmatmul.mubr.f32.gmra.mrb[0].mxu0 %v360
    %v1367 = vpop.f32.mrb[0].mxu0
    %v1368 = vadd.f32 0.0, %v1367
    %v1369 = vpop.f32.mrb[0].mxu0
    %1370 = vmatprep.mubr.f32.mxu0 %v425
    %1371 = vmatmul.mubr.f32.gmra.mrb[0].mxu0 %v361
    %v1372 = vpop.f32.mrb[0].mxu0
    %v1373 = vadd.f32 0.0, %v1372
    %v1374 = vpop.f32.mrb[0].mxu0
    %1375 = vmatprep.mubr.f32.mxu0 %v426
    %1376 = vmatmul.mubr.f32.gmra.mrb[0].mxu0 %v362
    %v1377 = vpop.f32.mrb[0].mxu0
    %v1378 = vadd.f32 0.0, %v1377
    %v1379 = vpop.f32.mrb[0].mxu0
    %1380 = vmatprep.mubr.f32.mxu0 %v427
    %1381 = vmatmul.mubr.f32.gmra.mrb[0].mxu0 %v363
    %v1382 = vpop.f32.mrb[0].mxu0
    %v1383 = vadd.f32 0.0, %v1382
    %v1384 = vpop.f32.mrb[0].mxu0
    %1385 = vmatprep.mubr.f32.mxu0 %v428
    %1386 = vmatmul.mubr.f32.gmra.mrb[0].mxu0 %v364
    %v1387 = vpop.f32.mrb[0].mxu0
    %v1388 = vadd.f32 0.0, %v1387
    %v1389 = vpop.f32.mrb[0].mxu0
    %1390 = vmatprep.mubr.f32.mxu0 %v429
    %1391 = vmatmul.mubr.f32.gmra.mrb[0].mxu0 %v365
    %v1392 = vpop.f32.mrb[0].mxu0
    %v1393 = vadd.f32 0.0, %v1392
    %v1394 = vpop.f32.mrb[0].mxu0
    %1395 = vmatprep.mubr.f32.mxu0 %v430
    %1396 = vmatmul.mubr.f32.gmra.mrb[0].mxu0 %v366
    %v1397 = vpop.f32.mrb[0].mxu0
    %v1398 = vadd.f32 0.0, %v1397
    %v1399 = vpop.f32.mrb[0].mxu0
    %1400 = vmatprep.mubr.f32.mxu0 %v431
    %1401 = vmatmul.mubr.f32.gmra.mrb[0].mxu0 %v367
    %v1402 = vpop.f32.mrb[0].mxu0
    %v1403 = vadd.f32 0.0, %v1402
    %v1404 = vpop.f32.mrb[0].mxu0
    %1405 = vmatprep.mubr.f32.mxu0 %v432
    %1406 = vmatmul.mubr.f32.gmra.mrb[0].mxu0 %v368
    %v1407 = vpop.f32.mrb[0].mxu0
    %v1408 = vadd.f32 0.0, %v1407
    %v1409 = vpop.f32.mrb[0].mxu0
    %1410 = vdwg.mxu0
    %1411 = vmatprep.subr.mxu0 0.0
    %1412 = vmatpush1.msra.mxu0 %v914
    %1413 = vmatprep.subr.mxu0 0.0
    %1414 = vmatpush1.msra.mxu0 %v915
    %1415 = vmatprep.subr.mxu0 0.0
    %1416 = vmatpush1.msra.mxu0 %v916
    %1417 = vmatprep.subr.mxu0 0.0
    %1418 = vmatpush1.msra.mxu0 %v917
    %1419 = vmatprep.subr.mxu0 0.0
    %1420 = vmatpush1.msra.mxu0 %v918
    %1421 = vmatprep.subr.mxu0 0.0
    %1422 = vmatpush1.msra.mxu0 %v919
    %1423 = vmatprep.subr.mxu0 0.0
    %1424 = vmatpush1.msra.mxu0 %v920
    %1425 = vmatprep.subr.mxu0 0.0
    %1426 = vmatpush1.msra.mxu0 %v921
    %1427 = vmatprep.subr.mxu0 0.0
    %1428 = vmatpush1.msra.mxu0 %v922
    %1429 = vmatprep.subr.mxu0 0.0
    %1430 = vmatpush1.msra.mxu0 %v923
    %1431 = vmatprep.subr.mxu0 0.0
    %1432 = vmatpush1.msra.mxu0 %v924
    %1433 = vmatprep.subr.mxu0 0.0
    %1434 = vmatpush1.msra.mxu0 %v925
    %1435 = vmatprep.subr.mxu0 0.0
    %1436 = vmatpush1.msra.mxu0 %v926
    %1437 = vmatprep.subr.mxu0 0.0
    %1438 = vmatpush1.msra.mxu0 %v927
    %1439 = vmatprep.subr.mxu0 0.0
    %1440 = vmatpush1.msra.mxu0 %v928
    %1441 = vmatprep.subr.mxu0 0.0
    %1442 = vmatpush1.msra.mxu0 %v929
    %1443 = vmatprep.subr.mxu0 0.0
    %1444 = vmatpush1.msra.mxu0 %v930
    %1445 = vmatprep.subr.mxu0 0.0
    %1446 = vmatpush1.msra.mxu0 %v931
    %1447 = vmatprep.subr.mxu0 0.0
    %1448 = vmatpush1.msra.mxu0 %v932
    %1449 = vmatprep.subr.mxu0 0.0
    %1450 = vmatpush1.msra.mxu0 %v933
    %1451 = vmatprep.subr.mxu0 0.0
    %1452 = vmatpush1.msra.mxu0 %v934
    %1453 = vmatprep.subr.mxu0 0.0
    %1454 = vmatpush1.msra.mxu0 %v935
    %1455 = vmatprep.subr.mxu0 0.0
    %1456 = vmatpush1.msra.mxu0 %v936
    %1457 = vmatprep.subr.mxu0 0.0
    %1458 = vmatpush1.msra.mxu0 %v937
    %1459 = vmatprep.subr.mxu0 0.0
    %1460 = vmatpush1.msra.mxu0 %v938
    %1461 = vmatprep.subr.mxu0 0.0
    %1462 = vmatpush1.msra.mxu0 %v939
    %1463 = vmatprep.subr.mxu0 0.0
    %1464 = vmatpush1.msra.mxu0 %v940
    %1465 = vmatprep.subr.mxu0 0.0
    %1466 = vmatpush1.msra.mxu0 %v941
    %1467 = vmatprep.subr.mxu0 0.0
    %1468 = vmatpush1.msra.mxu0 %v942
    %1469 = vmatprep.subr.mxu0 0.0
    %1470 = vmatpush1.msra.mxu0 %v943
    %1471 = vmatprep.subr.mxu0 0.0
    %1472 = vmatpush1.msra.mxu0 %v944
    %1473 = vmatprep.subr.mxu0 0.0
    %1474 = vmatpush1.msra.mxu0 %v945
    %1475 = vmatprep.mubr.f32.mxu0 %v497
    %1476 = vmatmul.mubr.f32.gmra.mrb[0].mxu0 %v433
    %v1477 = vpop.f32.mrb[0].mxu0
    %v1478 = vadd.f32 %v1093, %v1477
    %v1479 = vpop.f32.mrb[0].mxu0
    %1480 = vmatprep.mubr.f32.mxu0 %v498
    %1481 = vmatmul.mubr.f32.gmra.mrb[0].mxu0 %v434
    %v1482 = vpop.f32.mrb[0].mxu0
    %v1483 = vadd.f32 %v1098, %v1482
    %v1484 = vpop.f32.mrb[0].mxu0
    %1485 = vmatprep.mubr.f32.mxu0 %v499
    %1486 = vmatmul.mubr.f32.gmra.mrb[0].mxu0 %v435
    %v1487 = vpop.f32.mrb[0].mxu0
    %v1488 = vadd.f32 %v1103, %v1487
    %v1489 = vpop.f32.mrb[0].mxu0
    %1490 = vmatprep.mubr.f32.mxu0 %v500
    %1491 = vmatmul.mubr.f32.gmra.mrb[0].mxu0 %v436
    %v1492 = vpop.f32.mrb[0].mxu0
    %v1493 = vadd.f32 %v1108, %v1492
    %v1494 = vpop.f32.mrb[0].mxu0
    %1495 = vmatprep.mubr.f32.mxu0 %v501
    %1496 = vmatmul.mubr.f32.gmra.mrb[0].mxu0 %v437
    %v1497 = vpop.f32.mrb[0].mxu0
    %v1498 = vadd.f32 %v1113, %v1497
    %v1499 = vpop.f32.mrb[0].mxu0
    %1500 = vmatprep.mubr.f32.mxu0 %v502
    %1501 = vmatmul.mubr.f32.gmra.mrb[0].mxu0 %v438
    %v1502 = vpop.f32.mrb[0].mxu0
    %v1503 = vadd.f32 %v1118, %v1502
    %v1504 = vpop.f32.mrb[0].mxu0
    %1505 = vmatprep.mubr.f32.mxu0 %v503
    %1506 = vmatmul.mubr.f32.gmra.mrb[0].mxu0 %v439
    %v1507 = vpop.f32.mrb[0].mxu0
    %v1508 = vadd.f32 %v1123, %v1507
    %v1509 = vpop.f32.mrb[0].mxu0
    %1510 = vmatprep.mubr.f32.mxu0 %v504
    %1511 = vmatmul.mubr.f32.gmra.mrb[0].mxu0 %v440
    %v1512 = vpop.f32.mrb[0].mxu0
    %v1513 = vadd.f32 %v1128, %v1512
    %v1514 = vpop.f32.mrb[0].mxu0
    %1515 = vmatprep.mubr.f32.mxu0 %v505
    %1516 = vmatmul.mubr.f32.gmra.mrb[0].mxu0 %v441
    %v1517 = vpop.f32.mrb[0].mxu0
    %v1518 = vadd.f32 %v1133, %v1517
    %v1519 = vpop.f32.mrb[0].mxu0
    %1520 = vmatprep.mubr.f32.mxu0 %v506
    %1521 = vmatmul.mubr.f32.gmra.mrb[0].mxu0 %v442
    %v1522 = vpop.f32.mrb[0].mxu0
    %v1523 = vadd.f32 %v1138, %v1522
    %v1524 = vpop.f32.mrb[0].mxu0
    %1525 = vmatprep.mubr.f32.mxu0 %v507
    %1526 = vmatmul.mubr.f32.gmra.mrb[0].mxu0 %v443
    %v1527 = vpop.f32.mrb[0].mxu0
    %v1528 = vadd.f32 %v1143, %v1527
    %v1529 = vpop.f32.mrb[0].mxu0
    %1530 = vmatprep.mubr.f32.mxu0 %v508
    %1531 = vmatmul.mubr.f32.gmra.mrb[0].mxu0 %v444
    %v1532 = vpop.f32.mrb[0].mxu0
    %v1533 = vadd.f32 %v1148, %v1532
    %v1534 = vpop.f32.mrb[0].mxu0
    %1535 = vmatprep.mubr.f32.mxu0 %v509
    %1536 = vmatmul.mubr.f32.gmra.mrb[0].mxu0 %v445
    %v1537 = vpop.f32.mrb[0].mxu0
    %v1538 = vadd.f32 %v1153, %v1537
    %v1539 = vpop.f32.mrb[0].mxu0
    %1540 = vmatprep.mubr.f32.mxu0 %v510
    %1541 = vmatmul.mubr.f32.gmra.mrb[0].mxu0 %v446
    %v1542 = vpop.f32.mrb[0].mxu0
    %v1543 = vadd.f32 %v1158, %v1542
    %v1544 = vpop.f32.mrb[0].mxu0
    %1545 = vmatprep.mubr.f32.mxu0 %v511
    %1546 = vmatmul.mubr.f32.gmra.mrb[0].mxu0 %v447
    %v1547 = vpop.f32.mrb[0].mxu0
    %v1548 = vadd.f32 %v1163, %v1547
    %v1549 = vpop.f32.mrb[0].mxu0
    %1550 = vmatprep.mubr.f32.mxu0 %v512
    %1551 = vmatmul.mubr.f32.gmra.mrb[0].mxu0 %v448
    %v1552 = vpop.f32.mrb[0].mxu0
    %v1553 = vadd.f32 %v1168, %v1552
    %v1554 = vpop.f32.mrb[0].mxu0
    %1555 = vmatprep.mubr.f32.mxu0 %v513
    %1556 = vmatmul.mubr.f32.gmra.mrb[0].mxu0 %v449
    %v1557 = vpop.f32.mrb[0].mxu0
    %v1558 = vadd.f32 %v1173, %v1557
    %v1559 = vpop.f32.mrb[0].mxu0
    %1560 = vmatprep.mubr.f32.mxu0 %v514
    %1561 = vmatmul.mubr.f32.gmra.mrb[0].mxu0 %v450
    %v1562 = vpop.f32.mrb[0].mxu0
    %v1563 = vadd.f32 %v1178, %v1562
    %v1564 = vpop.f32.mrb[0].mxu0
    %1565 = vmatprep.mubr.f32.mxu0 %v515
    %1566 = vmatmul.mubr.f32.gmra.mrb[0].mxu0 %v451
    %v1567 = vpop.f32.mrb[0].mxu0
    %v1568 = vadd.f32 %v1183, %v1567
    %v1569 = vpop.f32.mrb[0].mxu0
    %1570 = vmatprep.mubr.f32.mxu0 %v516
    %1571 = vmatmul.mubr.f32.gmra.mrb[0].mxu0 %v452
    %v1572 = vpop.f32.mrb[0].mxu0
    %v1573 = vadd.f32 %v1188, %v1572
    %v1574 = vpop.f32.mrb[0].mxu0
    %1575 = vmatprep.mubr.f32.mxu0 %v517
    %1576 = vmatmul.mubr.f32.gmra.mrb[0].mxu0 %v453
    %v1577 = vpop.f32.mrb[0].mxu0
    %v1578 = vadd.f32 %v1193, %v1577
    %v1579 = vpop.f32.mrb[0].mxu0
    %1580 = vmatprep.mubr.f32.mxu0 %v518
    %1581 = vmatmul.mubr.f32.gmra.mrb[0].mxu0 %v454
    %v1582 = vpop.f32.mrb[0].mxu0
    %v1583 = vadd.f32 %v1198, %v1582
    %v1584 = vpop.f32.mrb[0].mxu0
    %1585 = vmatprep.mubr.f32.mxu0 %v519
    %1586 = vmatmul.mubr.f32.gmra.mrb[0].mxu0 %v455
    %v1587 = vpop.f32.mrb[0].mxu0
    %v1588 = vadd.f32 %v1203, %v1587
    %v1589 = vpop.f32.mrb[0].mxu0
    %1590 = vmatprep.mubr.f32.mxu0 %v520
    %1591 = vmatmul.mubr.f32.gmra.mrb[0].mxu0 %v456
    %v1592 = vpop.f32.mrb[0].mxu0
    %v1593 = vadd.f32 %v1208, %v1592
    %v1594 = vpop.f32.mrb[0].mxu0
    %1595 = vmatprep.mubr.f32.mxu0 %v521
    %1596 = vmatmul.mubr.f32.gmra.mrb[0].mxu0 %v457
    %v1597 = vpop.f32.mrb[0].mxu0
    %v1598 = vadd.f32 %v1213, %v1597
    %v1599 = vpop.f32.mrb[0].mxu0
    %1600 = vmatprep.mubr.f32.mxu0 %v522
    %1601 = vmatmul.mubr.f32.gmra.mrb[0].mxu0 %v458
    %v1602 = vpop.f32.mrb[0].mxu0
    %v1603 = vadd.f32 %v1218, %v1602
    %v1604 = vpop.f32.mrb[0].mxu0
    %1605 = vmatprep.mubr.f32.mxu0 %v523
    %1606 = vmatmul.mubr.f32.gmra.mrb[0].mxu0 %v459
    %v1607 = vpop.f32.mrb[0].mxu0
    %v1608 = vadd.f32 %v1223, %v1607
    %v1609 = vpop.f32.mrb[0].mxu0
    %1610 = vmatprep.mubr.f32.mxu0 %v524
    %1611 = vmatmul.mubr.f32.gmra.mrb[0].mxu0 %v460
    %v1612 = vpop.f32.mrb[0].mxu0
    %v1613 = vadd.f32 %v1228, %v1612
    %v1614 = vpop.f32.mrb[0].mxu0
    %1615 = vmatprep.mubr.f32.mxu0 %v525
    %1616 = vmatmul.mubr.f32.gmra.mrb[0].mxu0 %v461
    %v1617 = vpop.f32.mrb[0].mxu0
    %v1618 = vadd.f32 %v1233, %v1617
    %v1619 = vpop.f32.mrb[0].mxu0
    %1620 = vmatprep.mubr.f32.mxu0 %v526
    %1621 = vmatmul.mubr.f32.gmra.mrb[0].mxu0 %v462
    %v1622 = vpop.f32.mrb[0].mxu0
    %v1623 = vadd.f32 %v1238, %v1622
    %v1624 = vpop.f32.mrb[0].mxu0
    %1625 = vmatprep.mubr.f32.mxu0 %v527
    %1626 = vmatmul.mubr.f32.gmra.mrb[0].mxu0 %v463
    %v1627 = vpop.f32.mrb[0].mxu0
    %v1628 = vadd.f32 %v1243, %v1627
    %v1629 = vpop.f32.mrb[0].mxu0
    %1630 = vmatprep.mubr.f32.mxu0 %v528
    %1631 = vmatmul.mubr.f32.gmra.mrb[0].mxu0 %v464
    %v1632 = vpop.f32.mrb[0].mxu0
    %v1633 = vadd.f32 %v1248, %v1632
    %v1634 = vpop.f32.mrb[0].mxu0
    %1635 = vmatprep.mubr.f32.mxu0 %v529
    %1636 = vmatmul.mubr.f32.gmra.mrb[0].mxu0 %v465
    %v1637 = vpop.f32.mrb[0].mxu0
    %v1638 = vadd.f32 %v1253, %v1637
    %v1639 = vpop.f32.mrb[0].mxu0
    %1640 = vmatprep.mubr.f32.mxu0 %v530
    %1641 = vmatmul.mubr.f32.gmra.mrb[0].mxu0 %v466
    %v1642 = vpop.f32.mrb[0].mxu0
    %v1643 = vadd.f32 %v1258, %v1642
    %v1644 = vpop.f32.mrb[0].mxu0
    %1645 = vmatprep.mubr.f32.mxu0 %v531
    %1646 = vmatmul.mubr.f32.gmra.mrb[0].mxu0 %v467
    %v1647 = vpop.f32.mrb[0].mxu0
    %v1648 = vadd.f32 %v1263, %v1647
    %v1649 = vpop.f32.mrb[0].mxu0
    %1650 = vmatprep.mubr.f32.mxu0 %v532
    %1651 = vmatmul.mubr.f32.gmra.mrb[0].mxu0 %v468
    %v1652 = vpop.f32.mrb[0].mxu0
    %v1653 = vadd.f32 %v1268, %v1652
    %v1654 = vpop.f32.mrb[0].mxu0
    %1655 = vmatprep.mubr.f32.mxu0 %v533
    %1656 = vmatmul.mubr.f32.gmra.mrb[0].mxu0 %v469
    %v1657 = vpop.f32.mrb[0].mxu0
    %v1658 = vadd.f32 %v1273, %v1657
    %v1659 = vpop.f32.mrb[0].mxu0
    %1660 = vmatprep.mubr.f32.mxu0 %v534
    %1661 = vmatmul.mubr.f32.gmra.mrb[0].mxu0 %v470
    %v1662 = vpop.f32.mrb[0].mxu0
    %v1663 = vadd.f32 %v1278, %v1662
    %v1664 = vpop.f32.mrb[0].mxu0
    %1665 = vmatprep.mubr.f32.mxu0 %v535
    %1666 = vmatmul.mubr.f32.gmra.mrb[0].mxu0 %v471
    %v1667 = vpop.f32.mrb[0].mxu0
    %v1668 = vadd.f32 %v1283, %v1667
    %v1669 = vpop.f32.mrb[0].mxu0
    %1670 = vmatprep.mubr.f32.mxu0 %v536
    %1671 = vmatmul.mubr.f32.gmra.mrb[0].mxu0 %v472
    %v1672 = vpop.f32.mrb[0].mxu0
    %v1673 = vadd.f32 %v1288, %v1672
    %v1674 = vpop.f32.mrb[0].mxu0
    %1675 = vmatprep.mubr.f32.mxu0 %v537
    %1676 = vmatmul.mubr.f32.gmra.mrb[0].mxu0 %v473
    %v1677 = vpop.f32.mrb[0].mxu0
    %v1678 = vadd.f32 %v1293, %v1677
    %v1679 = vpop.f32.mrb[0].mxu0
    %1680 = vmatprep.mubr.f32.mxu0 %v538
    %1681 = vmatmul.mubr.f32.gmra.mrb[0].mxu0 %v474
    %v1682 = vpop.f32.mrb[0].mxu0
    %v1683 = vadd.f32 %v1298, %v1682
    %v1684 = vpop.f32.mrb[0].mxu0
    %1685 = vmatprep.mubr.f32.mxu0 %v539
    %1686 = vmatmul.mubr.f32.gmra.mrb[0].mxu0 %v475
    %v1687 = vpop.f32.mrb[0].mxu0
    %v1688 = vadd.f32 %v1303, %v1687
    %v1689 = vpop.f32.mrb[0].mxu0
    %1690 = vmatprep.mubr.f32.mxu0 %v540
    %1691 = vmatmul.mubr.f32.gmra.mrb[0].mxu0 %v476
    %v1692 = vpop.f32.mrb[0].mxu0
    %v1693 = vadd.f32 %v1308, %v1692
    %v1694 = vpop.f32.mrb[0].mxu0
    %1695 = vmatprep.mubr.f32.mxu0 %v541
    %1696 = vmatmul.mubr.f32.gmra.mrb[0].mxu0 %v477
    %v1697 = vpop.f32.mrb[0].mxu0
    %v1698 = vadd.f32 %v1313, %v1697
    %v1699 = vpop.f32.mrb[0].mxu0
    %1700 = vmatprep.mubr.f32.mxu0 %v542
    %1701 = vmatmul.mubr.f32.gmra.mrb[0].mxu0 %v478
    %v1702 = vpop.f32.mrb[0].mxu0
    %v1703 = vadd.f32 %v1318, %v1702
    %v1704 = vpop.f32.mrb[0].mxu0
    %1705 = vmatprep.mubr.f32.mxu0 %v543
    %1706 = vmatmul.mubr.f32.gmra.mrb[0].mxu0 %v479
    %v1707 = vpop.f32.mrb[0].mxu0
    %v1708 = vadd.f32 %v1323, %v1707
    %v1709 = vpop.f32.mrb[0].mxu0
    %1710 = vmatprep.mubr.f32.mxu0 %v544
    %1711 = vmatmul.mubr.f32.gmra.mrb[0].mxu0 %v480
    %v1712 = vpop.f32.mrb[0].mxu0
    %v1713 = vadd.f32 %v1328, %v1712
    %v1714 = vpop.f32.mrb[0].mxu0
    %1715 = vmatprep.mubr.f32.mxu0 %v545
    %1716 = vmatmul.mubr.f32.gmra.mrb[0].mxu0 %v481
    %v1717 = vpop.f32.mrb[0].mxu0
    %v1718 = vadd.f32 %v1333, %v1717
    %v1719 = vpop.f32.mrb[0].mxu0
    %1720 = vmatprep.mubr.f32.mxu0 %v546
    %1721 = vmatmul.mubr.f32.gmra.mrb[0].mxu0 %v482
    %v1722 = vpop.f32.mrb[0].mxu0
    %v1723 = vadd.f32 %v1338, %v1722
    %v1724 = vpop.f32.mrb[0].mxu0
    %1725 = vmatprep.mubr.f32.mxu0 %v547
    %1726 = vmatmul.mubr.f32.gmra.mrb[0].mxu0 %v483
    %v1727 = vpop.f32.mrb[0].mxu0
    %v1728 = vadd.f32 %v1343, %v1727
    %v1729 = vpop.f32.mrb[0].mxu0
    %1730 = vmatprep.mubr.f32.mxu0 %v548
    %1731 = vmatmul.mubr.f32.gmra.mrb[0].mxu0 %v484
    %v1732 = vpop.f32.mrb[0].mxu0
    %v1733 = vadd.f32 %v1348, %v1732
    %v1734 = vpop.f32.mrb[0].mxu0
    %1735 = vmatprep.mubr.f32.mxu0 %v549
    %1736 = vmatmul.mubr.f32.gmra.mrb[0].mxu0 %v485
    %v1737 = vpop.f32.mrb[0].mxu0
    %v1738 = vadd.f32 %v1353, %v1737
    %v1739 = vpop.f32.mrb[0].mxu0
    %1740 = vmatprep.mubr.f32.mxu0 %v550
    %1741 = vmatmul.mubr.f32.gmra.mrb[0].mxu0 %v486
    %v1742 = vpop.f32.mrb[0].mxu0
    %v1743 = vadd.f32 %v1358, %v1742
    %v1744 = vpop.f32.mrb[0].mxu0
    %1745 = vmatprep.mubr.f32.mxu0 %v551
    %1746 = vmatmul.mubr.f32.gmra.mrb[0].mxu0 %v487
    %v1747 = vpop.f32.mrb[0].mxu0
    %v1748 = vadd.f32 %v1363, %v1747
    %v1749 = vpop.f32.mrb[0].mxu0
    %1750 = vmatprep.mubr.f32.mxu0 %v552
    %1751 = vmatmul.mubr.f32.gmra.mrb[0].mxu0 %v488
    %v1752 = vpop.f32.mrb[0].mxu0
    %v1753 = vadd.f32 %v1368, %v1752
    %v1754 = vpop.f32.mrb[0].mxu0
    %1755 = vmatprep.mubr.f32.mxu0 %v553
    %1756 = vmatmul.mubr.f32.gmra.mrb[0].mxu0 %v489
    %v1757 = vpop.f32.mrb[0].mxu0
    %v1758 = vadd.f32 %v1373, %v1757
    %v1759 = vpop.f32.mrb[0].mxu0
    %1760 = vmatprep.mubr.f32.mxu0 %v554
    %1761 = vmatmul.mubr.f32.gmra.mrb[0].mxu0 %v490
    %v1762 = vpop.f32.mrb[0].mxu0
    %v1763 = vadd.f32 %v1378, %v1762
    %v1764 = vpop.f32.mrb[0].mxu0
    %1765 = vmatprep.mubr.f32.mxu0 %v555
    %1766 = vmatmul.mubr.f32.gmra.mrb[0].mxu0 %v491
    %v1767 = vpop.f32.mrb[0].mxu0
    %v1768 = vadd.f32 %v1383, %v1767
    %v1769 = vpop.f32.mrb[0].mxu0
    %1770 = vmatprep.mubr.f32.mxu0 %v556
    %1771 = vmatmul.mubr.f32.gmra.mrb[0].mxu0 %v492
    %v1772 = vpop.f32.mrb[0].mxu0
    %v1773 = vadd.f32 %v1388, %v1772
    %v1774 = vpop.f32.mrb[0].mxu0
    %1775 = vmatprep.mubr.f32.mxu0 %v557
    %1776 = vmatmul.mubr.f32.gmra.mrb[0].mxu0 %v493
    %v1777 = vpop.f32.mrb[0].mxu0
    %v1778 = vadd.f32 %v1393, %v1777
    %v1779 = vpop.f32.mrb[0].mxu0
    %1780 = vmatprep.mubr.f32.mxu0 %v558
    %1781 = vmatmul.mubr.f32.gmra.mrb[0].mxu0 %v494
    %v1782 = vpop.f32.mrb[0].mxu0
    %v1783 = vadd.f32 %v1398, %v1782
    %v1784 = vpop.f32.mrb[0].mxu0
    %1785 = vmatprep.mubr.f32.mxu0 %v559
    %1786 = vmatmul.mubr.f32.gmra.mrb[0].mxu0 %v495
    %v1787 = vpop.f32.mrb[0].mxu0
    %v1788 = vadd.f32 %v1403, %v1787
    %v1789 = vpop.f32.mrb[0].mxu0
    %1790 = vmatprep.mubr.f32.mxu0 %v560
    %1791 = vmatmul.mubr.f32.gmra.mrb[0].mxu0 %v496
    %v1792 = vpop.f32.mrb[0].mxu0
    %v1793 = vadd.f32 %v1408, %v1792
    %v1794 = vpop.f32.mrb[0].mxu0
    %1795 = vdwg.mxu0
    %1796 = vmatprep.subr.mxu0 0.0
    %1797 = vmatpush1.msra.mxu0 %v946
    %1798 = vmatprep.subr.mxu0 0.0
    %1799 = vmatpush1.msra.mxu0 %v947
    %1800 = vmatprep.subr.mxu0 0.0
    %1801 = vmatpush1.msra.mxu0 %v948
    %1802 = vmatprep.subr.mxu0 0.0
    %1803 = vmatpush1.msra.mxu0 %v949
    %1804 = vmatprep.subr.mxu0 0.0
    %1805 = vmatpush1.msra.mxu0 %v950
    %1806 = vmatprep.subr.mxu0 0.0
    %1807 = vmatpush1.msra.mxu0 %v951
    %1808 = vmatprep.subr.mxu0 0.0
    %1809 = vmatpush1.msra.mxu0 %v952
    %1810 = vmatprep.subr.mxu0 0.0
    %1811 = vmatpush1.msra.mxu0 %v953
    %1812 = vmatprep.subr.mxu0 0.0
    %1813 = vmatpush1.msra.mxu0 %v954
    %1814 = vmatprep.subr.mxu0 0.0
    %1815 = vmatpush1.msra.mxu0 %v955
    %1816 = vmatprep.subr.mxu0 0.0
    %1817 = vmatpush1.msra.mxu0 %v956
    %1818 = vmatprep.subr.mxu0 0.0
    %1819 = vmatpush1.msra.mxu0 %v957
    %1820 = vmatprep.subr.mxu0 0.0
    %1821 = vmatpush1.msra.mxu0 %v958
    %1822 = vmatprep.subr.mxu0 0.0
    %1823 = vmatpush1.msra.mxu0 %v959
    %1824 = vmatprep.subr.mxu0 0.0
    %1825 = vmatpush1.msra.mxu0 %v960
    %1826 = vmatprep.subr.mxu0 0.0
    %1827 = vmatpush1.msra.mxu0 %v961
    %1828 = vmatprep.subr.mxu0 0.0
    %1829 = vmatpush1.msra.mxu0 %v962
    %1830 = vmatprep.subr.mxu0 0.0
    %1831 = vmatpush1.msra.mxu0 %v963
    %1832 = vmatprep.subr.mxu0 0.0
    %1833 = vmatpush1.msra.mxu0 %v964
    %1834 = vmatprep.subr.mxu0 0.0
    %1835 = vmatpush1.msra.mxu0 %v965
    %1836 = vmatprep.subr.mxu0 0.0
    %1837 = vmatpush1.msra.mxu0 %v966
    %1838 = vmatprep.subr.mxu0 0.0
    %1839 = vmatpush1.msra.mxu0 %v967
    %1840 = vmatprep.subr.mxu0 0.0
    %1841 = vmatpush1.msra.mxu0 %v968
    %1842 = vmatprep.subr.mxu0 0.0
    %1843 = vmatpush1.msra.mxu0 %v969
    %1844 = vmatprep.subr.mxu0 0.0
    %1845 = vmatpush1.msra.mxu0 %v970
    %1846 = vmatprep.subr.mxu0 0.0
    %1847 = vmatpush1.msra.mxu0 %v971
    %1848 = vmatprep.subr.mxu0 0.0
    %1849 = vmatpush1.msra.mxu0 %v972
    %1850 = vmatprep.subr.mxu0 0.0
    %1851 = vmatpush1.msra.mxu0 %v973
    %1852 = vmatprep.subr.mxu0 0.0
    %1853 = vmatpush1.msra.mxu0 %v974
    %1854 = vmatprep.subr.mxu0 0.0
    %1855 = vmatpush1.msra.mxu0 %v975
    %1856 = vmatprep.subr.mxu0 0.0
    %1857 = vmatpush1.msra.mxu0 %v976
    %1858 = vmatprep.subr.mxu0 0.0
    %1859 = vmatpush1.msra.mxu0 %v977
    %1860 = vmatprep.mubr.f32.mxu0 %v625
    %1861 = vmatmul.mubr.f32.gmra.mrb[0].mxu0 %v561
    %v1862 = vpop.f32.mrb[0].mxu0
    %v1863 = vadd.f32 %v1478, %v1862
    %v1864 = vpop.f32.mrb[0].mxu0
    %1865 = vmatprep.mubr.f32.mxu0 %v626
    %1866 = vmatmul.mubr.f32.gmra.mrb[0].mxu0 %v562
    %v1867 = vpop.f32.mrb[0].mxu0
    %v1868 = vadd.f32 %v1483, %v1867
    %v1869 = vpop.f32.mrb[0].mxu0
    %1870 = vmatprep.mubr.f32.mxu0 %v627
    %1871 = vmatmul.mubr.f32.gmra.mrb[0].mxu0 %v563
    %v1872 = vpop.f32.mrb[0].mxu0
    %v1873 = vadd.f32 %v1488, %v1872
    %v1874 = vpop.f32.mrb[0].mxu0
    %1875 = vmatprep.mubr.f32.mxu0 %v628
    %1876 = vmatmul.mubr.f32.gmra.mrb[0].mxu0 %v564
    %v1877 = vpop.f32.mrb[0].mxu0
    %v1878 = vadd.f32 %v1493, %v1877
    %v1879 = vpop.f32.mrb[0].mxu0
    %1880 = vmatprep.mubr.f32.mxu0 %v629
    %1881 = vmatmul.mubr.f32.gmra.mrb[0].mxu0 %v565
    %v1882 = vpop.f32.mrb[0].mxu0
    %v1883 = vadd.f32 %v1498, %v1882
    %v1884 = vpop.f32.mrb[0].mxu0
    %1885 = vmatprep.mubr.f32.mxu0 %v630
    %1886 = vmatmul.mubr.f32.gmra.mrb[0].mxu0 %v566
    %v1887 = vpop.f32.mrb[0].mxu0
    %v1888 = vadd.f32 %v1503, %v1887
    %v1889 = vpop.f32.mrb[0].mxu0
    %1890 = vmatprep.mubr.f32.mxu0 %v631
    %1891 = vmatmul.mubr.f32.gmra.mrb[0].mxu0 %v567
    %v1892 = vpop.f32.mrb[0].mxu0
    %v1893 = vadd.f32 %v1508, %v1892
    %v1894 = vpop.f32.mrb[0].mxu0
    %1895 = vmatprep.mubr.f32.mxu0 %v632
    %1896 = vmatmul.mubr.f32.gmra.mrb[0].mxu0 %v568
    %v1897 = vpop.f32.mrb[0].mxu0
    %v1898 = vadd.f32 %v1513, %v1897
    %v1899 = vpop.f32.mrb[0].mxu0
    %1900 = vmatprep.mubr.f32.mxu0 %v633
    %1901 = vmatmul.mubr.f32.gmra.mrb[0].mxu0 %v569
    %v1902 = vpop.f32.mrb[0].mxu0
    %v1903 = vadd.f32 %v1518, %v1902
    %v1904 = vpop.f32.mrb[0].mxu0
    %1905 = vmatprep.mubr.f32.mxu0 %v634
    %1906 = vmatmul.mubr.f32.gmra.mrb[0].mxu0 %v570
    %v1907 = vpop.f32.mrb[0].mxu0
    %v1908 = vadd.f32 %v1523, %v1907
    %v1909 = vpop.f32.mrb[0].mxu0
    %1910 = vmatprep.mubr.f32.mxu0 %v635
    %1911 = vmatmul.mubr.f32.gmra.mrb[0].mxu0 %v571
    %v1912 = vpop.f32.mrb[0].mxu0
    %v1913 = vadd.f32 %v1528, %v1912
    %v1914 = vpop.f32.mrb[0].mxu0
    %1915 = vmatprep.mubr.f32.mxu0 %v636
    %1916 = vmatmul.mubr.f32.gmra.mrb[0].mxu0 %v572
    %v1917 = vpop.f32.mrb[0].mxu0
    %v1918 = vadd.f32 %v1533, %v1917
    %v1919 = vpop.f32.mrb[0].mxu0
    %1920 = vmatprep.mubr.f32.mxu0 %v637
    %1921 = vmatmul.mubr.f32.gmra.mrb[0].mxu0 %v573
    %v1922 = vpop.f32.mrb[0].mxu0
    %v1923 = vadd.f32 %v1538, %v1922
    %v1924 = vpop.f32.mrb[0].mxu0
    %1925 = vmatprep.mubr.f32.mxu0 %v638
    %1926 = vmatmul.mubr.f32.gmra.mrb[0].mxu0 %v574
    %v1927 = vpop.f32.mrb[0].mxu0
    %v1928 = vadd.f32 %v1543, %v1927
    %v1929 = vpop.f32.mrb[0].mxu0
    %1930 = vmatprep.mubr.f32.mxu0 %v639
    %1931 = vmatmul.mubr.f32.gmra.mrb[0].mxu0 %v575
    %v1932 = vpop.f32.mrb[0].mxu0
    %v1933 = vadd.f32 %v1548, %v1932
    %v1934 = vpop.f32.mrb[0].mxu0
    %1935 = vmatprep.mubr.f32.mxu0 %v640
    %1936 = vmatmul.mubr.f32.gmra.mrb[0].mxu0 %v576
    %v1937 = vpop.f32.mrb[0].mxu0
    %v1938 = vadd.f32 %v1553, %v1937
    %v1939 = vpop.f32.mrb[0].mxu0
    %1940 = vmatprep.mubr.f32.mxu0 %v641
    %1941 = vmatmul.mubr.f32.gmra.mrb[0].mxu0 %v577
    %v1942 = vpop.f32.mrb[0].mxu0
    %v1943 = vadd.f32 %v1558, %v1942
    %v1944 = vpop.f32.mrb[0].mxu0
    %1945 = vmatprep.mubr.f32.mxu0 %v642
    %1946 = vmatmul.mubr.f32.gmra.mrb[0].mxu0 %v578
    %v1947 = vpop.f32.mrb[0].mxu0
    %v1948 = vadd.f32 %v1563, %v1947
    %v1949 = vpop.f32.mrb[0].mxu0
    %1950 = vmatprep.mubr.f32.mxu0 %v643
    %1951 = vmatmul.mubr.f32.gmra.mrb[0].mxu0 %v579
    %v1952 = vpop.f32.mrb[0].mxu0
    %v1953 = vadd.f32 %v1568, %v1952
    %v1954 = vpop.f32.mrb[0].mxu0
    %1955 = vmatprep.mubr.f32.mxu0 %v644
    %1956 = vmatmul.mubr.f32.gmra.mrb[0].mxu0 %v580
    %v1957 = vpop.f32.mrb[0].mxu0
    %v1958 = vadd.f32 %v1573, %v1957
    %v1959 = vpop.f32.mrb[0].mxu0
    %1960 = vmatprep.mubr.f32.mxu0 %v645
    %1961 = vmatmul.mubr.f32.gmra.mrb[0].mxu0 %v581
    %v1962 = vpop.f32.mrb[0].mxu0
    %v1963 = vadd.f32 %v1578, %v1962
    %v1964 = vpop.f32.mrb[0].mxu0
    %1965 = vmatprep.mubr.f32.mxu0 %v646
    %1966 = vmatmul.mubr.f32.gmra.mrb[0].mxu0 %v582
    %v1967 = vpop.f32.mrb[0].mxu0
    %v1968 = vadd.f32 %v1583, %v1967
    %v1969 = vpop.f32.mrb[0].mxu0
    %1970 = vmatprep.mubr.f32.mxu0 %v647
    %1971 = vmatmul.mubr.f32.gmra.mrb[0].mxu0 %v583
    %v1972 = vpop.f32.mrb[0].mxu0
    %v1973 = vadd.f32 %v1588, %v1972
    %v1974 = vpop.f32.mrb[0].mxu0
    %1975 = vmatprep.mubr.f32.mxu0 %v648
    %1976 = vmatmul.mubr.f32.gmra.mrb[0].mxu0 %v584
    %v1977 = vpop.f32.mrb[0].mxu0
    %v1978 = vadd.f32 %v1593, %v1977
    %v1979 = vpop.f32.mrb[0].mxu0
    %1980 = vmatprep.mubr.f32.mxu0 %v649
    %1981 = vmatmul.mubr.f32.gmra.mrb[0].mxu0 %v585
    %v1982 = vpop.f32.mrb[0].mxu0
    %v1983 = vadd.f32 %v1598, %v1982
    %v1984 = vpop.f32.mrb[0].mxu0
    %1985 = vmatprep.mubr.f32.mxu0 %v650
    %1986 = vmatmul.mubr.f32.gmra.mrb[0].mxu0 %v586
    %v1987 = vpop.f32.mrb[0].mxu0
    %v1988 = vadd.f32 %v1603, %v1987
    %v1989 = vpop.f32.mrb[0].mxu0
    %1990 = vmatprep.mubr.f32.mxu0 %v651
    %1991 = vmatmul.mubr.f32.gmra.mrb[0].mxu0 %v587
    %v1992 = vpop.f32.mrb[0].mxu0
    %v1993 = vadd.f32 %v1608, %v1992
    %v1994 = vpop.f32.mrb[0].mxu0
    %1995 = vmatprep.mubr.f32.mxu0 %v652
    %1996 = vmatmul.mubr.f32.gmra.mrb[0].mxu0 %v588
    %v1997 = vpop.f32.mrb[0].mxu0
    %v1998 = vadd.f32 %v1613, %v1997
    %v1999 = vpop.f32.mrb[0].mxu0
    %2000 = vmatprep.mubr.f32.mxu0 %v653
    %2001 = vmatmul.mubr.f32.gmra.mrb[0].mxu0 %v589
    %v2002 = vpop.f32.mrb[0].mxu0
    %v2003 = vadd.f32 %v1618, %v2002
    %v2004 = vpop.f32.mrb[0].mxu0
    %2005 = vmatprep.mubr.f32.mxu0 %v654
    %2006 = vmatmul.mubr.f32.gmra.mrb[0].mxu0 %v590
    %v2007 = vpop.f32.mrb[0].mxu0
    %v2008 = vadd.f32 %v1623, %v2007
    %v2009 = vpop.f32.mrb[0].mxu0
    %2010 = vmatprep.mubr.f32.mxu0 %v655
    %2011 = vmatmul.mubr.f32.gmra.mrb[0].mxu0 %v591
    %v2012 = vpop.f32.mrb[0].mxu0
    %v2013 = vadd.f32 %v1628, %v2012
    %v2014 = vpop.f32.mrb[0].mxu0
    %2015 = vmatprep.mubr.f32.mxu0 %v656
    %2016 = vmatmul.mubr.f32.gmra.mrb[0].mxu0 %v592
    %v2017 = vpop.f32.mrb[0].mxu0
    %v2018 = vadd.f32 %v1633, %v2017
    %v2019 = vpop.f32.mrb[0].mxu0
    %2020 = vmatprep.mubr.f32.mxu0 %v657
    %2021 = vmatmul.mubr.f32.gmra.mrb[0].mxu0 %v593
    %v2022 = vpop.f32.mrb[0].mxu0
    %v2023 = vadd.f32 %v1638, %v2022
    %v2024 = vpop.f32.mrb[0].mxu0
    %2025 = vmatprep.mubr.f32.mxu0 %v658
    %2026 = vmatmul.mubr.f32.gmra.mrb[0].mxu0 %v594
    %v2027 = vpop.f32.mrb[0].mxu0
    %v2028 = vadd.f32 %v1643, %v2027
    %v2029 = vpop.f32.mrb[0].mxu0
    %2030 = vmatprep.mubr.f32.mxu0 %v659
    %2031 = vmatmul.mubr.f32.gmra.mrb[0].mxu0 %v595
    %v2032 = vpop.f32.mrb[0].mxu0
    %v2033 = vadd.f32 %v1648, %v2032
    %v2034 = vpop.f32.mrb[0].mxu0
    %2035 = vmatprep.mubr.f32.mxu0 %v660
    %2036 = vmatmul.mubr.f32.gmra.mrb[0].mxu0 %v596
    %v2037 = vpop.f32.mrb[0].mxu0
    %v2038 = vadd.f32 %v1653, %v2037
    %v2039 = vpop.f32.mrb[0].mxu0
    %2040 = vmatprep.mubr.f32.mxu0 %v661
    %2041 = vmatmul.mubr.f32.gmra.mrb[0].mxu0 %v597
    %v2042 = vpop.f32.mrb[0].mxu0
    %v2043 = vadd.f32 %v1658, %v2042
    %v2044 = vpop.f32.mrb[0].mxu0
    %2045 = vmatprep.mubr.f32.mxu0 %v662
    %2046 = vmatmul.mubr.f32.gmra.mrb[0].mxu0 %v598
    %v2047 = vpop.f32.mrb[0].mxu0
    %v2048 = vadd.f32 %v1663, %v2047
    %v2049 = vpop.f32.mrb[0].mxu0
    %2050 = vmatprep.mubr.f32.mxu0 %v663
    %2051 = vmatmul.mubr.f32.gmra.mrb[0].mxu0 %v599
    %v2052 = vpop.f32.mrb[0].mxu0
    %v2053 = vadd.f32 %v1668, %v2052
    %v2054 = vpop.f32.mrb[0].mxu0
    %2055 = vmatprep.mubr.f32.mxu0 %v664
    %2056 = vmatmul.mubr.f32.gmra.mrb[0].mxu0 %v600
    %v2057 = vpop.f32.mrb[0].mxu0
    %v2058 = vadd.f32 %v1673, %v2057
    %v2059 = vpop.f32.mrb[0].mxu0
    %2060 = vmatprep.mubr.f32.mxu0 %v665
    %2061 = vmatmul.mubr.f32.gmra.mrb[0].mxu0 %v601
    %v2062 = vpop.f32.mrb[0].mxu0
    %v2063 = vadd.f32 %v1678, %v2062
    %v2064 = vpop.f32.mrb[0].mxu0
    %2065 = vmatprep.mubr.f32.mxu0 %v666
    %2066 = vmatmul.mubr.f32.gmra.mrb[0].mxu0 %v602
    %v2067 = vpop.f32.mrb[0].mxu0
    %v2068 = vadd.f32 %v1683, %v2067
    %v2069 = vpop.f32.mrb[0].mxu0
    %2070 = vmatprep.mubr.f32.mxu0 %v667
    %2071 = vmatmul.mubr.f32.gmra.mrb[0].mxu0 %v603
    %v2072 = vpop.f32.mrb[0].mxu0
    %v2073 = vadd.f32 %v1688, %v2072
    %v2074 = vpop.f32.mrb[0].mxu0
    %2075 = vmatprep.mubr.f32.mxu0 %v668
    %2076 = vmatmul.mubr.f32.gmra.mrb[0].mxu0 %v604
    %v2077 = vpop.f32.mrb[0].mxu0
    %v2078 = vadd.f32 %v1693, %v2077
    %v2079 = vpop.f32.mrb[0].mxu0
    %2080 = vmatprep.mubr.f32.mxu0 %v669
    %2081 = vmatmul.mubr.f32.gmra.mrb[0].mxu0 %v605
    %v2082 = vpop.f32.mrb[0].mxu0
    %v2083 = vadd.f32 %v1698, %v2082
    %v2084 = vpop.f32.mrb[0].mxu0
    %2085 = vmatprep.mubr.f32.mxu0 %v670
    %2086 = vmatmul.mubr.f32.gmra.mrb[0].mxu0 %v606
    %v2087 = vpop.f32.mrb[0].mxu0
    %v2088 = vadd.f32 %v1703, %v2087
    %v2089 = vpop.f32.mrb[0].mxu0
    %2090 = vmatprep.mubr.f32.mxu0 %v671
    %2091 = vmatmul.mubr.f32.gmra.mrb[0].mxu0 %v607
    %v2092 = vpop.f32.mrb[0].mxu0
    %v2093 = vadd.f32 %v1708, %v2092
    %v2094 = vpop.f32.mrb[0].mxu0
    %2095 = vmatprep.mubr.f32.mxu0 %v672
    %2096 = vmatmul.mubr.f32.gmra.mrb[0].mxu0 %v608
    %v2097 = vpop.f32.mrb[0].mxu0
    %v2098 = vadd.f32 %v1713, %v2097
    %v2099 = vpop.f32.mrb[0].mxu0
    %2100 = vmatprep.mubr.f32.mxu0 %v673
    %2101 = vmatmul.mubr.f32.gmra.mrb[0].mxu0 %v609
    %v2102 = vpop.f32.mrb[0].mxu0
    %v2103 = vadd.f32 %v1718, %v2102
    %v2104 = vpop.f32.mrb[0].mxu0
    %2105 = vmatprep.mubr.f32.mxu0 %v674
    %2106 = vmatmul.mubr.f32.gmra.mrb[0].mxu0 %v610
    %v2107 = vpop.f32.mrb[0].mxu0
    %v2108 = vadd.f32 %v1723, %v2107
    %v2109 = vpop.f32.mrb[0].mxu0
    %2110 = vmatprep.mubr.f32.mxu0 %v675
    %2111 = vmatmul.mubr.f32.gmra.mrb[0].mxu0 %v611
    %v2112 = vpop.f32.mrb[0].mxu0
    %v2113 = vadd.f32 %v1728, %v2112
    %v2114 = vpop.f32.mrb[0].mxu0
    %2115 = vmatprep.mubr.f32.mxu0 %v676
    %2116 = vmatmul.mubr.f32.gmra.mrb[0].mxu0 %v612
    %v2117 = vpop.f32.mrb[0].mxu0
    %v2118 = vadd.f32 %v1733, %v2117
    %v2119 = vpop.f32.mrb[0].mxu0
    %2120 = vmatprep.mubr.f32.mxu0 %v677
    %2121 = vmatmul.mubr.f32.gmra.mrb[0].mxu0 %v613
    %v2122 = vpop.f32.mrb[0].mxu0
    %v2123 = vadd.f32 %v1738, %v2122
    %v2124 = vpop.f32.mrb[0].mxu0
    %2125 = vmatprep.mubr.f32.mxu0 %v678
    %2126 = vmatmul.mubr.f32.gmra.mrb[0].mxu0 %v614
    %v2127 = vpop.f32.mrb[0].mxu0
    %v2128 = vadd.f32 %v1743, %v2127
    %v2129 = vpop.f32.mrb[0].mxu0
    %2130 = vmatprep.mubr.f32.mxu0 %v679
    %2131 = vmatmul.mubr.f32.gmra.mrb[0].mxu0 %v615
    %v2132 = vpop.f32.mrb[0].mxu0
    %v2133 = vadd.f32 %v1748, %v2132
    %v2134 = vpop.f32.mrb[0].mxu0
    %2135 = vmatprep.mubr.f32.mxu0 %v680
    %2136 = vmatmul.mubr.f32.gmra.mrb[0].mxu0 %v616
    %v2137 = vpop.f32.mrb[0].mxu0
    %v2138 = vadd.f32 %v1753, %v2137
    %v2139 = vpop.f32.mrb[0].mxu0
    %2140 = vmatprep.mubr.f32.mxu0 %v681
    %2141 = vmatmul.mubr.f32.gmra.mrb[0].mxu0 %v617
    %v2142 = vpop.f32.mrb[0].mxu0
    %v2143 = vadd.f32 %v1758, %v2142
    %v2144 = vpop.f32.mrb[0].mxu0
    %2145 = vmatprep.mubr.f32.mxu0 %v682
    %2146 = vmatmul.mubr.f32.gmra.mrb[0].mxu0 %v618
    %v2147 = vpop.f32.mrb[0].mxu0
    %v2148 = vadd.f32 %v1763, %v2147
    %v2149 = vpop.f32.mrb[0].mxu0
    %2150 = vmatprep.mubr.f32.mxu0 %v683
    %2151 = vmatmul.mubr.f32.gmra.mrb[0].mxu0 %v619
    %v2152 = vpop.f32.mrb[0].mxu0
    %v2153 = vadd.f32 %v1768, %v2152
    %v2154 = vpop.f32.mrb[0].mxu0
    %2155 = vmatprep.mubr.f32.mxu0 %v684
    %2156 = vmatmul.mubr.f32.gmra.mrb[0].mxu0 %v620
    %v2157 = vpop.f32.mrb[0].mxu0
    %v2158 = vadd.f32 %v1773, %v2157
    %v2159 = vpop.f32.mrb[0].mxu0
    %2160 = vmatprep.mubr.f32.mxu0 %v685
    %2161 = vmatmul.mubr.f32.gmra.mrb[0].mxu0 %v621
    %v2162 = vpop.f32.mrb[0].mxu0
    %v2163 = vadd.f32 %v1778, %v2162
    %v2164 = vpop.f32.mrb[0].mxu0
    %2165 = vmatprep.mubr.f32.mxu0 %v686
    %2166 = vmatmul.mubr.f32.gmra.mrb[0].mxu0 %v622
    %v2167 = vpop.f32.mrb[0].mxu0
    %v2168 = vadd.f32 %v1783, %v2167
    %v2169 = vpop.f32.mrb[0].mxu0
    %2170 = vmatprep.mubr.f32.mxu0 %v687
    %2171 = vmatmul.mubr.f32.gmra.mrb[0].mxu0 %v623
    %v2172 = vpop.f32.mrb[0].mxu0
    %v2173 = vadd.f32 %v1788, %v2172
    %v2174 = vpop.f32.mrb[0].mxu0
    %2175 = vmatprep.mubr.f32.mxu0 %v688
    %2176 = vmatmul.mubr.f32.gmra.mrb[0].mxu0 %v624
    %v2177 = vpop.f32.mrb[0].mxu0
    %v2178 = vadd.f32 %v1793, %v2177
    %v2179 = vpop.f32.mrb[0].mxu0
    %2180 = vdwg.mxu0
    %2181 = vmatprep.subr.mxu0 0.0
    %2182 = vmatpush1.msra.mxu0 %v978
    %2183 = vmatprep.subr.mxu0 0.0
    %2184 = vmatpush1.msra.mxu0 %v979
    %2185 = vmatprep.subr.mxu0 0.0
    %2186 = vmatpush1.msra.mxu0 %v980
    %2187 = vmatprep.subr.mxu0 0.0
    %2188 = vmatpush1.msra.mxu0 %v981
    %2189 = vmatprep.subr.mxu0 0.0
    %2190 = vmatpush1.msra.mxu0 %v982
    %2191 = vmatprep.subr.mxu0 0.0
    %2192 = vmatpush1.msra.mxu0 %v983
    %2193 = vmatprep.subr.mxu0 0.0
    %2194 = vmatpush1.msra.mxu0 %v984
    %2195 = vmatprep.subr.mxu0 0.0
    %2196 = vmatpush1.msra.mxu0 %v985
    %2197 = vmatprep.subr.mxu0 0.0
    %2198 = vmatpush1.msra.mxu0 %v986
    %2199 = vmatprep.subr.mxu0 0.0
    %2200 = vmatpush1.msra.mxu0 %v987
    %2201 = vmatprep.subr.mxu0 0.0
    %2202 = vmatpush1.msra.mxu0 %v988
    %2203 = vmatprep.subr.mxu0 0.0
    %2204 = vmatpush1.msra.mxu0 %v989
    %2205 = vmatprep.subr.mxu0 0.0
    %2206 = vmatpush1.msra.mxu0 %v990
    %2207 = vmatprep.subr.mxu0 0.0
    %2208 = vmatpush1.msra.mxu0 %v991
    %2209 = vmatprep.subr.mxu0 0.0
    %2210 = vmatpush1.msra.mxu0 %v992
    %2211 = vmatprep.subr.mxu0 0.0
    %2212 = vmatpush1.msra.mxu0 %v993
    %2213 = vmatprep.subr.mxu0 0.0
    %2214 = vmatpush1.msra.mxu0 %v994
    %2215 = vmatprep.subr.mxu0 0.0
    %2216 = vmatpush1.msra.mxu0 %v995
    %2217 = vmatprep.subr.mxu0 0.0
    %2218 = vmatpush1.msra.mxu0 %v996
    %2219 = vmatprep.subr.mxu0 0.0
    %2220 = vmatpush1.msra.mxu0 %v997
    %2221 = vmatprep.subr.mxu0 0.0
    %2222 = vmatpush1.msra.mxu0 %v998
    %2223 = vmatprep.subr.mxu0 0.0
    %2224 = vmatpush1.msra.mxu0 %v999
    %2225 = vmatprep.subr.mxu0 0.0
    %2226 = vmatpush1.msra.mxu0 %v1000
    %2227 = vmatprep.subr.mxu0 0.0
    %2228 = vmatpush1.msra.mxu0 %v1001
    %2229 = vmatprep.subr.mxu0 0.0
    %2230 = vmatpush1.msra.mxu0 %v1002
    %2231 = vmatprep.subr.mxu0 0.0
    %2232 = vmatpush1.msra.mxu0 %v1003
    %2233 = vmatprep.subr.mxu0 0.0
    %2234 = vmatpush1.msra.mxu0 %v1004
    %2235 = vmatprep.subr.mxu0 0.0
    %2236 = vmatpush1.msra.mxu0 %v1005
    %2237 = vmatprep.subr.mxu0 0.0
    %2238 = vmatpush1.msra.mxu0 %v1006
    %2239 = vmatprep.subr.mxu0 0.0
    %2240 = vmatpush1.msra.mxu0 %v1007
    %2241 = vmatprep.subr.mxu0 0.0
    %2242 = vmatpush1.msra.mxu0 %v1008
    %2243 = vmatprep.subr.mxu0 0.0
    %2244 = vmatpush1.msra.mxu0 %v1009
    %2245 = vmatprep.mubr.f32.mxu0 %v754
    %2246 = vmatmul.mubr.f32.gmra.mrb[0].mxu0 %v690
    %v2247 = vpop.f32.mrb[0].mxu0
    %v2248 = vadd.f32 %v1863, %v2247
    %v2249 = vpop.f32.mrb[0].mxu0
    %2250 = vmatprep.mubr.f32.mxu0 %v755
    %2251 = vmatmul.mubr.f32.gmra.mrb[0].mxu0 %v691
    %v2252 = vpop.f32.mrb[0].mxu0
    %v2253 = vadd.f32 %v1868, %v2252
    %v2254 = vpop.f32.mrb[0].mxu0
    %2255 = vmatprep.mubr.f32.mxu0 %v756
    %2256 = vmatmul.mubr.f32.gmra.mrb[0].mxu0 %v692
    %v2257 = vpop.f32.mrb[0].mxu0
    %v2258 = vadd.f32 %v1873, %v2257
    %v2259 = vpop.f32.mrb[0].mxu0
    %2260 = vmatprep.mubr.f32.mxu0 %v757
    %2261 = vmatmul.mubr.f32.gmra.mrb[0].mxu0 %v693
    %v2262 = vpop.f32.mrb[0].mxu0
    %v2263 = vadd.f32 %v1878, %v2262
    %v2264 = vpop.f32.mrb[0].mxu0
    %2265 = vmatprep.mubr.f32.mxu0 %v758
    %2266 = vmatmul.mubr.f32.gmra.mrb[0].mxu0 %v694
    %v2267 = vpop.f32.mrb[0].mxu0
    %v2268 = vadd.f32 %v1883, %v2267
    %v2269 = vpop.f32.mrb[0].mxu0
    %2270 = vmatprep.mubr.f32.mxu0 %v759
    %2271 = vmatmul.mubr.f32.gmra.mrb[0].mxu0 %v695
    %v2272 = vpop.f32.mrb[0].mxu0
    %v2273 = vadd.f32 %v1888, %v2272
    %v2274 = vpop.f32.mrb[0].mxu0
    %2275 = vmatprep.mubr.f32.mxu0 %v760
    %2276 = vmatmul.mubr.f32.gmra.mrb[0].mxu0 %v696
    %v2277 = vpop.f32.mrb[0].mxu0
    %v2278 = vadd.f32 %v1893, %v2277
    %v2279 = vpop.f32.mrb[0].mxu0
    %2280 = vmatprep.mubr.f32.mxu0 %v761
    %2281 = vmatmul.mubr.f32.gmra.mrb[0].mxu0 %v697
    %v2282 = vpop.f32.mrb[0].mxu0
    %v2283 = vadd.f32 %v1898, %v2282
    %v2284 = vpop.f32.mrb[0].mxu0
    %2285 = vmatprep.mubr.f32.mxu0 %v762
    %2286 = vmatmul.mubr.f32.gmra.mrb[0].mxu0 %v698
    %v2287 = vpop.f32.mrb[0].mxu0
    %v2288 = vadd.f32 %v1903, %v2287
    %v2289 = vpop.f32.mrb[0].mxu0
    %2290 = vmatprep.mubr.f32.mxu0 %v763
    %2291 = vmatmul.mubr.f32.gmra.mrb[0].mxu0 %v699
    %v2292 = vpop.f32.mrb[0].mxu0
    %v2293 = vadd.f32 %v1908, %v2292
    %v2294 = vpop.f32.mrb[0].mxu0
    %2295 = vmatprep.mubr.f32.mxu0 %v764
    %2296 = vmatmul.mubr.f32.gmra.mrb[0].mxu0 %v700
    %v2297 = vpop.f32.mrb[0].mxu0
    %v2298 = vadd.f32 %v1913, %v2297
    %v2299 = vpop.f32.mrb[0].mxu0
    %2300 = vmatprep.mubr.f32.mxu0 %v765
    %2301 = vmatmul.mubr.f32.gmra.mrb[0].mxu0 %v701
    %v2302 = vpop.f32.mrb[0].mxu0
    %v2303 = vadd.f32 %v1918, %v2302
    %v2304 = vpop.f32.mrb[0].mxu0
    %2305 = vmatprep.mubr.f32.mxu0 %v766
    %2306 = vmatmul.mubr.f32.gmra.mrb[0].mxu0 %v702
    %v2307 = vpop.f32.mrb[0].mxu0
    %v2308 = vadd.f32 %v1923, %v2307
    %v2309 = vpop.f32.mrb[0].mxu0
    %2310 = vmatprep.mubr.f32.mxu0 %v767
    %2311 = vmatmul.mubr.f32.gmra.mrb[0].mxu0 %v703
    %v2312 = vpop.f32.mrb[0].mxu0
    %v2313 = vadd.f32 %v1928, %v2312
    %v2314 = vpop.f32.mrb[0].mxu0
    %2315 = vmatprep.mubr.f32.mxu0 %v768
    %2316 = vmatmul.mubr.f32.gmra.mrb[0].mxu0 %v704
    %v2317 = vpop.f32.mrb[0].mxu0
    %v2318 = vadd.f32 %v1933, %v2317
    %v2319 = vpop.f32.mrb[0].mxu0
    %2320 = vmatprep.mubr.f32.mxu0 %v769
    %2321 = vmatmul.mubr.f32.gmra.mrb[0].mxu0 %v705
    %v2322 = vpop.f32.mrb[0].mxu0
    %v2323 = vadd.f32 %v1938, %v2322
    %v2324 = vpop.f32.mrb[0].mxu0
    %2325 = vmatprep.mubr.f32.mxu0 %v770
    %2326 = vmatmul.mubr.f32.gmra.mrb[0].mxu0 %v706
    %v2327 = vpop.f32.mrb[0].mxu0
    %v2328 = vadd.f32 %v1943, %v2327
    %v2329 = vpop.f32.mrb[0].mxu0
    %2330 = vmatprep.mubr.f32.mxu0 %v771
    %2331 = vmatmul.mubr.f32.gmra.mrb[0].mxu0 %v707
    %v2332 = vpop.f32.mrb[0].mxu0
    %v2333 = vadd.f32 %v1948, %v2332
    %v2334 = vpop.f32.mrb[0].mxu0
    %2335 = vmatprep.mubr.f32.mxu0 %v772
    %2336 = vmatmul.mubr.f32.gmra.mrb[0].mxu0 %v708
    %v2337 = vpop.f32.mrb[0].mxu0
    %v2338 = vadd.f32 %v1953, %v2337
    %v2339 = vpop.f32.mrb[0].mxu0
    %2340 = vmatprep.mubr.f32.mxu0 %v773
    %2341 = vmatmul.mubr.f32.gmra.mrb[0].mxu0 %v709
    %v2342 = vpop.f32.mrb[0].mxu0
    %v2343 = vadd.f32 %v1958, %v2342
    %v2344 = vpop.f32.mrb[0].mxu0
    %2345 = vmatprep.mubr.f32.mxu0 %v774
    %2346 = vmatmul.mubr.f32.gmra.mrb[0].mxu0 %v710
    %v2347 = vpop.f32.mrb[0].mxu0
    %v2348 = vadd.f32 %v1963, %v2347
    %v2349 = vpop.f32.mrb[0].mxu0
    %2350 = vmatprep.mubr.f32.mxu0 %v775
    %2351 = vmatmul.mubr.f32.gmra.mrb[0].mxu0 %v711
    %v2352 = vpop.f32.mrb[0].mxu0
    %v2353 = vadd.f32 %v1968, %v2352
    %v2354 = vpop.f32.mrb[0].mxu0
    %2355 = vmatprep.mubr.f32.mxu0 %v776
    %2356 = vmatmul.mubr.f32.gmra.mrb[0].mxu0 %v712
    %v2357 = vpop.f32.mrb[0].mxu0
    %v2358 = vadd.f32 %v1973, %v2357
    %v2359 = vpop.f32.mrb[0].mxu0
    %2360 = vmatprep.mubr.f32.mxu0 %v777
    %2361 = vmatmul.mubr.f32.gmra.mrb[0].mxu0 %v713
    %v2362 = vpop.f32.mrb[0].mxu0
    %v2363 = vadd.f32 %v1978, %v2362
    %v2364 = vpop.f32.mrb[0].mxu0
    %2365 = vmatprep.mubr.f32.mxu0 %v778
    %2366 = vmatmul.mubr.f32.gmra.mrb[0].mxu0 %v714
    %v2367 = vpop.f32.mrb[0].mxu0
    %v2368 = vadd.f32 %v1983, %v2367
    %v2369 = vpop.f32.mrb[0].mxu0
    %2370 = vmatprep.mubr.f32.mxu0 %v779
    %2371 = vmatmul.mubr.f32.gmra.mrb[0].mxu0 %v715
    %v2372 = vpop.f32.mrb[0].mxu0
    %v2373 = vadd.f32 %v1988, %v2372
    %v2374 = vpop.f32.mrb[0].mxu0
    %2375 = vmatprep.mubr.f32.mxu0 %v780
    %2376 = vmatmul.mubr.f32.gmra.mrb[0].mxu0 %v716
    %v2377 = vpop.f32.mrb[0].mxu0
    %v2378 = vadd.f32 %v1993, %v2377
    %v2379 = vpop.f32.mrb[0].mxu0
    %2380 = vmatprep.mubr.f32.mxu0 %v781
    %2381 = vmatmul.mubr.f32.gmra.mrb[0].mxu0 %v717
    %v2382 = vpop.f32.mrb[0].mxu0
    %v2383 = vadd.f32 %v1998, %v2382
    %v2384 = vpop.f32.mrb[0].mxu0
    %2385 = vmatprep.mubr.f32.mxu0 %v782
    %2386 = vmatmul.mubr.f32.gmra.mrb[0].mxu0 %v718
    %v2387 = vpop.f32.mrb[0].mxu0
    %v2388 = vadd.f32 %v2003, %v2387
    %v2389 = vpop.f32.mrb[0].mxu0
    %2390 = vmatprep.mubr.f32.mxu0 %v783
    %2391 = vmatmul.mubr.f32.gmra.mrb[0].mxu0 %v719
    %v2392 = vpop.f32.mrb[0].mxu0
    %v2393 = vadd.f32 %v2008, %v2392
    %v2394 = vpop.f32.mrb[0].mxu0
    %2395 = vmatprep.mubr.f32.mxu0 %v784
    %2396 = vmatmul.mubr.f32.gmra.mrb[0].mxu0 %v720
    %v2397 = vpop.f32.mrb[0].mxu0
    %v2398 = vadd.f32 %v2013, %v2397
    %v2399 = vpop.f32.mrb[0].mxu0
    %2400 = vmatprep.mubr.f32.mxu0 %v785
    %2401 = vmatmul.mubr.f32.gmra.mrb[0].mxu0 %v721
    %v2402 = vpop.f32.mrb[0].mxu0
    %v2403 = vadd.f32 %v2018, %v2402
    %v2404 = vpop.f32.mrb[0].mxu0
    %2405 = vmatprep.mubr.f32.mxu0 %v786
    %2406 = vmatmul.mubr.f32.gmra.mrb[0].mxu0 %v722
    %v2407 = vpop.f32.mrb[0].mxu0
    %v2408 = vadd.f32 %v2023, %v2407
    %v2409 = vpop.f32.mrb[0].mxu0
    %2410 = vmatprep.mubr.f32.mxu0 %v787
    %2411 = vmatmul.mubr.f32.gmra.mrb[0].mxu0 %v723
    %v2412 = vpop.f32.mrb[0].mxu0
    %v2413 = vadd.f32 %v2028, %v2412
    %v2414 = vpop.f32.mrb[0].mxu0
    %2415 = vmatprep.mubr.f32.mxu0 %v788
    %2416 = vmatmul.mubr.f32.gmra.mrb[0].mxu0 %v724
    %v2417 = vpop.f32.mrb[0].mxu0
    %v2418 = vadd.f32 %v2033, %v2417
    %v2419 = vpop.f32.mrb[0].mxu0
    %2420 = vmatprep.mubr.f32.mxu0 %v789
    %2421 = vmatmul.mubr.f32.gmra.mrb[0].mxu0 %v725
    %v2422 = vpop.f32.mrb[0].mxu0
    %v2423 = vadd.f32 %v2038, %v2422
    %v2424 = vpop.f32.mrb[0].mxu0
    %2425 = vmatprep.mubr.f32.mxu0 %v790
    %2426 = vmatmul.mubr.f32.gmra.mrb[0].mxu0 %v726
    %v2427 = vpop.f32.mrb[0].mxu0
    %v2428 = vadd.f32 %v2043, %v2427
    %v2429 = vpop.f32.mrb[0].mxu0
    %2430 = vmatprep.mubr.f32.mxu0 %v791
    %2431 = vmatmul.mubr.f32.gmra.mrb[0].mxu0 %v727
    %v2432 = vpop.f32.mrb[0].mxu0
    %v2433 = vadd.f32 %v2048, %v2432
    %v2434 = vpop.f32.mrb[0].mxu0
    %2435 = vmatprep.mubr.f32.mxu0 %v792
    %2436 = vmatmul.mubr.f32.gmra.mrb[0].mxu0 %v728
    %v2437 = vpop.f32.mrb[0].mxu0
    %v2438 = vadd.f32 %v2053, %v2437
    %v2439 = vpop.f32.mrb[0].mxu0
    %2440 = vmatprep.mubr.f32.mxu0 %v793
    %2441 = vmatmul.mubr.f32.gmra.mrb[0].mxu0 %v729
    %v2442 = vpop.f32.mrb[0].mxu0
    %v2443 = vadd.f32 %v2058, %v2442
    %v2444 = vpop.f32.mrb[0].mxu0
    %2445 = vmatprep.mubr.f32.mxu0 %v794
    %2446 = vmatmul.mubr.f32.gmra.mrb[0].mxu0 %v730
    %v2447 = vpop.f32.mrb[0].mxu0
    %v2448 = vadd.f32 %v2063, %v2447
    %v2449 = vpop.f32.mrb[0].mxu0
    %2450 = vmatprep.mubr.f32.mxu0 %v795
    %2451 = vmatmul.mubr.f32.gmra.mrb[0].mxu0 %v731
    %v2452 = vpop.f32.mrb[0].mxu0
    %v2453 = vadd.f32 %v2068, %v2452
    %v2454 = vpop.f32.mrb[0].mxu0
    %2455 = vmatprep.mubr.f32.mxu0 %v796
    %2456 = vmatmul.mubr.f32.gmra.mrb[0].mxu0 %v732
    %v2457 = vpop.f32.mrb[0].mxu0
    %v2458 = vadd.f32 %v2073, %v2457
    %v2459 = vpop.f32.mrb[0].mxu0
    %2460 = vmatprep.mubr.f32.mxu0 %v797
    %2461 = vmatmul.mubr.f32.gmra.mrb[0].mxu0 %v733
    %v2462 = vpop.f32.mrb[0].mxu0
    %v2463 = vadd.f32 %v2078, %v2462
    %v2464 = vpop.f32.mrb[0].mxu0
    %2465 = vmatprep.mubr.f32.mxu0 %v798
    %2466 = vmatmul.mubr.f32.gmra.mrb[0].mxu0 %v734
    %v2467 = vpop.f32.mrb[0].mxu0
    %v2468 = vadd.f32 %v2083, %v2467
    %v2469 = vpop.f32.mrb[0].mxu0
    %2470 = vmatprep.mubr.f32.mxu0 %v799
    %2471 = vmatmul.mubr.f32.gmra.mrb[0].mxu0 %v735
    %v2472 = vpop.f32.mrb[0].mxu0
    %v2473 = vadd.f32 %v2088, %v2472
    %v2474 = vpop.f32.mrb[0].mxu0
    %2475 = vmatprep.mubr.f32.mxu0 %v800
    %2476 = vmatmul.mubr.f32.gmra.mrb[0].mxu0 %v736
    %v2477 = vpop.f32.mrb[0].mxu0
    %v2478 = vadd.f32 %v2093, %v2477
    %v2479 = vpop.f32.mrb[0].mxu0
    %2480 = vmatprep.mubr.f32.mxu0 %v801
    %2481 = vmatmul.mubr.f32.gmra.mrb[0].mxu0 %v737
    %v2482 = vpop.f32.mrb[0].mxu0
    %v2483 = vadd.f32 %v2098, %v2482
    %v2484 = vpop.f32.mrb[0].mxu0
    %2485 = vmatprep.mubr.f32.mxu0 %v802
    %2486 = vmatmul.mubr.f32.gmra.mrb[0].mxu0 %v738
    %v2487 = vpop.f32.mrb[0].mxu0
    %v2488 = vadd.f32 %v2103, %v2487
    %v2489 = vpop.f32.mrb[0].mxu0
    %2490 = vmatprep.mubr.f32.mxu0 %v803
    %2491 = vmatmul.mubr.f32.gmra.mrb[0].mxu0 %v739
    %v2492 = vpop.f32.mrb[0].mxu0
    %v2493 = vadd.f32 %v2108, %v2492
    %v2494 = vpop.f32.mrb[0].mxu0
    %2495 = vmatprep.mubr.f32.mxu0 %v804
    %2496 = vmatmul.mubr.f32.gmra.mrb[0].mxu0 %v740
    %v2497 = vpop.f32.mrb[0].mxu0
    %v2498 = vadd.f32 %v2113, %v2497
    %v2499 = vpop.f32.mrb[0].mxu0
    %2500 = vmatprep.mubr.f32.mxu0 %v805
    %2501 = vmatmul.mubr.f32.gmra.mrb[0].mxu0 %v741
    %v2502 = vpop.f32.mrb[0].mxu0
    %v2503 = vadd.f32 %v2118, %v2502
    %v2504 = vpop.f32.mrb[0].mxu0
    %2505 = vmatprep.mubr.f32.mxu0 %v806
    %2506 = vmatmul.mubr.f32.gmra.mrb[0].mxu0 %v742
    %v2507 = vpop.f32.mrb[0].mxu0
    %v2508 = vadd.f32 %v2123, %v2507
    %v2509 = vpop.f32.mrb[0].mxu0
    %2510 = vmatprep.mubr.f32.mxu0 %v807
    %2511 = vmatmul.mubr.f32.gmra.mrb[0].mxu0 %v743
    %v2512 = vpop.f32.mrb[0].mxu0
    %v2513 = vadd.f32 %v2128, %v2512
    %v2514 = vpop.f32.mrb[0].mxu0
    %2515 = vmatprep.mubr.f32.mxu0 %v808
    %2516 = vmatmul.mubr.f32.gmra.mrb[0].mxu0 %v744
    %v2517 = vpop.f32.mrb[0].mxu0
    %v2518 = vadd.f32 %v2133, %v2517
    %v2519 = vpop.f32.mrb[0].mxu0
    %2520 = vmatprep.mubr.f32.mxu0 %v809
    %2521 = vmatmul.mubr.f32.gmra.mrb[0].mxu0 %v745
    %v2522 = vpop.f32.mrb[0].mxu0
    %v2523 = vadd.f32 %v2138, %v2522
    %v2524 = vpop.f32.mrb[0].mxu0
    %2525 = vmatprep.mubr.f32.mxu0 %v810
    %2526 = vmatmul.mubr.f32.gmra.mrb[0].mxu0 %v746
    %v2527 = vpop.f32.mrb[0].mxu0
    %v2528 = vadd.f32 %v2143, %v2527
    %v2529 = vpop.f32.mrb[0].mxu0
    %2530 = vmatprep.mubr.f32.mxu0 %v811
    %2531 = vmatmul.mubr.f32.gmra.mrb[0].mxu0 %v747
    %v2532 = vpop.f32.mrb[0].mxu0
    %v2533 = vadd.f32 %v2148, %v2532
    %v2534 = vpop.f32.mrb[0].mxu0
    %2535 = vmatprep.mubr.f32.mxu0 %v812
    %2536 = vmatmul.mubr.f32.gmra.mrb[0].mxu0 %v748
    %v2537 = vpop.f32.mrb[0].mxu0
    %v2538 = vadd.f32 %v2153, %v2537
    %v2539 = vpop.f32.mrb[0].mxu0
    %2540 = vmatprep.mubr.f32.mxu0 %v813
    %2541 = vmatmul.mubr.f32.gmra.mrb[0].mxu0 %v749
    %v2542 = vpop.f32.mrb[0].mxu0
    %v2543 = vadd.f32 %v2158, %v2542
    %v2544 = vpop.f32.mrb[0].mxu0
    %2545 = vmatprep.mubr.f32.mxu0 %v814
    %2546 = vmatmul.mubr.f32.gmra.mrb[0].mxu0 %v750
    %v2547 = vpop.f32.mrb[0].mxu0
    %v2548 = vadd.f32 %v2163, %v2547
    %v2549 = vpop.f32.mrb[0].mxu0
    %2550 = vmatprep.mubr.f32.mxu0 %v815
    %2551 = vmatmul.mubr.f32.gmra.mrb[0].mxu0 %v751
    %v2552 = vpop.f32.mrb[0].mxu0
    %v2553 = vadd.f32 %v2168, %v2552
    %v2554 = vpop.f32.mrb[0].mxu0
    %2555 = vmatprep.mubr.f32.mxu0 %v816
    %2556 = vmatmul.mubr.f32.gmra.mrb[0].mxu0 %v752
    %v2557 = vpop.f32.mrb[0].mxu0
    %v2558 = vadd.f32 %v2173, %v2557
    %v2559 = vpop.f32.mrb[0].mxu0
    %2560 = vmatprep.mubr.f32.mxu0 %v817
    %2561 = vmatmul.mubr.f32.gmra.mrb[0].mxu0 %v753
    %v2562 = vpop.f32.mrb[0].mxu0
    %v2563 = vadd.f32 %v2178, %v2562
    %v2564 = vpop.f32.mrb[0].mxu0
    %2565 = vdwg.mxu0
    %2566 = vmatprep.subr.mxu0 0.0
    %2567 = vmatpush1.msra.mxu0 %v1010
    %2568 = vmatprep.subr.mxu0 0.0
    %2569 = vmatpush1.msra.mxu0 %v1011
    %2570 = vmatprep.subr.mxu0 0.0
    %2571 = vmatpush1.msra.mxu0 %v1012
    %2572 = vmatprep.subr.mxu0 0.0
    %2573 = vmatpush1.msra.mxu0 %v1013
    %2574 = vmatprep.subr.mxu0 0.0
    %2575 = vmatpush1.msra.mxu0 %v1014
    %2576 = vmatprep.subr.mxu0 0.0
    %2577 = vmatpush1.msra.mxu0 %v1015
    %2578 = vmatprep.subr.mxu0 0.0
    %2579 = vmatpush1.msra.mxu0 %v1016
    %2580 = vmatprep.subr.mxu0 0.0
    %2581 = vmatpush1.msra.mxu0 %v1017
    %2582 = vmatprep.subr.mxu0 0.0
    %2583 = vmatpush1.msra.mxu0 %v1018
    %2584 = vmatprep.subr.mxu0 0.0
    %2585 = vmatpush1.msra.mxu0 %v1019
    %2586 = vmatprep.subr.mxu0 0.0
    %2587 = vmatpush1.msra.mxu0 %v1020
    %2588 = vmatprep.subr.mxu0 0.0
    %2589 = vmatpush1.msra.mxu0 %v1021
    %2590 = vmatprep.subr.mxu0 0.0
    %2591 = vmatpush1.msra.mxu0 %v1022
    %2592 = vmatprep.subr.mxu0 0.0
    %2593 = vmatpush1.msra.mxu0 %v1023
    %2594 = vmatprep.subr.mxu0 0.0
    %2595 = vmatpush1.msra.mxu0 %v1024
    %2596 = vmatprep.subr.mxu0 0.0
    %2597 = vmatpush1.msra.mxu0 %v1025
    %2598 = vmatprep.subr.mxu0 0.0
    %2599 = vmatpush1.msra.mxu0 0.0
    %2600 = vmatprep.subr.mxu0 0.0
    %2601 = vmatpush1.msra.mxu0 0.0
    %2602 = vmatprep.subr.mxu0 0.0
    %2603 = vmatpush1.msra.mxu0 0.0
    %2604 = vmatprep.subr.mxu0 0.0
    %2605 = vmatpush1.msra.mxu0 0.0
    %2606 = vmatprep.subr.mxu0 0.0
    %2607 = vmatpush1.msra.mxu0 0.0
    %2608 = vmatprep.subr.mxu0 0.0
    %2609 = vmatpush1.msra.mxu0 0.0
    %2610 = vmatprep.subr.mxu0 0.0
    %2611 = vmatpush1.msra.mxu0 0.0
    %2612 = vmatprep.subr.mxu0 0.0
    %2613 = vmatpush1.msra.mxu0 0.0
    %2614 = vmatprep.subr.mxu0 0.0
    %2615 = vmatpush1.msra.mxu0 0.0
    %2616 = vmatprep.subr.mxu0 0.0
    %2617 = vmatpush1.msra.mxu0 0.0
    %2618 = vmatprep.subr.mxu0 0.0
    %2619 = vmatpush1.msra.mxu0 0.0
    %2620 = vmatprep.subr.mxu0 0.0
    %2621 = vmatpush1.msra.mxu0 0.0
    %2622 = vmatprep.subr.mxu0 0.0
    %2623 = vmatpush1.msra.mxu0 0.0
    %2624 = vmatprep.subr.mxu0 0.0
    %2625 = vmatpush1.msra.mxu0 0.0
    %2626 = vmatprep.subr.mxu0 0.0
    %2627 = vmatpush1.msra.mxu0 0.0
    %2628 = vmatprep.subr.mxu0 0.0
    %2629 = vmatpush1.msra.mxu0 0.0
    %2630 = vmatprep.mubr.f32.mxu0 0.0
    %2631 = vmatmul.mubr.f32.gmra.mrb[0].mxu0 %v818
    %v2632 = vpop.f32.mrb[0].mxu0
    %v2633 = vadd.f32 %v2248, %v2632
    %v2634 = vpop.f32.mrb[0].mxu0
    %2635 = vmatprep.mubr.f32.mxu0 0.0
    %2636 = vmatmul.mubr.f32.gmra.mrb[0].mxu0 %v819
    %v2637 = vpop.f32.mrb[0].mxu0
    %v2638 = vadd.f32 %v2253, %v2637
    %v2639 = vpop.f32.mrb[0].mxu0
    %2640 = vmatprep.mubr.f32.mxu0 0.0
    %2641 = vmatmul.mubr.f32.gmra.mrb[0].mxu0 %v820
    %v2642 = vpop.f32.mrb[0].mxu0
    %v2643 = vadd.f32 %v2258, %v2642
    %v2644 = vpop.f32.mrb[0].mxu0
    %2645 = vmatprep.mubr.f32.mxu0 0.0
    %2646 = vmatmul.mubr.f32.gmra.mrb[0].mxu0 %v821
    %v2647 = vpop.f32.mrb[0].mxu0
    %v2648 = vadd.f32 %v2263, %v2647
    %v2649 = vpop.f32.mrb[0].mxu0
    %2650 = vmatprep.mubr.f32.mxu0 0.0
    %2651 = vmatmul.mubr.f32.gmra.mrb[0].mxu0 %v822
    %v2652 = vpop.f32.mrb[0].mxu0
    %v2653 = vadd.f32 %v2268, %v2652
    %v2654 = vpop.f32.mrb[0].mxu0
    %2655 = vmatprep.mubr.f32.mxu0 0.0
    %2656 = vmatmul.mubr.f32.gmra.mrb[0].mxu0 %v823
    %v2657 = vpop.f32.mrb[0].mxu0
    %v2658 = vadd.f32 %v2273, %v2657
    %v2659 = vpop.f32.mrb[0].mxu0
    %2660 = vmatprep.mubr.f32.mxu0 0.0
    %2661 = vmatmul.mubr.f32.gmra.mrb[0].mxu0 %v824
    %v2662 = vpop.f32.mrb[0].mxu0
    %v2663 = vadd.f32 %v2278, %v2662
    %v2664 = vpop.f32.mrb[0].mxu0
    %2665 = vmatprep.mubr.f32.mxu0 0.0
    %2666 = vmatmul.mubr.f32.gmra.mrb[0].mxu0 %v825
    %v2667 = vpop.f32.mrb[0].mxu0
    %v2668 = vadd.f32 %v2283, %v2667
    %v2669 = vpop.f32.mrb[0].mxu0
    %2670 = vmatprep.mubr.f32.mxu0 0.0
    %2671 = vmatmul.mubr.f32.gmra.mrb[0].mxu0 %v826
    %v2672 = vpop.f32.mrb[0].mxu0
    %v2673 = vadd.f32 %v2288, %v2672
    %v2674 = vpop.f32.mrb[0].mxu0
    %2675 = vmatprep.mubr.f32.mxu0 0.0
    %2676 = vmatmul.mubr.f32.gmra.mrb[0].mxu0 %v827
    %v2677 = vpop.f32.mrb[0].mxu0
    %v2678 = vadd.f32 %v2293, %v2677
    %v2679 = vpop.f32.mrb[0].mxu0
    %2680 = vmatprep.mubr.f32.mxu0 0.0
    %2681 = vmatmul.mubr.f32.gmra.mrb[0].mxu0 %v828
    %v2682 = vpop.f32.mrb[0].mxu0
    %v2683 = vadd.f32 %v2298, %v2682
    %v2684 = vpop.f32.mrb[0].mxu0
    %2685 = vmatprep.mubr.f32.mxu0 0.0
    %2686 = vmatmul.mubr.f32.gmra.mrb[0].mxu0 %v829
    %v2687 = vpop.f32.mrb[0].mxu0
    %v2688 = vadd.f32 %v2303, %v2687
    %v2689 = vpop.f32.mrb[0].mxu0
    %2690 = vmatprep.mubr.f32.mxu0 0.0
    %2691 = vmatmul.mubr.f32.gmra.mrb[0].mxu0 %v830
    %v2692 = vpop.f32.mrb[0].mxu0
    %v2693 = vadd.f32 %v2308, %v2692
    %v2694 = vpop.f32.mrb[0].mxu0
    %2695 = vmatprep.mubr.f32.mxu0 0.0
    %2696 = vmatmul.mubr.f32.gmra.mrb[0].mxu0 %v831
    %v2697 = vpop.f32.mrb[0].mxu0
    %v2698 = vadd.f32 %v2313, %v2697
    %v2699 = vpop.f32.mrb[0].mxu0
    %2700 = vmatprep.mubr.f32.mxu0 0.0
    %2701 = vmatmul.mubr.f32.gmra.mrb[0].mxu0 %v832
    %v2702 = vpop.f32.mrb[0].mxu0
    %v2703 = vadd.f32 %v2318, %v2702
    %v2704 = vpop.f32.mrb[0].mxu0
    %2705 = vmatprep.mubr.f32.mxu0 0.0
    %2706 = vmatmul.mubr.f32.gmra.mrb[0].mxu0 %v833
    %v2707 = vpop.f32.mrb[0].mxu0
    %v2708 = vadd.f32 %v2323, %v2707
    %v2709 = vpop.f32.mrb[0].mxu0
    %2710 = vmatprep.mubr.f32.mxu0 0.0
    %2711 = vmatmul.mubr.f32.gmra.mrb[0].mxu0 %v834
    %v2712 = vpop.f32.mrb[0].mxu0
    %v2713 = vadd.f32 %v2328, %v2712
    %v2714 = vpop.f32.mrb[0].mxu0
    %2715 = vmatprep.mubr.f32.mxu0 0.0
    %2716 = vmatmul.mubr.f32.gmra.mrb[0].mxu0 %v835
    %v2717 = vpop.f32.mrb[0].mxu0
    %v2718 = vadd.f32 %v2333, %v2717
    %v2719 = vpop.f32.mrb[0].mxu0
    %2720 = vmatprep.mubr.f32.mxu0 0.0
    %2721 = vmatmul.mubr.f32.gmra.mrb[0].mxu0 %v836
    %v2722 = vpop.f32.mrb[0].mxu0
    %v2723 = vadd.f32 %v2338, %v2722
    %v2724 = vpop.f32.mrb[0].mxu0
    %2725 = vmatprep.mubr.f32.mxu0 0.0
    %2726 = vmatmul.mubr.f32.gmra.mrb[0].mxu0 %v837
    %v2727 = vpop.f32.mrb[0].mxu0
    %v2728 = vadd.f32 %v2343, %v2727
    %v2729 = vpop.f32.mrb[0].mxu0
    %2730 = vmatprep.mubr.f32.mxu0 0.0
    %2731 = vmatmul.mubr.f32.gmra.mrb[0].mxu0 %v838
    %v2732 = vpop.f32.mrb[0].mxu0
    %v2733 = vadd.f32 %v2348, %v2732
    %v2734 = vpop.f32.mrb[0].mxu0
    %2735 = vmatprep.mubr.f32.mxu0 0.0
    %2736 = vmatmul.mubr.f32.gmra.mrb[0].mxu0 %v839
    %v2737 = vpop.f32.mrb[0].mxu0
    %v2738 = vadd.f32 %v2353, %v2737
    %v2739 = vpop.f32.mrb[0].mxu0
    %2740 = vmatprep.mubr.f32.mxu0 0.0
    %2741 = vmatmul.mubr.f32.gmra.mrb[0].mxu0 %v840
    %v2742 = vpop.f32.mrb[0].mxu0
    %v2743 = vadd.f32 %v2358, %v2742
    %v2744 = vpop.f32.mrb[0].mxu0
    %2745 = vmatprep.mubr.f32.mxu0 0.0
    %2746 = vmatmul.mubr.f32.gmra.mrb[0].mxu0 %v841
    %v2747 = vpop.f32.mrb[0].mxu0
    %v2748 = vadd.f32 %v2363, %v2747
    %v2749 = vpop.f32.mrb[0].mxu0
    %2750 = vmatprep.mubr.f32.mxu0 0.0
    %2751 = vmatmul.mubr.f32.gmra.mrb[0].mxu0 %v842
    %v2752 = vpop.f32.mrb[0].mxu0
    %v2753 = vadd.f32 %v2368, %v2752
    %v2754 = vpop.f32.mrb[0].mxu0
    %2755 = vmatprep.mubr.f32.mxu0 0.0
    %2756 = vmatmul.mubr.f32.gmra.mrb[0].mxu0 %v843
    %v2757 = vpop.f32.mrb[0].mxu0
    %v2758 = vadd.f32 %v2373, %v2757
    %v2759 = vpop.f32.mrb[0].mxu0
    %2760 = vmatprep.mubr.f32.mxu0 0.0
    %2761 = vmatmul.mubr.f32.gmra.mrb[0].mxu0 %v844
    %v2762 = vpop.f32.mrb[0].mxu0
    %v2763 = vadd.f32 %v2378, %v2762
    %v2764 = vpop.f32.mrb[0].mxu0
    %2765 = vmatprep.mubr.f32.mxu0 0.0
    %2766 = vmatmul.mubr.f32.gmra.mrb[0].mxu0 %v845
    %v2767 = vpop.f32.mrb[0].mxu0
    %v2768 = vadd.f32 %v2383, %v2767
    %v2769 = vpop.f32.mrb[0].mxu0
    %2770 = vmatprep.mubr.f32.mxu0 0.0
    %2771 = vmatmul.mubr.f32.gmra.mrb[0].mxu0 %v846
    %v2772 = vpop.f32.mrb[0].mxu0
    %v2773 = vadd.f32 %v2388, %v2772
    %v2774 = vpop.f32.mrb[0].mxu0
    %2775 = vmatprep.mubr.f32.mxu0 0.0
    %2776 = vmatmul.mubr.f32.gmra.mrb[0].mxu0 %v847
    %v2777 = vpop.f32.mrb[0].mxu0
    %v2778 = vadd.f32 %v2393, %v2777
    %v2779 = vpop.f32.mrb[0].mxu0
    %2780 = vmatprep.mubr.f32.mxu0 0.0
    %2781 = vmatmul.mubr.f32.gmra.mrb[0].mxu0 %v848
    %v2782 = vpop.f32.mrb[0].mxu0
    %v2783 = vadd.f32 %v2398, %v2782
    %v2784 = vpop.f32.mrb[0].mxu0
    %2785 = vmatprep.mubr.f32.mxu0 0.0
    %2786 = vmatmul.mubr.f32.gmra.mrb[0].mxu0 %v849
    %v2787 = vpop.f32.mrb[0].mxu0
    %v2788 = vadd.f32 %v2403, %v2787
    %v2789 = vpop.f32.mrb[0].mxu0
    %2790 = vmatprep.mubr.f32.mxu0 0.0
    %2791 = vmatmul.mubr.f32.gmra.mrb[0].mxu0 %v850
    %v2792 = vpop.f32.mrb[0].mxu0
    %v2793 = vadd.f32 %v2408, %v2792
    %v2794 = vpop.f32.mrb[0].mxu0
    %2795 = vmatprep.mubr.f32.mxu0 0.0
    %2796 = vmatmul.mubr.f32.gmra.mrb[0].mxu0 %v851
    %v2797 = vpop.f32.mrb[0].mxu0
    %v2798 = vadd.f32 %v2413, %v2797
    %v2799 = vpop.f32.mrb[0].mxu0
    %2800 = vmatprep.mubr.f32.mxu0 0.0
    %2801 = vmatmul.mubr.f32.gmra.mrb[0].mxu0 %v852
    %v2802 = vpop.f32.mrb[0].mxu0
    %v2803 = vadd.f32 %v2418, %v2802
    %v2804 = vpop.f32.mrb[0].mxu0
    %2805 = vmatprep.mubr.f32.mxu0 0.0
    %2806 = vmatmul.mubr.f32.gmra.mrb[0].mxu0 %v853
    %v2807 = vpop.f32.mrb[0].mxu0
    %v2808 = vadd.f32 %v2423, %v2807
    %v2809 = vpop.f32.mrb[0].mxu0
    %2810 = vmatprep.mubr.f32.mxu0 0.0
    %2811 = vmatmul.mubr.f32.gmra.mrb[0].mxu0 %v854
    %v2812 = vpop.f32.mrb[0].mxu0
    %v2813 = vadd.f32 %v2428, %v2812
    %v2814 = vpop.f32.mrb[0].mxu0
    %2815 = vmatprep.mubr.f32.mxu0 0.0
    %2816 = vmatmul.mubr.f32.gmra.mrb[0].mxu0 %v855
    %v2817 = vpop.f32.mrb[0].mxu0
    %v2818 = vadd.f32 %v2433, %v2817
    %v2819 = vpop.f32.mrb[0].mxu0
    %2820 = vmatprep.mubr.f32.mxu0 0.0
    %2821 = vmatmul.mubr.f32.gmra.mrb[0].mxu0 %v856
    %v2822 = vpop.f32.mrb[0].mxu0
    %v2823 = vadd.f32 %v2438, %v2822
    %v2824 = vpop.f32.mrb[0].mxu0
    %2825 = vmatprep.mubr.f32.mxu0 0.0
    %2826 = vmatmul.mubr.f32.gmra.mrb[0].mxu0 %v857
    %v2827 = vpop.f32.mrb[0].mxu0
    %v2828 = vadd.f32 %v2443, %v2827
    %v2829 = vpop.f32.mrb[0].mxu0
    %2830 = vmatprep.mubr.f32.mxu0 0.0
    %2831 = vmatmul.mubr.f32.gmra.mrb[0].mxu0 %v858
    %v2832 = vpop.f32.mrb[0].mxu0
    %v2833 = vadd.f32 %v2448, %v2832
    %v2834 = vpop.f32.mrb[0].mxu0
    %2835 = vmatprep.mubr.f32.mxu0 0.0
    %2836 = vmatmul.mubr.f32.gmra.mrb[0].mxu0 %v859
    %v2837 = vpop.f32.mrb[0].mxu0
    %v2838 = vadd.f32 %v2453, %v2837
    %v2839 = vpop.f32.mrb[0].mxu0
    %2840 = vmatprep.mubr.f32.mxu0 0.0
    %2841 = vmatmul.mubr.f32.gmra.mrb[0].mxu0 %v860
    %v2842 = vpop.f32.mrb[0].mxu0
    %v2843 = vadd.f32 %v2458, %v2842
    %v2844 = vpop.f32.mrb[0].mxu0
    %2845 = vmatprep.mubr.f32.mxu0 0.0
    %2846 = vmatmul.mubr.f32.gmra.mrb[0].mxu0 %v861
    %v2847 = vpop.f32.mrb[0].mxu0
    %v2848 = vadd.f32 %v2463, %v2847
    %v2849 = vpop.f32.mrb[0].mxu0
    %2850 = vmatprep.mubr.f32.mxu0 0.0
    %2851 = vmatmul.mubr.f32.gmra.mrb[0].mxu0 %v862
    %v2852 = vpop.f32.mrb[0].mxu0
    %v2853 = vadd.f32 %v2468, %v2852
    %v2854 = vpop.f32.mrb[0].mxu0
    %2855 = vmatprep.mubr.f32.mxu0 0.0
    %2856 = vmatmul.mubr.f32.gmra.mrb[0].mxu0 %v863
    %v2857 = vpop.f32.mrb[0].mxu0
    %v2858 = vadd.f32 %v2473, %v2857
    %v2859 = vpop.f32.mrb[0].mxu0
    %2860 = vmatprep.mubr.f32.mxu0 0.0
    %2861 = vmatmul.mubr.f32.gmra.mrb[0].mxu0 %v864
    %v2862 = vpop.f32.mrb[0].mxu0
    %v2863 = vadd.f32 %v2478, %v2862
    %v2864 = vpop.f32.mrb[0].mxu0
    %2865 = vmatprep.mubr.f32.mxu0 0.0
    %2866 = vmatmul.mubr.f32.gmra.mrb[0].mxu0 %v865
    %v2867 = vpop.f32.mrb[0].mxu0
    %v2868 = vadd.f32 %v2483, %v2867
    %v2869 = vpop.f32.mrb[0].mxu0
    %2870 = vmatprep.mubr.f32.mxu0 0.0
    %2871 = vmatmul.mubr.f32.gmra.mrb[0].mxu0 %v866
    %v2872 = vpop.f32.mrb[0].mxu0
    %v2873 = vadd.f32 %v2488, %v2872
    %v2874 = vpop.f32.mrb[0].mxu0
    %2875 = vmatprep.mubr.f32.mxu0 0.0
    %2876 = vmatmul.mubr.f32.gmra.mrb[0].mxu0 %v867
    %v2877 = vpop.f32.mrb[0].mxu0
    %v2878 = vadd.f32 %v2493, %v2877
    %v2879 = vpop.f32.mrb[0].mxu0
    %2880 = vmatprep.mubr.f32.mxu0 0.0
    %2881 = vmatmul.mubr.f32.gmra.mrb[0].mxu0 %v868
    %v2882 = vpop.f32.mrb[0].mxu0
    %v2883 = vadd.f32 %v2498, %v2882
    %v2884 = vpop.f32.mrb[0].mxu0
    %2885 = vmatprep.mubr.f32.mxu0 0.0
    %2886 = vmatmul.mubr.f32.gmra.mrb[0].mxu0 %v869
    %v2887 = vpop.f32.mrb[0].mxu0
    %v2888 = vadd.f32 %v2503, %v2887
    %v2889 = vpop.f32.mrb[0].mxu0
    %2890 = vmatprep.mubr.f32.mxu0 0.0
    %2891 = vmatmul.mubr.f32.gmra.mrb[0].mxu0 %v870
    %v2892 = vpop.f32.mrb[0].mxu0
    %v2893 = vadd.f32 %v2508, %v2892
    %v2894 = vpop.f32.mrb[0].mxu0
    %2895 = vmatprep.mubr.f32.mxu0 0.0
    %2896 = vmatmul.mubr.f32.gmra.mrb[0].mxu0 %v871
    %v2897 = vpop.f32.mrb[0].mxu0
    %v2898 = vadd.f32 %v2513, %v2897
    %v2899 = vpop.f32.mrb[0].mxu0
    %2900 = vmatprep.mubr.f32.mxu0 0.0
    %2901 = vmatmul.mubr.f32.gmra.mrb[0].mxu0 %v872
    %v2902 = vpop.f32.mrb[0].mxu0
    %v2903 = vadd.f32 %v2518, %v2902
    %v2904 = vpop.f32.mrb[0].mxu0
    %2905 = vmatprep.mubr.f32.mxu0 0.0
    %2906 = vmatmul.mubr.f32.gmra.mrb[0].mxu0 %v873
    %v2907 = vpop.f32.mrb[0].mxu0
    %v2908 = vadd.f32 %v2523, %v2907
    %v2909 = vpop.f32.mrb[0].mxu0
    %2910 = vmatprep.mubr.f32.mxu0 0.0
    %2911 = vmatmul.mubr.f32.gmra.mrb[0].mxu0 %v874
    %v2912 = vpop.f32.mrb[0].mxu0
    %v2913 = vadd.f32 %v2528, %v2912
    %v2914 = vpop.f32.mrb[0].mxu0
    %2915 = vmatprep.mubr.f32.mxu0 0.0
    %2916 = vmatmul.mubr.f32.gmra.mrb[0].mxu0 %v875
    %v2917 = vpop.f32.mrb[0].mxu0
    %v2918 = vadd.f32 %v2533, %v2917
    %v2919 = vpop.f32.mrb[0].mxu0
    %2920 = vmatprep.mubr.f32.mxu0 0.0
    %2921 = vmatmul.mubr.f32.gmra.mrb[0].mxu0 %v876
    %v2922 = vpop.f32.mrb[0].mxu0
    %v2923 = vadd.f32 %v2538, %v2922
    %v2924 = vpop.f32.mrb[0].mxu0
    %2925 = vmatprep.mubr.f32.mxu0 0.0
    %2926 = vmatmul.mubr.f32.gmra.mrb[0].mxu0 %v877
    %v2927 = vpop.f32.mrb[0].mxu0
    %v2928 = vadd.f32 %v2543, %v2927
    %v2929 = vpop.f32.mrb[0].mxu0
    %2930 = vmatprep.mubr.f32.mxu0 0.0
    %2931 = vmatmul.mubr.f32.gmra.mrb[0].mxu0 %v878
    %v2932 = vpop.f32.mrb[0].mxu0
    %v2933 = vadd.f32 %v2548, %v2932
    %v2934 = vpop.f32.mrb[0].mxu0
    %2935 = vmatprep.mubr.f32.mxu0 0.0
    %2936 = vmatmul.mubr.f32.gmra.mrb[0].mxu0 %v879
    %v2937 = vpop.f32.mrb[0].mxu0
    %v2938 = vadd.f32 %v2553, %v2937
    %v2939 = vpop.f32.mrb[0].mxu0
    %2940 = vmatprep.mubr.f32.mxu0 0.0
    %2941 = vmatmul.mubr.f32.gmra.mrb[0].mxu0 %v880
    %v2942 = vpop.f32.mrb[0].mxu0
    %v2943 = vadd.f32 %v2558, %v2942
    %v2944 = vpop.f32.mrb[0].mxu0
    %2945 = vmatprep.mubr.f32.mxu0 0.0
    %2946 = vmatmul.mubr.f32.gmra.mrb[0].mxu0 %v881
    %v2947 = vpop.f32.mrb[0].mxu0
    %v2948 = vadd.f32 %v2563, %v2947
    %v2949 = vpop.f32.mrb[0].mxu0
    %2950 = vdwg.mxu0
    %v2951 = vadd.f32 %v2633, %v2638
    %v2952 = vadd.f32 %v2951, %v2643
    %v2953 = vadd.f32 %v2952, %v2648
    %v2954 = vadd.f32 %v2953, %v2653
    %v2955 = vadd.f32 %v2954, %v2658
    %v2956 = vadd.f32 %v2955, %v2663
    %v2957 = vadd.f32 %v2956, %v2668
    %v2958 = vadd.f32 %v2957, %v2673
    %v2959 = vadd.f32 %v2958, %v2678
    %v2960 = vadd.f32 %v2959, %v2683
    %v2961 = vadd.f32 %v2960, %v2688
    %v2962 = vadd.f32 %v2961, %v2693
    %v2963 = vadd.f32 %v2962, %v2698
    %v2964 = vadd.f32 %v2963, %v2703
    %v2965 = vadd.f32 %v2964, %v2708
    %v2966 = vadd.f32 %v2965, %v2713
    %v2967 = vadd.f32 %v2966, %v2718
    %v2968 = vadd.f32 %v2967, %v2723
    %v2969 = vadd.f32 %v2968, %v2728
    %v2970 = vadd.f32 %v2969, %v2733
    %v2971 = vadd.f32 %v2970, %v2738
    %v2972 = vadd.f32 %v2971, %v2743
    %v2973 = vadd.f32 %v2972, %v2748
    %v2974 = vadd.f32 %v2973, %v2753
    %v2975 = vadd.f32 %v2974, %v2758
    %v2976 = vadd.f32 %v2975, %v2763
    %v2977 = vadd.f32 %v2976, %v2768
    %v2978 = vadd.f32 %v2977, %v2773
    %v2979 = vadd.f32 %v2978, %v2778
    %v2980 = vadd.f32 %v2979, %v2783
    %v2981 = vadd.f32 %v2980, %v2788
    %v2982 = vadd.f32 %v2981, %v2793
    %v2983 = vadd.f32 %v2982, %v2798
    %v2984 = vadd.f32 %v2983, %v2803
    %v2985 = vadd.f32 %v2984, %v2808
    %v2986 = vadd.f32 %v2985, %v2813
    %v2987 = vadd.f32 %v2986, %v2818
    %v2988 = vadd.f32 %v2987, %v2823
    %v2989 = vadd.f32 %v2988, %v2828
    %v2990 = vadd.f32 %v2989, %v2833
    %v2991 = vadd.f32 %v2990, %v2838
    %v2992 = vadd.f32 %v2991, %v2843
    %v2993 = vadd.f32 %v2992, %v2848
    %v2994 = vadd.f32 %v2993, %v2853
    %v2995 = vadd.f32 %v2994, %v2858
    %v2996 = vadd.f32 %v2995, %v2863
    %v2997 = vadd.f32 %v2996, %v2868
    %v2998 = vadd.f32 %v2997, %v2873
    %v2999 = vadd.f32 %v2998, %v2878
    %v3000 = vadd.f32 %v2999, %v2883
    %v3001 = vadd.f32 %v3000, %v2888
    %v3002 = vadd.f32 %v3001, %v2893
    %v3003 = vadd.f32 %v3002, %v2898
    %v3004 = vadd.f32 %v3003, %v2903
    %v3005 = vadd.f32 %v3004, %v2908
    %v3006 = vadd.f32 %v3005, %v2913
    %v3007 = vadd.f32 %v3006, %v2918
    %v3008 = vadd.f32 %v3007, %v2923
    %v3009 = vadd.f32 %v3008, %v2928
    %v3010 = vadd.f32 %v3009, %v2933
    %v3011 = vadd.f32 %v3010, %v2938
    %v3012 = vadd.f32 %v3011, %v2943
    %v3013 = vadd.f32 %v3012, %v2948
    %v3014 = vrot.slane %v3013, 4
    %v3015 = vadd.f32 %v3013, %v3014
    %v3016 = vrot.slane %v3015, 2
    %v3017 = vadd.f32 %v3015, %v3016
    %v3018 = vrot.slane %v3017, 1
    %v3019 = vadd.f32 %v3017, %v3018
    %v3020 = vrcp.pop 512.0
    %v3021 = vmul.f32 %v3019, %v3020
    %v3022 = vsub.f32 %v2633, %v3021
    %v3023 = vsub.f32 %v2638, %v3021
    %v3024 = vsub.f32 %v2643, %v3021
    %v3025 = vsub.f32 %v2648, %v3021
    %v3026 = vsub.f32 %v2653, %v3021
    %v3027 = vsub.f32 %v2658, %v3021
    %v3028 = vsub.f32 %v2663, %v3021
    %v3029 = vsub.f32 %v2668, %v3021
    %v3030 = vsub.f32 %v2673, %v3021
    %v3031 = vsub.f32 %v2678, %v3021
    %v3032 = vsub.f32 %v2683, %v3021
    %v3033 = vsub.f32 %v2688, %v3021
    %v3034 = vsub.f32 %v2693, %v3021
    %v3035 = vsub.f32 %v2698, %v3021
    %v3036 = vsub.f32 %v2703, %v3021
    %v3037 = vsub.f32 %v2708, %v3021
    %v3038 = vsub.f32 %v2713, %v3021
    %v3039 = vsub.f32 %v2718, %v3021
    %v3040 = vsub.f32 %v2723, %v3021
    %v3041 = vsub.f32 %v2728, %v3021
    %v3042 = vsub.f32 %v2733, %v3021
    %v3043 = vsub.f32 %v2738, %v3021
    %v3044 = vsub.f32 %v2743, %v3021
    %v3045 = vsub.f32 %v2748, %v3021
    %v3046 = vsub.f32 %v2753, %v3021
    %v3047 = vsub.f32 %v2758, %v3021
    %v3048 = vsub.f32 %v2763, %v3021
    %v3049 = vsub.f32 %v2768, %v3021
    %v3050 = vsub.f32 %v2773, %v3021
    %v3051 = vsub.f32 %v2778, %v3021
    %v3052 = vsub.f32 %v2783, %v3021
    %v3053 = vsub.f32 %v2788, %v3021
    %v3054 = vsub.f32 %v2793, %v3021
    %v3055 = vsub.f32 %v2798, %v3021
    %v3056 = vsub.f32 %v2803, %v3021
    %v3057 = vsub.f32 %v2808, %v3021
    %v3058 = vsub.f32 %v2813, %v3021
    %v3059 = vsub.f32 %v2818, %v3021
    %v3060 = vsub.f32 %v2823, %v3021
    %v3061 = vsub.f32 %v2828, %v3021
    %v3062 = vsub.f32 %v2833, %v3021
    %v3063 = vsub.f32 %v2838, %v3021
    %v3064 = vsub.f32 %v2843, %v3021
    %v3065 = vsub.f32 %v2848, %v3021
    %v3066 = vsub.f32 %v2853, %v3021
    %v3067 = vsub.f32 %v2858, %v3021
    %v3068 = vsub.f32 %v2863, %v3021
    %v3069 = vsub.f32 %v2868, %v3021
    %v3070 = vsub.f32 %v2873, %v3021
    %v3071 = vsub.f32 %v2878, %v3021
    %v3072 = vsub.f32 %v2883, %v3021
    %v3073 = vsub.f32 %v2888, %v3021
    %v3074 = vsub.f32 %v2893, %v3021
    %v3075 = vsub.f32 %v2898, %v3021
    %v3076 = vsub.f32 %v2903, %v3021
    %v3077 = vsub.f32 %v2908, %v3021
    %v3078 = vsub.f32 %v2913, %v3021
    %v3079 = vsub.f32 %v2918, %v3021
    %v3080 = vsub.f32 %v2923, %v3021
    %v3081 = vsub.f32 %v2928, %v3021
    %v3082 = vsub.f32 %v2933, %v3021
    %v3083 = vsub.f32 %v2938, %v3021
    %v3084 = vsub.f32 %v2943, %v3021
    %v3085 = vsub.f32 %v2948, %v3021
    %v3086 = vmul.f32 %v3022, %v3022
    %v3087 = vmul.f32 %v3023, %v3023
    %v3088 = vmul.f32 %v3024, %v3024
    %v3089 = vmul.f32 %v3025, %v3025
    %v3090 = vmul.f32 %v3026, %v3026
    %v3091 = vmul.f32 %v3027, %v3027
    %v3092 = vmul.f32 %v3028, %v3028
    %v3093 = vmul.f32 %v3029, %v3029
    %v3094 = vmul.f32 %v3030, %v3030
    %v3095 = vmul.f32 %v3031, %v3031
    %v3096 = vmul.f32 %v3032, %v3032
    %v3097 = vmul.f32 %v3033, %v3033
    %v3098 = vmul.f32 %v3034, %v3034
    %v3099 = vmul.f32 %v3035, %v3035
    %v3100 = vmul.f32 %v3036, %v3036
    %v3101 = vmul.f32 %v3037, %v3037
    %v3102 = vmul.f32 %v3038, %v3038
    %v3103 = vmul.f32 %v3039, %v3039
    %v3104 = vmul.f32 %v3040, %v3040
    %v3105 = vmul.f32 %v3041, %v3041
    %v3106 = vmul.f32 %v3042, %v3042
    %v3107 = vmul.f32 %v3043, %v3043
    %v3108 = vmul.f32 %v3044, %v3044
    %v3109 = vmul.f32 %v3045, %v3045
    %v3110 = vmul.f32 %v3046, %v3046
    %v3111 = vmul.f32 %v3047, %v3047
    %v3112 = vmul.f32 %v3048, %v3048
    %v3113 = vmul.f32 %v3049, %v3049
    %v3114 = vmul.f32 %v3050, %v3050
    %v3115 = vmul.f32 %v3051, %v3051
    %v3116 = vmul.f32 %v3052, %v3052
    %v3117 = vmul.f32 %v3053, %v3053
    %v3118 = vmul.f32 %v3054, %v3054
    %v3119 = vmul.f32 %v3055, %v3055
    %v3120 = vmul.f32 %v3056, %v3056
    %v3121 = vmul.f32 %v3057, %v3057
    %v3122 = vmul.f32 %v3058, %v3058
    %v3123 = vmul.f32 %v3059, %v3059
    %v3124 = vmul.f32 %v3060, %v3060
    %v3125 = vmul.f32 %v3061, %v3061
    %v3126 = vmul.f32 %v3062, %v3062
    %v3127 = vmul.f32 %v3063, %v3063
    %v3128 = vmul.f32 %v3064, %v3064
    %v3129 = vmul.f32 %v3065, %v3065
    %v3130 = vmul.f32 %v3066, %v3066
    %v3131 = vmul.f32 %v3067, %v3067
    %v3132 = vmul.f32 %v3068, %v3068
    %v3133 = vmul.f32 %v3069, %v3069
    %v3134 = vmul.f32 %v3070, %v3070
    %v3135 = vmul.f32 %v3071, %v3071
    %v3136 = vmul.f32 %v3072, %v3072
    %v3137 = vmul.f32 %v3073, %v3073
    %v3138 = vmul.f32 %v3074, %v3074
    %v3139 = vmul.f32 %v3075, %v3075
    %v3140 = vmul.f32 %v3076, %v3076
    %v3141 = vmul.f32 %v3077, %v3077
    %v3142 = vmul.f32 %v3078, %v3078
    %v3143 = vmul.f32 %v3079, %v3079
    %v3144 = vmul.f32 %v3080, %v3080
    %v3145 = vmul.f32 %v3081, %v3081
    %v3146 = vmul.f32 %v3082, %v3082
    %v3147 = vmul.f32 %v3083, %v3083
    %v3148 = vmul.f32 %v3084, %v3084
    %v3149 = vmul.f32 %v3085, %v3085
    %v3150 = vadd.f32 %v3086, %v3087
    %v3151 = vadd.f32 %v3150, %v3088
    %v3152 = vadd.f32 %v3151, %v3089
    %v3153 = vadd.f32 %v3152, %v3090
    %v3154 = vadd.f32 %v3153, %v3091
    %v3155 = vadd.f32 %v3154, %v3092
    %v3156 = vadd.f32 %v3155, %v3093
    %v3157 = vadd.f32 %v3156, %v3094
    %v3158 = vadd.f32 %v3157, %v3095
    %v3159 = vadd.f32 %v3158, %v3096
    %v3160 = vadd.f32 %v3159, %v3097
    %v3161 = vadd.f32 %v3160, %v3098
    %v3162 = vadd.f32 %v3161, %v3099
    %v3163 = vadd.f32 %v3162, %v3100
    %v3164 = vadd.f32 %v3163, %v3101
    %v3165 = vadd.f32 %v3164, %v3102
    %v3166 = vadd.f32 %v3165, %v3103
    %v3167 = vadd.f32 %v3166, %v3104
    %v3168 = vadd.f32 %v3167, %v3105
    %v3169 = vadd.f32 %v3168, %v3106
    %v3170 = vadd.f32 %v3169, %v3107
    %v3171 = vadd.f32 %v3170, %v3108
    %v3172 = vadd.f32 %v3171, %v3109
    %v3173 = vadd.f32 %v3172, %v3110
    %v3174 = vadd.f32 %v3173, %v3111
    %v3175 = vadd.f32 %v3174, %v3112
    %v3176 = vadd.f32 %v3175, %v3113
    %v3177 = vadd.f32 %v3176, %v3114
    %v3178 = vadd.f32 %v3177, %v3115
    %v3179 = vadd.f32 %v3178, %v3116
    %v3180 = vadd.f32 %v3179, %v3117
    %v3181 = vadd.f32 %v3180, %v3118
    %v3182 = vadd.f32 %v3181, %v3119
    %v3183 = vadd.f32 %v3182, %v3120
    %v3184 = vadd.f32 %v3183, %v3121
    %v3185 = vadd.f32 %v3184, %v3122
    %v3186 = vadd.f32 %v3185, %v3123
    %v3187 = vadd.f32 %v3186, %v3124
    %v3188 = vadd.f32 %v3187, %v3125
    %v3189 = vadd.f32 %v3188, %v3126
    %v3190 = vadd.f32 %v3189, %v3127
    %v3191 = vadd.f32 %v3190, %v3128
    %v3192 = vadd.f32 %v3191, %v3129
    %v3193 = vadd.f32 %v3192, %v3130
    %v3194 = vadd.f32 %v3193, %v3131
    %v3195 = vadd.f32 %v3194, %v3132
    %v3196 = vadd.f32 %v3195, %v3133
    %v3197 = vadd.f32 %v3196, %v3134
    %v3198 = vadd.f32 %v3197, %v3135
    %v3199 = vadd.f32 %v3198, %v3136
    %v3200 = vadd.f32 %v3199, %v3137
    %v3201 = vadd.f32 %v3200, %v3138
    %v3202 = vadd.f32 %v3201, %v3139
    %v3203 = vadd.f32 %v3202, %v3140
    %v3204 = vadd.f32 %v3203, %v3141
    %v3205 = vadd.f32 %v3204, %v3142
    %v3206 = vadd.f32 %v3205, %v3143
    %v3207 = vadd.f32 %v3206, %v3144
    %v3208 = vadd.f32 %v3207, %v3145
    %v3209 = vadd.f32 %v3208, %v3146
    %v3210 = vadd.f32 %v3209, %v3147
    %v3211 = vadd.f32 %v3210, %v3148
    %v3212 = vadd.f32 %v3211, %v3149
    %v3213 = vrot.slane %v3212, 4
    %v3214 = vadd.f32 %v3212, %v3213
    %v3215 = vrot.slane %v3214, 2
    %v3216 = vadd.f32 %v3214, %v3215
    %v3217 = vrot.slane %v3216, 1
    %v3218 = vadd.f32 %v3216, %v3217
    %v3219 = vmul.f32 %v3218, %v3020
    %v3220 = vadd.f32 %v3219, 1e-05
    %v3221 = vrsqrt.pop %v3220
    %v3222 = vmul.f32 %v3022, %v3221
    %v3223 = vmul.f32 %v3023, %v3221
    %v3224 = vmul.f32 %v3024, %v3221
    %v3225 = vmul.f32 %v3025, %v3221
    %v3226 = vmul.f32 %v3026, %v3221
    %v3227 = vmul.f32 %v3027, %v3221
    %v3228 = vmul.f32 %v3028, %v3221
    %v3229 = vmul.f32 %v3029, %v3221
    %v3230 = vmul.f32 %v3030, %v3221
    %v3231 = vmul.f32 %v3031, %v3221
    %v3232 = vmul.f32 %v3032, %v3221
    %v3233 = vmul.f32 %v3033, %v3221
    %v3234 = vmul.f32 %v3034, %v3221
    %v3235 = vmul.f32 %v3035, %v3221
    %v3236 = vmul.f32 %v3036, %v3221
    %v3237 = vmul.f32 %v3037, %v3221
    %v3238 = vmul.f32 %v3038, %v3221
    %v3239 = vmul.f32 %v3039, %v3221
    %v3240 = vmul.f32 %v3040, %v3221
    %v3241 = vmul.f32 %v3041, %v3221
    %v3242 = vmul.f32 %v3042, %v3221
    %v3243 = vmul.f32 %v3043, %v3221
    %v3244 = vmul.f32 %v3044, %v3221
    %v3245 = vmul.f32 %v3045, %v3221
    %v3246 = vmul.f32 %v3046, %v3221
    %v3247 = vmul.f32 %v3047, %v3221
    %v3248 = vmul.f32 %v3048, %v3221
    %v3249 = vmul.f32 %v3049, %v3221
    %v3250 = vmul.f32 %v3050, %v3221
    %v3251 = vmul.f32 %v3051, %v3221
    %v3252 = vmul.f32 %v3052, %v3221
    %v3253 = vmul.f32 %v3053, %v3221
    %v3254 = vmul.f32 %v3054, %v3221
    %v3255 = vmul.f32 %v3055, %v3221
    %v3256 = vmul.f32 %v3056, %v3221
    %v3257 = vmul.f32 %v3057, %v3221
    %v3258 = vmul.f32 %v3058, %v3221
    %v3259 = vmul.f32 %v3059, %v3221
    %v3260 = vmul.f32 %v3060, %v3221
    %v3261 = vmul.f32 %v3061, %v3221
    %v3262 = vmul.f32 %v3062, %v3221
    %v3263 = vmul.f32 %v3063, %v3221
    %v3264 = vmul.f32 %v3064, %v3221
    %v3265 = vmul.f32 %v3065, %v3221
    %v3266 = vmul.f32 %v3066, %v3221
    %v3267 = vmul.f32 %v3067, %v3221
    %v3268 = vmul.f32 %v3068, %v3221
    %v3269 = vmul.f32 %v3069, %v3221
    %v3270 = vmul.f32 %v3070, %v3221
    %v3271 = vmul.f32 %v3071, %v3221
    %v3272 = vmul.f32 %v3072, %v3221
    %v3273 = vmul.f32 %v3073, %v3221
    %v3274 = vmul.f32 %v3074, %v3221
    %v3275 = vmul.f32 %v3075, %v3221
    %v3276 = vmul.f32 %v3076, %v3221
    %v3277 = vmul.f32 %v3077, %v3221
    %v3278 = vmul.f32 %v3078, %v3221
    %v3279 = vmul.f32 %v3079, %v3221
    %v3280 = vmul.f32 %v3080, %v3221
    %v3281 = vmul.f32 %v3081, %v3221
    %v3282 = vmul.f32 %v3082, %v3221
    %v3283 = vmul.f32 %v3083, %v3221
    %v3284 = vmul.f32 %v3084, %v3221
    %v3285 = vmul.f32 %v3085, %v3221
    %v3286 = vld [vmem:[%s2] sm:$0x1]
    %v3288 = vlaneseq
    %v3289 = vshrl.u32 %v3288, 7
    %v3290 = vsub.s32 0, %v3289
    %v3291 = vrot.slane %v3286, %v3290
    %v3293 = vmul.f32 %v3222, %v3291
    %v3294 = vmul.f32 %v3223, %v3291
    %v3295 = vmul.f32 %v3224, %v3291
    %v3296 = vmul.f32 %v3225, %v3291
    %v3297 = vmul.f32 %v3226, %v3291
    %v3298 = vmul.f32 %v3227, %v3291
    %v3299 = vmul.f32 %v3228, %v3291
    %v3300 = vmul.f32 %v3229, %v3291
    %v3301 = vmul.f32 %v3230, %v3291
    %v3302 = vmul.f32 %v3231, %v3291
    %v3303 = vmul.f32 %v3232, %v3291
    %v3304 = vmul.f32 %v3233, %v3291
    %v3305 = vmul.f32 %v3234, %v3291
    %v3306 = vmul.f32 %v3235, %v3291
    %v3307 = vmul.f32 %v3236, %v3291
    %v3308 = vmul.f32 %v3237, %v3291
    %v3309 = vmul.f32 %v3238, %v3291
    %v3310 = vmul.f32 %v3239, %v3291
    %v3311 = vmul.f32 %v3240, %v3291
    %v3312 = vmul.f32 %v3241, %v3291
    %v3313 = vmul.f32 %v3242, %v3291
    %v3314 = vmul.f32 %v3243, %v3291
    %v3315 = vmul.f32 %v3244, %v3291
    %v3316 = vmul.f32 %v3245, %v3291
    %v3317 = vmul.f32 %v3246, %v3291
    %v3318 = vmul.f32 %v3247, %v3291
    %v3319 = vmul.f32 %v3248, %v3291
    %v3320 = vmul.f32 %v3249, %v3291
    %v3321 = vmul.f32 %v3250, %v3291
    %v3322 = vmul.f32 %v3251, %v3291
    %v3323 = vmul.f32 %v3252, %v3291
    %v3324 = vmul.f32 %v3253, %v3291
    %v3325 = vmul.f32 %v3254, %v3291
    %v3326 = vmul.f32 %v3255, %v3291
    %v3327 = vmul.f32 %v3256, %v3291
    %v3328 = vmul.f32 %v3257, %v3291
    %v3329 = vmul.f32 %v3258, %v3291
    %v3330 = vmul.f32 %v3259, %v3291
    %v3331 = vmul.f32 %v3260, %v3291
    %v3332 = vmul.f32 %v3261, %v3291
    %v3333 = vmul.f32 %v3262, %v3291
    %v3334 = vmul.f32 %v3263, %v3291
    %v3335 = vmul.f32 %v3264, %v3291
    %v3336 = vmul.f32 %v3265, %v3291
    %v3337 = vmul.f32 %v3266, %v3291
    %v3338 = vmul.f32 %v3267, %v3291
    %v3339 = vmul.f32 %v3268, %v3291
    %v3340 = vmul.f32 %v3269, %v3291
    %v3341 = vmul.f32 %v3270, %v3291
    %v3342 = vmul.f32 %v3271, %v3291
    %v3343 = vmul.f32 %v3272, %v3291
    %v3344 = vmul.f32 %v3273, %v3291
    %v3345 = vmul.f32 %v3274, %v3291
    %v3346 = vmul.f32 %v3275, %v3291
    %v3347 = vmul.f32 %v3276, %v3291
    %v3348 = vmul.f32 %v3277, %v3291
    %v3349 = vmul.f32 %v3278, %v3291
    %v3350 = vmul.f32 %v3279, %v3291
    %v3351 = vmul.f32 %v3280, %v3291
    %v3352 = vmul.f32 %v3281, %v3291
    %v3353 = vmul.f32 %v3282, %v3291
    %v3354 = vmul.f32 %v3283, %v3291
    %v3355 = vmul.f32 %v3284, %v3291
    %v3356 = vmul.f32 %v3285, %v3291
    %v3357 = vld [vmem:[%s3] sm:$0x1]
    %v3359 = vlaneseq
    %v3360 = vshrl.u32 %v3359, 7
    %v3361 = vsub.s32 0, %v3360
    %v3362 = vrot.slane %v3357, %v3361
    %v3364 = vadd.f32 %v3293, %v3362
    %v3365 = vadd.f32 %v3294, %v3362
    %v3366 = vadd.f32 %v3295, %v3362
    %v3367 = vadd.f32 %v3296, %v3362
    %v3368 = vadd.f32 %v3297, %v3362
    %v3369 = vadd.f32 %v3298, %v3362
    %v3370 = vadd.f32 %v3299, %v3362
    %v3371 = vadd.f32 %v3300, %v3362
    %v3372 = vadd.f32 %v3301, %v3362
    %v3373 = vadd.f32 %v3302, %v3362
    %v3374 = vadd.f32 %v3303, %v3362
    %v3375 = vadd.f32 %v3304, %v3362
    %v3376 = vadd.f32 %v3305, %v3362
    %v3377 = vadd.f32 %v3306, %v3362
    %v3378 = vadd.f32 %v3307, %v3362
    %v3379 = vadd.f32 %v3308, %v3362
    %v3380 = vadd.f32 %v3309, %v3362
    %v3381 = vadd.f32 %v3310, %v3362
    %v3382 = vadd.f32 %v3311, %v3362
    %v3383 = vadd.f32 %v3312, %v3362
    %v3384 = vadd.f32 %v3313, %v3362
    %v3385 = vadd.f32 %v3314, %v3362
    %v3386 = vadd.f32 %v3315, %v3362
    %v3387 = vadd.f32 %v3316, %v3362
    %v3388 = vadd.f32 %v3317, %v3362
    %v3389 = vadd.f32 %v3318, %v3362
    %v3390 = vadd.f32 %v3319, %v3362
    %v3391 = vadd.f32 %v3320, %v3362
    %v3392 = vadd.f32 %v3321, %v3362
    %v3393 = vadd.f32 %v3322, %v3362
    %v3394 = vadd.f32 %v3323, %v3362
    %v3395 = vadd.f32 %v3324, %v3362
    %v3396 = vadd.f32 %v3325, %v3362
    %v3397 = vadd.f32 %v3326, %v3362
    %v3398 = vadd.f32 %v3327, %v3362
    %v3399 = vadd.f32 %v3328, %v3362
    %v3400 = vadd.f32 %v3329, %v3362
    %v3401 = vadd.f32 %v3330, %v3362
    %v3402 = vadd.f32 %v3331, %v3362
    %v3403 = vadd.f32 %v3332, %v3362
    %v3404 = vadd.f32 %v3333, %v3362
    %v3405 = vadd.f32 %v3334, %v3362
    %v3406 = vadd.f32 %v3335, %v3362
    %v3407 = vadd.f32 %v3336, %v3362
    %v3408 = vadd.f32 %v3337, %v3362
    %v3409 = vadd.f32 %v3338, %v3362
    %v3410 = vadd.f32 %v3339, %v3362
    %v3411 = vadd.f32 %v3340, %v3362
    %v3412 = vadd.f32 %v3341, %v3362
    %v3413 = vadd.f32 %v3342, %v3362
    %v3414 = vadd.f32 %v3343, %v3362
    %v3415 = vadd.f32 %v3344, %v3362
    %v3416 = vadd.f32 %v3345, %v3362
    %v3417 = vadd.f32 %v3346, %v3362
    %v3418 = vadd.f32 %v3347, %v3362
    %v3419 = vadd.f32 %v3348, %v3362
    %v3420 = vadd.f32 %v3349, %v3362
    %v3421 = vadd.f32 %v3350, %v3362
    %v3422 = vadd.f32 %v3351, %v3362
    %v3423 = vadd.f32 %v3352, %v3362
    %v3424 = vadd.f32 %v3353, %v3362
    %v3425 = vadd.f32 %v3354, %v3362
    %v3426 = vadd.f32 %v3355, %v3362
    %v3427 = vadd.f32 %v3356, %v3362
    %v3428 = vmax.f32 %v3364, 0.0
    %v3429 = vmax.f32 %v3365, 0.0
    %v3430 = vmax.f32 %v3366, 0.0
    %v3431 = vmax.f32 %v3367, 0.0
    %v3432 = vmax.f32 %v3368, 0.0
    %v3433 = vmax.f32 %v3369, 0.0
    %v3434 = vmax.f32 %v3370, 0.0
    %v3435 = vmax.f32 %v3371, 0.0
    %v3436 = vmax.f32 %v3372, 0.0
    %v3437 = vmax.f32 %v3373, 0.0
    %v3438 = vmax.f32 %v3374, 0.0
    %v3439 = vmax.f32 %v3375, 0.0
    %v3440 = vmax.f32 %v3376, 0.0
    %v3441 = vmax.f32 %v3377, 0.0
    %v3442 = vmax.f32 %v3378, 0.0
    %v3443 = vmax.f32 %v3379, 0.0
    %v3444 = vmax.f32 %v3380, 0.0
    %v3445 = vmax.f32 %v3381, 0.0
    %v3446 = vmax.f32 %v3382, 0.0
    %v3447 = vmax.f32 %v3383, 0.0
    %v3448 = vmax.f32 %v3384, 0.0
    %v3449 = vmax.f32 %v3385, 0.0
    %v3450 = vmax.f32 %v3386, 0.0
    %v3451 = vmax.f32 %v3387, 0.0
    %v3452 = vmax.f32 %v3388, 0.0
    %v3453 = vmax.f32 %v3389, 0.0
    %v3454 = vmax.f32 %v3390, 0.0
    %v3455 = vmax.f32 %v3391, 0.0
    %v3456 = vmax.f32 %v3392, 0.0
    %v3457 = vmax.f32 %v3393, 0.0
    %v3458 = vmax.f32 %v3394, 0.0
    %v3459 = vmax.f32 %v3395, 0.0
    %v3460 = vmax.f32 %v3396, 0.0
    %v3461 = vmax.f32 %v3397, 0.0
    %v3462 = vmax.f32 %v3398, 0.0
    %v3463 = vmax.f32 %v3399, 0.0
    %v3464 = vmax.f32 %v3400, 0.0
    %v3465 = vmax.f32 %v3401, 0.0
    %v3466 = vmax.f32 %v3402, 0.0
    %v3467 = vmax.f32 %v3403, 0.0
    %v3468 = vmax.f32 %v3404, 0.0
    %v3469 = vmax.f32 %v3405, 0.0
    %v3470 = vmax.f32 %v3406, 0.0
    %v3471 = vmax.f32 %v3407, 0.0
    %v3472 = vmax.f32 %v3408, 0.0
    %v3473 = vmax.f32 %v3409, 0.0
    %v3474 = vmax.f32 %v3410, 0.0
    %v3475 = vmax.f32 %v3411, 0.0
    %v3476 = vmax.f32 %v3412, 0.0
    %v3477 = vmax.f32 %v3413, 0.0
    %v3478 = vmax.f32 %v3414, 0.0
    %v3479 = vmax.f32 %v3415, 0.0
    %v3480 = vmax.f32 %v3416, 0.0
    %v3481 = vmax.f32 %v3417, 0.0
    %v3482 = vmax.f32 %v3418, 0.0
    %v3483 = vmax.f32 %v3419, 0.0
    %v3484 = vmax.f32 %v3420, 0.0
    %v3485 = vmax.f32 %v3421, 0.0
    %v3486 = vmax.f32 %v3422, 0.0
    %v3487 = vmax.f32 %v3423, 0.0
    %v3488 = vmax.f32 %v3424, 0.0
    %v3489 = vmax.f32 %v3425, 0.0
    %v3490 = vmax.f32 %v3426, 0.0
    %v3491 = vmax.f32 %v3427, 0.0
    %3492 = vst [vmem:[%s240 + $0x1] sm:$0xff] %v3428
    %3493 = vst [vmem:[%s240 + $0x9] sm:$0xff] %v3429
    %3494 = vst [vmem:[%s240 + $0x19] sm:$0xff] %v3430
    %3495 = vst [vmem:[%s240 + $0x21] sm:$0xff] %v3431
    %3496 = vst [vmem:[%s240 + $0x31] sm:$0xff] %v3432
    %3497 = vst [vmem:[%s240 + $0x39] sm:$0xff] %v3433
    %3498 = vst [vmem:[%s240 + $0x49] sm:$0xff] %v3434
    %3499 = vst [vmem:[%s240 + $0x51] sm:$0xff] %v3435
    %3500 = vst [vmem:[%s240 + $0x61] sm:$0xff] %v3436
    %3501 = vst [vmem:[%s240 + $0x69] sm:$0xff] %v3437
    %3502 = vst [vmem:[%s240 + $0x79] sm:$0xff] %v3438
    %3503 = vst [vmem:[%s240 + $0x81] sm:$0xff] %v3439
    %3504 = vst [vmem:[%s240 + $0x91] sm:$0xff] %v3440
    %3505 = vst [vmem:[%s240 + $0x99] sm:$0xff] %v3441
    %3506 = vst [vmem:[%s240 + $0xa9] sm:$0xff] %v3442
    %3507 = vst [vmem:[%s240 + $0xb1] sm:$0xff] %v3443
    %3508 = vst [vmem:[%s240 + $0xc1] sm:$0xff] %v3444
    %3509 = vst [vmem:[%s240 + $0xc9] sm:$0xff] %v3445
    %3510 = vst [vmem:[%s240 + $0xd9] sm:$0xff] %v3446
    %3511 = vst [vmem:[%s240 + $0xe1] sm:$0xff] %v3447
    %3512 = vst [vmem:[%s240 + $0xf1] sm:$0xff] %v3448
    %3513 = vst [vmem:[%s240 + $0xf9] sm:$0xff] %v3449
    %3514 = vst [vmem:[%s240 + $0x109] sm:$0xff] %v3450
    %3515 = vst [vmem:[%s240 + $0x111] sm:$0xff] %v3451
    %3516 = vst [vmem:[%s240 + $0x121] sm:$0xff] %v3452
    %3517 = vst [vmem:[%s240 + $0x129] sm:$0xff] %v3453
    %3518 = vst [vmem:[%s240 + $0x139] sm:$0xff] %v3454
    %3519 = vst [vmem:[%s240 + $0x141] sm:$0xff] %v3455
    %3520 = vst [vmem:[%s240 + $0x151] sm:$0xff] %v3456
    %3521 = vst [vmem:[%s240 + $0x159] sm:$0xff] %v3457
    %3522 = vst [vmem:[%s240 + $0x169] sm:$0xff] %v3458
    %3523 = vst [vmem:[%s240 + $0x171] sm:$0xff] %v3459
    %3524 = vst [vmem:[%s240 + $0x1b1] sm:$0xff] %v3460
    %3525 = vst [vmem:[%s240 + $0x1b9] sm:$0xff] %v3461
    %3526 = vst [vmem:[%s240 + $0x1c9] sm:$0xff] %v3462
    %3527 = vst [vmem:[%s240 + $0x1d1] sm:$0xff] %v3463
    %3528 = vst [vmem:[%s240 + $0x1e1] sm:$0xff] %v3464
    %3529 = vst [vmem:[%s240 + $0x1e9] sm:$0xff] %v3465
    %3530 = vst [vmem:[%s240 + $0x1f9] sm:$0xff] %v3466
    %3531 = vst [vmem:[%s240 + $0x201] sm:$0xff] %v3467
    %3532 = vst [vmem:[%s240 + $0x211] sm:$0xff] %v3468
    %3533 = vst [vmem:[%s240 + $0x219] sm:$0xff] %v3469
    %3534 = vst [vmem:[%s240 + $0x229] sm:$0xff] %v3470
    %3535 = vst [vmem:[%s240 + $0x231] sm:$0xff] %v3471
    %3536 = vst [vmem:[%s240 + $0x241] sm:$0xff] %v3472
    %3537 = vst [vmem:[%s240 + $0x249] sm:$0xff] %v3473
    %3538 = vst [vmem:[%s240 + $0x259] sm:$0xff] %v3474
    %3539 = vst [vmem:[%s240 + $0x261] sm:$0xff] %v3475
    %3540 = vst [vmem:[%s240 + $0x271] sm:$0xff] %v3476
    %3541 = vst [vmem:[%s240 + $0x279] sm:$0xff] %v3477
    %3542 = vst [vmem:[%s240 + $0x289] sm:$0xff] %v3478
    %3543 = vst [vmem:[%s240 + $0x291] sm:$0xff] %v3479
    %3544 = vst [vmem:[%s240 + $0x2a1] sm:$0xff] %v3480
    %3545 = vst [vmem:[%s240 + $0x2a9] sm:$0xff] %v3481
    %3546 = vst [vmem:[%s240 + $0x2b9] sm:$0xff] %v3482
    %3547 = vst [vmem:[%s240 + $0x2c1] sm:$0xff] %v3483
    %3548 = vst [vmem:[%s240 + $0x2d1] sm:$0xff] %v3484
    %3549 = vst [vmem:[%s240 + $0x2d9] sm:$0xff] %v3485
    %3550 = vst [vmem:[%s240 + $0x2e9] sm:$0xff] %v3486
    %3551 = vst [vmem:[%s240 + $0x2f1] sm:$0xff] %v3487
    %3552 = vst [vmem:[%s240 + $0x301] sm:$0xff] %v3488
    %3553 = vst [vmem:[%s240 + $0x309] sm:$0xff] %v3489
    %3554 = vst [vmem:[%s240 + $0x319] sm:$0xff] %v3490
    %3555 = vst [vmem:[%s240 + $0x321] sm:$0xff] %v3491
    %v3556 = vld [vmem:[#allocation2] sm:$0xff]
    %v3557 = vld [vmem:[#allocation2 + $0x8] sm:$0xff]
    %v3558 = vld [vmem:[#allocation2 + $0x18] sm:$0xff]
    %v3559 = vld [vmem:[#allocation2 + $0x20] sm:$0xff]
    %v3560 = vld [vmem:[#allocation2 + $0x30] sm:$0xff]
    %v3561 = vld [vmem:[#allocation2 + $0x38] sm:$0xff]
    %v3562 = vld [vmem:[#allocation2 + $0x48] sm:$0xff]
    %v3563 = vld [vmem:[#allocation2 + $0x50] sm:$0xff]
    %v3564 = vld [vmem:[#allocation2 + $0x60] sm:$0xff]
    %v3565 = vld [vmem:[#allocation2 + $0x68] sm:$0xff]
    %v3566 = vld [vmem:[#allocation2 + $0x78] sm:$0xff]
    %v3567 = vld [vmem:[#allocation2 + $0x80] sm:$0xff]
    %v3568 = vld [vmem:[#allocation2 + $0x90] sm:$0xff]
    %v3569 = vld [vmem:[#allocation2 + $0x98] sm:$0xff]
    %v3570 = vld [vmem:[#allocation2 + $0xa8] sm:$0xff]
    %v3571 = vld [vmem:[#allocation2 + $0xb0] sm:$0xff]
    %v3572 = vld [vmem:[#allocation2 + $0xc0] sm:$0xff]
    %v3573 = vld [vmem:[#allocation2 + $0xc8] sm:$0xff]
    %v3574 = vld [vmem:[#allocation2 + $0xd8] sm:$0xff]
    %v3575 = vld [vmem:[#allocation2 + $0xe0] sm:$0xff]
    %v3576 = vld [vmem:[#allocation2 + $0xf0] sm:$0xff]
    %v3577 = vld [vmem:[#allocation2 + $0xf8] sm:$0xff]
    %v3578 = vld [vmem:[#allocation2 + $0x108] sm:$0xff]
    %v3579 = vld [vmem:[#allocation2 + $0x110] sm:$0xff]
    %v3580 = vld [vmem:[#allocation2 + $0x120] sm:$0xff]
    %v3581 = vld [vmem:[#allocation2 + $0x128] sm:$0xff]
    %v3582 = vld [vmem:[#allocation2 + $0x138] sm:$0xff]
    %v3583 = vld [vmem:[#allocation2 + $0x140] sm:$0xff]
    %v3584 = vld [vmem:[#allocation2 + $0x150] sm:$0xff]
    %v3585 = vld [vmem:[#allocation2 + $0x158] sm:$0xff]
    %v3586 = vld [vmem:[#allocation2 + $0x168] sm:$0xff]
    %v3587 = vld [vmem:[#allocation2 + $0x170] sm:$0xff]
    %v3588 = vld [vmem:[#allocation2 + $0x1b0] sm:$0xff]
    %v3589 = vld [vmem:[#allocation2 + $0x1b8] sm:$0xff]
    %v3590 = vld [vmem:[#allocation2 + $0x1c8] sm:$0xff]
    %v3591 = vld [vmem:[#allocation2 + $0x1d0] sm:$0xff]
    %v3592 = vld [vmem:[#allocation2 + $0x1e0] sm:$0xff]
    %v3593 = vld [vmem:[#allocation2 + $0x1e8] sm:$0xff]
    %v3594 = vld [vmem:[#allocation2 + $0x1f8] sm:$0xff]
    %v3595 = vld [vmem:[#allocation2 + $0x200] sm:$0xff]
    %v3596 = vld [vmem:[#allocation2 + $0x210] sm:$0xff]
    %v3597 = vld [vmem:[#allocation2 + $0x218] sm:$0xff]
    %v3598 = vld [vmem:[#allocation2 + $0x228] sm:$0xff]
    %v3599 = vld [vmem:[#allocation2 + $0x230] sm:$0xff]
    %v3600 = vld [vmem:[#allocation2 + $0x240] sm:$0xff]
    %v3601 = vld [vmem:[#allocation2 + $0x248] sm:$0xff]
    %v3602 = vld [vmem:[#allocation2 + $0x258] sm:$0xff]
    %v3603 = vld [vmem:[#allocation2 + $0x260] sm:$0xff]
    %v3604 = vld [vmem:[#allocation2 + $0x270] sm:$0xff]
    %v3605 = vld [vmem:[#allocation2 + $0x278] sm:$0xff]
    %v3606 = vld [vmem:[#allocation2 + $0x288] sm:$0xff]
    %v3607 = vld [vmem:[#allocation2 + $0x290] sm:$0xff]
    %v3608 = vld [vmem:[#allocation2 + $0x2a0] sm:$0xff]
    %v3609 = vld [vmem:[#allocation2 + $0x2a8] sm:$0xff]
    %v3610 = vld [vmem:[#allocation2 + $0x2b8] sm:$0xff]
    %v3611 = vld [vmem:[#allocation2 + $0x2c0] sm:$0xff]
    %v3612 = vld [vmem:[#allocation2 + $0x2d0] sm:$0xff]
    %v3613 = vld [vmem:[#allocation2 + $0x2d8] sm:$0xff]
    %v3614 = vld [vmem:[#allocation2 + $0x2e8] sm:$0xff]
    %v3615 = vld [vmem:[#allocation2 + $0x2f0] sm:$0xff]
    %v3616 = vld [vmem:[#allocation2 + $0x300] sm:$0xff]
    %v3617 = vld [vmem:[#allocation2 + $0x308] sm:$0xff]
    %v3618 = vld [vmem:[#allocation2 + $0x318] sm:$0xff]
    %v3619 = vld [vmem:[#allocation2 + $0x320] sm:$0xff]
    %v3620 = vld [vmem:[#allocation2 + $0x1] sm:$0xff]
    %v3621 = vld [vmem:[#allocation2 + $0x9] sm:$0xff]
    %v3622 = vld [vmem:[#allocation2 + $0x19] sm:$0xff]
    %v3623 = vld [vmem:[#allocation2 + $0x21] sm:$0xff]
    %v3624 = vld [vmem:[#allocation2 + $0x31] sm:$0xff]
    %v3625 = vld [vmem:[#allocation2 + $0x39] sm:$0xff]
    %v3626 = vld [vmem:[#allocation2 + $0x49] sm:$0xff]
    %v3627 = vld [vmem:[#allocation2 + $0x51] sm:$0xff]
    %v3628 = vld [vmem:[#allocation2 + $0x61] sm:$0xff]
    %v3629 = vld [vmem:[#allocation2 + $0x69] sm:$0xff]
    %v3630 = vld [vmem:[#allocation2 + $0x79] sm:$0xff]
    %v3631 = vld [vmem:[#allocation2 + $0x81] sm:$0xff]
    %v3632 = vld [vmem:[#allocation2 + $0x91] sm:$0xff]
    %v3633 = vld [vmem:[#allocation2 + $0x99] sm:$0xff]
    %v3634 = vld [vmem:[#allocation2 + $0xa9] sm:$0xff]
    %v3635 = vld [vmem:[#allocation2 + $0xb1] sm:$0xff]
    %v3636 = vld [vmem:[#allocation2 + $0xc1] sm:$0xff]
    %v3637 = vld [vmem:[#allocation2 + $0xc9] sm:$0xff]
    %v3638 = vld [vmem:[#allocation2 + $0xd9] sm:$0xff]
    %v3639 = vld [vmem:[#allocation2 + $0xe1] sm:$0xff]
    %v3640 = vld [vmem:[#allocation2 + $0xf1] sm:$0xff]
    %v3641 = vld [vmem:[#allocation2 + $0xf9] sm:$0xff]
    %v3642 = vld [vmem:[#allocation2 + $0x109] sm:$0xff]
    %v3643 = vld [vmem:[#allocation2 + $0x111] sm:$0xff]
    %v3644 = vld [vmem:[#allocation2 + $0x121] sm:$0xff]
    %v3645 = vld [vmem:[#allocation2 + $0x129] sm:$0xff]
    %v3646 = vld [vmem:[#allocation2 + $0x139] sm:$0xff]
    %v3647 = vld [vmem:[#allocation2 + $0x141] sm:$0xff]
    %v3648 = vld [vmem:[#allocation2 + $0x151] sm:$0xff]
    %v3649 = vld [vmem:[#allocation2 + $0x159] sm:$0xff]
    %v3650 = vld [vmem:[#allocation2 + $0x169] sm:$0xff]
    %v3651 = vld [vmem:[#allocation2 + $0x171] sm:$0xff]
    %v3652 = vld [vmem:[#allocation2 + $0x1b1] sm:$0xff]
    %v3653 = vld [vmem:[#allocation2 + $0x1b9] sm:$0xff]
    %v3654 = vld [vmem:[#allocation2 + $0x1c9] sm:$0xff]
    %v3655 = vld [vmem:[#allocation2 + $0x1d1] sm:$0xff]
    %v3656 = vld [vmem:[#allocation2 + $0x1e1] sm:$0xff]
    %v3657 = vld [vmem:[#allocation2 + $0x1e9] sm:$0xff]
    %v3658 = vld [vmem:[#allocation2 + $0x1f9] sm:$0xff]
    %v3659 = vld [vmem:[#allocation2 + $0x201] sm:$0xff]
    %v3660 = vld [vmem:[#allocation2 + $0x211] sm:$0xff]
    %v3661 = vld [vmem:[#allocation2 + $0x219] sm:$0xff]
    %v3662 = vld [vmem:[#allocation2 + $0x229] sm:$0xff]
    %v3663 = vld [vmem:[#allocation2 + $0x231] sm:$0xff]
    %v3664 = vld [vmem:[#allocation2 + $0x241] sm:$0xff]
    %v3665 = vld [vmem:[#allocation2 + $0x249] sm:$0xff]
    %v3666 = vld [vmem:[#allocation2 + $0x259] sm:$0xff]
    %v3667 = vld [vmem:[#allocation2 + $0x261] sm:$0xff]
    %v3668 = vld [vmem:[#allocation2 + $0x271] sm:$0xff]
    %v3669 = vld [vmem:[#allocation2 + $0x279] sm:$0xff]
    %v3670 = vld [vmem:[#allocation2 + $0x289] sm:$0xff]
    %v3671 = vld [vmem:[#allocation2 + $0x291] sm:$0xff]
    %v3672 = vld [vmem:[#allocation2 + $0x2a1] sm:$0xff]
    %v3673 = vld [vmem:[#allocation2 + $0x2a9] sm:$0xff]
    %v3674 = vld [vmem:[#allocation2 + $0x2b9] sm:$0xff]
    %v3675 = vld [vmem:[#allocation2 + $0x2c1] sm:$0xff]
    %v3676 = vld [vmem:[#allocation2 + $0x2d1] sm:$0xff]
    %v3677 = vld [vmem:[#allocation2 + $0x2d9] sm:$0xff]
    %v3678 = vld [vmem:[#allocation2 + $0x2e9] sm:$0xff]
    %v3679 = vld [vmem:[#allocation2 + $0x2f1] sm:$0xff]
    %v3680 = vld [vmem:[#allocation2 + $0x301] sm:$0xff]
    %v3681 = vld [vmem:[#allocation2 + $0x309] sm:$0xff]
    %v3682 = vld [vmem:[#allocation2 + $0x319] sm:$0xff]
    %v3683 = vld [vmem:[#allocation2 + $0x321] sm:$0xff]
    %v3684 = vld [vmem:[#allocation2 + $0x2] sm:$0xff]
    %v3685 = vld [vmem:[#allocation2 + $0xa] sm:$0xff]
    %v3686 = vld [vmem:[#allocation2 + $0x1a] sm:$0xff]
    %v3687 = vld [vmem:[#allocation2 + $0x22] sm:$0xff]
    %v3688 = vld [vmem:[#allocation2 + $0x32] sm:$0xff]
    %v3689 = vld [vmem:[#allocation2 + $0x3a] sm:$0xff]
    %v3690 = vld [vmem:[#allocation2 + $0x4a] sm:$0xff]
    %v3691 = vld [vmem:[#allocation2 + $0x52] sm:$0xff]
    %v3692 = vld [vmem:[#allocation2 + $0x62] sm:$0xff]
    %v3693 = vld [vmem:[#allocation2 + $0x6a] sm:$0xff]
    %v3694 = vld [vmem:[#allocation2 + $0x7a] sm:$0xff]
    %v3695 = vld [vmem:[#allocation2 + $0x82] sm:$0xff]
    %v3696 = vld [vmem:[#allocation2 + $0x92] sm:$0xff]
    %v3697 = vld [vmem:[#allocation2 + $0x9a] sm:$0xff]
    %v3698 = vld [vmem:[#allocation2 + $0xaa] sm:$0xff]
    %v3699 = vld [vmem:[#allocation2 + $0xb2] sm:$0xff]
    %v3700 = vld [vmem:[#allocation2 + $0xc2] sm:$0xff]
    %v3701 = vld [vmem:[#allocation2 + $0xca] sm:$0xff]
    %v3702 = vld [vmem:[#allocation2 + $0xda] sm:$0xff]
    %v3703 = vld [vmem:[#allocation2 + $0xe2] sm:$0xff]
    %v3704 = vld [vmem:[#allocation2 + $0xf2] sm:$0xff]
    %v3705 = vld [vmem:[#allocation2 + $0xfa] sm:$0xff]
    %v3706 = vld [vmem:[#allocation2 + $0x10a] sm:$0xff]
    %v3707 = vld [vmem:[#allocation2 + $0x112] sm:$0xff]
    %v3708 = vld [vmem:[#allocation2 + $0x122] sm:$0xff]
    %v3709 = vld [vmem:[#allocation2 + $0x12a] sm:$0xff]
    %v3710 = vld [vmem:[#allocation2 + $0x13a] sm:$0xff]
    %v3711 = vld [vmem:[#allocation2 + $0x142] sm:$0xff]
    %v3712 = vld [vmem:[#allocation2 + $0x152] sm:$0xff]
    %v3713 = vld [vmem:[#allocation2 + $0x15a] sm:$0xff]
    %v3714 = vld [vmem:[#allocation2 + $0x16a] sm:$0xff]
    %v3715 = vld [vmem:[#allocation2 + $0x172] sm:$0xff]
    %v3716 = vld [vmem:[#allocation2 + $0x1b2] sm:$0xff]
    %v3717 = vld [vmem:[#allocation2 + $0x1ba] sm:$0xff]
    %v3718 = vld [vmem:[#allocation2 + $0x1ca] sm:$0xff]
    %v3719 = vld [vmem:[#allocation2 + $0x1d2] sm:$0xff]
    %v3720 = vld [vmem:[#allocation2 + $0x1e2] sm:$0xff]
    %v3721 = vld [vmem:[#allocation2 + $0x1ea] sm:$0xff]
    %v3722 = vld [vmem:[#allocation2 + $0x1fa] sm:$0xff]
    %v3723 = vld [vmem:[#allocation2 + $0x202] sm:$0xff]
    %v3724 = vld [vmem:[#allocation2 + $0x212] sm:$0xff]
    %v3725 = vld [vmem:[#allocation2 + $0x21a] sm:$0xff]
    %v3726 = vld [vmem:[#allocation2 + $0x22a] sm:$0xff]
    %v3727 = vld [vmem:[#allocation2 + $0x232] sm:$0xff]
    %v3728 = vld [vmem:[#allocation2 + $0x242] sm:$0xff]
    %v3729 = vld [vmem:[#allocation2 + $0x24a] sm:$0xff]
    %v3730 = vld [vmem:[#allocation2 + $0x25a] sm:$0xff]
    %v3731 = vld [vmem:[#allocation2 + $0x262] sm:$0xff]
    %v3732 = vld [vmem:[#allocation2 + $0x272] sm:$0xff]
    %v3733 = vld [vmem:[#allocation2 + $0x27a] sm:$0xff]
    %v3734 = vld [vmem:[#allocation2 + $0x28a] sm:$0xff]
    %v3735 = vld [vmem:[#allocation2 + $0x292] sm:$0xff]
    %v3736 = vld [vmem:[#allocation2 + $0x2a2] sm:$0xff]
    %v3737 = vld [vmem:[#allocation2 + $0x2aa] sm:$0xff]
    %v3738 = vld [vmem:[#allocation2 + $0x2ba] sm:$0xff]
    %v3739 = vld [vmem:[#allocation2 + $0x2c2] sm:$0xff]
    %v3740 = vld [vmem:[#allocation2 + $0x2d2] sm:$0xff]
    %v3741 = vld [vmem:[#allocation2 + $0x2da] sm:$0xff]
    %v3742 = vld [vmem:[#allocation2 + $0x2ea] sm:$0xff]
    %v3743 = vld [vmem:[#allocation2 + $0x2f2] sm:$0xff]
    %v3744 = vld [vmem:[#allocation2 + $0x302] sm:$0xff]
    %v3745 = vld [vmem:[#allocation2 + $0x30a] sm:$0xff]
    %v3746 = vld [vmem:[#allocation2 + $0x31a] sm:$0xff]
    %v3747 = vld [vmem:[#allocation2 + $0x322] sm:$0xff]
    %v3748 = vld [vmem:[%s240] sm:$0xff]
    %v3749 = vld [vmem:[%s240 + $0x8] sm:$0xff]
    %v3750 = vld [vmem:[%s240 + $0x18] sm:$0xff]
    %v3751 = vld [vmem:[%s240 + $0x20] sm:$0xff]
    %v3752 = vld [vmem:[%s240 + $0x30] sm:$0xff]
    %v3753 = vld [vmem:[%s240 + $0x38] sm:$0xff]
    %v3754 = vld [vmem:[%s240 + $0x48] sm:$0xff]
    %v3755 = vld [vmem:[%s240 + $0x50] sm:$0xff]
    %v3756 = vld [vmem:[%s240 + $0x60] sm:$0xff]
    %v3757 = vld [vmem:[%s240 + $0x68] sm:$0xff]
    %v3758 = vld [vmem:[%s240 + $0x78] sm:$0xff]
    %v3759 = vld [vmem:[%s240 + $0x80] sm:$0xff]
    %v3760 = vld [vmem:[%s240 + $0x90] sm:$0xff]
    %v3761 = vld [vmem:[%s240 + $0x98] sm:$0xff]
    %v3762 = vld [vmem:[%s240 + $0xa8] sm:$0xff]
    %v3763 = vld [vmem:[%s240 + $0xb0] sm:$0xff]
    %v3764 = vld [vmem:[%s240 + $0xc0] sm:$0xff]
    %v3765 = vld [vmem:[%s240 + $0xc8] sm:$0xff]
    %v3766 = vld [vmem:[%s240 + $0xd8] sm:$0xff]
    %v3767 = vld [vmem:[%s240 + $0xe0] sm:$0xff]
    %v3768 = vld [vmem:[%s240 + $0xf0] sm:$0xff]
    %v3769 = vld [vmem:[%s240 + $0xf8] sm:$0xff]
    %v3770 = vld [vmem:[%s240 + $0x108] sm:$0xff]
    %v3771 = vld [vmem:[%s240 + $0x110] sm:$0xff]
    %v3772 = vld [vmem:[%s240 + $0x120] sm:$0xff]
    %v3773 = vld [vmem:[%s240 + $0x128] sm:$0xff]
    %v3774 = vld [vmem:[%s240 + $0x138] sm:$0xff]
    %v3775 = vld [vmem:[%s240 + $0x140] sm:$0xff]
    %v3776 = vld [vmem:[%s240 + $0x150] sm:$0xff]
    %v3777 = vld [vmem:[%s240 + $0x158] sm:$0xff]
    %v3778 = vld [vmem:[%s240 + $0x168] sm:$0xff]
    %v3779 = vld [vmem:[%s240 + $0x170] sm:$0xff]
    %v3780 = vld [vmem:[%s240 + $0x1b0] sm:$0xff]
    %v3781 = vld [vmem:[%s240 + $0x1b8] sm:$0xff]
    %v3782 = vld [vmem:[%s240 + $0x1c8] sm:$0xff]
    %v3783 = vld [vmem:[%s240 + $0x1d0] sm:$0xff]
    %v3784 = vld [vmem:[%s240 + $0x1e0] sm:$0xff]
    %v3785 = vld [vmem:[%s240 + $0x1e8] sm:$0xff]
    %v3786 = vld [vmem:[%s240 + $0x1f8] sm:$0xff]
    %v3787 = vld [vmem:[%s240 + $0x200] sm:$0xff]
    %v3788 = vld [vmem:[%s240 + $0x210] sm:$0xff]
    %v3789 = vld [vmem:[%s240 + $0x218] sm:$0xff]
    %v3790 = vld [vmem:[%s240 + $0x228] sm:$0xff]
    %v3791 = vld [vmem:[%s240 + $0x230] sm:$0xff]
    %v3792 = vld [vmem:[%s240 + $0x240] sm:$0xff]
    %v3793 = vld [vmem:[%s240 + $0x248] sm:$0xff]
    %v3794 = vld [vmem:[%s240 + $0x258] sm:$0xff]
    %v3795 = vld [vmem:[%s240 + $0x260] sm:$0xff]
    %v3796 = vld [vmem:[%s240 + $0x270] sm:$0xff]
    %v3797 = vld [vmem:[%s240 + $0x278] sm:$0xff]
    %v3798 = vld [vmem:[%s240 + $0x288] sm:$0xff]
    %v3799 = vld [vmem:[%s240 + $0x290] sm:$0xff]
    %v3800 = vld [vmem:[%s240 + $0x2a0] sm:$0xff]
    %v3801 = vld [vmem:[%s240 + $0x2a8] sm:$0xff]
    %v3802 = vld [vmem:[%s240 + $0x2b8] sm:$0xff]
    %v3803 = vld [vmem:[%s240 + $0x2c0] sm:$0xff]
    %v3804 = vld [vmem:[%s240 + $0x2d0] sm:$0xff]
    %v3805 = vld [vmem:[%s240 + $0x2d8] sm:$0xff]
    %v3806 = vld [vmem:[%s240 + $0x2e8] sm:$0xff]
    %v3807 = vld [vmem:[%s240 + $0x2f0] sm:$0xff]
    %v3808 = vld [vmem:[%s240 + $0x300] sm:$0xff]
    %v3809 = vld [vmem:[%s240 + $0x308] sm:$0xff]
    %v3810 = vld [vmem:[%s240 + $0x318] sm:$0xff]
    %v3811 = vld [vmem:[%s240 + $0x320] sm:$0xff]
    %v3812 = vld [vmem:[%s240 + $0x1] sm:$0xff]
    %v3813 = vld [vmem:[%s240 + $0x9] sm:$0xff]
    %v3814 = vld [vmem:[%s240 + $0x19] sm:$0xff]
    %v3815 = vld [vmem:[%s240 + $0x21] sm:$0xff]
    %v3816 = vld [vmem:[%s240 + $0x31] sm:$0xff]
    %v3817 = vld [vmem:[%s240 + $0x39] sm:$0xff]
    %v3818 = vld [vmem:[%s240 + $0x49] sm:$0xff]
    %v3819 = vld [vmem:[%s240 + $0x51] sm:$0xff]
    %v3820 = vld [vmem:[%s240 + $0x61] sm:$0xff]
    %v3821 = vld [vmem:[%s240 + $0x69] sm:$0xff]
    %v3822 = vld [vmem:[%s240 + $0x79] sm:$0xff]
    %v3823 = vld [vmem:[%s240 + $0x81] sm:$0xff]
    %v3824 = vld [vmem:[%s240 + $0x91] sm:$0xff]
    %v3825 = vld [vmem:[%s240 + $0x99] sm:$0xff]
    %v3826 = vld [vmem:[%s240 + $0xa9] sm:$0xff]
    %v3827 = vld [vmem:[%s240 + $0xb1] sm:$0xff]
    %v3828 = vld [vmem:[%s240 + $0xc1] sm:$0xff]
    %v3829 = vld [vmem:[%s240 + $0xc9] sm:$0xff]
    %v3830 = vld [vmem:[%s240 + $0xd9] sm:$0xff]
    %v3831 = vld [vmem:[%s240 + $0xe1] sm:$0xff]
    %v3832 = vld [vmem:[%s240 + $0xf1] sm:$0xff]
    %v3833 = vld [vmem:[%s240 + $0xf9] sm:$0xff]
    %v3834 = vld [vmem:[%s240 + $0x109] sm:$0xff]
    %v3835 = vld [vmem:[%s240 + $0x111] sm:$0xff]
    %v3836 = vld [vmem:[%s240 + $0x121] sm:$0xff]
    %v3837 = vld [vmem:[%s240 + $0x129] sm:$0xff]
    %v3838 = vld [vmem:[%s240 + $0x139] sm:$0xff]
    %v3839 = vld [vmem:[%s240 + $0x141] sm:$0xff]
    %v3840 = vld [vmem:[%s240 + $0x151] sm:$0xff]
    %v3841 = vld [vmem:[%s240 + $0x159] sm:$0xff]
    %v3842 = vld [vmem:[%s240 + $0x169] sm:$0xff]
    %v3843 = vld [vmem:[%s240 + $0x171] sm:$0xff]
    %v3844 = vld [vmem:[%s240 + $0x1b1] sm:$0xff]
    %v3845 = vld [vmem:[%s240 + $0x1b9] sm:$0xff]
    %v3846 = vld [vmem:[%s240 + $0x1c9] sm:$0xff]
    %v3847 = vld [vmem:[%s240 + $0x1d1] sm:$0xff]
    %v3848 = vld [vmem:[%s240 + $0x1e1] sm:$0xff]
    %v3849 = vld [vmem:[%s240 + $0x1e9] sm:$0xff]
    %v3850 = vld [vmem:[%s240 + $0x1f9] sm:$0xff]
    %v3851 = vld [vmem:[%s240 + $0x201] sm:$0xff]
    %v3852 = vld [vmem:[%s240 + $0x211] sm:$0xff]
    %v3853 = vld [vmem:[%s240 + $0x219] sm:$0xff]
    %v3854 = vld [vmem:[%s240 + $0x229] sm:$0xff]
    %v3855 = vld [vmem:[%s240 + $0x231] sm:$0xff]
    %v3856 = vld [vmem:[%s240 + $0x241] sm:$0xff]
    %v3857 = vld [vmem:[%s240 + $0x249] sm:$0xff]
    %v3858 = vld [vmem:[%s240 + $0x259] sm:$0xff]
    %v3859 = vld [vmem:[%s240 + $0x261] sm:$0xff]
    %v3860 = vld [vmem:[%s240 + $0x271] sm:$0xff]
    %v3861 = vld [vmem:[%s240 + $0x279] sm:$0xff]
    %v3862 = vld [vmem:[%s240 + $0x289] sm:$0xff]
    %v3863 = vld [vmem:[%s240 + $0x291] sm:$0xff]
    %v3864 = vld [vmem:[%s240 + $0x2a1] sm:$0xff]
    %v3865 = vld [vmem:[%s240 + $0x2a9] sm:$0xff]
    %v3866 = vld [vmem:[%s240 + $0x2b9] sm:$0xff]
    %v3867 = vld [vmem:[%s240 + $0x2c1] sm:$0xff]
    %v3868 = vld [vmem:[%s240 + $0x2d1] sm:$0xff]
    %v3869 = vld [vmem:[%s240 + $0x2d9] sm:$0xff]
    %v3870 = vld [vmem:[%s240 + $0x2e9] sm:$0xff]
    %v3871 = vld [vmem:[%s240 + $0x2f1] sm:$0xff]
    %v3872 = vld [vmem:[%s240 + $0x301] sm:$0xff]
    %v3873 = vld [vmem:[%s240 + $0x309] sm:$0xff]
    %v3874 = vld [vmem:[%s240 + $0x319] sm:$0xff]
    %v3875 = vld [vmem:[%s240 + $0x321] sm:$0xff]
    %v3876 = vld [vmem:[%s240 + $0x2] sm:$0xff]
    %v3877 = vld [vmem:[%s240 + $0xa] sm:$0xff]
    %v3878 = vld [vmem:[%s240 + $0x1a] sm:$0xff]
    %v3879 = vld [vmem:[%s240 + $0x22] sm:$0xff]
    %v3880 = vld [vmem:[%s240 + $0x32] sm:$0xff]
    %v3881 = vld [vmem:[%s240 + $0x3a] sm:$0xff]
    %v3882 = vld [vmem:[%s240 + $0x4a] sm:$0xff]
    %v3883 = vld [vmem:[%s240 + $0x52] sm:$0xff]
    %v3884 = vld [vmem:[%s240 + $0x62] sm:$0xff]
    %v3885 = vld [vmem:[%s240 + $0x6a] sm:$0xff]
    %v3886 = vld [vmem:[%s240 + $0x7a] sm:$0xff]
    %v3887 = vld [vmem:[%s240 + $0x82] sm:$0xff]
    %v3888 = vld [vmem:[%s240 + $0x92] sm:$0xff]
    %v3889 = vld [vmem:[%s240 + $0x9a] sm:$0xff]
    %v3890 = vld [vmem:[%s240 + $0xaa] sm:$0xff]
    %v3891 = vld [vmem:[%s240 + $0xb2] sm:$0xff]
    %v3892 = vld [vmem:[%s240 + $0xc2] sm:$0xff]
    %v3893 = vld [vmem:[%s240 + $0xca] sm:$0xff]
    %v3894 = vld [vmem:[%s240 + $0xda] sm:$0xff]
    %v3895 = vld [vmem:[%s240 + $0xe2] sm:$0xff]
    %v3896 = vld [vmem:[%s240 + $0xf2] sm:$0xff]
    %v3897 = vld [vmem:[%s240 + $0xfa] sm:$0xff]
    %v3898 = vld [vmem:[%s240 + $0x10a] sm:$0xff]
    %v3899 = vld [vmem:[%s240 + $0x112] sm:$0xff]
    %v3900 = vld [vmem:[%s240 + $0x122] sm:$0xff]
    %v3901 = vld [vmem:[%s240 + $0x12a] sm:$0xff]
    %v3902 = vld [vmem:[%s240 + $0x13a] sm:$0xff]
    %v3903 = vld [vmem:[%s240 + $0x142] sm:$0xff]
    %v3904 = vld [vmem:[%s240 + $0x152] sm:$0xff]
    %v3905 = vld [vmem:[%s240 + $0x15a] sm:$0xff]
    %v3906 = vld [vmem:[%s240 + $0x16a] sm:$0xff]
    %v3907 = vld [vmem:[%s240 + $0x172] sm:$0xff]
    %v3908 = vld [vmem:[%s240 + $0x1b2] sm:$0xff]
    %v3909 = vld [vmem:[%s240 + $0x1ba] sm:$0xff]
    %v3910 = vld [vmem:[%s240 + $0x1ca] sm:$0xff]
    %v3911 = vld [vmem:[%s240 + $0x1d2] sm:$0xff]
    %v3912 = vld [vmem:[%s240 + $0x1e2] sm:$0xff]
    %v3913 = vld [vmem:[%s240 + $0x1ea] sm:$0xff]
    %v3914 = vld [vmem:[%s240 + $0x1fa] sm:$0xff]
    %v3915 = vld [vmem:[%s240 + $0x202] sm:$0xff]
    %v3916 = vld [vmem:[%s240 + $0x212] sm:$0xff]
    %v3917 = vld [vmem:[%s240 + $0x21a] sm:$0xff]
    %v3918 = vld [vmem:[%s240 + $0x22a] sm:$0xff]
    %v3919 = vld [vmem:[%s240 + $0x232] sm:$0xff]
    %v3920 = vld [vmem:[%s240 + $0x242] sm:$0xff]
    %v3921 = vld [vmem:[%s240 + $0x24a] sm:$0xff]
    %v3922 = vld [vmem:[%s240 + $0x25a] sm:$0xff]
    %v3923 = vld [vmem:[%s240 + $0x262] sm:$0xff]
    %v3924 = vld [vmem:[%s240 + $0x272] sm:$0xff]
    %v3925 = vld [vmem:[%s240 + $0x27a] sm:$0xff]
    %v3926 = vld [vmem:[%s240 + $0x28a] sm:$0xff]
    %v3927 = vld [vmem:[%s240 + $0x292] sm:$0xff]
    %v3928 = vld [vmem:[%s240 + $0x2a2] sm:$0xff]
    %v3929 = vld [vmem:[%s240 + $0x2aa] sm:$0xff]
    %v3930 = vld [vmem:[%s240 + $0x2ba] sm:$0xff]
    %v3931 = vld [vmem:[%s240 + $0x2c2] sm:$0xff]
    %v3932 = vld [vmem:[%s240 + $0x2d2] sm:$0xff]
    %v3933 = vld [vmem:[%s240 + $0x2da] sm:$0xff]
    %v3934 = vld [vmem:[%s240 + $0x2ea] sm:$0xff]
    %v3935 = vld [vmem:[%s240 + $0x2f2] sm:$0xff]
    %v3936 = vld [vmem:[%s240 + $0x302] sm:$0xff]
    %v3937 = vld [vmem:[%s240 + $0x30a] sm:$0xff]
    %v3938 = vld [vmem:[%s240 + $0x31a] sm:$0xff]
    %v3939 = vld [vmem:[%s240 + $0x322] sm:$0xff]
    %v3940 = vld [vmem:[%s689] sm:$0xff]
    %v3941 = vld [vmem:[%s689 + $0x8] sm:$0xff]
    %v3942 = vld [vmem:[%s689 + $0x18] sm:$0xff]
    %v3943 = vld [vmem:[%s689 + $0x20] sm:$0xff]
    %v3944 = vld [vmem:[%s689 + $0x30] sm:$0xff]
    %v3945 = vld [vmem:[%s689 + $0x38] sm:$0xff]
    %v3946 = vld [vmem:[%s689 + $0x48] sm:$0xff]
    %v3947 = vld [vmem:[%s689 + $0x50] sm:$0xff]
    %v3948 = vld [vmem:[%s689 + $0x60] sm:$0xff]
    %v3949 = vld [vmem:[%s689 + $0x68] sm:$0xff]
    %v3950 = vld [vmem:[%s689 + $0x78] sm:$0xff]
    %v3951 = vld [vmem:[%s689 + $0x80] sm:$0xff]
    %v3952 = vld [vmem:[%s689 + $0x90] sm:$0xff]
    %v3953 = vld [vmem:[%s689 + $0x98] sm:$0xff]
    %v3954 = vld [vmem:[%s689 + $0xa8] sm:$0xff]
    %v3955 = vld [vmem:[%s689 + $0xb0] sm:$0xff]
    %v3956 = vld [vmem:[%s689 + $0xc0] sm:$0xff]
    %v3957 = vld [vmem:[%s689 + $0xc8] sm:$0xff]
    %v3958 = vld [vmem:[%s689 + $0xd8] sm:$0xff]
    %v3959 = vld [vmem:[%s689 + $0xe0] sm:$0xff]
    %v3960 = vld [vmem:[%s689 + $0xf0] sm:$0xff]
    %v3961 = vld [vmem:[%s689 + $0xf8] sm:$0xff]
    %v3962 = vld [vmem:[%s689 + $0x108] sm:$0xff]
    %v3963 = vld [vmem:[%s689 + $0x110] sm:$0xff]
    %v3964 = vld [vmem:[%s689 + $0x120] sm:$0xff]
    %v3965 = vld [vmem:[%s689 + $0x128] sm:$0xff]
    %v3966 = vld [vmem:[%s689 + $0x138] sm:$0xff]
    %v3967 = vld [vmem:[%s689 + $0x140] sm:$0xff]
    %v3968 = vld [vmem:[%s689 + $0x150] sm:$0xff]
    %v3969 = vld [vmem:[%s689 + $0x158] sm:$0xff]
    %v3970 = vld [vmem:[%s689 + $0x168] sm:$0xff]
    %v3971 = vld [vmem:[%s689 + $0x170] sm:$0xff]
    %v3972 = vld [vmem:[%s689 + $0x1b0] sm:$0xff]
    %v3973 = vld [vmem:[%s689 + $0x1b8] sm:$0xff]
    %v3974 = vld [vmem:[%s689 + $0x1c8] sm:$0xff]
    %v3975 = vld [vmem:[%s689 + $0x1d0] sm:$0xff]
    %v3976 = vld [vmem:[%s689 + $0x1e0] sm:$0xff]
    %v3977 = vld [vmem:[%s689 + $0x1e8] sm:$0xff]
    %v3978 = vld [vmem:[%s689 + $0x1f8] sm:$0xff]
    %v3979 = vld [vmem:[%s689 + $0x200] sm:$0xff]
    %v3980 = vld [vmem:[%s689 + $0x210] sm:$0xff]
    %v3981 = vld [vmem:[%s689 + $0x218] sm:$0xff]
    %v3982 = vld [vmem:[%s689 + $0x228] sm:$0xff]
    %v3983 = vld [vmem:[%s689 + $0x230] sm:$0xff]
    %v3984 = vld [vmem:[%s689 + $0x240] sm:$0xff]
    %v3985 = vld [vmem:[%s689 + $0x248] sm:$0xff]
    %v3986 = vld [vmem:[%s689 + $0x258] sm:$0xff]
    %v3987 = vld [vmem:[%s689 + $0x260] sm:$0xff]
    %v3988 = vld [vmem:[%s689 + $0x270] sm:$0xff]
    %v3989 = vld [vmem:[%s689 + $0x278] sm:$0xff]
    %v3990 = vld [vmem:[%s689 + $0x288] sm:$0xff]
    %v3991 = vld [vmem:[%s689 + $0x290] sm:$0xff]
    %v3992 = vld [vmem:[%s689 + $0x2a0] sm:$0xff]
    %v3993 = vld [vmem:[%s689 + $0x2a8] sm:$0xff]
    %v3994 = vld [vmem:[%s689 + $0x2b8] sm:$0xff]
    %v3995 = vld [vmem:[%s689 + $0x2c0] sm:$0xff]
    %v3996 = vld [vmem:[%s689 + $0x2d0] sm:$0xff]
    %v3997 = vld [vmem:[%s689 + $0x2d8] sm:$0xff]
    %v3998 = vld [vmem:[%s689 + $0x2e8] sm:$0xff]
    %v3999 = vld [vmem:[%s689 + $0x2f0] sm:$0xff]
    %v4000 = vld [vmem:[%s689 + $0x300] sm:$0xff]
    %v4001 = vld [vmem:[%s689 + $0x308] sm:$0xff]
    %v4002 = vld [vmem:[%s689 + $0x318] sm:$0xff]
    %v4003 = vld [vmem:[%s689 + $0x320] sm:$0xff]
    %v4004 = vld [vmem:[%s689 + $0x1] sm:$0xff]
    %v4005 = vld [vmem:[%s689 + $0x9] sm:$0xff]
    %v4006 = vld [vmem:[%s689 + $0x19] sm:$0xff]
    %v4007 = vld [vmem:[%s689 + $0x21] sm:$0xff]
    %v4008 = vld [vmem:[%s689 + $0x31] sm:$0xff]
    %v4009 = vld [vmem:[%s689 + $0x39] sm:$0xff]
    %v4010 = vld [vmem:[%s689 + $0x49] sm:$0xff]
    %v4011 = vld [vmem:[%s689 + $0x51] sm:$0xff]
    %v4012 = vld [vmem:[%s689 + $0x61] sm:$0xff]
    %v4013 = vld [vmem:[%s689 + $0x69] sm:$0xff]
    %v4014 = vld [vmem:[%s689 + $0x79] sm:$0xff]
    %v4015 = vld [vmem:[%s689 + $0x81] sm:$0xff]
    %v4016 = vld [vmem:[%s689 + $0x91] sm:$0xff]
    %v4017 = vld [vmem:[%s689 + $0x99] sm:$0xff]
    %v4018 = vld [vmem:[%s689 + $0xa9] sm:$0xff]
    %v4019 = vld [vmem:[%s689 + $0xb1] sm:$0xff]
    %v4020 = vld [vmem:[%s689 + $0xc1] sm:$0xff]
    %v4021 = vld [vmem:[%s689 + $0xc9] sm:$0xff]
    %v4022 = vld [vmem:[%s689 + $0xd9] sm:$0xff]
    %v4023 = vld [vmem:[%s689 + $0xe1] sm:$0xff]
    %v4024 = vld [vmem:[%s689 + $0xf1] sm:$0xff]
    %v4025 = vld [vmem:[%s689 + $0xf9] sm:$0xff]
    %v4026 = vld [vmem:[%s689 + $0x109] sm:$0xff]
    %v4027 = vld [vmem:[%s689 + $0x111] sm:$0xff]
    %v4028 = vld [vmem:[%s689 + $0x121] sm:$0xff]
    %v4029 = vld [vmem:[%s689 + $0x129] sm:$0xff]
    %v4030 = vld [vmem:[%s689 + $0x139] sm:$0xff]
    %v4031 = vld [vmem:[%s689 + $0x141] sm:$0xff]
    %v4032 = vld [vmem:[%s689 + $0x151] sm:$0xff]
    %v4033 = vld [vmem:[%s689 + $0x159] sm:$0xff]
    %v4034 = vld [vmem:[%s689 + $0x169] sm:$0xff]
    %v4035 = vld [vmem:[%s689 + $0x171] sm:$0xff]
    %v4036 = vld [vmem:[%s689 + $0x1b1] sm:$0xff]
    %v4037 = vld [vmem:[%s689 + $0x1b9] sm:$0xff]
    %v4038 = vld [vmem:[%s689 + $0x1c9] sm:$0xff]
    %v4039 = vld [vmem:[%s689 + $0x1d1] sm:$0xff]
    %v4040 = vld [vmem:[%s689 + $0x1e1] sm:$0xff]
    %v4041 = vld [vmem:[%s689 + $0x1e9] sm:$0xff]
    %v4042 = vld [vmem:[%s689 + $0x1f9] sm:$0xff]
    %v4043 = vld [vmem:[%s689 + $0x201] sm:$0xff]
    %v4044 = vld [vmem:[%s689 + $0x211] sm:$0xff]
    %v4045 = vld [vmem:[%s689 + $0x219] sm:$0xff]
    %v4046 = vld [vmem:[%s689 + $0x229] sm:$0xff]
    %v4047 = vld [vmem:[%s689 + $0x231] sm:$0xff]
    %v4048 = vld [vmem:[%s689 + $0x241] sm:$0xff]
    %v4049 = vld [vmem:[%s689 + $0x249] sm:$0xff]
    %v4050 = vld [vmem:[%s689 + $0x259] sm:$0xff]
    %v4051 = vld [vmem:[%s689 + $0x261] sm:$0xff]
    %v4052 = vld [vmem:[%s689 + $0x271] sm:$0xff]
    %v4053 = vld [vmem:[%s689 + $0x279] sm:$0xff]
    %v4054 = vld [vmem:[%s689 + $0x289] sm:$0xff]
    %v4055 = vld [vmem:[%s689 + $0x291] sm:$0xff]
    %v4056 = vld [vmem:[%s689 + $0x2a1] sm:$0xff]
    %v4057 = vld [vmem:[%s689 + $0x2a9] sm:$0xff]
    %v4058 = vld [vmem:[%s689 + $0x2b9] sm:$0xff]
    %v4059 = vld [vmem:[%s689 + $0x2c1] sm:$0xff]
    %v4060 = vld [vmem:[%s689 + $0x2d1] sm:$0xff]
    %v4061 = vld [vmem:[%s689 + $0x2d9] sm:$0xff]
    %v4062 = vld [vmem:[%s689 + $0x2e9] sm:$0xff]
    %v4063 = vld [vmem:[%s689 + $0x2f1] sm:$0xff]
    %v4064 = vld [vmem:[%s689 + $0x301] sm:$0xff]
    %v4065 = vld [vmem:[%s689 + $0x309] sm:$0xff]
    %v4066 = vld [vmem:[%s689 + $0x319] sm:$0xff]
    %v4067 = vld [vmem:[%s689 + $0x321] sm:$0xff]
    %v4068 = vld [vmem:[%s689 + $0x2] sm:$0xff]
    %v4069 = vld [vmem:[%s689 + $0xa] sm:$0xff]
    %v4070 = vld [vmem:[%s689 + $0x1a] sm:$0xff]
    %v4071 = vld [vmem:[%s689 + $0x22] sm:$0xff]
    %v4072 = vld [vmem:[%s689 + $0x32] sm:$0xff]
    %v4073 = vld [vmem:[%s689 + $0x3a] sm:$0xff]
    %v4074 = vld [vmem:[%s689 + $0x4a] sm:$0xff]
    %v4075 = vld [vmem:[%s689 + $0x52] sm:$0xff]
    %v4076 = vld [vmem:[%s689 + $0x62] sm:$0xff]
    %v4077 = vld [vmem:[%s689 + $0x6a] sm:$0xff]
    %v4078 = vld [vmem:[%s689 + $0x7a] sm:$0xff]
    %v4079 = vld [vmem:[%s689 + $0x82] sm:$0xff]
    %v4080 = vld [vmem:[%s689 + $0x92] sm:$0xff]
    %v4081 = vld [vmem:[%s689 + $0x9a] sm:$0xff]
    %v4082 = vld [vmem:[%s689 + $0xaa] sm:$0xff]
    %v4083 = vld [vmem:[%s689 + $0xb2] sm:$0xff]
    %v4084 = vld [vmem:[%s689 + $0xc2] sm:$0xff]
    %v4085 = vld [vmem:[%s689 + $0xca] sm:$0xff]
    %v4086 = vld [vmem:[%s689 + $0xda] sm:$0xff]
    %v4087 = vld [vmem:[%s689 + $0xe2] sm:$0xff]
    %v4088 = vld [vmem:[%s689 + $0xf2] sm:$0xff]
    %v4089 = vld [vmem:[%s689 + $0xfa] sm:$0xff]
    %v4090 = vld [vmem:[%s689 + $0x10a] sm:$0xff]
    %v4091 = vld [vmem:[%s689 + $0x112] sm:$0xff]
    %v4092 = vld [vmem:[%s689 + $0x122] sm:$0xff]
    %v4093 = vld [vmem:[%s689 + $0x12a] sm:$0xff]
    %v4094 = vld [vmem:[%s689 + $0x13a] sm:$0xff]
    %v4095 = vld [vmem:[%s689 + $0x142] sm:$0xff]
    %v4096 = vld [vmem:[%s689 + $0x152] sm:$0xff]
    %v4097 = vld [vmem:[%s689 + $0x15a] sm:$0xff]
    %v4098 = vld [vmem:[%s689 + $0x16a] sm:$0xff]
    %v4099 = vld [vmem:[%s689 + $0x172] sm:$0xff]
    %v4100 = vld [vmem:[%s689 + $0x1b2] sm:$0xff]
    %v4101 = vld [vmem:[%s689 + $0x1ba] sm:$0xff]
    %v4102 = vld [vmem:[%s689 + $0x1ca] sm:$0xff]
    %v4103 = vld [vmem:[%s689 + $0x1d2] sm:$0xff]
    %v4104 = vld [vmem:[%s689 + $0x1e2] sm:$0xff]
    %v4105 = vld [vmem:[%s689 + $0x1ea] sm:$0xff]
    %v4106 = vld [vmem:[%s689 + $0x1fa] sm:$0xff]
    %v4107 = vld [vmem:[%s689 + $0x202] sm:$0xff]
    %v4108 = vld [vmem:[%s689 + $0x212] sm:$0xff]
    %v4109 = vld [vmem:[%s689 + $0x21a] sm:$0xff]
    %v4110 = vld [vmem:[%s689 + $0x22a] sm:$0xff]
    %v4111 = vld [vmem:[%s689 + $0x232] sm:$0xff]
    %v4112 = vld [vmem:[%s689 + $0x242] sm:$0xff]
    %v4113 = vld [vmem:[%s689 + $0x24a] sm:$0xff]
    %v4114 = vld [vmem:[%s689 + $0x25a] sm:$0xff]
    %v4115 = vld [vmem:[%s689 + $0x262] sm:$0xff]
    %v4116 = vld [vmem:[%s689 + $0x272] sm:$0xff]
    %v4117 = vld [vmem:[%s689 + $0x27a] sm:$0xff]
    %v4118 = vld [vmem:[%s689 + $0x28a] sm:$0xff]
    %v4119 = vld [vmem:[%s689 + $0x292] sm:$0xff]
    %v4120 = vld [vmem:[%s689 + $0x2a2] sm:$0xff]
    %v4121 = vld [vmem:[%s689 + $0x2aa] sm:$0xff]
    %v4122 = vld [vmem:[%s689 + $0x2ba] sm:$0xff]
    %v4123 = vld [vmem:[%s689 + $0x2c2] sm:$0xff]
    %v4124 = vld [vmem:[%s689 + $0x2d2] sm:$0xff]
    %v4125 = vld [vmem:[%s689 + $0x2da] sm:$0xff]
    %v4126 = vld [vmem:[%s689 + $0x2ea] sm:$0xff]
    %v4127 = vld [vmem:[%s689 + $0x2f2] sm:$0xff]
    %v4128 = vld [vmem:[%s689 + $0x302] sm:$0xff]
    %v4129 = vld [vmem:[%s689 + $0x30a] sm:$0xff]
    %v4130 = vld [vmem:[%s689 + $0x31a] sm:$0xff]
    %v4131 = vld [vmem:[%s689 + $0x322] sm:$0xff]
    %v4132 = vld [vmem:[#allocation8] sm:$0xff]
    %v4133 = vld [vmem:[#allocation8 + $0x8] sm:$0xff]
    %v4134 = vld [vmem:[#allocation8 + $0x10] sm:$0xff]
    %v4135 = vld [vmem:[#allocation8 + $0x18] sm:$0xff]
    %v4136 = vld [vmem:[#allocation8 + $0x20] sm:$0xff]
    %v4137 = vld [vmem:[#allocation8 + $0x28] sm:$0xff]
    %v4138 = vld [vmem:[#allocation8 + $0x30] sm:$0xff]
    %v4139 = vld [vmem:[#allocation8 + $0x38] sm:$0xff]
    %v4140 = vld [vmem:[#allocation8 + $0x40] sm:$0xff]
    %v4141 = vld [vmem:[#allocation8 + $0x48] sm:$0xff]
    %v4142 = vld [vmem:[#allocation8 + $0x50] sm:$0xff]
    %v4143 = vld [vmem:[#allocation8 + $0x58] sm:$0xff]
    %v4144 = vld [vmem:[#allocation8 + $0x60] sm:$0xff]
    %v4145 = vld [vmem:[#allocation8 + $0x68] sm:$0xff]
    %v4146 = vld [vmem:[#allocation8 + $0x70] sm:$0xff]
    %v4147 = vld [vmem:[#allocation8 + $0x78] sm:$0xff]
    %v4148 = vld [vmem:[#allocation8 + $0x80] sm:$0xff]
    %v4149 = vld [vmem:[#allocation8 + $0x88] sm:$0xff]
    %v4150 = vld [vmem:[#allocation8 + $0x90] sm:$0xff]
    %v4151 = vld [vmem:[#allocation8 + $0x98] sm:$0xff]
    %v4152 = vld [vmem:[#allocation8 + $0xa0] sm:$0xff]
    %v4153 = vld [vmem:[#allocation8 + $0xa8] sm:$0xff]
    %v4154 = vld [vmem:[#allocation8 + $0xb0] sm:$0xff]
    %v4155 = vld [vmem:[#allocation8 + $0xb8] sm:$0xff]
    %v4156 = vld [vmem:[#allocation8 + $0xc0] sm:$0xff]
    %v4157 = vld [vmem:[#allocation8 + $0xc8] sm:$0xff]
    %v4158 = vld [vmem:[#allocation8 + $0xd0] sm:$0xff]
    %v4159 = vld [vmem:[#allocation8 + $0xd8] sm:$0xff]
    %v4160 = vld [vmem:[#allocation8 + $0xe0] sm:$0xff]
    %v4161 = vld [vmem:[#allocation8 + $0xe8] sm:$0xff]
    %v4162 = vld [vmem:[#allocation8 + $0xf0] sm:$0xff]
    %v4163 = vld [vmem:[#allocation8 + $0xf8] sm:$0xff]
    %v4164 = vld [vmem:[#allocation8 + $0x100] sm:$0xff]
    %v4165 = vld [vmem:[#allocation8 + $0x108] sm:$0xff]
    %v4166 = vld [vmem:[#allocation8 + $0x110] sm:$0xff]
    %v4167 = vld [vmem:[#allocation8 + $0x118] sm:$0xff]
    %v4168 = vld [vmem:[#allocation8 + $0x120] sm:$0xff]
    %v4169 = vld [vmem:[#allocation8 + $0x128] sm:$0xff]
    %v4170 = vld [vmem:[#allocation8 + $0x130] sm:$0xff]
    %v4171 = vld [vmem:[#allocation8 + $0x138] sm:$0xff]
    %v4172 = vld [vmem:[#allocation8 + $0x140] sm:$0xff]
    %v4173 = vld [vmem:[#allocation8 + $0x148] sm:$0xff]
    %v4174 = vld [vmem:[#allocation8 + $0x150] sm:$0xff]
    %v4175 = vld [vmem:[#allocation8 + $0x158] sm:$0xff]
    %v4176 = vld [vmem:[#allocation8 + $0x160] sm:$0xff]
    %v4177 = vld [vmem:[#allocation8 + $0x168] sm:$0xff]
    %v4178 = vld [vmem:[#allocation8 + $0x170] sm:$0xff]
    %v4179 = vld [vmem:[#allocation8 + $0x178] sm:$0xff]
    %v4180 = vld [vmem:[#allocation8 + $0x180] sm:$0xff]
    %v4181 = vld [vmem:[#allocation8 + $0x188] sm:$0xff]
    %v4182 = vld [vmem:[#allocation8 + $0x190] sm:$0xff]
    %v4183 = vld [vmem:[#allocation8 + $0x198] sm:$0xff]
    %v4184 = vld [vmem:[#allocation8 + $0x1a0] sm:$0xff]
    %v4185 = vld [vmem:[#allocation8 + $0x1a8] sm:$0xff]
    %v4186 = vld [vmem:[#allocation8 + $0x1b0] sm:$0xff]
    %v4187 = vld [vmem:[#allocation8 + $0x1b8] sm:$0xff]
    %v4188 = vld [vmem:[#allocation8 + $0x1c0] sm:$0xff]
    %v4189 = vld [vmem:[#allocation8 + $0x1c8] sm:$0xff]
    %v4190 = vld [vmem:[#allocation8 + $0x1d0] sm:$0xff]
    %v4191 = vld [vmem:[#allocation8 + $0x1d8] sm:$0xff]
    %v4192 = vld [vmem:[#allocation8 + $0x1e0] sm:$0xff]
    %v4193 = vld [vmem:[#allocation8 + $0x1e8] sm:$0xff]
    %v4194 = vld [vmem:[#allocation8 + $0x1f0] sm:$0xff]
    %v4195 = vld [vmem:[#allocation8 + $0x1f8] sm:$0xff]
    %v4196 = vld [vmem:[#allocation8 + $0x200] sm:$0xff]
    %v4197 = vld [vmem:[#allocation8 + $0x208] sm:$0xff]
    %v4198 = vld [vmem:[#allocation8 + $0x210] sm:$0xff]
    %v4199 = vld [vmem:[#allocation8 + $0x218] sm:$0xff]
    %v4200 = vld [vmem:[#allocation8 + $0x220] sm:$0xff]
    %v4201 = vld [vmem:[#allocation8 + $0x228] sm:$0xff]
    %v4202 = vld [vmem:[#allocation8 + $0x230] sm:$0xff]
    %v4203 = vld [vmem:[#allocation8 + $0x238] sm:$0xff]
    %v4204 = vld [vmem:[#allocation8 + $0x240] sm:$0xff]
    %v4205 = vld [vmem:[#allocation8 + $0x248] sm:$0xff]
    %v4206 = vld [vmem:[#allocation8 + $0x250] sm:$0xff]
    %v4207 = vld [vmem:[#allocation8 + $0x258] sm:$0xff]
    %v4208 = vld [vmem:[#allocation8 + $0x260] sm:$0xff]
    %v4209 = vld [vmem:[#allocation8 + $0x268] sm:$0xff]
    %v4210 = vld [vmem:[#allocation8 + $0x270] sm:$0xff]
    %v4211 = vld [vmem:[#allocation8 + $0x278] sm:$0xff]
    %v4212 = vld [vmem:[#allocation8 + $0x280] sm:$0xff]
    %v4213 = vld [vmem:[#allocation8 + $0x288] sm:$0xff]
    %v4214 = vld [vmem:[#allocation8 + $0x290] sm:$0xff]
    %v4215 = vld [vmem:[#allocation8 + $0x298] sm:$0xff]
    %v4216 = vld [vmem:[#allocation8 + $0x2a0] sm:$0xff]
    %v4217 = vld [vmem:[#allocation8 + $0x2a8] sm:$0xff]
    %v4218 = vld [vmem:[#allocation8 + $0x2b0] sm:$0xff]
    %v4219 = vld [vmem:[#allocation8 + $0x2b8] sm:$0xff]
    %v4220 = vld [vmem:[#allocation8 + $0x2c0] sm:$0xff]
    %v4221 = vld [vmem:[#allocation8 + $0x2c8] sm:$0xff]
    %v4222 = vld [vmem:[#allocation8 + $0x2d0] sm:$0xff]
    %v4223 = vld [vmem:[#allocation8 + $0x2d8] sm:$0xff]
    %v4224 = vld [vmem:[#allocation8 + $0x2e0] sm:$0xff]
    %v4225 = vld [vmem:[#allocation8 + $0x2e8] sm:$0xff]
    %v4226 = vld [vmem:[#allocation8 + $0x2f0] sm:$0xff]
    %v4227 = vld [vmem:[#allocation8 + $0x2f8] sm:$0xff]
    %v4228 = vld [vmem:[#allocation8 + $0x300] sm:$0xff]
    %v4229 = vld [vmem:[#allocation8 + $0x308] sm:$0xff]
    %v4230 = vld [vmem:[#allocation8 + $0x310] sm:$0xff]
    %v4231 = vld [vmem:[#allocation8 + $0x318] sm:$0xff]
    %v4232 = vld [vmem:[#allocation8 + $0x320] sm:$0xff]
    %v4233 = vld [vmem:[#allocation8 + $0x328] sm:$0xff]
    %v4234 = vld [vmem:[#allocation8 + $0x330] sm:$0xff]
    %v4235 = vld [vmem:[#allocation8 + $0x338] sm:$0xff]
    %v4236 = vld [vmem:[#allocation8 + $0x340] sm:$0xff]
    %v4237 = vld [vmem:[#allocation8 + $0x348] sm:$0xff]
    %v4238 = vld [vmem:[#allocation8 + $0x350] sm:$0xff]
    %v4239 = vld [vmem:[#allocation8 + $0x358] sm:$0xff]
    %v4240 = vld [vmem:[#allocation8 + $0x360] sm:$0xff]
    %v4241 = vld [vmem:[#allocation8 + $0x368] sm:$0xff]
    %v4242 = vld [vmem:[#allocation8 + $0x370] sm:$0xff]
    %v4243 = vld [vmem:[#allocation8 + $0x378] sm:$0xff]
    %v4244 = vld [vmem:[#allocation8 + $0x380] sm:$0xff]
    %v4245 = vld [vmem:[#allocation8 + $0x388] sm:$0xff]
    %v4246 = vld [vmem:[#allocation8 + $0x390] sm:$0xff]
    %v4247 = vld [vmem:[#allocation8 + $0x398] sm:$0xff]
    %v4248 = vld [vmem:[#allocation8 + $0x3a0] sm:$0xff]
    %v4249 = vld [vmem:[#allocation8 + $0x3a8] sm:$0xff]
    %v4250 = vld [vmem:[#allocation8 + $0x3b0] sm:$0xff]
    %v4251 = vld [vmem:[#allocation8 + $0x3b8] sm:$0xff]
    %v4252 = vld [vmem:[#allocation8 + $0x3c0] sm:$0xff]
    %v4253 = vld [vmem:[#allocation8 + $0x3c8] sm:$0xff]
    %v4254 = vld [vmem:[#allocation8 + $0x3d0] sm:$0xff]
    %v4255 = vld [vmem:[#allocation8 + $0x3d8] sm:$0xff]
    %v4256 = vld [vmem:[#allocation8 + $0x3e0] sm:$0xff]
    %v4257 = vld [vmem:[#allocation8 + $0x3e8] sm:$0xff]
    %v4258 = vld [vmem:[#allocation8 + $0x3f0] sm:$0xff]
    %v4259 = vld [vmem:[#allocation8 + $0x3f8] sm:$0xff]
    %v4260 = vld [vmem:[#allocation8 + $0x400] sm:$0xff]
    %v4261 = vld [vmem:[#allocation8 + $0x408] sm:$0xff]
    %v4262 = vld [vmem:[#allocation8 + $0x410] sm:$0xff]
    %v4263 = vld [vmem:[#allocation8 + $0x418] sm:$0xff]
    %v4264 = vld [vmem:[#allocation8 + $0x420] sm:$0xff]
    %v4265 = vld [vmem:[#allocation8 + $0x428] sm:$0xff]
    %v4266 = vld [vmem:[#allocation8 + $0x430] sm:$0xff]
    %v4267 = vld [vmem:[#allocation8 + $0x438] sm:$0xff]
    %v4268 = vld [vmem:[#allocation8 + $0x440] sm:$0xff]
    %v4269 = vld [vmem:[#allocation8 + $0x448] sm:$0xff]
    %v4270 = vld [vmem:[#allocation8 + $0x450] sm:$0xff]
    %v4271 = vld [vmem:[#allocation8 + $0x458] sm:$0xff]
    %v4272 = vld [vmem:[#allocation8 + $0x460] sm:$0xff]
    %v4273 = vld [vmem:[#allocation8 + $0x468] sm:$0xff]
    %v4274 = vld [vmem:[#allocation8 + $0x470] sm:$0xff]
    %v4275 = vld [vmem:[#allocation8 + $0x478] sm:$0xff]
    %4276 = vmatprep.subr.mxu0 0.0
    %4277 = vmatpush1.msra.mxu0 %v4132
    %4278 = vmatprep.subr.mxu0 0.0
    %4279 = vmatpush1.msra.mxu0 %v4133
    %4280 = vmatprep.subr.mxu0 0.0
    %4281 = vmatpush1.msra.mxu0 %v4134
    %4282 = vmatprep.subr.mxu0 0.0
    %4283 = vmatpush1.msra.mxu0 %v4135
    %4284 = vmatprep.subr.mxu0 0.0
    %4285 = vmatpush1.msra.mxu0 %v4136
    %4286 = vmatprep.subr.mxu0 0.0
    %4287 = vmatpush1.msra.mxu0 %v4137
    %4288 = vmatprep.subr.mxu0 0.0
    %4289 = vmatpush1.msra.mxu0 %v4138
    %4290 = vmatprep.subr.mxu0 0.0
    %4291 = vmatpush1.msra.mxu0 %v4139
    %4292 = vmatprep.subr.mxu0 0.0
    %4293 = vmatpush1.msra.mxu0 %v4140
    %4294 = vmatprep.subr.mxu0 0.0
    %4295 = vmatpush1.msra.mxu0 %v4141
    %4296 = vmatprep.subr.mxu0 0.0
    %4297 = vmatpush1.msra.mxu0 %v4142
    %4298 = vmatprep.subr.mxu0 0.0
    %4299 = vmatpush1.msra.mxu0 %v4143
    %4300 = vmatprep.subr.mxu0 0.0
    %4301 = vmatpush1.msra.mxu0 %v4144
    %4302 = vmatprep.subr.mxu0 0.0
    %4303 = vmatpush1.msra.mxu0 %v4145
    %4304 = vmatprep.subr.mxu0 0.0
    %4305 = vmatpush1.msra.mxu0 %v4146
    %4306 = vmatprep.subr.mxu0 0.0
    %4307 = vmatpush1.msra.mxu0 %v4147
    %4308 = vmatprep.subr.mxu0 0.0
    %4309 = vmatpush1.msra.mxu0 %v4148
    %4310 = vmatprep.subr.mxu0 0.0
    %4311 = vmatpush1.msra.mxu0 %v4149
    %4312 = vmatprep.subr.mxu0 0.0
    %4313 = vmatpush1.msra.mxu0 %v4150
    %4314 = vmatprep.subr.mxu0 0.0
    %4315 = vmatpush1.msra.mxu0 %v4151
    %4316 = vmatprep.subr.mxu0 0.0
    %4317 = vmatpush1.msra.mxu0 %v4152
    %4318 = vmatprep.subr.mxu0 0.0
    %4319 = vmatpush1.msra.mxu0 %v4153
    %4320 = vmatprep.subr.mxu0 0.0
    %4321 = vmatpush1.msra.mxu0 %v4154
    %4322 = vmatprep.subr.mxu0 0.0
    %4323 = vmatpush1.msra.mxu0 %v4155
    %4324 = vmatprep.subr.mxu0 0.0
    %4325 = vmatpush1.msra.mxu0 %v4156
    %4326 = vmatprep.subr.mxu0 0.0
    %4327 = vmatpush1.msra.mxu0 %v4157
    %4328 = vmatprep.subr.mxu0 0.0
    %4329 = vmatpush1.msra.mxu0 %v4158
    %4330 = vmatprep.subr.mxu0 0.0
    %4331 = vmatpush1.msra.mxu0 %v4159
    %4332 = vmatprep.subr.mxu0 0.0
    %4333 = vmatpush1.msra.mxu0 %v4160
    %4334 = vmatprep.subr.mxu0 0.0
    %4335 = vmatpush1.msra.mxu0 %v4161
    %4336 = vmatprep.subr.mxu0 0.0
    %4337 = vmatpush1.msra.mxu0 %v4162
    %4338 = vmatprep.subr.mxu0 0.0
    %4339 = vmatpush1.msra.mxu0 %v4163
    %4340 = vmatprep.mubr.f32.mxu0 %v3620
    %4341 = vmatmul.mubr.f32.gmra.mrb[0].mxu0 %v3556
    %v4342 = vpop.f32.mrb[0].mxu0
    %v4343 = vadd.f32 0.0, %v4342
    %v4344 = vpop.f32.mrb[0].mxu0
    %4345 = vmatprep.mubr.f32.mxu0 %v3621
    %4346 = vmatmul.mubr.f32.gmra.mrb[0].mxu0 %v3557
    %v4347 = vpop.f32.mrb[0].mxu0
    %v4348 = vadd.f32 0.0, %v4347
    %v4349 = vpop.f32.mrb[0].mxu0
    %4350 = vmatprep.mubr.f32.mxu0 %v3622
    %4351 = vmatmul.mubr.f32.gmra.mrb[0].mxu0 %v3558
    %v4352 = vpop.f32.mrb[0].mxu0
    %v4353 = vadd.f32 0.0, %v4352
    %v4354 = vpop.f32.mrb[0].mxu0
    %4355 = vmatprep.mubr.f32.mxu0 %v3623
    %4356 = vmatmul.mubr.f32.gmra.mrb[0].mxu0 %v3559
    %v4357 = vpop.f32.mrb[0].mxu0
    %v4358 = vadd.f32 0.0, %v4357
    %v4359 = vpop.f32.mrb[0].mxu0
    %4360 = vmatprep.mubr.f32.mxu0 %v3624
    %4361 = vmatmul.mubr.f32.gmra.mrb[0].mxu0 %v3560
    %v4362 = vpop.f32.mrb[0].mxu0
    %v4363 = vadd.f32 0.0, %v4362
    %v4364 = vpop.f32.mrb[0].mxu0
    %4365 = vmatprep.mubr.f32.mxu0 %v3625
    %4366 = vmatmul.mubr.f32.gmra.mrb[0].mxu0 %v3561
    %v4367 = vpop.f32.mrb[0].mxu0
    %v4368 = vadd.f32 0.0, %v4367
    %v4369 = vpop.f32.mrb[0].mxu0
    %4370 = vmatprep.mubr.f32.mxu0 %v3626
    %4371 = vmatmul.mubr.f32.gmra.mrb[0].mxu0 %v3562
    %v4372 = vpop.f32.mrb[0].mxu0
    %v4373 = vadd.f32 0.0, %v4372
    %v4374 = vpop.f32.mrb[0].mxu0
    %4375 = vmatprep.mubr.f32.mxu0 %v3627
    %4376 = vmatmul.mubr.f32.gmra.mrb[0].mxu0 %v3563
    %v4377 = vpop.f32.mrb[0].mxu0
    %v4378 = vadd.f32 0.0, %v4377
    %v4379 = vpop.f32.mrb[0].mxu0
    %4380 = vmatprep.mubr.f32.mxu0 %v3628
    %4381 = vmatmul.mubr.f32.gmra.mrb[0].mxu0 %v3564
    %v4382 = vpop.f32.mrb[0].mxu0
    %v4383 = vadd.f32 0.0, %v4382
    %v4384 = vpop.f32.mrb[0].mxu0
    %4385 = vmatprep.mubr.f32.mxu0 %v3629
    %4386 = vmatmul.mubr.f32.gmra.mrb[0].mxu0 %v3565
    %v4387 = vpop.f32.mrb[0].mxu0
    %v4388 = vadd.f32 0.0, %v4387
    %v4389 = vpop.f32.mrb[0].mxu0
    %4390 = vmatprep.mubr.f32.mxu0 %v3630
    %4391 = vmatmul.mubr.f32.gmra.mrb[0].mxu0 %v3566
    %v4392 = vpop.f32.mrb[0].mxu0
    %v4393 = vadd.f32 0.0, %v4392
    %v4394 = vpop.f32.mrb[0].mxu0
    %4395 = vmatprep.mubr.f32.mxu0 %v3631
    %4396 = vmatmul.mubr.f32.gmra.mrb[0].mxu0 %v3567
    %v4397 = vpop.f32.mrb[0].mxu0
    %v4398 = vadd.f32 0.0, %v4397
    %v4399 = vpop.f32.mrb[0].mxu0
    %4400 = vmatprep.mubr.f32.mxu0 %v3632
    %4401 = vmatmul.mubr.f32.gmra.mrb[0].mxu0 %v3568
    %v4402 = vpop.f32.mrb[0].mxu0
    %v4403 = vadd.f32 0.0, %v4402
    %v4404 = vpop.f32.mrb[0].mxu0
    %4405 = vmatprep.mubr.f32.mxu0 %v3633
    %4406 = vmatmul.mubr.f32.gmra.mrb[0].mxu0 %v3569
    %v4407 = vpop.f32.mrb[0].mxu0
    %v4408 = vadd.f32 0.0, %v4407
    %v4409 = vpop.f32.mrb[0].mxu0
    %4410 = vmatprep.mubr.f32.mxu0 %v3634
    %4411 = vmatmul.mubr.f32.gmra.mrb[0].mxu0 %v3570
    %v4412 = vpop.f32.mrb[0].mxu0
    %v4413 = vadd.f32 0.0, %v4412
    %v4414 = vpop.f32.mrb[0].mxu0
    %4415 = vmatprep.mubr.f32.mxu0 %v3635
    %4416 = vmatmul.mubr.f32.gmra.mrb[0].mxu0 %v3571
    %v4417 = vpop.f32.mrb[0].mxu0
    %v4418 = vadd.f32 0.0, %v4417
    %v4419 = vpop.f32.mrb[0].mxu0
    %4420 = vmatprep.mubr.f32.mxu0 %v3636
    %4421 = vmatmul.mubr.f32.gmra.mrb[0].mxu0 %v3572
    %v4422 = vpop.f32.mrb[0].mxu0
    %v4423 = vadd.f32 0.0, %v4422
    %v4424 = vpop.f32.mrb[0].mxu0
    %4425 = vmatprep.mubr.f32.mxu0 %v3637
    %4426 = vmatmul.mubr.f32.gmra.mrb[0].mxu0 %v3573
    %v4427 = vpop.f32.mrb[0].mxu0
    %v4428 = vadd.f32 0.0, %v4427
    %v4429 = vpop.f32.mrb[0].mxu0
    %4430 = vmatprep.mubr.f32.mxu0 %v3638
    %4431 = vmatmul.mubr.f32.gmra.mrb[0].mxu0 %v3574
    %v4432 = vpop.f32.mrb[0].mxu0
    %v4433 = vadd.f32 0.0, %v4432
    %v4434 = vpop.f32.mrb[0].mxu0
    %4435 = vmatprep.mubr.f32.mxu0 %v3639
    %4436 = vmatmul.mubr.f32.gmra.mrb[0].mxu0 %v3575
    %v4437 = vpop.f32.mrb[0].mxu0
    %v4438 = vadd.f32 0.0, %v4437
    %v4439 = vpop.f32.mrb[0].mxu0
    %4440 = vmatprep.mubr.f32.mxu0 %v3640
    %4441 = vmatmul.mubr.f32.gmra.mrb[0].mxu0 %v3576
    %v4442 = vpop.f32.mrb[0].mxu0
    %v4443 = vadd.f32 0.0, %v4442
    %v4444 = vpop.f32.mrb[0].mxu0
    %4445 = vmatprep.mubr.f32.mxu0 %v3641
    %4446 = vmatmul.mubr.f32.gmra.mrb[0].mxu0 %v3577
    %v4447 = vpop.f32.mrb[0].mxu0
    %v4448 = vadd.f32 0.0, %v4447
    %v4449 = vpop.f32.mrb[0].mxu0
    %4450 = vmatprep.mubr.f32.mxu0 %v3642
    %4451 = vmatmul.mubr.f32.gmra.mrb[0].mxu0 %v3578
    %v4452 = vpop.f32.mrb[0].mxu0
    %v4453 = vadd.f32 0.0, %v4452
    %v4454 = vpop.f32.mrb[0].mxu0
    %4455 = vmatprep.mubr.f32.mxu0 %v3643
    %4456 = vmatmul.mubr.f32.gmra.mrb[0].mxu0 %v3579
    %v4457 = vpop.f32.mrb[0].mxu0
    %v4458 = vadd.f32 0.0, %v4457
    %v4459 = vpop.f32.mrb[0].mxu0
    %4460 = vmatprep.mubr.f32.mxu0 %v3644
    %4461 = vmatmul.mubr.f32.gmra.mrb[0].mxu0 %v3580
    %v4462 = vpop.f32.mrb[0].mxu0
    %v4463 = vadd.f32 0.0, %v4462
    %v4464 = vpop.f32.mrb[0].mxu0
    %4465 = vmatprep.mubr.f32.mxu0 %v3645
    %4466 = vmatmul.mubr.f32.gmra.mrb[0].mxu0 %v3581
    %v4467 = vpop.f32.mrb[0].mxu0
    %v4468 = vadd.f32 0.0, %v4467
    %v4469 = vpop.f32.mrb[0].mxu0
    %4470 = vmatprep.mubr.f32.mxu0 %v3646
    %4471 = vmatmul.mubr.f32.gmra.mrb[0].mxu0 %v3582
    %v4472 = vpop.f32.mrb[0].mxu0
    %v4473 = vadd.f32 0.0, %v4472
    %v4474 = vpop.f32.mrb[0].mxu0
    %4475 = vmatprep.mubr.f32.mxu0 %v3647
    %4476 = vmatmul.mubr.f32.gmra.mrb[0].mxu0 %v3583
    %v4477 = vpop.f32.mrb[0].mxu0
    %v4478 = vadd.f32 0.0, %v4477
    %v4479 = vpop.f32.mrb[0].mxu0
    %4480 = vmatprep.mubr.f32.mxu0 %v3648
    %4481 = vmatmul.mubr.f32.gmra.mrb[0].mxu0 %v3584
    %v4482 = vpop.f32.mrb[0].mxu0
    %v4483 = vadd.f32 0.0, %v4482
    %v4484 = vpop.f32.mrb[0].mxu0
    %4485 = vmatprep.mubr.f32.mxu0 %v3649
    %4486 = vmatmul.mubr.f32.gmra.mrb[0].mxu0 %v3585
    %v4487 = vpop.f32.mrb[0].mxu0
    %v4488 = vadd.f32 0.0, %v4487
    %v4489 = vpop.f32.mrb[0].mxu0
    %4490 = vmatprep.mubr.f32.mxu0 %v3650
    %4491 = vmatmul.mubr.f32.gmra.mrb[0].mxu0 %v3586
    %v4492 = vpop.f32.mrb[0].mxu0
    %v4493 = vadd.f32 0.0, %v4492
    %v4494 = vpop.f32.mrb[0].mxu0
    %4495 = vmatprep.mubr.f32.mxu0 %v3651
    %4496 = vmatmul.mubr.f32.gmra.mrb[0].mxu0 %v3587
    %v4497 = vpop.f32.mrb[0].mxu0
    %v4498 = vadd.f32 0.0, %v4497
    %v4499 = vpop.f32.mrb[0].mxu0
    %4500 = vmatprep.mubr.f32.mxu0 %v3652
    %4501 = vmatmul.mubr.f32.gmra.mrb[0].mxu0 %v3588
    %v4502 = vpop.f32.mrb[0].mxu0
    %v4503 = vadd.f32 0.0, %v4502
    %v4504 = vpop.f32.mrb[0].mxu0
    %4505 = vmatprep.mubr.f32.mxu0 %v3653
    %4506 = vmatmul.mubr.f32.gmra.mrb[0].mxu0 %v3589
    %v4507 = vpop.f32.mrb[0].mxu0
    %v4508 = vadd.f32 0.0, %v4507
    %v4509 = vpop.f32.mrb[0].mxu0
    %4510 = vmatprep.mubr.f32.mxu0 %v3654
    %4511 = vmatmul.mubr.f32.gmra.mrb[0].mxu0 %v3590
    %v4512 = vpop.f32.mrb[0].mxu0
    %v4513 = vadd.f32 0.0, %v4512
    %v4514 = vpop.f32.mrb[0].mxu0
    %4515 = vmatprep.mubr.f32.mxu0 %v3655
    %4516 = vmatmul.mubr.f32.gmra.mrb[0].mxu0 %v3591
    %v4517 = vpop.f32.mrb[0].mxu0
    %v4518 = vadd.f32 0.0, %v4517
    %v4519 = vpop.f32.mrb[0].mxu0
    %4520 = vmatprep.mubr.f32.mxu0 %v3656
    %4521 = vmatmul.mubr.f32.gmra.mrb[0].mxu0 %v3592
    %v4522 = vpop.f32.mrb[0].mxu0
    %v4523 = vadd.f32 0.0, %v4522
    %v4524 = vpop.f32.mrb[0].mxu0
    %4525 = vmatprep.mubr.f32.mxu0 %v3657
    %4526 = vmatmul.mubr.f32.gmra.mrb[0].mxu0 %v3593
    %v4527 = vpop.f32.mrb[0].mxu0
    %v4528 = vadd.f32 0.0, %v4527
    %v4529 = vpop.f32.mrb[0].mxu0
    %4530 = vmatprep.mubr.f32.mxu0 %v3658
    %4531 = vmatmul.mubr.f32.gmra.mrb[0].mxu0 %v3594
    %v4532 = vpop.f32.mrb[0].mxu0
    %v4533 = vadd.f32 0.0, %v4532
    %v4534 = vpop.f32.mrb[0].mxu0
    %4535 = vmatprep.mubr.f32.mxu0 %v3659
    %4536 = vmatmul.mubr.f32.gmra.mrb[0].mxu0 %v3595
    %v4537 = vpop.f32.mrb[0].mxu0
    %v4538 = vadd.f32 0.0, %v4537
    %v4539 = vpop.f32.mrb[0].mxu0
    %4540 = vmatprep.mubr.f32.mxu0 %v3660
    %4541 = vmatmul.mubr.f32.gmra.mrb[0].mxu0 %v3596
    %v4542 = vpop.f32.mrb[0].mxu0
    %v4543 = vadd.f32 0.0, %v4542
    %v4544 = vpop.f32.mrb[0].mxu0
    %4545 = vmatprep.mubr.f32.mxu0 %v3661
    %4546 = vmatmul.mubr.f32.gmra.mrb[0].mxu0 %v3597
    %v4547 = vpop.f32.mrb[0].mxu0
    %v4548 = vadd.f32 0.0, %v4547
    %v4549 = vpop.f32.mrb[0].mxu0
    %4550 = vmatprep.mubr.f32.mxu0 %v3662
    %4551 = vmatmul.mubr.f32.gmra.mrb[0].mxu0 %v3598
    %v4552 = vpop.f32.mrb[0].mxu0
    %v4553 = vadd.f32 0.0, %v4552
    %v4554 = vpop.f32.mrb[0].mxu0
    %4555 = vmatprep.mubr.f32.mxu0 %v3663
    %4556 = vmatmul.mubr.f32.gmra.mrb[0].mxu0 %v3599
    %v4557 = vpop.f32.mrb[0].mxu0
    %v4558 = vadd.f32 0.0, %v4557
    %v4559 = vpop.f32.mrb[0].mxu0
    %4560 = vmatprep.mubr.f32.mxu0 %v3664
    %4561 = vmatmul.mubr.f32.gmra.mrb[0].mxu0 %v3600
    %v4562 = vpop.f32.mrb[0].mxu0
    %v4563 = vadd.f32 0.0, %v4562
    %v4564 = vpop.f32.mrb[0].mxu0
    %4565 = vmatprep.mubr.f32.mxu0 %v3665
    %4566 = vmatmul.mubr.f32.gmra.mrb[0].mxu0 %v3601
    %v4567 = vpop.f32.mrb[0].mxu0
    %v4568 = vadd.f32 0.0, %v4567
    %v4569 = vpop.f32.mrb[0].mxu0
    %4570 = vmatprep.mubr.f32.mxu0 %v3666
    %4571 = vmatmul.mubr.f32.gmra.mrb[0].mxu0 %v3602
    %v4572 = vpop.f32.mrb[0].mxu0
    %v4573 = vadd.f32 0.0, %v4572
    %v4574 = vpop.f32.mrb[0].mxu0
    %4575 = vmatprep.mubr.f32.mxu0 %v3667
    %4576 = vmatmul.mubr.f32.gmra.mrb[0].mxu0 %v3603
    %v4577 = vpop.f32.mrb[0].mxu0
    %v4578 = vadd.f32 0.0, %v4577
    %v4579 = vpop.f32.mrb[0].mxu0
    %4580 = vmatprep.mubr.f32.mxu0 %v3668
    %4581 = vmatmul.mubr.f32.gmra.mrb[0].mxu0 %v3604
    %v4582 = vpop.f32.mrb[0].mxu0
    %v4583 = vadd.f32 0.0, %v4582
    %v4584 = vpop.f32.mrb[0].mxu0
    %4585 = vmatprep.mubr.f32.mxu0 %v3669
    %4586 = vmatmul.mubr.f32.gmra.mrb[0].mxu0 %v3605
    %v4587 = vpop.f32.mrb[0].mxu0
    %v4588 = vadd.f32 0.0, %v4587
    %v4589 = vpop.f32.mrb[0].mxu0
    %4590 = vmatprep.mubr.f32.mxu0 %v3670
    %4591 = vmatmul.mubr.f32.gmra.mrb[0].mxu0 %v3606
    %v4592 = vpop.f32.mrb[0].mxu0
    %v4593 = vadd.f32 0.0, %v4592
    %v4594 = vpop.f32.mrb[0].mxu0
    %4595 = vmatprep.mubr.f32.mxu0 %v3671
    %4596 = vmatmul.mubr.f32.gmra.mrb[0].mxu0 %v3607
    %v4597 = vpop.f32.mrb[0].mxu0
    %v4598 = vadd.f32 0.0, %v4597
    %v4599 = vpop.f32.mrb[0].mxu0
    %4600 = vmatprep.mubr.f32.mxu0 %v3672
    %4601 = vmatmul.mubr.f32.gmra.mrb[0].mxu0 %v3608
    %v4602 = vpop.f32.mrb[0].mxu0
    %v4603 = vadd.f32 0.0, %v4602
    %v4604 = vpop.f32.mrb[0].mxu0
    %4605 = vmatprep.mubr.f32.mxu0 %v3673
    %4606 = vmatmul.mubr.f32.gmra.mrb[0].mxu0 %v3609
    %v4607 = vpop.f32.mrb[0].mxu0
    %v4608 = vadd.f32 0.0, %v4607
    %v4609 = vpop.f32.mrb[0].mxu0
    %4610 = vmatprep.mubr.f32.mxu0 %v3674
    %4611 = vmatmul.mubr.f32.gmra.mrb[0].mxu0 %v3610
    %v4612 = vpop.f32.mrb[0].mxu0
    %v4613 = vadd.f32 0.0, %v4612
    %v4614 = vpop.f32.mrb[0].mxu0
    %4615 = vmatprep.mubr.f32.mxu0 %v3675
    %4616 = vmatmul.mubr.f32.gmra.mrb[0].mxu0 %v3611
    %v4617 = vpop.f32.mrb[0].mxu0
    %v4618 = vadd.f32 0.0, %v4617
    %v4619 = vpop.f32.mrb[0].mxu0
    %4620 = vmatprep.mubr.f32.mxu0 %v3676
    %4621 = vmatmul.mubr.f32.gmra.mrb[0].mxu0 %v3612
    %v4622 = vpop.f32.mrb[0].mxu0
    %v4623 = vadd.f32 0.0, %v4622
    %v4624 = vpop.f32.mrb[0].mxu0
    %4625 = vmatprep.mubr.f32.mxu0 %v3677
    %4626 = vmatmul.mubr.f32.gmra.mrb[0].mxu0 %v3613
    %v4627 = vpop.f32.mrb[0].mxu0
    %v4628 = vadd.f32 0.0, %v4627
    %v4629 = vpop.f32.mrb[0].mxu0
    %4630 = vmatprep.mubr.f32.mxu0 %v3678
    %4631 = vmatmul.mubr.f32.gmra.mrb[0].mxu0 %v3614
    %v4632 = vpop.f32.mrb[0].mxu0
    %v4633 = vadd.f32 0.0, %v4632
    %v4634 = vpop.f32.mrb[0].mxu0
    %4635 = vmatprep.mubr.f32.mxu0 %v3679
    %4636 = vmatmul.mubr.f32.gmra.mrb[0].mxu0 %v3615
    %v4637 = vpop.f32.mrb[0].mxu0
    %v4638 = vadd.f32 0.0, %v4637
    %v4639 = vpop.f32.mrb[0].mxu0
    %4640 = vmatprep.mubr.f32.mxu0 %v3680
    %4641 = vmatmul.mubr.f32.gmra.mrb[0].mxu0 %v3616
    %v4642 = vpop.f32.mrb[0].mxu0
    %v4643 = vadd.f32 0.0, %v4642
    %v4644 = vpop.f32.mrb[0].mxu0
    %4645 = vmatprep.mubr.f32.mxu0 %v3681
    %4646 = vmatmul.mubr.f32.gmra.mrb[0].mxu0 %v3617
    %v4647 = vpop.f32.mrb[0].mxu0
    %v4648 = vadd.f32 0.0, %v4647
    %v4649 = vpop.f32.mrb[0].mxu0
    %4650 = vmatprep.mubr.f32.mxu0 %v3682
    %4651 = vmatmul.mubr.f32.gmra.mrb[0].mxu0 %v3618
    %v4652 = vpop.f32.mrb[0].mxu0
    %v4653 = vadd.f32 0.0, %v4652
    %v4654 = vpop.f32.mrb[0].mxu0
    %4655 = vmatprep.mubr.f32.mxu0 %v3683
    %4656 = vmatmul.mubr.f32.gmra.mrb[0].mxu0 %v3619
    %v4657 = vpop.f32.mrb[0].mxu0
    %v4658 = vadd.f32 0.0, %v4657
    %v4659 = vpop.f32.mrb[0].mxu0
    %4660 = vdwg.mxu0
    %4661 = vmatprep.subr.mxu0 0.0
    %4662 = vmatpush1.msra.mxu0 %v4164
    %4663 = vmatprep.subr.mxu0 0.0
    %4664 = vmatpush1.msra.mxu0 %v4165
    %4665 = vmatprep.subr.mxu0 0.0
    %4666 = vmatpush1.msra.mxu0 %v4166
    %4667 = vmatprep.subr.mxu0 0.0
    %4668 = vmatpush1.msra.mxu0 %v4167
    %4669 = vmatprep.subr.mxu0 0.0
    %4670 = vmatpush1.msra.mxu0 %v4168
    %4671 = vmatprep.subr.mxu0 0.0
    %4672 = vmatpush1.msra.mxu0 %v4169
    %4673 = vmatprep.subr.mxu0 0.0
    %4674 = vmatpush1.msra.mxu0 %v4170
    %4675 = vmatprep.subr.mxu0 0.0
    %4676 = vmatpush1.msra.mxu0 %v4171
    %4677 = vmatprep.subr.mxu0 0.0
    %4678 = vmatpush1.msra.mxu0 %v4172
    %4679 = vmatprep.subr.mxu0 0.0
    %4680 = vmatpush1.msra.mxu0 %v4173
    %4681 = vmatprep.subr.mxu0 0.0
    %4682 = vmatpush1.msra.mxu0 %v4174
    %4683 = vmatprep.subr.mxu0 0.0
    %4684 = vmatpush1.msra.mxu0 %v4175
    %4685 = vmatprep.subr.mxu0 0.0
    %4686 = vmatpush1.msra.mxu0 %v4176
    %4687 = vmatprep.subr.mxu0 0.0
    %4688 = vmatpush1.msra.mxu0 %v4177
    %4689 = vmatprep.subr.mxu0 0.0
    %4690 = vmatpush1.msra.mxu0 %v4178
    %4691 = vmatprep.subr.mxu0 0.0
    %4692 = vmatpush1.msra.mxu0 %v4179
    %4693 = vmatprep.subr.mxu0 0.0
    %4694 = vmatpush1.msra.mxu0 %v4180
    %4695 = vmatprep.subr.mxu0 0.0
    %4696 = vmatpush1.msra.mxu0 %v4181
    %4697 = vmatprep.subr.mxu0 0.0
    %4698 = vmatpush1.msra.mxu0 %v4182
    %4699 = vmatprep.subr.mxu0 0.0
    %4700 = vmatpush1.msra.mxu0 %v4183
    %4701 = vmatprep.subr.mxu0 0.0
    %4702 = vmatpush1.msra.mxu0 %v4184
    %4703 = vmatprep.subr.mxu0 0.0
    %4704 = vmatpush1.msra.mxu0 %v4185
    %4705 = vmatprep.subr.mxu0 0.0
    %4706 = vmatpush1.msra.mxu0 %v4186
    %4707 = vmatprep.subr.mxu0 0.0
    %4708 = vmatpush1.msra.mxu0 %v4187
    %4709 = vmatprep.subr.mxu0 0.0
    %4710 = vmatpush1.msra.mxu0 %v4188
    %4711 = vmatprep.subr.mxu0 0.0
    %4712 = vmatpush1.msra.mxu0 %v4189
    %4713 = vmatprep.subr.mxu0 0.0
    %4714 = vmatpush1.msra.mxu0 %v4190
    %4715 = vmatprep.subr.mxu0 0.0
    %4716 = vmatpush1.msra.mxu0 %v4191
    %4717 = vmatprep.subr.mxu0 0.0
    %4718 = vmatpush1.msra.mxu0 %v4192
    %4719 = vmatprep.subr.mxu0 0.0
    %4720 = vmatpush1.msra.mxu0 %v4193
    %4721 = vmatprep.subr.mxu0 0.0
    %4722 = vmatpush1.msra.mxu0 %v4194
    %4723 = vmatprep.subr.mxu0 0.0
    %4724 = vmatpush1.msra.mxu0 %v4195
    %4725 = vmatprep.mubr.f32.mxu0 %v3748
    %4726 = vmatmul.mubr.f32.gmra.mrb[0].mxu0 %v3684
    %v4727 = vpop.f32.mrb[0].mxu0
    %v4728 = vadd.f32 %v4343, %v4727
    %v4729 = vpop.f32.mrb[0].mxu0
    %4730 = vmatprep.mubr.f32.mxu0 %v3749
    %4731 = vmatmul.mubr.f32.gmra.mrb[0].mxu0 %v3685
    %v4732 = vpop.f32.mrb[0].mxu0
    %v4733 = vadd.f32 %v4348, %v4732
    %v4734 = vpop.f32.mrb[0].mxu0
    %4735 = vmatprep.mubr.f32.mxu0 %v3750
    %4736 = vmatmul.mubr.f32.gmra.mrb[0].mxu0 %v3686
    %v4737 = vpop.f32.mrb[0].mxu0
    %v4738 = vadd.f32 %v4353, %v4737
    %v4739 = vpop.f32.mrb[0].mxu0
    %4740 = vmatprep.mubr.f32.mxu0 %v3751
    %4741 = vmatmul.mubr.f32.gmra.mrb[0].mxu0 %v3687
    %v4742 = vpop.f32.mrb[0].mxu0
    %v4743 = vadd.f32 %v4358, %v4742
    %v4744 = vpop.f32.mrb[0].mxu0
    %4745 = vmatprep.mubr.f32.mxu0 %v3752
    %4746 = vmatmul.mubr.f32.gmra.mrb[0].mxu0 %v3688
    %v4747 = vpop.f32.mrb[0].mxu0
    %v4748 = vadd.f32 %v4363, %v4747
    %v4749 = vpop.f32.mrb[0].mxu0
    %4750 = vmatprep.mubr.f32.mxu0 %v3753
    %4751 = vmatmul.mubr.f32.gmra.mrb[0].mxu0 %v3689
    %v4752 = vpop.f32.mrb[0].mxu0
    %v4753 = vadd.f32 %v4368, %v4752
    %v4754 = vpop.f32.mrb[0].mxu0
    %4755 = vmatprep.mubr.f32.mxu0 %v3754
    %4756 = vmatmul.mubr.f32.gmra.mrb[0].mxu0 %v3690
    %v4757 = vpop.f32.mrb[0].mxu0
    %v4758 = vadd.f32 %v4373, %v4757
    %v4759 = vpop.f32.mrb[0].mxu0
    %4760 = vmatprep.mubr.f32.mxu0 %v3755
    %4761 = vmatmul.mubr.f32.gmra.mrb[0].mxu0 %v3691
    %v4762 = vpop.f32.mrb[0].mxu0
    %v4763 = vadd.f32 %v4378, %v4762
    %v4764 = vpop.f32.mrb[0].mxu0
    %4765 = vmatprep.mubr.f32.mxu0 %v3756
    %4766 = vmatmul.mubr.f32.gmra.mrb[0].mxu0 %v3692
    %v4767 = vpop.f32.mrb[0].mxu0
    %v4768 = vadd.f32 %v4383, %v4767
    %v4769 = vpop.f32.mrb[0].mxu0
    %4770 = vmatprep.mubr.f32.mxu0 %v3757
    %4771 = vmatmul.mubr.f32.gmra.mrb[0].mxu0 %v3693
    %v4772 = vpop.f32.mrb[0].mxu0
    %v4773 = vadd.f32 %v4388, %v4772
    %v4774 = vpop.f32.mrb[0].mxu0
    %4775 = vmatprep.mubr.f32.mxu0 %v3758
    %4776 = vmatmul.mubr.f32.gmra.mrb[0].mxu0 %v3694
    %v4777 = vpop.f32.mrb[0].mxu0
    %v4778 = vadd.f32 %v4393, %v4777
    %v4779 = vpop.f32.mrb[0].mxu0
    %4780 = vmatprep.mubr.f32.mxu0 %v3759
    %4781 = vmatmul.mubr.f32.gmra.mrb[0].mxu0 %v3695
    %v4782 = vpop.f32.mrb[0].mxu0
    %v4783 = vadd.f32 %v4398, %v4782
    %v4784 = vpop.f32.mrb[0].mxu0
    %4785 = vmatprep.mubr.f32.mxu0 %v3760
    %4786 = vmatmul.mubr.f32.gmra.mrb[0].mxu0 %v3696
    %v4787 = vpop.f32.mrb[0].mxu0
    %v4788 = vadd.f32 %v4403, %v4787
    %v4789 = vpop.f32.mrb[0].mxu0
    %4790 = vmatprep.mubr.f32.mxu0 %v3761
    %4791 = vmatmul.mubr.f32.gmra.mrb[0].mxu0 %v3697
    %v4792 = vpop.f32.mrb[0].mxu0
    %v4793 = vadd.f32 %v4408, %v4792
    %v4794 = vpop.f32.mrb[0].mxu0
    %4795 = vmatprep.mubr.f32.mxu0 %v3762
    %4796 = vmatmul.mubr.f32.gmra.mrb[0].mxu0 %v3698
    %v4797 = vpop.f32.mrb[0].mxu0
    %v4798 = vadd.f32 %v4413, %v4797
    %v4799 = vpop.f32.mrb[0].mxu0
    %4800 = vmatprep.mubr.f32.mxu0 %v3763
    %4801 = vmatmul.mubr.f32.gmra.mrb[0].mxu0 %v3699
    %v4802 = vpop.f32.mrb[0].mxu0
    %v4803 = vadd.f32 %v4418, %v4802
    %v4804 = vpop.f32.mrb[0].mxu0
    %4805 = vmatprep.mubr.f32.mxu0 %v3764
    %4806 = vmatmul.mubr.f32.gmra.mrb[0].mxu0 %v3700
    %v4807 = vpop.f32.mrb[0].mxu0
    %v4808 = vadd.f32 %v4423, %v4807
    %v4809 = vpop.f32.mrb[0].mxu0
    %4810 = vmatprep.mubr.f32.mxu0 %v3765
    %4811 = vmatmul.mubr.f32.gmra.mrb[0].mxu0 %v3701
    %v4812 = vpop.f32.mrb[0].mxu0
    %v4813 = vadd.f32 %v4428, %v4812
    %v4814 = vpop.f32.mrb[0].mxu0
    %4815 = vmatprep.mubr.f32.mxu0 %v3766
    %4816 = vmatmul.mubr.f32.gmra.mrb[0].mxu0 %v3702
    %v4817 = vpop.f32.mrb[0].mxu0
    %v4818 = vadd.f32 %v4433, %v4817
    %v4819 = vpop.f32.mrb[0].mxu0
    %4820 = vmatprep.mubr.f32.mxu0 %v3767
    %4821 = vmatmul.mubr.f32.gmra.mrb[0].mxu0 %v3703
    %v4822 = vpop.f32.mrb[0].mxu0
    %v4823 = vadd.f32 %v4438, %v4822
    %v4824 = vpop.f32.mrb[0].mxu0
    %4825 = vmatprep.mubr.f32.mxu0 %v3768
    %4826 = vmatmul.mubr.f32.gmra.mrb[0].mxu0 %v3704
    %v4827 = vpop.f32.mrb[0].mxu0
    %v4828 = vadd.f32 %v4443, %v4827
    %v4829 = vpop.f32.mrb[0].mxu0
    %4830 = vmatprep.mubr.f32.mxu0 %v3769
    %4831 = vmatmul.mubr.f32.gmra.mrb[0].mxu0 %v3705
    %v4832 = vpop.f32.mrb[0].mxu0
    %v4833 = vadd.f32 %v4448, %v4832
    %v4834 = vpop.f32.mrb[0].mxu0
    %4835 = vmatprep.mubr.f32.mxu0 %v3770
    %4836 = vmatmul.mubr.f32.gmra.mrb[0].mxu0 %v3706
    %v4837 = vpop.f32.mrb[0].mxu0
    %v4838 = vadd.f32 %v4453, %v4837
    %v4839 = vpop.f32.mrb[0].mxu0
    %4840 = vmatprep.mubr.f32.mxu0 %v3771
    %4841 = vmatmul.mubr.f32.gmra.mrb[0].mxu0 %v3707
    %v4842 = vpop.f32.mrb[0].mxu0
    %v4843 = vadd.f32 %v4458, %v4842
    %v4844 = vpop.f32.mrb[0].mxu0
    %4845 = vmatprep.mubr.f32.mxu0 %v3772
    %4846 = vmatmul.mubr.f32.gmra.mrb[0].mxu0 %v3708
    %v4847 = vpop.f32.mrb[0].mxu0
    %v4848 = vadd.f32 %v4463, %v4847
    %v4849 = vpop.f32.mrb[0].mxu0
    %4850 = vmatprep.mubr.f32.mxu0 %v3773
    %4851 = vmatmul.mubr.f32.gmra.mrb[0].mxu0 %v3709
    %v4852 = vpop.f32.mrb[0].mxu0
    %v4853 = vadd.f32 %v4468, %v4852
    %v4854 = vpop.f32.mrb[0].mxu0
    %4855 = vmatprep.mubr.f32.mxu0 %v3774
    %4856 = vmatmul.mubr.f32.gmra.mrb[0].mxu0 %v3710
    %v4857 = vpop.f32.mrb[0].mxu0
    %v4858 = vadd.f32 %v4473, %v4857
    %v4859 = vpop.f32.mrb[0].mxu0
    %4860 = vmatprep.mubr.f32.mxu0 %v3775
    %4861 = vmatmul.mubr.f32.gmra.mrb[0].mxu0 %v3711
    %v4862 = vpop.f32.mrb[0].mxu0
    %v4863 = vadd.f32 %v4478, %v4862
    %v4864 = vpop.f32.mrb[0].mxu0
    %4865 = vmatprep.mubr.f32.mxu0 %v3776
    %4866 = vmatmul.mubr.f32.gmra.mrb[0].mxu0 %v3712
    %v4867 = vpop.f32.mrb[0].mxu0
    %v4868 = vadd.f32 %v4483, %v4867
    %v4869 = vpop.f32.mrb[0].mxu0
    %4870 = vmatprep.mubr.f32.mxu0 %v3777
    %4871 = vmatmul.mubr.f32.gmra.mrb[0].mxu0 %v3713
    %v4872 = vpop.f32.mrb[0].mxu0
    %v4873 = vadd.f32 %v4488, %v4872
    %v4874 = vpop.f32.mrb[0].mxu0
    %4875 = vmatprep.mubr.f32.mxu0 %v3778
    %4876 = vmatmul.mubr.f32.gmra.mrb[0].mxu0 %v3714
    %v4877 = vpop.f32.mrb[0].mxu0
    %v4878 = vadd.f32 %v4493, %v4877
    %v4879 = vpop.f32.mrb[0].mxu0
    %4880 = vmatprep.mubr.f32.mxu0 %v3779
    %4881 = vmatmul.mubr.f32.gmra.mrb[0].mxu0 %v3715
    %v4882 = vpop.f32.mrb[0].mxu0
    %v4883 = vadd.f32 %v4498, %v4882
    %v4884 = vpop.f32.mrb[0].mxu0
    %4885 = vmatprep.mubr.f32.mxu0 %v3780
    %4886 = vmatmul.mubr.f32.gmra.mrb[0].mxu0 %v3716
    %v4887 = vpop.f32.mrb[0].mxu0
    %v4888 = vadd.f32 %v4503, %v4887
    %v4889 = vpop.f32.mrb[0].mxu0
    %4890 = vmatprep.mubr.f32.mxu0 %v3781
    %4891 = vmatmul.mubr.f32.gmra.mrb[0].mxu0 %v3717
    %v4892 = vpop.f32.mrb[0].mxu0
    %v4893 = vadd.f32 %v4508, %v4892
    %v4894 = vpop.f32.mrb[0].mxu0
    %4895 = vmatprep.mubr.f32.mxu0 %v3782
    %4896 = vmatmul.mubr.f32.gmra.mrb[0].mxu0 %v3718
    %v4897 = vpop.f32.mrb[0].mxu0
    %v4898 = vadd.f32 %v4513, %v4897
    %v4899 = vpop.f32.mrb[0].mxu0
    %4900 = vmatprep.mubr.f32.mxu0 %v3783
    %4901 = vmatmul.mubr.f32.gmra.mrb[0].mxu0 %v3719
    %v4902 = vpop.f32.mrb[0].mxu0
    %v4903 = vadd.f32 %v4518, %v4902
    %v4904 = vpop.f32.mrb[0].mxu0
    %4905 = vmatprep.mubr.f32.mxu0 %v3784
    %4906 = vmatmul.mubr.f32.gmra.mrb[0].mxu0 %v3720
    %v4907 = vpop.f32.mrb[0].mxu0
    %v4908 = vadd.f32 %v4523, %v4907
    %v4909 = vpop.f32.mrb[0].mxu0
    %4910 = vmatprep.mubr.f32.mxu0 %v3785
    %4911 = vmatmul.mubr.f32.gmra.mrb[0].mxu0 %v3721
    %v4912 = vpop.f32.mrb[0].mxu0
    %v4913 = vadd.f32 %v4528, %v4912
    %v4914 = vpop.f32.mrb[0].mxu0
    %4915 = vmatprep.mubr.f32.mxu0 %v3786
    %4916 = vmatmul.mubr.f32.gmra.mrb[0].mxu0 %v3722
    %v4917 = vpop.f32.mrb[0].mxu0
    %v4918 = vadd.f32 %v4533, %v4917
    %v4919 = vpop.f32.mrb[0].mxu0
    %4920 = vmatprep.mubr.f32.mxu0 %v3787
    %4921 = vmatmul.mubr.f32.gmra.mrb[0].mxu0 %v3723
    %v4922 = vpop.f32.mrb[0].mxu0
    %v4923 = vadd.f32 %v4538, %v4922
    %v4924 = vpop.f32.mrb[0].mxu0
    %4925 = vmatprep.mubr.f32.mxu0 %v3788
    %4926 = vmatmul.mubr.f32.gmra.mrb[0].mxu0 %v3724
    %v4927 = vpop.f32.mrb[0].mxu0
    %v4928 = vadd.f32 %v4543, %v4927
    %v4929 = vpop.f32.mrb[0].mxu0
    %4930 = vmatprep.mubr.f32.mxu0 %v3789
    %4931 = vmatmul.mubr.f32.gmra.mrb[0].mxu0 %v3725
    %v4932 = vpop.f32.mrb[0].mxu0
    %v4933 = vadd.f32 %v4548, %v4932
    %v4934 = vpop.f32.mrb[0].mxu0
    %4935 = vmatprep.mubr.f32.mxu0 %v3790
    %4936 = vmatmul.mubr.f32.gmra.mrb[0].mxu0 %v3726
    %v4937 = vpop.f32.mrb[0].mxu0
    %v4938 = vadd.f32 %v4553, %v4937
    %v4939 = vpop.f32.mrb[0].mxu0
    %4940 = vmatprep.mubr.f32.mxu0 %v3791
    %4941 = vmatmul.mubr.f32.gmra.mrb[0].mxu0 %v3727
    %v4942 = vpop.f32.mrb[0].mxu0
    %v4943 = vadd.f32 %v4558, %v4942
    %v4944 = vpop.f32.mrb[0].mxu0
    %4945 = vmatprep.mubr.f32.mxu0 %v3792
    %4946 = vmatmul.mubr.f32.gmra.mrb[0].mxu0 %v3728
    %v4947 = vpop.f32.mrb[0].mxu0
    %v4948 = vadd.f32 %v4563, %v4947
    %v4949 = vpop.f32.mrb[0].mxu0
    %4950 = vmatprep.mubr.f32.mxu0 %v3793
    %4951 = vmatmul.mubr.f32.gmra.mrb[0].mxu0 %v3729
    %v4952 = vpop.f32.mrb[0].mxu0
    %v4953 = vadd.f32 %v4568, %v4952
    %v4954 = vpop.f32.mrb[0].mxu0
    %4955 = vmatprep.mubr.f32.mxu0 %v3794
    %4956 = vmatmul.mubr.f32.gmra.mrb[0].mxu0 %v3730
    %v4957 = vpop.f32.mrb[0].mxu0
    %v4958 = vadd.f32 %v4573, %v4957
    %v4959 = vpop.f32.mrb[0].mxu0
    %4960 = vmatprep.mubr.f32.mxu0 %v3795
    %4961 = vmatmul.mubr.f32.gmra.mrb[0].mxu0 %v3731
    %v4962 = vpop.f32.mrb[0].mxu0
    %v4963 = vadd.f32 %v4578, %v4962
    %v4964 = vpop.f32.mrb[0].mxu0
    %4965 = vmatprep.mubr.f32.mxu0 %v3796
    %4966 = vmatmul.mubr.f32.gmra.mrb[0].mxu0 %v3732
    %v4967 = vpop.f32.mrb[0].mxu0
    %v4968 = vadd.f32 %v4583, %v4967
    %v4969 = vpop.f32.mrb[0].mxu0
    %4970 = vmatprep.mubr.f32.mxu0 %v3797
    %4971 = vmatmul.mubr.f32.gmra.mrb[0].mxu0 %v3733
    %v4972 = vpop.f32.mrb[0].mxu0
    %v4973 = vadd.f32 %v4588, %v4972
    %v4974 = vpop.f32.mrb[0].mxu0
    %4975 = vmatprep.mubr.f32.mxu0 %v3798
    %4976 = vmatmul.mubr.f32.gmra.mrb[0].mxu0 %v3734
    %v4977 = vpop.f32.mrb[0].mxu0
    %v4978 = vadd.f32 %v4593, %v4977
    %v4979 = vpop.f32.mrb[0].mxu0
    %4980 = vmatprep.mubr.f32.mxu0 %v3799
    %4981 = vmatmul.mubr.f32.gmra.mrb[0].mxu0 %v3735
    %v4982 = vpop.f32.mrb[0].mxu0
    %v4983 = vadd.f32 %v4598, %v4982
    %v4984 = vpop.f32.mrb[0].mxu0
    %4985 = vmatprep.mubr.f32.mxu0 %v3800
    %4986 = vmatmul.mubr.f32.gmra.mrb[0].mxu0 %v3736
    %v4987 = vpop.f32.mrb[0].mxu0
    %v4988 = vadd.f32 %v4603, %v4987
    %v4989 = vpop.f32.mrb[0].mxu0
    %4990 = vmatprep.mubr.f32.mxu0 %v3801
    %4991 = vmatmul.mubr.f32.gmra.mrb[0].mxu0 %v3737
    %v4992 = vpop.f32.mrb[0].mxu0
    %v4993 = vadd.f32 %v4608, %v4992
    %v4994 = vpop.f32.mrb[0].mxu0
    %4995 = vmatprep.mubr.f32.mxu0 %v3802
    %4996 = vmatmul.mubr.f32.gmra.mrb[0].mxu0 %v3738
    %v4997 = vpop.f32.mrb[0].mxu0
    %v4998 = vadd.f32 %v4613, %v4997
    %v4999 = vpop.f32.mrb[0].mxu0
    %5000 = vmatprep.mubr.f32.mxu0 %v3803
    %5001 = vmatmul.mubr.f32.gmra.mrb[0].mxu0 %v3739
    %v5002 = vpop.f32.mrb[0].mxu0
    %v5003 = vadd.f32 %v4618, %v5002
    %v5004 = vpop.f32.mrb[0].mxu0
    %5005 = vmatprep.mubr.f32.mxu0 %v3804
    %5006 = vmatmul.mubr.f32.gmra.mrb[0].mxu0 %v3740
    %v5007 = vpop.f32.mrb[0].mxu0
    %v5008 = vadd.f32 %v4623, %v5007
    %v5009 = vpop.f32.mrb[0].mxu0
    %5010 = vmatprep.mubr.f32.mxu0 %v3805
    %5011 = vmatmul.mubr.f32.gmra.mrb[0].mxu0 %v3741
    %v5012 = vpop.f32.mrb[0].mxu0
    %v5013 = vadd.f32 %v4628, %v5012
    %v5014 = vpop.f32.mrb[0].mxu0
    %5015 = vmatprep.mubr.f32.mxu0 %v3806
    %5016 = vmatmul.mubr.f32.gmra.mrb[0].mxu0 %v3742
    %v5017 = vpop.f32.mrb[0].mxu0
    %v5018 = vadd.f32 %v4633, %v5017
    %v5019 = vpop.f32.mrb[0].mxu0
    %5020 = vmatprep.mubr.f32.mxu0 %v3807
    %5021 = vmatmul.mubr.f32.gmra.mrb[0].mxu0 %v3743
    %v5022 = vpop.f32.mrb[0].mxu0
    %v5023 = vadd.f32 %v4638, %v5022
    %v5024 = vpop.f32.mrb[0].mxu0
    %5025 = vmatprep.mubr.f32.mxu0 %v3808
    %5026 = vmatmul.mubr.f32.gmra.mrb[0].mxu0 %v3744
    %v5027 = vpop.f32.mrb[0].mxu0
    %v5028 = vadd.f32 %v4643, %v5027
    %v5029 = vpop.f32.mrb[0].mxu0
    %5030 = vmatprep.mubr.f32.mxu0 %v3809
    %5031 = vmatmul.mubr.f32.gmra.mrb[0].mxu0 %v3745
    %v5032 = vpop.f32.mrb[0].mxu0
    %v5033 = vadd.f32 %v4648, %v5032
    %v5034 = vpop.f32.mrb[0].mxu0
    %5035 = vmatprep.mubr.f32.mxu0 %v3810
    %5036 = vmatmul.mubr.f32.gmra.mrb[0].mxu0 %v3746
    %v5037 = vpop.f32.mrb[0].mxu0
    %v5038 = vadd.f32 %v4653, %v5037
    %v5039 = vpop.f32.mrb[0].mxu0
    %5040 = vmatprep.mubr.f32.mxu0 %v3811
    %5041 = vmatmul.mubr.f32.gmra.mrb[0].mxu0 %v3747
    %v5042 = vpop.f32.mrb[0].mxu0
    %v5043 = vadd.f32 %v4658, %v5042
    %v5044 = vpop.f32.mrb[0].mxu0
    %5045 = vdwg.mxu0
    %5046 = vmatprep.subr.mxu0 0.0
    %5047 = vmatpush1.msra.mxu0 %v4196
    %5048 = vmatprep.subr.mxu0 0.0
    %5049 = vmatpush1.msra.mxu0 %v4197
    %5050 = vmatprep.subr.mxu0 0.0
    %5051 = vmatpush1.msra.mxu0 %v4198
    %5052 = vmatprep.subr.mxu0 0.0
    %5053 = vmatpush1.msra.mxu0 %v4199
    %5054 = vmatprep.subr.mxu0 0.0
    %5055 = vmatpush1.msra.mxu0 %v4200
    %5056 = vmatprep.subr.mxu0 0.0
    %5057 = vmatpush1.msra.mxu0 %v4201
    %5058 = vmatprep.subr.mxu0 0.0
    %5059 = vmatpush1.msra.mxu0 %v4202
    %5060 = vmatprep.subr.mxu0 0.0
    %5061 = vmatpush1.msra.mxu0 %v4203
    %5062 = vmatprep.subr.mxu0 0.0
    %5063 = vmatpush1.msra.mxu0 %v4204
    %5064 = vmatprep.subr.mxu0 0.0
    %5065 = vmatpush1.msra.mxu0 %v4205
    %5066 = vmatprep.subr.mxu0 0.0
    %5067 = vmatpush1.msra.mxu0 %v4206
    %5068 = vmatprep.subr.mxu0 0.0
    %5069 = vmatpush1.msra.mxu0 %v4207
    %5070 = vmatprep.subr.mxu0 0.0
    %5071 = vmatpush1.msra.mxu0 %v4208
    %5072 = vmatprep.subr.mxu0 0.0
    %5073 = vmatpush1.msra.mxu0 %v4209
    %5074 = vmatprep.subr.mxu0 0.0
    %5075 = vmatpush1.msra.mxu0 %v4210
    %5076 = vmatprep.subr.mxu0 0.0
    %5077 = vmatpush1.msra.mxu0 %v4211
    %5078 = vmatprep.subr.mxu0 0.0
    %5079 = vmatpush1.msra.mxu0 %v4212
    %5080 = vmatprep.subr.mxu0 0.0
    %5081 = vmatpush1.msra.mxu0 %v4213
    %5082 = vmatprep.subr.mxu0 0.0
    %5083 = vmatpush1.msra.mxu0 %v4214
    %5084 = vmatprep.subr.mxu0 0.0
    %5085 = vmatpush1.msra.mxu0 %v4215
    %5086 = vmatprep.subr.mxu0 0.0
    %5087 = vmatpush1.msra.mxu0 %v4216
    %5088 = vmatprep.subr.mxu0 0.0
    %5089 = vmatpush1.msra.mxu0 %v4217
    %5090 = vmatprep.subr.mxu0 0.0
    %5091 = vmatpush1.msra.mxu0 %v4218
    %5092 = vmatprep.subr.mxu0 0.0
    %5093 = vmatpush1.msra.mxu0 %v4219
    %5094 = vmatprep.subr.mxu0 0.0
    %5095 = vmatpush1.msra.mxu0 %v4220
    %5096 = vmatprep.subr.mxu0 0.0
    %5097 = vmatpush1.msra.mxu0 %v4221
    %5098 = vmatprep.subr.mxu0 0.0
    %5099 = vmatpush1.msra.mxu0 %v4222
    %5100 = vmatprep.subr.mxu0 0.0
    %5101 = vmatpush1.msra.mxu0 %v4223
    %5102 = vmatprep.subr.mxu0 0.0
    %5103 = vmatpush1.msra.mxu0 %v4224
    %5104 = vmatprep.subr.mxu0 0.0
    %5105 = vmatpush1.msra.mxu0 %v4225
    %5106 = vmatprep.subr.mxu0 0.0
    %5107 = vmatpush1.msra.mxu0 %v4226
    %5108 = vmatprep.subr.mxu0 0.0
    %5109 = vmatpush1.msra.mxu0 %v4227
    %5110 = vmatprep.mubr.f32.mxu0 %v3876
    %5111 = vmatmul.mubr.f32.gmra.mrb[0].mxu0 %v3812
    %v5112 = vpop.f32.mrb[0].mxu0
    %v5113 = vadd.f32 %v4728, %v5112
    %v5114 = vpop.f32.mrb[0].mxu0
    %5115 = vmatprep.mubr.f32.mxu0 %v3877
    %5116 = vmatmul.mubr.f32.gmra.mrb[0].mxu0 %v3813
    %v5117 = vpop.f32.mrb[0].mxu0
    %v5118 = vadd.f32 %v4733, %v5117
    %v5119 = vpop.f32.mrb[0].mxu0
    %5120 = vmatprep.mubr.f32.mxu0 %v3878
    %5121 = vmatmul.mubr.f32.gmra.mrb[0].mxu0 %v3814
    %v5122 = vpop.f32.mrb[0].mxu0
    %v5123 = vadd.f32 %v4738, %v5122
    %v5124 = vpop.f32.mrb[0].mxu0
    %5125 = vmatprep.mubr.f32.mxu0 %v3879
    %5126 = vmatmul.mubr.f32.gmra.mrb[0].mxu0 %v3815
    %v5127 = vpop.f32.mrb[0].mxu0
    %v5128 = vadd.f32 %v4743, %v5127
    %v5129 = vpop.f32.mrb[0].mxu0
    %5130 = vmatprep.mubr.f32.mxu0 %v3880
    %5131 = vmatmul.mubr.f32.gmra.mrb[0].mxu0 %v3816
    %v5132 = vpop.f32.mrb[0].mxu0
    %v5133 = vadd.f32 %v4748, %v5132
    %v5134 = vpop.f32.mrb[0].mxu0
    %5135 = vmatprep.mubr.f32.mxu0 %v3881
    %5136 = vmatmul.mubr.f32.gmra.mrb[0].mxu0 %v3817
    %v5137 = vpop.f32.mrb[0].mxu0
    %v5138 = vadd.f32 %v4753, %v5137
    %v5139 = vpop.f32.mrb[0].mxu0
    %5140 = vmatprep.mubr.f32.mxu0 %v3882
    %5141 = vmatmul.mubr.f32.gmra.mrb[0].mxu0 %v3818
    %v5142 = vpop.f32.mrb[0].mxu0
    %v5143 = vadd.f32 %v4758, %v5142
    %v5144 = vpop.f32.mrb[0].mxu0
    %5145 = vmatprep.mubr.f32.mxu0 %v3883
    %5146 = vmatmul.mubr.f32.gmra.mrb[0].mxu0 %v3819
    %v5147 = vpop.f32.mrb[0].mxu0
    %v5148 = vadd.f32 %v4763, %v5147
    %v5149 = vpop.f32.mrb[0].mxu0
    %5150 = vmatprep.mubr.f32.mxu0 %v3884
    %5151 = vmatmul.mubr.f32.gmra.mrb[0].mxu0 %v3820
    %v5152 = vpop.f32.mrb[0].mxu0
    %v5153 = vadd.f32 %v4768, %v5152
    %v5154 = vpop.f32.mrb[0].mxu0
    %5155 = vmatprep.mubr.f32.mxu0 %v3885
    %5156 = vmatmul.mubr.f32.gmra.mrb[0].mxu0 %v3821
    %v5157 = vpop.f32.mrb[0].mxu0
    %v5158 = vadd.f32 %v4773, %v5157
    %v5159 = vpop.f32.mrb[0].mxu0
    %5160 = vmatprep.mubr.f32.mxu0 %v3886
    %5161 = vmatmul.mubr.f32.gmra.mrb[0].mxu0 %v3822
    %v5162 = vpop.f32.mrb[0].mxu0
    %v5163 = vadd.f32 %v4778, %v5162
    %v5164 = vpop.f32.mrb[0].mxu0
    %5165 = vmatprep.mubr.f32.mxu0 %v3887
    %5166 = vmatmul.mubr.f32.gmra.mrb[0].mxu0 %v3823
    %v5167 = vpop.f32.mrb[0].mxu0
    %v5168 = vadd.f32 %v4783, %v5167
    %v5169 = vpop.f32.mrb[0].mxu0
    %5170 = vmatprep.mubr.f32.mxu0 %v3888
    %5171 = vmatmul.mubr.f32.gmra.mrb[0].mxu0 %v3824
    %v5172 = vpop.f32.mrb[0].mxu0
    %v5173 = vadd.f32 %v4788, %v5172
    %v5174 = vpop.f32.mrb[0].mxu0
    %5175 = vmatprep.mubr.f32.mxu0 %v3889
    %5176 = vmatmul.mubr.f32.gmra.mrb[0].mxu0 %v3825
    %v5177 = vpop.f32.mrb[0].mxu0
    %v5178 = vadd.f32 %v4793, %v5177
    %v5179 = vpop.f32.mrb[0].mxu0
    %5180 = vmatprep.mubr.f32.mxu0 %v3890
    %5181 = vmatmul.mubr.f32.gmra.mrb[0].mxu0 %v3826
    %v5182 = vpop.f32.mrb[0].mxu0
    %v5183 = vadd.f32 %v4798, %v5182
    %v5184 = vpop.f32.mrb[0].mxu0
    %5185 = vmatprep.mubr.f32.mxu0 %v3891
    %5186 = vmatmul.mubr.f32.gmra.mrb[0].mxu0 %v3827
    %v5187 = vpop.f32.mrb[0].mxu0
    %v5188 = vadd.f32 %v4803, %v5187
    %v5189 = vpop.f32.mrb[0].mxu0
    %5190 = vmatprep.mubr.f32.mxu0 %v3892
    %5191 = vmatmul.mubr.f32.gmra.mrb[0].mxu0 %v3828
    %v5192 = vpop.f32.mrb[0].mxu0
    %v5193 = vadd.f32 %v4808, %v5192
    %v5194 = vpop.f32.mrb[0].mxu0
    %5195 = vmatprep.mubr.f32.mxu0 %v3893
    %5196 = vmatmul.mubr.f32.gmra.mrb[0].mxu0 %v3829
    %v5197 = vpop.f32.mrb[0].mxu0
    %v5198 = vadd.f32 %v4813, %v5197
    %v5199 = vpop.f32.mrb[0].mxu0
    %5200 = vmatprep.mubr.f32.mxu0 %v3894
    %5201 = vmatmul.mubr.f32.gmra.mrb[0].mxu0 %v3830
    %v5202 = vpop.f32.mrb[0].mxu0
    %v5203 = vadd.f32 %v4818, %v5202
    %v5204 = vpop.f32.mrb[0].mxu0
    %5205 = vmatprep.mubr.f32.mxu0 %v3895
    %5206 = vmatmul.mubr.f32.gmra.mrb[0].mxu0 %v3831
    %v5207 = vpop.f32.mrb[0].mxu0
    %v5208 = vadd.f32 %v4823, %v5207
    %v5209 = vpop.f32.mrb[0].mxu0
    %5210 = vmatprep.mubr.f32.mxu0 %v3896
    %5211 = vmatmul.mubr.f32.gmra.mrb[0].mxu0 %v3832
    %v5212 = vpop.f32.mrb[0].mxu0
    %v5213 = vadd.f32 %v4828, %v5212
    %v5214 = vpop.f32.mrb[0].mxu0
    %5215 = vmatprep.mubr.f32.mxu0 %v3897
    %5216 = vmatmul.mubr.f32.gmra.mrb[0].mxu0 %v3833
    %v5217 = vpop.f32.mrb[0].mxu0
    %v5218 = vadd.f32 %v4833, %v5217
    %v5219 = vpop.f32.mrb[0].mxu0
    %5220 = vmatprep.mubr.f32.mxu0 %v3898
    %5221 = vmatmul.mubr.f32.gmra.mrb[0].mxu0 %v3834
    %v5222 = vpop.f32.mrb[0].mxu0
    %v5223 = vadd.f32 %v4838, %v5222
    %v5224 = vpop.f32.mrb[0].mxu0
    %5225 = vmatprep.mubr.f32.mxu0 %v3899
    %5226 = vmatmul.mubr.f32.gmra.mrb[0].mxu0 %v3835
    %v5227 = vpop.f32.mrb[0].mxu0
    %v5228 = vadd.f32 %v4843, %v5227
    %v5229 = vpop.f32.mrb[0].mxu0
    %5230 = vmatprep.mubr.f32.mxu0 %v3900
    %5231 = vmatmul.mubr.f32.gmra.mrb[0].mxu0 %v3836
    %v5232 = vpop.f32.mrb[0].mxu0
    %v5233 = vadd.f32 %v4848, %v5232
    %v5234 = vpop.f32.mrb[0].mxu0
    %5235 = vmatprep.mubr.f32.mxu0 %v3901
    %5236 = vmatmul.mubr.f32.gmra.mrb[0].mxu0 %v3837
    %v5237 = vpop.f32.mrb[0].mxu0
    %v5238 = vadd.f32 %v4853, %v5237
    %v5239 = vpop.f32.mrb[0].mxu0
    %5240 = vmatprep.mubr.f32.mxu0 %v3902
    %5241 = vmatmul.mubr.f32.gmra.mrb[0].mxu0 %v3838
    %v5242 = vpop.f32.mrb[0].mxu0
    %v5243 = vadd.f32 %v4858, %v5242
    %v5244 = vpop.f32.mrb[0].mxu0
    %5245 = vmatprep.mubr.f32.mxu0 %v3903
    %5246 = vmatmul.mubr.f32.gmra.mrb[0].mxu0 %v3839
    %v5247 = vpop.f32.mrb[0].mxu0
    %v5248 = vadd.f32 %v4863, %v5247
    %v5249 = vpop.f32.mrb[0].mxu0
    %5250 = vmatprep.mubr.f32.mxu0 %v3904
    %5251 = vmatmul.mubr.f32.gmra.mrb[0].mxu0 %v3840
    %v5252 = vpop.f32.mrb[0].mxu0
    %v5253 = vadd.f32 %v4868, %v5252
    %v5254 = vpop.f32.mrb[0].mxu0
    %5255 = vmatprep.mubr.f32.mxu0 %v3905
    %5256 = vmatmul.mubr.f32.gmra.mrb[0].mxu0 %v3841
    %v5257 = vpop.f32.mrb[0].mxu0
    %v5258 = vadd.f32 %v4873, %v5257
    %v5259 = vpop.f32.mrb[0].mxu0
    %5260 = vmatprep.mubr.f32.mxu0 %v3906
    %5261 = vmatmul.mubr.f32.gmra.mrb[0].mxu0 %v3842
    %v5262 = vpop.f32.mrb[0].mxu0
    %v5263 = vadd.f32 %v4878, %v5262
    %v5264 = vpop.f32.mrb[0].mxu0
    %5265 = vmatprep.mubr.f32.mxu0 %v3907
    %5266 = vmatmul.mubr.f32.gmra.mrb[0].mxu0 %v3843
    %v5267 = vpop.f32.mrb[0].mxu0
    %v5268 = vadd.f32 %v4883, %v5267
    %v5269 = vpop.f32.mrb[0].mxu0
    %5270 = vmatprep.mubr.f32.mxu0 %v3908
    %5271 = vmatmul.mubr.f32.gmra.mrb[0].mxu0 %v3844
    %v5272 = vpop.f32.mrb[0].mxu0
    %v5273 = vadd.f32 %v4888, %v5272
    %v5274 = vpop.f32.mrb[0].mxu0
    %5275 = vmatprep.mubr.f32.mxu0 %v3909
    %5276 = vmatmul.mubr.f32.gmra.mrb[0].mxu0 %v3845
    %v5277 = vpop.f32.mrb[0].mxu0
    %v5278 = vadd.f32 %v4893, %v5277
    %v5279 = vpop.f32.mrb[0].mxu0
    %5280 = vmatprep.mubr.f32.mxu0 %v3910
    %5281 = vmatmul.mubr.f32.gmra.mrb[0].mxu0 %v3846
    %v5282 = vpop.f32.mrb[0].mxu0
    %v5283 = vadd.f32 %v4898, %v5282
    %v5284 = vpop.f32.mrb[0].mxu0
    %5285 = vmatprep.mubr.f32.mxu0 %v3911
    %5286 = vmatmul.mubr.f32.gmra.mrb[0].mxu0 %v3847
    %v5287 = vpop.f32.mrb[0].mxu0
    %v5288 = vadd.f32 %v4903, %v5287
    %v5289 = vpop.f32.mrb[0].mxu0
    %5290 = vmatprep.mubr.f32.mxu0 %v3912
    %5291 = vmatmul.mubr.f32.gmra.mrb[0].mxu0 %v3848
    %v5292 = vpop.f32.mrb[0].mxu0
    %v5293 = vadd.f32 %v4908, %v5292
    %v5294 = vpop.f32.mrb[0].mxu0
    %5295 = vmatprep.mubr.f32.mxu0 %v3913
    %5296 = vmatmul.mubr.f32.gmra.mrb[0].mxu0 %v3849
    %v5297 = vpop.f32.mrb[0].mxu0
    %v5298 = vadd.f32 %v4913, %v5297
    %v5299 = vpop.f32.mrb[0].mxu0
    %5300 = vmatprep.mubr.f32.mxu0 %v3914
    %5301 = vmatmul.mubr.f32.gmra.mrb[0].mxu0 %v3850
    %v5302 = vpop.f32.mrb[0].mxu0
    %v5303 = vadd.f32 %v4918, %v5302
    %v5304 = vpop.f32.mrb[0].mxu0
    %5305 = vmatprep.mubr.f32.mxu0 %v3915
    %5306 = vmatmul.mubr.f32.gmra.mrb[0].mxu0 %v3851
    %v5307 = vpop.f32.mrb[0].mxu0
    %v5308 = vadd.f32 %v4923, %v5307
    %v5309 = vpop.f32.mrb[0].mxu0
    %5310 = vmatprep.mubr.f32.mxu0 %v3916
    %5311 = vmatmul.mubr.f32.gmra.mrb[0].mxu0 %v3852
    %v5312 = vpop.f32.mrb[0].mxu0
    %v5313 = vadd.f32 %v4928, %v5312
    %v5314 = vpop.f32.mrb[0].mxu0
    %5315 = vmatprep.mubr.f32.mxu0 %v3917
    %5316 = vmatmul.mubr.f32.gmra.mrb[0].mxu0 %v3853
    %v5317 = vpop.f32.mrb[0].mxu0
    %v5318 = vadd.f32 %v4933, %v5317
    %v5319 = vpop.f32.mrb[0].mxu0
    %5320 = vmatprep.mubr.f32.mxu0 %v3918
    %5321 = vmatmul.mubr.f32.gmra.mrb[0].mxu0 %v3854
    %v5322 = vpop.f32.mrb[0].mxu0
    %v5323 = vadd.f32 %v4938, %v5322
    %v5324 = vpop.f32.mrb[0].mxu0
    %5325 = vmatprep.mubr.f32.mxu0 %v3919
    %5326 = vmatmul.mubr.f32.gmra.mrb[0].mxu0 %v3855
    %v5327 = vpop.f32.mrb[0].mxu0
    %v5328 = vadd.f32 %v4943, %v5327
    %v5329 = vpop.f32.mrb[0].mxu0
    %5330 = vmatprep.mubr.f32.mxu0 %v3920
    %5331 = vmatmul.mubr.f32.gmra.mrb[0].mxu0 %v3856
    %v5332 = vpop.f32.mrb[0].mxu0
    %v5333 = vadd.f32 %v4948, %v5332
    %v5334 = vpop.f32.mrb[0].mxu0
    %5335 = vmatprep.mubr.f32.mxu0 %v3921
    %5336 = vmatmul.mubr.f32.gmra.mrb[0].mxu0 %v3857
    %v5337 = vpop.f32.mrb[0].mxu0
    %v5338 = vadd.f32 %v4953, %v5337
    %v5339 = vpop.f32.mrb[0].mxu0
    %5340 = vmatprep.mubr.f32.mxu0 %v3922
    %5341 = vmatmul.mubr.f32.gmra.mrb[0].mxu0 %v3858
    %v5342 = vpop.f32.mrb[0].mxu0
    %v5343 = vadd.f32 %v4958, %v5342
    %v5344 = vpop.f32.mrb[0].mxu0
    %5345 = vmatprep.mubr.f32.mxu0 %v3923
    %5346 = vmatmul.mubr.f32.gmra.mrb[0].mxu0 %v3859
    %v5347 = vpop.f32.mrb[0].mxu0
    %v5348 = vadd.f32 %v4963, %v5347
    %v5349 = vpop.f32.mrb[0].mxu0
    %5350 = vmatprep.mubr.f32.mxu0 %v3924
    %5351 = vmatmul.mubr.f32.gmra.mrb[0].mxu0 %v3860
    %v5352 = vpop.f32.mrb[0].mxu0
    %v5353 = vadd.f32 %v4968, %v5352
    %v5354 = vpop.f32.mrb[0].mxu0
    %5355 = vmatprep.mubr.f32.mxu0 %v3925
    %5356 = vmatmul.mubr.f32.gmra.mrb[0].mxu0 %v3861
    %v5357 = vpop.f32.mrb[0].mxu0
    %v5358 = vadd.f32 %v4973, %v5357
    %v5359 = vpop.f32.mrb[0].mxu0
    %5360 = vmatprep.mubr.f32.mxu0 %v3926
    %5361 = vmatmul.mubr.f32.gmra.mrb[0].mxu0 %v3862
    %v5362 = vpop.f32.mrb[0].mxu0
    %v5363 = vadd.f32 %v4978, %v5362
    %v5364 = vpop.f32.mrb[0].mxu0
    %5365 = vmatprep.mubr.f32.mxu0 %v3927
    %5366 = vmatmul.mubr.f32.gmra.mrb[0].mxu0 %v3863
    %v5367 = vpop.f32.mrb[0].mxu0
    %v5368 = vadd.f32 %v4983, %v5367
    %v5369 = vpop.f32.mrb[0].mxu0
    %5370 = vmatprep.mubr.f32.mxu0 %v3928
    %5371 = vmatmul.mubr.f32.gmra.mrb[0].mxu0 %v3864
    %v5372 = vpop.f32.mrb[0].mxu0
    %v5373 = vadd.f32 %v4988, %v5372
    %v5374 = vpop.f32.mrb[0].mxu0
    %5375 = vmatprep.mubr.f32.mxu0 %v3929
    %5376 = vmatmul.mubr.f32.gmra.mrb[0].mxu0 %v3865
    %v5377 = vpop.f32.mrb[0].mxu0
    %v5378 = vadd.f32 %v4993, %v5377
    %v5379 = vpop.f32.mrb[0].mxu0
    %5380 = vmatprep.mubr.f32.mxu0 %v3930
    %5381 = vmatmul.mubr.f32.gmra.mrb[0].mxu0 %v3866
    %v5382 = vpop.f32.mrb[0].mxu0
    %v5383 = vadd.f32 %v4998, %v5382
    %v5384 = vpop.f32.mrb[0].mxu0
    %5385 = vmatprep.mubr.f32.mxu0 %v3931
    %5386 = vmatmul.mubr.f32.gmra.mrb[0].mxu0 %v3867
    %v5387 = vpop.f32.mrb[0].mxu0
    %v5388 = vadd.f32 %v5003, %v5387
    %v5389 = vpop.f32.mrb[0].mxu0
    %5390 = vmatprep.mubr.f32.mxu0 %v3932
    %5391 = vmatmul.mubr.f32.gmra.mrb[0].mxu0 %v3868
    %v5392 = vpop.f32.mrb[0].mxu0
    %v5393 = vadd.f32 %v5008, %v5392
    %v5394 = vpop.f32.mrb[0].mxu0
    %5395 = vmatprep.mubr.f32.mxu0 %v3933
    %5396 = vmatmul.mubr.f32.gmra.mrb[0].mxu0 %v3869
    %v5397 = vpop.f32.mrb[0].mxu0
    %v5398 = vadd.f32 %v5013, %v5397
    %v5399 = vpop.f32.mrb[0].mxu0
    %5400 = vmatprep.mubr.f32.mxu0 %v3934
    %5401 = vmatmul.mubr.f32.gmra.mrb[0].mxu0 %v3870
    %v5402 = vpop.f32.mrb[0].mxu0
    %v5403 = vadd.f32 %v5018, %v5402
    %v5404 = vpop.f32.mrb[0].mxu0
    %5405 = vmatprep.mubr.f32.mxu0 %v3935
    %5406 = vmatmul.mubr.f32.gmra.mrb[0].mxu0 %v3871
    %v5407 = vpop.f32.mrb[0].mxu0
    %v5408 = vadd.f32 %v5023, %v5407
    %v5409 = vpop.f32.mrb[0].mxu0
    %5410 = vmatprep.mubr.f32.mxu0 %v3936
    %5411 = vmatmul.mubr.f32.gmra.mrb[0].mxu0 %v3872
    %v5412 = vpop.f32.mrb[0].mxu0
    %v5413 = vadd.f32 %v5028, %v5412
    %v5414 = vpop.f32.mrb[0].mxu0
    %5415 = vmatprep.mubr.f32.mxu0 %v3937
    %5416 = vmatmul.mubr.f32.gmra.mrb[0].mxu0 %v3873
    %v5417 = vpop.f32.mrb[0].mxu0
    %v5418 = vadd.f32 %v5033, %v5417
    %v5419 = vpop.f32.mrb[0].mxu0
    %5420 = vmatprep.mubr.f32.mxu0 %v3938
    %5421 = vmatmul.mubr.f32.gmra.mrb[0].mxu0 %v3874
    %v5422 = vpop.f32.mrb[0].mxu0
    %v5423 = vadd.f32 %v5038, %v5422
    %v5424 = vpop.f32.mrb[0].mxu0
    %5425 = vmatprep.mubr.f32.mxu0 %v3939
    %5426 = vmatmul.mubr.f32.gmra.mrb[0].mxu0 %v3875
    %v5427 = vpop.f32.mrb[0].mxu0
    %v5428 = vadd.f32 %v5043, %v5427
    %v5429 = vpop.f32.mrb[0].mxu0
    %5430 = vdwg.mxu0
    %5431 = vmatprep.subr.mxu0 0.0
    %5432 = vmatpush1.msra.mxu0 %v4228
    %5433 = vmatprep.subr.mxu0 0.0
    %5434 = vmatpush1.msra.mxu0 %v4229
    %5435 = vmatprep.subr.mxu0 0.0
    %5436 = vmatpush1.msra.mxu0 %v4230
    %5437 = vmatprep.subr.mxu0 0.0
    %5438 = vmatpush1.msra.mxu0 %v4231
    %5439 = vmatprep.subr.mxu0 0.0
    %5440 = vmatpush1.msra.mxu0 %v4232
    %5441 = vmatprep.subr.mxu0 0.0
    %5442 = vmatpush1.msra.mxu0 %v4233
    %5443 = vmatprep.subr.mxu0 0.0
    %5444 = vmatpush1.msra.mxu0 %v4234
    %5445 = vmatprep.subr.mxu0 0.0
    %5446 = vmatpush1.msra.mxu0 %v4235
    %5447 = vmatprep.subr.mxu0 0.0
    %5448 = vmatpush1.msra.mxu0 %v4236
    %5449 = vmatprep.subr.mxu0 0.0
    %5450 = vmatpush1.msra.mxu0 %v4237
    %5451 = vmatprep.subr.mxu0 0.0
    %5452 = vmatpush1.msra.mxu0 %v4238
    %5453 = vmatprep.subr.mxu0 0.0
    %5454 = vmatpush1.msra.mxu0 %v4239
    %5455 = vmatprep.subr.mxu0 0.0
    %5456 = vmatpush1.msra.mxu0 %v4240
    %5457 = vmatprep.subr.mxu0 0.0
    %5458 = vmatpush1.msra.mxu0 %v4241
    %5459 = vmatprep.subr.mxu0 0.0
    %5460 = vmatpush1.msra.mxu0 %v4242
    %5461 = vmatprep.subr.mxu0 0.0
    %5462 = vmatpush1.msra.mxu0 %v4243
    %5463 = vmatprep.subr.mxu0 0.0
    %5464 = vmatpush1.msra.mxu0 %v4244
    %5465 = vmatprep.subr.mxu0 0.0
    %5466 = vmatpush1.msra.mxu0 %v4245
    %5467 = vmatprep.subr.mxu0 0.0
    %5468 = vmatpush1.msra.mxu0 %v4246
    %5469 = vmatprep.subr.mxu0 0.0
    %5470 = vmatpush1.msra.mxu0 %v4247
    %5471 = vmatprep.subr.mxu0 0.0
    %5472 = vmatpush1.msra.mxu0 %v4248
    %5473 = vmatprep.subr.mxu0 0.0
    %5474 = vmatpush1.msra.mxu0 %v4249
    %5475 = vmatprep.subr.mxu0 0.0
    %5476 = vmatpush1.msra.mxu0 %v4250
    %5477 = vmatprep.subr.mxu0 0.0
    %5478 = vmatpush1.msra.mxu0 %v4251
    %5479 = vmatprep.subr.mxu0 0.0
    %5480 = vmatpush1.msra.mxu0 %v4252
    %5481 = vmatprep.subr.mxu0 0.0
    %5482 = vmatpush1.msra.mxu0 %v4253
    %5483 = vmatprep.subr.mxu0 0.0
    %5484 = vmatpush1.msra.mxu0 %v4254
    %5485 = vmatprep.subr.mxu0 0.0
    %5486 = vmatpush1.msra.mxu0 %v4255
    %5487 = vmatprep.subr.mxu0 0.0
    %5488 = vmatpush1.msra.mxu0 %v4256
    %5489 = vmatprep.subr.mxu0 0.0
    %5490 = vmatpush1.msra.mxu0 %v4257
    %5491 = vmatprep.subr.mxu0 0.0
    %5492 = vmatpush1.msra.mxu0 %v4258
    %5493 = vmatprep.subr.mxu0 0.0
    %5494 = vmatpush1.msra.mxu0 %v4259
    %5495 = vmatprep.mubr.f32.mxu0 %v4004
    %5496 = vmatmul.mubr.f32.gmra.mrb[0].mxu0 %v3940
    %v5497 = vpop.f32.mrb[0].mxu0
    %v5498 = vadd.f32 %v5113, %v5497
    %v5499 = vpop.f32.mrb[0].mxu0
    %5500 = vmatprep.mubr.f32.mxu0 %v4005
    %5501 = vmatmul.mubr.f32.gmra.mrb[0].mxu0 %v3941
    %v5502 = vpop.f32.mrb[0].mxu0
    %v5503 = vadd.f32 %v5118, %v5502
    %v5504 = vpop.f32.mrb[0].mxu0
    %5505 = vmatprep.mubr.f32.mxu0 %v4006
    %5506 = vmatmul.mubr.f32.gmra.mrb[0].mxu0 %v3942
    %v5507 = vpop.f32.mrb[0].mxu0
    %v5508 = vadd.f32 %v5123, %v5507
    %v5509 = vpop.f32.mrb[0].mxu0
    %5510 = vmatprep.mubr.f32.mxu0 %v4007
    %5511 = vmatmul.mubr.f32.gmra.mrb[0].mxu0 %v3943
    %v5512 = vpop.f32.mrb[0].mxu0
    %v5513 = vadd.f32 %v5128, %v5512
    %v5514 = vpop.f32.mrb[0].mxu0
    %5515 = vmatprep.mubr.f32.mxu0 %v4008
    %5516 = vmatmul.mubr.f32.gmra.mrb[0].mxu0 %v3944
    %v5517 = vpop.f32.mrb[0].mxu0
    %v5518 = vadd.f32 %v5133, %v5517
    %v5519 = vpop.f32.mrb[0].mxu0
    %5520 = vmatprep.mubr.f32.mxu0 %v4009
    %5521 = vmatmul.mubr.f32.gmra.mrb[0].mxu0 %v3945
    %v5522 = vpop.f32.mrb[0].mxu0
    %v5523 = vadd.f32 %v5138, %v5522
    %v5524 = vpop.f32.mrb[0].mxu0
    %5525 = vmatprep.mubr.f32.mxu0 %v4010
    %5526 = vmatmul.mubr.f32.gmra.mrb[0].mxu0 %v3946
    %v5527 = vpop.f32.mrb[0].mxu0
    %v5528 = vadd.f32 %v5143, %v5527
    %v5529 = vpop.f32.mrb[0].mxu0
    %5530 = vmatprep.mubr.f32.mxu0 %v4011
    %5531 = vmatmul.mubr.f32.gmra.mrb[0].mxu0 %v3947
    %v5532 = vpop.f32.mrb[0].mxu0
    %v5533 = vadd.f32 %v5148, %v5532
    %v5534 = vpop.f32.mrb[0].mxu0
    %5535 = vmatprep.mubr.f32.mxu0 %v4012
    %5536 = vmatmul.mubr.f32.gmra.mrb[0].mxu0 %v3948
    %v5537 = vpop.f32.mrb[0].mxu0
    %v5538 = vadd.f32 %v5153, %v5537
    %v5539 = vpop.f32.mrb[0].mxu0
    %5540 = vmatprep.mubr.f32.mxu0 %v4013
    %5541 = vmatmul.mubr.f32.gmra.mrb[0].mxu0 %v3949
    %v5542 = vpop.f32.mrb[0].mxu0
    %v5543 = vadd.f32 %v5158, %v5542
    %v5544 = vpop.f32.mrb[0].mxu0
    %5545 = vmatprep.mubr.f32.mxu0 %v4014
    %5546 = vmatmul.mubr.f32.gmra.mrb[0].mxu0 %v3950
    %v5547 = vpop.f32.mrb[0].mxu0
    %v5548 = vadd.f32 %v5163, %v5547
    %v5549 = vpop.f32.mrb[0].mxu0
    %5550 = vmatprep.mubr.f32.mxu0 %v4015
    %5551 = vmatmul.mubr.f32.gmra.mrb[0].mxu0 %v3951
    %v5552 = vpop.f32.mrb[0].mxu0
    %v5553 = vadd.f32 %v5168, %v5552
    %v5554 = vpop.f32.mrb[0].mxu0
    %5555 = vmatprep.mubr.f32.mxu0 %v4016
    %5556 = vmatmul.mubr.f32.gmra.mrb[0].mxu0 %v3952
    %v5557 = vpop.f32.mrb[0].mxu0
    %v5558 = vadd.f32 %v5173, %v5557
    %v5559 = vpop.f32.mrb[0].mxu0
    %5560 = vmatprep.mubr.f32.mxu0 %v4017
    %5561 = vmatmul.mubr.f32.gmra.mrb[0].mxu0 %v3953
    %v5562 = vpop.f32.mrb[0].mxu0
    %v5563 = vadd.f32 %v5178, %v5562
    %v5564 = vpop.f32.mrb[0].mxu0
    %5565 = vmatprep.mubr.f32.mxu0 %v4018
    %5566 = vmatmul.mubr.f32.gmra.mrb[0].mxu0 %v3954
    %v5567 = vpop.f32.mrb[0].mxu0
    %v5568 = vadd.f32 %v5183, %v5567
    %v5569 = vpop.f32.mrb[0].mxu0
    %5570 = vmatprep.mubr.f32.mxu0 %v4019
    %5571 = vmatmul.mubr.f32.gmra.mrb[0].mxu0 %v3955
    %v5572 = vpop.f32.mrb[0].mxu0
    %v5573 = vadd.f32 %v5188, %v5572
    %v5574 = vpop.f32.mrb[0].mxu0
    %5575 = vmatprep.mubr.f32.mxu0 %v4020
    %5576 = vmatmul.mubr.f32.gmra.mrb[0].mxu0 %v3956
    %v5577 = vpop.f32.mrb[0].mxu0
    %v5578 = vadd.f32 %v5193, %v5577
    %v5579 = vpop.f32.mrb[0].mxu0
    %5580 = vmatprep.mubr.f32.mxu0 %v4021
    %5581 = vmatmul.mubr.f32.gmra.mrb[0].mxu0 %v3957
    %v5582 = vpop.f32.mrb[0].mxu0
    %v5583 = vadd.f32 %v5198, %v5582
    %v5584 = vpop.f32.mrb[0].mxu0
    %5585 = vmatprep.mubr.f32.mxu0 %v4022
    %5586 = vmatmul.mubr.f32.gmra.mrb[0].mxu0 %v3958
    %v5587 = vpop.f32.mrb[0].mxu0
    %v5588 = vadd.f32 %v5203, %v5587
    %v5589 = vpop.f32.mrb[0].mxu0
    %5590 = vmatprep.mubr.f32.mxu0 %v4023
    %5591 = vmatmul.mubr.f32.gmra.mrb[0].mxu0 %v3959
    %v5592 = vpop.f32.mrb[0].mxu0
    %v5593 = vadd.f32 %v5208, %v5592
    %v5594 = vpop.f32.mrb[0].mxu0
    %5595 = vmatprep.mubr.f32.mxu0 %v4024
    %5596 = vmatmul.mubr.f32.gmra.mrb[0].mxu0 %v3960
    %v5597 = vpop.f32.mrb[0].mxu0
    %v5598 = vadd.f32 %v5213, %v5597
    %v5599 = vpop.f32.mrb[0].mxu0
    %5600 = vmatprep.mubr.f32.mxu0 %v4025
    %5601 = vmatmul.mubr.f32.gmra.mrb[0].mxu0 %v3961
    %v5602 = vpop.f32.mrb[0].mxu0
    %v5603 = vadd.f32 %v5218, %v5602
    %v5604 = vpop.f32.mrb[0].mxu0
    %5605 = vmatprep.mubr.f32.mxu0 %v4026
    %5606 = vmatmul.mubr.f32.gmra.mrb[0].mxu0 %v3962
    %v5607 = vpop.f32.mrb[0].mxu0
    %v5608 = vadd.f32 %v5223, %v5607
    %v5609 = vpop.f32.mrb[0].mxu0
    %5610 = vmatprep.mubr.f32.mxu0 %v4027
    %5611 = vmatmul.mubr.f32.gmra.mrb[0].mxu0 %v3963
    %v5612 = vpop.f32.mrb[0].mxu0
    %v5613 = vadd.f32 %v5228, %v5612
    %v5614 = vpop.f32.mrb[0].mxu0
    %5615 = vmatprep.mubr.f32.mxu0 %v4028
    %5616 = vmatmul.mubr.f32.gmra.mrb[0].mxu0 %v3964
    %v5617 = vpop.f32.mrb[0].mxu0
    %v5618 = vadd.f32 %v5233, %v5617
    %v5619 = vpop.f32.mrb[0].mxu0
    %5620 = vmatprep.mubr.f32.mxu0 %v4029
    %5621 = vmatmul.mubr.f32.gmra.mrb[0].mxu0 %v3965
    %v5622 = vpop.f32.mrb[0].mxu0
    %v5623 = vadd.f32 %v5238, %v5622
    %v5624 = vpop.f32.mrb[0].mxu0
    %5625 = vmatprep.mubr.f32.mxu0 %v4030
    %5626 = vmatmul.mubr.f32.gmra.mrb[0].mxu0 %v3966
    %v5627 = vpop.f32.mrb[0].mxu0
    %v5628 = vadd.f32 %v5243, %v5627
    %v5629 = vpop.f32.mrb[0].mxu0
    %5630 = vmatprep.mubr.f32.mxu0 %v4031
    %5631 = vmatmul.mubr.f32.gmra.mrb[0].mxu0 %v3967
    %v5632 = vpop.f32.mrb[0].mxu0
    %v5633 = vadd.f32 %v5248, %v5632
    %v5634 = vpop.f32.mrb[0].mxu0
    %5635 = vmatprep.mubr.f32.mxu0 %v4032
    %5636 = vmatmul.mubr.f32.gmra.mrb[0].mxu0 %v3968
    %v5637 = vpop.f32.mrb[0].mxu0
    %v5638 = vadd.f32 %v5253, %v5637
    %v5639 = vpop.f32.mrb[0].mxu0
    %5640 = vmatprep.mubr.f32.mxu0 %v4033
    %5641 = vmatmul.mubr.f32.gmra.mrb[0].mxu0 %v3969
    %v5642 = vpop.f32.mrb[0].mxu0
    %v5643 = vadd.f32 %v5258, %v5642
    %v5644 = vpop.f32.mrb[0].mxu0
    %5645 = vmatprep.mubr.f32.mxu0 %v4034
    %5646 = vmatmul.mubr.f32.gmra.mrb[0].mxu0 %v3970
    %v5647 = vpop.f32.mrb[0].mxu0
    %v5648 = vadd.f32 %v5263, %v5647
    %v5649 = vpop.f32.mrb[0].mxu0
    %5650 = vmatprep.mubr.f32.mxu0 %v4035
    %5651 = vmatmul.mubr.f32.gmra.mrb[0].mxu0 %v3971
    %v5652 = vpop.f32.mrb[0].mxu0
    %v5653 = vadd.f32 %v5268, %v5652
    %v5654 = vpop.f32.mrb[0].mxu0
    %5655 = vmatprep.mubr.f32.mxu0 %v4036
    %5656 = vmatmul.mubr.f32.gmra.mrb[0].mxu0 %v3972
    %v5657 = vpop.f32.mrb[0].mxu0
    %v5658 = vadd.f32 %v5273, %v5657
    %v5659 = vpop.f32.mrb[0].mxu0
    %5660 = vmatprep.mubr.f32.mxu0 %v4037
    %5661 = vmatmul.mubr.f32.gmra.mrb[0].mxu0 %v3973
    %v5662 = vpop.f32.mrb[0].mxu0
    %v5663 = vadd.f32 %v5278, %v5662
    %v5664 = vpop.f32.mrb[0].mxu0
    %5665 = vmatprep.mubr.f32.mxu0 %v4038
    %5666 = vmatmul.mubr.f32.gmra.mrb[0].mxu0 %v3974
    %v5667 = vpop.f32.mrb[0].mxu0
    %v5668 = vadd.f32 %v5283, %v5667
    %v5669 = vpop.f32.mrb[0].mxu0
    %5670 = vmatprep.mubr.f32.mxu0 %v4039
    %5671 = vmatmul.mubr.f32.gmra.mrb[0].mxu0 %v3975
    %v5672 = vpop.f32.mrb[0].mxu0
    %v5673 = vadd.f32 %v5288, %v5672
    %v5674 = vpop.f32.mrb[0].mxu0
    %5675 = vmatprep.mubr.f32.mxu0 %v4040
    %5676 = vmatmul.mubr.f32.gmra.mrb[0].mxu0 %v3976
    %v5677 = vpop.f32.mrb[0].mxu0
    %v5678 = vadd.f32 %v5293, %v5677
    %v5679 = vpop.f32.mrb[0].mxu0
    %5680 = vmatprep.mubr.f32.mxu0 %v4041
    %5681 = vmatmul.mubr.f32.gmra.mrb[0].mxu0 %v3977
    %v5682 = vpop.f32.mrb[0].mxu0
    %v5683 = vadd.f32 %v5298, %v5682
    %v5684 = vpop.f32.mrb[0].mxu0
    %5685 = vmatprep.mubr.f32.mxu0 %v4042
    %5686 = vmatmul.mubr.f32.gmra.mrb[0].mxu0 %v3978
    %v5687 = vpop.f32.mrb[0].mxu0
    %v5688 = vadd.f32 %v5303, %v5687
    %v5689 = vpop.f32.mrb[0].mxu0
    %5690 = vmatprep.mubr.f32.mxu0 %v4043
    %5691 = vmatmul.mubr.f32.gmra.mrb[0].mxu0 %v3979
    %v5692 = vpop.f32.mrb[0].mxu0
    %v5693 = vadd.f32 %v5308, %v5692
    %v5694 = vpop.f32.mrb[0].mxu0
    %5695 = vmatprep.mubr.f32.mxu0 %v4044
    %5696 = vmatmul.mubr.f32.gmra.mrb[0].mxu0 %v3980
    %v5697 = vpop.f32.mrb[0].mxu0
    %v5698 = vadd.f32 %v5313, %v5697
    %v5699 = vpop.f32.mrb[0].mxu0
    %5700 = vmatprep.mubr.f32.mxu0 %v4045
    %5701 = vmatmul.mubr.f32.gmra.mrb[0].mxu0 %v3981
    %v5702 = vpop.f32.mrb[0].mxu0
    %v5703 = vadd.f32 %v5318, %v5702
    %v5704 = vpop.f32.mrb[0].mxu0
    %5705 = vmatprep.mubr.f32.mxu0 %v4046
    %5706 = vmatmul.mubr.f32.gmra.mrb[0].mxu0 %v3982
    %v5707 = vpop.f32.mrb[0].mxu0
    %v5708 = vadd.f32 %v5323, %v5707
    %v5709 = vpop.f32.mrb[0].mxu0
    %5710 = vmatprep.mubr.f32.mxu0 %v4047
    %5711 = vmatmul.mubr.f32.gmra.mrb[0].mxu0 %v3983
    %v5712 = vpop.f32.mrb[0].mxu0
    %v5713 = vadd.f32 %v5328, %v5712
    %v5714 = vpop.f32.mrb[0].mxu0
    %5715 = vmatprep.mubr.f32.mxu0 %v4048
    %5716 = vmatmul.mubr.f32.gmra.mrb[0].mxu0 %v3984
    %v5717 = vpop.f32.mrb[0].mxu0
    %v5718 = vadd.f32 %v5333, %v5717
    %v5719 = vpop.f32.mrb[0].mxu0
    %5720 = vmatprep.mubr.f32.mxu0 %v4049
    %5721 = vmatmul.mubr.f32.gmra.mrb[0].mxu0 %v3985
    %v5722 = vpop.f32.mrb[0].mxu0
    %v5723 = vadd.f32 %v5338, %v5722
    %v5724 = vpop.f32.mrb[0].mxu0
    %5725 = vmatprep.mubr.f32.mxu0 %v4050
    %5726 = vmatmul.mubr.f32.gmra.mrb[0].mxu0 %v3986
    %v5727 = vpop.f32.mrb[0].mxu0
    %v5728 = vadd.f32 %v5343, %v5727
    %v5729 = vpop.f32.mrb[0].mxu0
    %5730 = vmatprep.mubr.f32.mxu0 %v4051
    %5731 = vmatmul.mubr.f32.gmra.mrb[0].mxu0 %v3987
    %v5732 = vpop.f32.mrb[0].mxu0
    %v5733 = vadd.f32 %v5348, %v5732
    %v5734 = vpop.f32.mrb[0].mxu0
    %5735 = vmatprep.mubr.f32.mxu0 %v4052
    %5736 = vmatmul.mubr.f32.gmra.mrb[0].mxu0 %v3988
    %v5737 = vpop.f32.mrb[0].mxu0
    %v5738 = vadd.f32 %v5353, %v5737
    %v5739 = vpop.f32.mrb[0].mxu0
    %5740 = vmatprep.mubr.f32.mxu0 %v4053
    %5741 = vmatmul.mubr.f32.gmra.mrb[0].mxu0 %v3989
    %v5742 = vpop.f32.mrb[0].mxu0
    %v5743 = vadd.f32 %v5358, %v5742
    %v5744 = vpop.f32.mrb[0].mxu0
    %5745 = vmatprep.mubr.f32.mxu0 %v4054
    %5746 = vmatmul.mubr.f32.gmra.mrb[0].mxu0 %v3990
    %v5747 = vpop.f32.mrb[0].mxu0
    %v5748 = vadd.f32 %v5363, %v5747
    %v5749 = vpop.f32.mrb[0].mxu0
    %5750 = vmatprep.mubr.f32.mxu0 %v4055
    %5751 = vmatmul.mubr.f32.gmra.mrb[0].mxu0 %v3991
    %v5752 = vpop.f32.mrb[0].mxu0
    %v5753 = vadd.f32 %v5368, %v5752
    %v5754 = vpop.f32.mrb[0].mxu0
    %5755 = vmatprep.mubr.f32.mxu0 %v4056
    %5756 = vmatmul.mubr.f32.gmra.mrb[0].mxu0 %v3992
    %v5757 = vpop.f32.mrb[0].mxu0
    %v5758 = vadd.f32 %v5373, %v5757
    %v5759 = vpop.f32.mrb[0].mxu0
    %5760 = vmatprep.mubr.f32.mxu0 %v4057
    %5761 = vmatmul.mubr.f32.gmra.mrb[0].mxu0 %v3993
    %v5762 = vpop.f32.mrb[0].mxu0
    %v5763 = vadd.f32 %v5378, %v5762
    %v5764 = vpop.f32.mrb[0].mxu0
    %5765 = vmatprep.mubr.f32.mxu0 %v4058
    %5766 = vmatmul.mubr.f32.gmra.mrb[0].mxu0 %v3994
    %v5767 = vpop.f32.mrb[0].mxu0
    %v5768 = vadd.f32 %v5383, %v5767
    %v5769 = vpop.f32.mrb[0].mxu0
    %5770 = vmatprep.mubr.f32.mxu0 %v4059
    %5771 = vmatmul.mubr.f32.gmra.mrb[0].mxu0 %v3995
    %v5772 = vpop.f32.mrb[0].mxu0
    %v5773 = vadd.f32 %v5388, %v5772
    %v5774 = vpop.f32.mrb[0].mxu0
    %5775 = vmatprep.mubr.f32.mxu0 %v4060
    %5776 = vmatmul.mubr.f32.gmra.mrb[0].mxu0 %v3996
    %v5777 = vpop.f32.mrb[0].mxu0
    %v5778 = vadd.f32 %v5393, %v5777
    %v5779 = vpop.f32.mrb[0].mxu0
    %5780 = vmatprep.mubr.f32.mxu0 %v4061
    %5781 = vmatmul.mubr.f32.gmra.mrb[0].mxu0 %v3997
    %v5782 = vpop.f32.mrb[0].mxu0
    %v5783 = vadd.f32 %v5398, %v5782
    %v5784 = vpop.f32.mrb[0].mxu0
    %5785 = vmatprep.mubr.f32.mxu0 %v4062
    %5786 = vmatmul.mubr.f32.gmra.mrb[0].mxu0 %v3998
    %v5787 = vpop.f32.mrb[0].mxu0
    %v5788 = vadd.f32 %v5403, %v5787
    %v5789 = vpop.f32.mrb[0].mxu0
    %5790 = vmatprep.mubr.f32.mxu0 %v4063
    %5791 = vmatmul.mubr.f32.gmra.mrb[0].mxu0 %v3999
    %v5792 = vpop.f32.mrb[0].mxu0
    %v5793 = vadd.f32 %v5408, %v5792
    %v5794 = vpop.f32.mrb[0].mxu0
    %5795 = vmatprep.mubr.f32.mxu0 %v4064
    %5796 = vmatmul.mubr.f32.gmra.mrb[0].mxu0 %v4000
    %v5797 = vpop.f32.mrb[0].mxu0
    %v5798 = vadd.f32 %v5413, %v5797
    %v5799 = vpop.f32.mrb[0].mxu0
    %5800 = vmatprep.mubr.f32.mxu0 %v4065
    %5801 = vmatmul.mubr.f32.gmra.mrb[0].mxu0 %v4001
    %v5802 = vpop.f32.mrb[0].mxu0
    %v5803 = vadd.f32 %v5418, %v5802
    %v5804 = vpop.f32.mrb[0].mxu0
    %5805 = vmatprep.mubr.f32.mxu0 %v4066
    %5806 = vmatmul.mubr.f32.gmra.mrb[0].mxu0 %v4002
    %v5807 = vpop.f32.mrb[0].mxu0
    %v5808 = vadd.f32 %v5423, %v5807
    %v5809 = vpop.f32.mrb[0].mxu0
    %5810 = vmatprep.mubr.f32.mxu0 %v4067
    %5811 = vmatmul.mubr.f32.gmra.mrb[0].mxu0 %v4003
    %v5812 = vpop.f32.mrb[0].mxu0
    %v5813 = vadd.f32 %v5428, %v5812
    %v5814 = vpop.f32.mrb[0].mxu0
    %5815 = vdwg.mxu0
    %5816 = vmatprep.subr.mxu0 0.0
    %5817 = vmatpush1.msra.mxu0 %v4260
    %5818 = vmatprep.subr.mxu0 0.0
    %5819 = vmatpush1.msra.mxu0 %v4261
    %5820 = vmatprep.subr.mxu0 0.0
    %5821 = vmatpush1.msra.mxu0 %v4262
    %5822 = vmatprep.subr.mxu0 0.0
    %5823 = vmatpush1.msra.mxu0 %v4263
    %5824 = vmatprep.subr.mxu0 0.0
    %5825 = vmatpush1.msra.mxu0 %v4264
    %5826 = vmatprep.subr.mxu0 0.0
    %5827 = vmatpush1.msra.mxu0 %v4265
    %5828 = vmatprep.subr.mxu0 0.0
    %5829 = vmatpush1.msra.mxu0 %v4266
    %5830 = vmatprep.subr.mxu0 0.0
    %5831 = vmatpush1.msra.mxu0 %v4267
    %5832 = vmatprep.subr.mxu0 0.0
    %5833 = vmatpush1.msra.mxu0 %v4268
    %5834 = vmatprep.subr.mxu0 0.0
    %5835 = vmatpush1.msra.mxu0 %v4269
    %5836 = vmatprep.subr.mxu0 0.0
    %5837 = vmatpush1.msra.mxu0 %v4270
    %5838 = vmatprep.subr.mxu0 0.0
    %5839 = vmatpush1.msra.mxu0 %v4271
    %5840 = vmatprep.subr.mxu0 0.0
    %5841 = vmatpush1.msra.mxu0 %v4272
    %5842 = vmatprep.subr.mxu0 0.0
    %5843 = vmatpush1.msra.mxu0 %v4273
    %5844 = vmatprep.subr.mxu0 0.0
    %5845 = vmatpush1.msra.mxu0 %v4274
    %5846 = vmatprep.subr.mxu0 0.0
    %5847 = vmatpush1.msra.mxu0 %v4275
    %5848 = vmatprep.subr.mxu0 0.0
    %5849 = vmatpush1.msra.mxu0 0.0
    %5850 = vmatprep.subr.mxu0 0.0
    %5851 = vmatpush1.msra.mxu0 0.0
    %5852 = vmatprep.subr.mxu0 0.0
    %5853 = vmatpush1.msra.mxu0 0.0
    %5854 = vmatprep.subr.mxu0 0.0
    %5855 = vmatpush1.msra.mxu0 0.0
    %5856 = vmatprep.subr.mxu0 0.0
    %5857 = vmatpush1.msra.mxu0 0.0
    %5858 = vmatprep.subr.mxu0 0.0
    %5859 = vmatpush1.msra.mxu0 0.0
    %5860 = vmatprep.subr.mxu0 0.0
    %5861 = vmatpush1.msra.mxu0 0.0
    %5862 = vmatprep.subr.mxu0 0.0
    %5863 = vmatpush1.msra.mxu0 0.0
    %5864 = vmatprep.subr.mxu0 0.0
    %5865 = vmatpush1.msra.mxu0 0.0
    %5866 = vmatprep.subr.mxu0 0.0
    %5867 = vmatpush1.msra.mxu0 0.0
    %5868 = vmatprep.subr.mxu0 0.0
    %5869 = vmatpush1.msra.mxu0 0.0
    %5870 = vmatprep.subr.mxu0 0.0
    %5871 = vmatpush1.msra.mxu0 0.0
    %5872 = vmatprep.subr.mxu0 0.0
    %5873 = vmatpush1.msra.mxu0 0.0
    %5874 = vmatprep.subr.mxu0 0.0
    %5875 = vmatpush1.msra.mxu0 0.0
    %5876 = vmatprep.subr.mxu0 0.0
    %5877 = vmatpush1.msra.mxu0 0.0
    %5878 = vmatprep.subr.mxu0 0.0
    %5879 = vmatpush1.msra.mxu0 0.0
    %5880 = vmatprep.mubr.f32.mxu0 0.0
    %5881 = vmatmul.mubr.f32.gmra.mrb[0].mxu0 %v4068
    %v5882 = vpop.f32.mrb[0].mxu0
    %v5883 = vadd.f32 %v5498, %v5882
    %v5884 = vpop.f32.mrb[0].mxu0
    %5885 = vmatprep.mubr.f32.mxu0 0.0
    %5886 = vmatmul.mubr.f32.gmra.mrb[0].mxu0 %v4069
    %v5887 = vpop.f32.mrb[0].mxu0
    %v5888 = vadd.f32 %v5503, %v5887
    %v5889 = vpop.f32.mrb[0].mxu0
    %5890 = vmatprep.mubr.f32.mxu0 0.0
    %5891 = vmatmul.mubr.f32.gmra.mrb[0].mxu0 %v4070
    %v5892 = vpop.f32.mrb[0].mxu0
    %v5893 = vadd.f32 %v5508, %v5892
    %v5894 = vpop.f32.mrb[0].mxu0
    %5895 = vmatprep.mubr.f32.mxu0 0.0
    %5896 = vmatmul.mubr.f32.gmra.mrb[0].mxu0 %v4071
    %v5897 = vpop.f32.mrb[0].mxu0
    %v5898 = vadd.f32 %v5513, %v5897
    %v5899 = vpop.f32.mrb[0].mxu0
    %5900 = vmatprep.mubr.f32.mxu0 0.0
    %5901 = vmatmul.mubr.f32.gmra.mrb[0].mxu0 %v4072
    %v5902 = vpop.f32.mrb[0].mxu0
    %v5903 = vadd.f32 %v5518, %v5902
    %v5904 = vpop.f32.mrb[0].mxu0
    %5905 = vmatprep.mubr.f32.mxu0 0.0
    %5906 = vmatmul.mubr.f32.gmra.mrb[0].mxu0 %v4073
    %v5907 = vpop.f32.mrb[0].mxu0
    %v5908 = vadd.f32 %v5523, %v5907
    %v5909 = vpop.f32.mrb[0].mxu0
    %5910 = vmatprep.mubr.f32.mxu0 0.0
    %5911 = vmatmul.mubr.f32.gmra.mrb[0].mxu0 %v4074
    %v5912 = vpop.f32.mrb[0].mxu0
    %v5913 = vadd.f32 %v5528, %v5912
    %v5914 = vpop.f32.mrb[0].mxu0
    %5915 = vmatprep.mubr.f32.mxu0 0.0
    %5916 = vmatmul.mubr.f32.gmra.mrb[0].mxu0 %v4075
    %v5917 = vpop.f32.mrb[0].mxu0
    %v5918 = vadd.f32 %v5533, %v5917
    %v5919 = vpop.f32.mrb[0].mxu0
    %5920 = vmatprep.mubr.f32.mxu0 0.0
    %5921 = vmatmul.mubr.f32.gmra.mrb[0].mxu0 %v4076
    %v5922 = vpop.f32.mrb[0].mxu0
    %v5923 = vadd.f32 %v5538, %v5922
    %v5924 = vpop.f32.mrb[0].mxu0
    %5925 = vmatprep.mubr.f32.mxu0 0.0
    %5926 = vmatmul.mubr.f32.gmra.mrb[0].mxu0 %v4077
    %v5927 = vpop.f32.mrb[0].mxu0
    %v5928 = vadd.f32 %v5543, %v5927
    %v5929 = vpop.f32.mrb[0].mxu0
    %5930 = vmatprep.mubr.f32.mxu0 0.0
    %5931 = vmatmul.mubr.f32.gmra.mrb[0].mxu0 %v4078
    %v5932 = vpop.f32.mrb[0].mxu0
    %v5933 = vadd.f32 %v5548, %v5932
    %v5934 = vpop.f32.mrb[0].mxu0
    %5935 = vmatprep.mubr.f32.mxu0 0.0
    %5936 = vmatmul.mubr.f32.gmra.mrb[0].mxu0 %v4079
    %v5937 = vpop.f32.mrb[0].mxu0
    %v5938 = vadd.f32 %v5553, %v5937
    %v5939 = vpop.f32.mrb[0].mxu0
    %5940 = vmatprep.mubr.f32.mxu0 0.0
    %5941 = vmatmul.mubr.f32.gmra.mrb[0].mxu0 %v4080
    %v5942 = vpop.f32.mrb[0].mxu0
    %v5943 = vadd.f32 %v5558, %v5942
    %v5944 = vpop.f32.mrb[0].mxu0
    %5945 = vmatprep.mubr.f32.mxu0 0.0
    %5946 = vmatmul.mubr.f32.gmra.mrb[0].mxu0 %v4081
    %v5947 = vpop.f32.mrb[0].mxu0
    %v5948 = vadd.f32 %v5563, %v5947
    %v5949 = vpop.f32.mrb[0].mxu0
    %5950 = vmatprep.mubr.f32.mxu0 0.0
    %5951 = vmatmul.mubr.f32.gmra.mrb[0].mxu0 %v4082
    %v5952 = vpop.f32.mrb[0].mxu0
    %v5953 = vadd.f32 %v5568, %v5952
    %v5954 = vpop.f32.mrb[0].mxu0
    %5955 = vmatprep.mubr.f32.mxu0 0.0
    %5956 = vmatmul.mubr.f32.gmra.mrb[0].mxu0 %v4083
    %v5957 = vpop.f32.mrb[0].mxu0
    %v5958 = vadd.f32 %v5573, %v5957
    %v5959 = vpop.f32.mrb[0].mxu0
    %5960 = vmatprep.mubr.f32.mxu0 0.0
    %5961 = vmatmul.mubr.f32.gmra.mrb[0].mxu0 %v4084
    %v5962 = vpop.f32.mrb[0].mxu0
    %v5963 = vadd.f32 %v5578, %v5962
    %v5964 = vpop.f32.mrb[0].mxu0
    %5965 = vmatprep.mubr.f32.mxu0 0.0
    %5966 = vmatmul.mubr.f32.gmra.mrb[0].mxu0 %v4085
    %v5967 = vpop.f32.mrb[0].mxu0
    %v5968 = vadd.f32 %v5583, %v5967
    %v5969 = vpop.f32.mrb[0].mxu0
    %5970 = vmatprep.mubr.f32.mxu0 0.0
    %5971 = vmatmul.mubr.f32.gmra.mrb[0].mxu0 %v4086
    %v5972 = vpop.f32.mrb[0].mxu0
    %v5973 = vadd.f32 %v5588, %v5972
    %v5974 = vpop.f32.mrb[0].mxu0
    %5975 = vmatprep.mubr.f32.mxu0 0.0
    %5976 = vmatmul.mubr.f32.gmra.mrb[0].mxu0 %v4087
    %v5977 = vpop.f32.mrb[0].mxu0
    %v5978 = vadd.f32 %v5593, %v5977
    %v5979 = vpop.f32.mrb[0].mxu0
    %5980 = vmatprep.mubr.f32.mxu0 0.0
    %5981 = vmatmul.mubr.f32.gmra.mrb[0].mxu0 %v4088
    %v5982 = vpop.f32.mrb[0].mxu0
    %v5983 = vadd.f32 %v5598, %v5982
    %v5984 = vpop.f32.mrb[0].mxu0
    %5985 = vmatprep.mubr.f32.mxu0 0.0
    %5986 = vmatmul.mubr.f32.gmra.mrb[0].mxu0 %v4089
    %v5987 = vpop.f32.mrb[0].mxu0
    %v5988 = vadd.f32 %v5603, %v5987
    %v5989 = vpop.f32.mrb[0].mxu0
    %5990 = vmatprep.mubr.f32.mxu0 0.0
    %5991 = vmatmul.mubr.f32.gmra.mrb[0].mxu0 %v4090
    %v5992 = vpop.f32.mrb[0].mxu0
    %v5993 = vadd.f32 %v5608, %v5992
    %v5994 = vpop.f32.mrb[0].mxu0
    %5995 = vmatprep.mubr.f32.mxu0 0.0
    %5996 = vmatmul.mubr.f32.gmra.mrb[0].mxu0 %v4091
    %v5997 = vpop.f32.mrb[0].mxu0
    %v5998 = vadd.f32 %v5613, %v5997
    %v5999 = vpop.f32.mrb[0].mxu0
    %6000 = vmatprep.mubr.f32.mxu0 0.0
    %6001 = vmatmul.mubr.f32.gmra.mrb[0].mxu0 %v4092
    %v6002 = vpop.f32.mrb[0].mxu0
    %v6003 = vadd.f32 %v5618, %v6002
    %v6004 = vpop.f32.mrb[0].mxu0
    %6005 = vmatprep.mubr.f32.mxu0 0.0
    %6006 = vmatmul.mubr.f32.gmra.mrb[0].mxu0 %v4093
    %v6007 = vpop.f32.mrb[0].mxu0
    %v6008 = vadd.f32 %v5623, %v6007
    %v6009 = vpop.f32.mrb[0].mxu0
    %6010 = vmatprep.mubr.f32.mxu0 0.0
    %6011 = vmatmul.mubr.f32.gmra.mrb[0].mxu0 %v4094
    %v6012 = vpop.f32.mrb[0].mxu0
    %v6013 = vadd.f32 %v5628, %v6012
    %v6014 = vpop.f32.mrb[0].mxu0
    %6015 = vmatprep.mubr.f32.mxu0 0.0
    %6016 = vmatmul.mubr.f32.gmra.mrb[0].mxu0 %v4095
    %v6017 = vpop.f32.mrb[0].mxu0
    %v6018 = vadd.f32 %v5633, %v6017
    %v6019 = vpop.f32.mrb[0].mxu0
    %6020 = vmatprep.mubr.f32.mxu0 0.0
    %6021 = vmatmul.mubr.f32.gmra.mrb[0].mxu0 %v4096
    %v6022 = vpop.f32.mrb[0].mxu0
    %v6023 = vadd.f32 %v5638, %v6022
    %v6024 = vpop.f32.mrb[0].mxu0
    %6025 = vmatprep.mubr.f32.mxu0 0.0
    %6026 = vmatmul.mubr.f32.gmra.mrb[0].mxu0 %v4097
    %v6027 = vpop.f32.mrb[0].mxu0
    %v6028 = vadd.f32 %v5643, %v6027
    %v6029 = vpop.f32.mrb[0].mxu0
    %6030 = vmatprep.mubr.f32.mxu0 0.0
    %6031 = vmatmul.mubr.f32.gmra.mrb[0].mxu0 %v4098
    %v6032 = vpop.f32.mrb[0].mxu0
    %v6033 = vadd.f32 %v5648, %v6032
    %v6034 = vpop.f32.mrb[0].mxu0
    %6035 = vmatprep.mubr.f32.mxu0 0.0
    %6036 = vmatmul.mubr.f32.gmra.mrb[0].mxu0 %v4099
    %v6037 = vpop.f32.mrb[0].mxu0
    %v6038 = vadd.f32 %v5653, %v6037
    %v6039 = vpop.f32.mrb[0].mxu0
    %6040 = vmatprep.mubr.f32.mxu0 0.0
    %6041 = vmatmul.mubr.f32.gmra.mrb[0].mxu0 %v4100
    %v6042 = vpop.f32.mrb[0].mxu0
    %v6043 = vadd.f32 %v5658, %v6042
    %v6044 = vpop.f32.mrb[0].mxu0
    %6045 = vmatprep.mubr.f32.mxu0 0.0
    %6046 = vmatmul.mubr.f32.gmra.mrb[0].mxu0 %v4101
    %v6047 = vpop.f32.mrb[0].mxu0
    %v6048 = vadd.f32 %v5663, %v6047
    %v6049 = vpop.f32.mrb[0].mxu0
    %6050 = vmatprep.mubr.f32.mxu0 0.0
    %6051 = vmatmul.mubr.f32.gmra.mrb[0].mxu0 %v4102
    %v6052 = vpop.f32.mrb[0].mxu0
    %v6053 = vadd.f32 %v5668, %v6052
    %v6054 = vpop.f32.mrb[0].mxu0
    %6055 = vmatprep.mubr.f32.mxu0 0.0
    %6056 = vmatmul.mubr.f32.gmra.mrb[0].mxu0 %v4103
    %v6057 = vpop.f32.mrb[0].mxu0
    %v6058 = vadd.f32 %v5673, %v6057
    %v6059 = vpop.f32.mrb[0].mxu0
    %6060 = vmatprep.mubr.f32.mxu0 0.0
    %6061 = vmatmul.mubr.f32.gmra.mrb[0].mxu0 %v4104
    %v6062 = vpop.f32.mrb[0].mxu0
    %v6063 = vadd.f32 %v5678, %v6062
    %v6064 = vpop.f32.mrb[0].mxu0
    %6065 = vmatprep.mubr.f32.mxu0 0.0
    %6066 = vmatmul.mubr.f32.gmra.mrb[0].mxu0 %v4105
    %v6067 = vpop.f32.mrb[0].mxu0
    %v6068 = vadd.f32 %v5683, %v6067
    %v6069 = vpop.f32.mrb[0].mxu0
    %6070 = vmatprep.mubr.f32.mxu0 0.0
    %6071 = vmatmul.mubr.f32.gmra.mrb[0].mxu0 %v4106
    %v6072 = vpop.f32.mrb[0].mxu0
    %v6073 = vadd.f32 %v5688, %v6072
    %v6074 = vpop.f32.mrb[0].mxu0
    %6075 = vmatprep.mubr.f32.mxu0 0.0
    %6076 = vmatmul.mubr.f32.gmra.mrb[0].mxu0 %v4107
    %v6077 = vpop.f32.mrb[0].mxu0
    %v6078 = vadd.f32 %v5693, %v6077
    %v6079 = vpop.f32.mrb[0].mxu0
    %6080 = vmatprep.mubr.f32.mxu0 0.0
    %6081 = vmatmul.mubr.f32.gmra.mrb[0].mxu0 %v4108
    %v6082 = vpop.f32.mrb[0].mxu0
    %v6083 = vadd.f32 %v5698, %v6082
    %v6084 = vpop.f32.mrb[0].mxu0
    %6085 = vmatprep.mubr.f32.mxu0 0.0
    %6086 = vmatmul.mubr.f32.gmra.mrb[0].mxu0 %v4109
    %v6087 = vpop.f32.mrb[0].mxu0
    %v6088 = vadd.f32 %v5703, %v6087
    %v6089 = vpop.f32.mrb[0].mxu0
    %6090 = vmatprep.mubr.f32.mxu0 0.0
    %6091 = vmatmul.mubr.f32.gmra.mrb[0].mxu0 %v4110
    %v6092 = vpop.f32.mrb[0].mxu0
    %v6093 = vadd.f32 %v5708, %v6092
    %v6094 = vpop.f32.mrb[0].mxu0
    %6095 = vmatprep.mubr.f32.mxu0 0.0
    %6096 = vmatmul.mubr.f32.gmra.mrb[0].mxu0 %v4111
    %v6097 = vpop.f32.mrb[0].mxu0
    %v6098 = vadd.f32 %v5713, %v6097
    %v6099 = vpop.f32.mrb[0].mxu0
    %6100 = vmatprep.mubr.f32.mxu0 0.0
    %6101 = vmatmul.mubr.f32.gmra.mrb[0].mxu0 %v4112
    %v6102 = vpop.f32.mrb[0].mxu0
    %v6103 = vadd.f32 %v5718, %v6102
    %v6104 = vpop.f32.mrb[0].mxu0
    %6105 = vmatprep.mubr.f32.mxu0 0.0
    %6106 = vmatmul.mubr.f32.gmra.mrb[0].mxu0 %v4113
    %v6107 = vpop.f32.mrb[0].mxu0
    %v6108 = vadd.f32 %v5723, %v6107
    %v6109 = vpop.f32.mrb[0].mxu0
    %6110 = vmatprep.mubr.f32.mxu0 0.0
    %6111 = vmatmul.mubr.f32.gmra.mrb[0].mxu0 %v4114
    %v6112 = vpop.f32.mrb[0].mxu0
    %v6113 = vadd.f32 %v5728, %v6112
    %v6114 = vpop.f32.mrb[0].mxu0
    %6115 = vmatprep.mubr.f32.mxu0 0.0
    %6116 = vmatmul.mubr.f32.gmra.mrb[0].mxu0 %v4115
    %v6117 = vpop.f32.mrb[0].mxu0
    %v6118 = vadd.f32 %v5733, %v6117
    %v6119 = vpop.f32.mrb[0].mxu0
    %6120 = vmatprep.mubr.f32.mxu0 0.0
    %6121 = vmatmul.mubr.f32.gmra.mrb[0].mxu0 %v4116
    %v6122 = vpop.f32.mrb[0].mxu0
    %v6123 = vadd.f32 %v5738, %v6122
    %v6124 = vpop.f32.mrb[0].mxu0
    %6125 = vmatprep.mubr.f32.mxu0 0.0
    %6126 = vmatmul.mubr.f32.gmra.mrb[0].mxu0 %v4117
    %v6127 = vpop.f32.mrb[0].mxu0
    %v6128 = vadd.f32 %v5743, %v6127
    %v6129 = vpop.f32.mrb[0].mxu0
    %6130 = vmatprep.mubr.f32.mxu0 0.0
    %6131 = vmatmul.mubr.f32.gmra.mrb[0].mxu0 %v4118
    %v6132 = vpop.f32.mrb[0].mxu0
    %v6133 = vadd.f32 %v5748, %v6132
    %v6134 = vpop.f32.mrb[0].mxu0
    %6135 = vmatprep.mubr.f32.mxu0 0.0
    %6136 = vmatmul.mubr.f32.gmra.mrb[0].mxu0 %v4119
    %v6137 = vpop.f32.mrb[0].mxu0
    %v6138 = vadd.f32 %v5753, %v6137
    %v6139 = vpop.f32.mrb[0].mxu0
    %6140 = vmatprep.mubr.f32.mxu0 0.0
    %6141 = vmatmul.mubr.f32.gmra.mrb[0].mxu0 %v4120
    %v6142 = vpop.f32.mrb[0].mxu0
    %v6143 = vadd.f32 %v5758, %v6142
    %v6144 = vpop.f32.mrb[0].mxu0
    %6145 = vmatprep.mubr.f32.mxu0 0.0
    %6146 = vmatmul.mubr.f32.gmra.mrb[0].mxu0 %v4121
    %v6147 = vpop.f32.mrb[0].mxu0
    %v6148 = vadd.f32 %v5763, %v6147
    %v6149 = vpop.f32.mrb[0].mxu0
    %6150 = vmatprep.mubr.f32.mxu0 0.0
    %6151 = vmatmul.mubr.f32.gmra.mrb[0].mxu0 %v4122
    %v6152 = vpop.f32.mrb[0].mxu0
    %v6153 = vadd.f32 %v5768, %v6152
    %v6154 = vpop.f32.mrb[0].mxu0
    %6155 = vmatprep.mubr.f32.mxu0 0.0
    %6156 = vmatmul.mubr.f32.gmra.mrb[0].mxu0 %v4123
    %v6157 = vpop.f32.mrb[0].mxu0
    %v6158 = vadd.f32 %v5773, %v6157
    %v6159 = vpop.f32.mrb[0].mxu0
    %6160 = vmatprep.mubr.f32.mxu0 0.0
    %6161 = vmatmul.mubr.f32.gmra.mrb[0].mxu0 %v4124
    %v6162 = vpop.f32.mrb[0].mxu0
    %v6163 = vadd.f32 %v5778, %v6162
    %v6164 = vpop.f32.mrb[0].mxu0
    %6165 = vmatprep.mubr.f32.mxu0 0.0
    %6166 = vmatmul.mubr.f32.gmra.mrb[0].mxu0 %v4125
    %v6167 = vpop.f32.mrb[0].mxu0
    %v6168 = vadd.f32 %v5783, %v6167
    %v6169 = vpop.f32.mrb[0].mxu0
    %6170 = vmatprep.mubr.f32.mxu0 0.0
    %6171 = vmatmul.mubr.f32.gmra.mrb[0].mxu0 %v4126
    %v6172 = vpop.f32.mrb[0].mxu0
    %v6173 = vadd.f32 %v5788, %v6172
    %v6174 = vpop.f32.mrb[0].mxu0
    %6175 = vmatprep.mubr.f32.mxu0 0.0
    %6176 = vmatmul.mubr.f32.gmra.mrb[0].mxu0 %v4127
    %v6177 = vpop.f32.mrb[0].mxu0
    %v6178 = vadd.f32 %v5793, %v6177
    %v6179 = vpop.f32.mrb[0].mxu0
    %6180 = vmatprep.mubr.f32.mxu0 0.0
    %6181 = vmatmul.mubr.f32.gmra.mrb[0].mxu0 %v4128
    %v6182 = vpop.f32.mrb[0].mxu0
    %v6183 = vadd.f32 %v5798, %v6182
    %v6184 = vpop.f32.mrb[0].mxu0
    %6185 = vmatprep.mubr.f32.mxu0 0.0
    %6186 = vmatmul.mubr.f32.gmra.mrb[0].mxu0 %v4129
    %v6187 = vpop.f32.mrb[0].mxu0
    %v6188 = vadd.f32 %v5803, %v6187
    %v6189 = vpop.f32.mrb[0].mxu0
    %6190 = vmatprep.mubr.f32.mxu0 0.0
    %6191 = vmatmul.mubr.f32.gmra.mrb[0].mxu0 %v4130
    %v6192 = vpop.f32.mrb[0].mxu0
    %v6193 = vadd.f32 %v5808, %v6192
    %v6194 = vpop.f32.mrb[0].mxu0
    %6195 = vmatprep.mubr.f32.mxu0 0.0
    %6196 = vmatmul.mubr.f32.gmra.mrb[0].mxu0 %v4131
    %v6197 = vpop.f32.mrb[0].mxu0
    %v6198 = vadd.f32 %v5813, %v6197
    %v6199 = vpop.f32.mrb[0].mxu0
    %6200 = vdwg.mxu0
    %v6201 = vadd.f32 %v5883, %v5888
    %v6202 = vadd.f32 %v6201, %v5893
    %v6203 = vadd.f32 %v6202, %v5898
    %v6204 = vadd.f32 %v6203, %v5903
    %v6205 = vadd.f32 %v6204, %v5908
    %v6206 = vadd.f32 %v6205, %v5913
    %v6207 = vadd.f32 %v6206, %v5918
    %v6208 = vadd.f32 %v6207, %v5923
    %v6209 = vadd.f32 %v6208, %v5928
    %v6210 = vadd.f32 %v6209, %v5933
    %v6211 = vadd.f32 %v6210, %v5938
    %v6212 = vadd.f32 %v6211, %v5943
    %v6213 = vadd.f32 %v6212, %v5948
    %v6214 = vadd.f32 %v6213, %v5953
    %v6215 = vadd.f32 %v6214, %v5958
    %v6216 = vadd.f32 %v6215, %v5963
    %v6217 = vadd.f32 %v6216, %v5968
    %v6218 = vadd.f32 %v6217, %v5973
    %v6219 = vadd.f32 %v6218, %v5978
    %v6220 = vadd.f32 %v6219, %v5983
    %v6221 = vadd.f32 %v6220, %v5988
    %v6222 = vadd.f32 %v6221, %v5993
    %v6223 = vadd.f32 %v6222, %v5998
    %v6224 = vadd.f32 %v6223, %v6003
    %v6225 = vadd.f32 %v6224, %v6008
    %v6226 = vadd.f32 %v6225, %v6013
    %v6227 = vadd.f32 %v6226, %v6018
    %v6228 = vadd.f32 %v6227, %v6023
    %v6229 = vadd.f32 %v6228, %v6028
    %v6230 = vadd.f32 %v6229, %v6033
    %v6231 = vadd.f32 %v6230, %v6038
    %v6232 = vadd.f32 %v6231, %v6043
    %v6233 = vadd.f32 %v6232, %v6048
    %v6234 = vadd.f32 %v6233, %v6053
    %v6235 = vadd.f32 %v6234, %v6058
    %v6236 = vadd.f32 %v6235, %v6063
    %v6237 = vadd.f32 %v6236, %v6068
    %v6238 = vadd.f32 %v6237, %v6073
    %v6239 = vadd.f32 %v6238, %v6078
    %v6240 = vadd.f32 %v6239, %v6083
    %v6241 = vadd.f32 %v6240, %v6088
    %v6242 = vadd.f32 %v6241, %v6093
    %v6243 = vadd.f32 %v6242, %v6098
    %v6244 = vadd.f32 %v6243, %v6103
    %v6245 = vadd.f32 %v6244, %v6108
    %v6246 = vadd.f32 %v6245, %v6113
    %v6247 = vadd.f32 %v6246, %v6118
    %v6248 = vadd.f32 %v6247, %v6123
    %v6249 = vadd.f32 %v6248, %v6128
    %v6250 = vadd.f32 %v6249, %v6133
    %v6251 = vadd.f32 %v6250, %v6138
    %v6252 = vadd.f32 %v6251, %v6143
    %v6253 = vadd.f32 %v6252, %v6148
    %v6254 = vadd.f32 %v6253, %v6153
    %v6255 = vadd.f32 %v6254, %v6158
    %v6256 = vadd.f32 %v6255, %v6163
    %v6257 = vadd.f32 %v6256, %v6168
    %v6258 = vadd.f32 %v6257, %v6173
    %v6259 = vadd.f32 %v6258, %v6178
    %v6260 = vadd.f32 %v6259, %v6183
    %v6261 = vadd.f32 %v6260, %v6188
    %v6262 = vadd.f32 %v6261, %v6193
    %v6263 = vadd.f32 %v6262, %v6198
    %v6264 = vrot.slane %v6263, 4
    %v6265 = vadd.f32 %v6263, %v6264
    %v6266 = vrot.slane %v6265, 2
    %v6267 = vadd.f32 %v6265, %v6266
    %v6268 = vrot.slane %v6267, 1
    %v6269 = vadd.f32 %v6267, %v6268
    %v6270 = vmul.f32 %v6269, %v3020
    %v6271 = vsub.f32 %v5883, %v6270
    %v6272 = vsub.f32 %v5888, %v6270
    %v6273 = vsub.f32 %v5893, %v6270
    %v6274 = vsub.f32 %v5898, %v6270
    %v6275 = vsub.f32 %v5903, %v6270
    %v6276 = vsub.f32 %v5908, %v6270
    %v6277 = vsub.f32 %v5913, %v6270
    %v6278 = vsub.f32 %v5918, %v6270
    %v6279 = vsub.f32 %v5923, %v6270
    %v6280 = vsub.f32 %v5928, %v6270
    %v6281 = vsub.f32 %v5933, %v6270
    %v6282 = vsub.f32 %v5938, %v6270
    %v6283 = vsub.f32 %v5943, %v6270
    %v6284 = vsub.f32 %v5948, %v6270
    %v6285 = vsub.f32 %v5953, %v6270
    %v6286 = vsub.f32 %v5958, %v6270
    %v6287 = vsub.f32 %v5963, %v6270
    %v6288 = vsub.f32 %v5968, %v6270
    %v6289 = vsub.f32 %v5973, %v6270
    %v6290 = vsub.f32 %v5978, %v6270
    %v6291 = vsub.f32 %v5983, %v6270
    %v6292 = vsub.f32 %v5988, %v6270
    %v6293 = vsub.f32 %v5993, %v6270
    %v6294 = vsub.f32 %v5998, %v6270
    %v6295 = vsub.f32 %v6003, %v6270
    %v6296 = vsub.f32 %v6008, %v6270
    %v6297 = vsub.f32 %v6013, %v6270
    %v6298 = vsub.f32 %v6018, %v6270
    %v6299 = vsub.f32 %v6023, %v6270
    %v6300 = vsub.f32 %v6028, %v6270
    %v6301 = vsub.f32 %v6033, %v6270
    %v6302 = vsub.f32 %v6038, %v6270
    %v6303 = vsub.f32 %v6043, %v6270
    %v6304 = vsub.f32 %v6048, %v6270
    %v6305 = vsub.f32 %v6053, %v6270
    %v6306 = vsub.f32 %v6058, %v6270
    %v6307 = vsub.f32 %v6063, %v6270
    %v6308 = vsub.f32 %v6068, %v6270
    %v6309 = vsub.f32 %v6073, %v6270
    %v6310 = vsub.f32 %v6078, %v6270
    %v6311 = vsub.f32 %v6083, %v6270
    %v6312 = vsub.f32 %v6088, %v6270
    %v6313 = vsub.f32 %v6093, %v6270
    %v6314 = vsub.f32 %v6098, %v6270
    %v6315 = vsub.f32 %v6103, %v6270
    %v6316 = vsub.f32 %v6108, %v6270
    %v6317 = vsub.f32 %v6113, %v6270
    %v6318 = vsub.f32 %v6118, %v6270
    %v6319 = vsub.f32 %v6123, %v6270
    %v6320 = vsub.f32 %v6128, %v6270
    %v6321 = vsub.f32 %v6133, %v6270
    %v6322 = vsub.f32 %v6138, %v6270
    %v6323 = vsub.f32 %v6143, %v6270
    %v6324 = vsub.f32 %v6148, %v6270
    %v6325 = vsub.f32 %v6153, %v6270
    %v6326 = vsub.f32 %v6158, %v6270
    %v6327 = vsub.f32 %v6163, %v6270
    %v6328 = vsub.f32 %v6168, %v6270
    %v6329 = vsub.f32 %v6173, %v6270
    %v6330 = vsub.f32 %v6178, %v6270
    %v6331 = vsub.f32 %v6183, %v6270
    %v6332 = vsub.f32 %v6188, %v6270
    %v6333 = vsub.f32 %v6193, %v6270
    %v6334 = vsub.f32 %v6198, %v6270
    %v6335 = vmul.f32 %v6271, %v6271
    %v6336 = vmul.f32 %v6272, %v6272
    %v6337 = vmul.f32 %v6273, %v6273
    %v6338 = vmul.f32 %v6274, %v6274
    %v6339 = vmul.f32 %v6275, %v6275
    %v6340 = vmul.f32 %v6276, %v6276
    %v6341 = vmul.f32 %v6277, %v6277
    %v6342 = vmul.f32 %v6278, %v6278
    %v6343 = vmul.f32 %v6279, %v6279
    %v6344 = vmul.f32 %v6280, %v6280
    %v6345 = vmul.f32 %v6281, %v6281
    %v6346 = vmul.f32 %v6282, %v6282
    %v6347 = vmul.f32 %v6283, %v6283
    %v6348 = vmul.f32 %v6284, %v6284
    %v6349 = vmul.f32 %v6285, %v6285
    %v6350 = vmul.f32 %v6286, %v6286
    %v6351 = vmul.f32 %v6287, %v6287
    %v6352 = vmul.f32 %v6288, %v6288
    %v6353 = vmul.f32 %v6289, %v6289
    %v6354 = vmul.f32 %v6290, %v6290
    %v6355 = vmul.f32 %v6291, %v6291
    %v6356 = vmul.f32 %v6292, %v6292
    %v6357 = vmul.f32 %v6293, %v6293
    %v6358 = vmul.f32 %v6294, %v6294
    %v6359 = vmul.f32 %v6295, %v6295
    %v6360 = vmul.f32 %v6296, %v6296
    %v6361 = vmul.f32 %v6297, %v6297
    %v6362 = vmul.f32 %v6298, %v6298
    %v6363 = vmul.f32 %v6299, %v6299
    %v6364 = vmul.f32 %v6300, %v6300
    %v6365 = vmul.f32 %v6301, %v6301
    %v6366 = vmul.f32 %v6302, %v6302
    %v6367 = vmul.f32 %v6303, %v6303
    %v6368 = vmul.f32 %v6304, %v6304
    %v6369 = vmul.f32 %v6305, %v6305
    %v6370 = vmul.f32 %v6306, %v6306
    %v6371 = vmul.f32 %v6307, %v6307
    %v6372 = vmul.f32 %v6308, %v6308
    %v6373 = vmul.f32 %v6309, %v6309
    %v6374 = vmul.f32 %v6310, %v6310
    %v6375 = vmul.f32 %v6311, %v6311
    %v6376 = vmul.f32 %v6312, %v6312
    %v6377 = vmul.f32 %v6313, %v6313
    %v6378 = vmul.f32 %v6314, %v6314
    %v6379 = vmul.f32 %v6315, %v6315
    %v6380 = vmul.f32 %v6316, %v6316
    %v6381 = vmul.f32 %v6317, %v6317
    %v6382 = vmul.f32 %v6318, %v6318
    %v6383 = vmul.f32 %v6319, %v6319
    %v6384 = vmul.f32 %v6320, %v6320
    %v6385 = vmul.f32 %v6321, %v6321
    %v6386 = vmul.f32 %v6322, %v6322
    %v6387 = vmul.f32 %v6323, %v6323
    %v6388 = vmul.f32 %v6324, %v6324
    %v6389 = vmul.f32 %v6325, %v6325
    %v6390 = vmul.f32 %v6326, %v6326
    %v6391 = vmul.f32 %v6327, %v6327
    %v6392 = vmul.f32 %v6328, %v6328
    %v6393 = vmul.f32 %v6329, %v6329
    %v6394 = vmul.f32 %v6330, %v6330
    %v6395 = vmul.f32 %v6331, %v6331
    %v6396 = vmul.f32 %v6332, %v6332
    %v6397 = vmul.f32 %v6333, %v6333
    %v6398 = vmul.f32 %v6334, %v6334
    %v6399 = vadd.f32 %v6335, %v6336
    %v6400 = vadd.f32 %v6399, %v6337
    %v6401 = vadd.f32 %v6400, %v6338
    %v6402 = vadd.f32 %v6401, %v6339
    %v6403 = vadd.f32 %v6402, %v6340
    %v6404 = vadd.f32 %v6403, %v6341
    %v6405 = vadd.f32 %v6404, %v6342
    %v6406 = vadd.f32 %v6405, %v6343
    %v6407 = vadd.f32 %v6406, %v6344
    %v6408 = vadd.f32 %v6407, %v6345
    %v6409 = vadd.f32 %v6408, %v6346
    %v6410 = vadd.f32 %v6409, %v6347
    %v6411 = vadd.f32 %v6410, %v6348
    %v6412 = vadd.f32 %v6411, %v6349
    %v6413 = vadd.f32 %v6412, %v6350
    %v6414 = vadd.f32 %v6413, %v6351
    %v6415 = vadd.f32 %v6414, %v6352
    %v6416 = vadd.f32 %v6415, %v6353
    %v6417 = vadd.f32 %v6416, %v6354
    %v6418 = vadd.f32 %v6417, %v6355
    %v6419 = vadd.f32 %v6418, %v6356
    %v6420 = vadd.f32 %v6419, %v6357
    %v6421 = vadd.f32 %v6420, %v6358
    %v6422 = vadd.f32 %v6421, %v6359
    %v6423 = vadd.f32 %v6422, %v6360
    %v6424 = vadd.f32 %v6423, %v6361
    %v6425 = vadd.f32 %v6424, %v6362
    %v6426 = vadd.f32 %v6425, %v6363
    %v6427 = vadd.f32 %v6426, %v6364
    %v6428 = vadd.f32 %v6427, %v6365
    %v6429 = vadd.f32 %v6428, %v6366
    %v6430 = vadd.f32 %v6429, %v6367
    %v6431 = vadd.f32 %v6430, %v6368
    %v6432 = vadd.f32 %v6431, %v6369
    %v6433 = vadd.f32 %v6432, %v6370
    %v6434 = vadd.f32 %v6433, %v6371
    %v6435 = vadd.f32 %v6434, %v6372
    %v6436 = vadd.f32 %v6435, %v6373
    %v6437 = vadd.f32 %v6436, %v6374
    %v6438 = vadd.f32 %v6437, %v6375
    %v6439 = vadd.f32 %v6438, %v6376
    %v6440 = vadd.f32 %v6439, %v6377
    %v6441 = vadd.f32 %v6440, %v6378
    %v6442 = vadd.f32 %v6441, %v6379
    %v6443 = vadd.f32 %v6442, %v6380
    %v6444 = vadd.f32 %v6443, %v6381
    %v6445 = vadd.f32 %v6444, %v6382
    %v6446 = vadd.f32 %v6445, %v6383
    %v6447 = vadd.f32 %v6446, %v6384
    %v6448 = vadd.f32 %v6447, %v6385
    %v6449 = vadd.f32 %v6448, %v6386
    %v6450 = vadd.f32 %v6449, %v6387
    %v6451 = vadd.f32 %v6450, %v6388
    %v6452 = vadd.f32 %v6451, %v6389
    %v6453 = vadd.f32 %v6452, %v6390
    %v6454 = vadd.f32 %v6453, %v6391
    %v6455 = vadd.f32 %v6454, %v6392
    %v6456 = vadd.f32 %v6455, %v6393
    %v6457 = vadd.f32 %v6456, %v6394
    %v6458 = vadd.f32 %v6457, %v6395
    %v6459 = vadd.f32 %v6458, %v6396
    %v6460 = vadd.f32 %v6459, %v6397
    %v6461 = vadd.f32 %v6460, %v6398
    %v6462 = vrot.slane %v6461, 4
    %v6463 = vadd.f32 %v6461, %v6462
    %v6464 = vrot.slane %v6463, 2
    %v6465 = vadd.f32 %v6463, %v6464
    %v6466 = vrot.slane %v6465, 1
    %v6467 = vadd.f32 %v6465, %v6466
    %v6468 = vmul.f32 %v6467, %v3020
    %v6469 = vadd.f32 %v6468, 1e-05
    %v6470 = vrsqrt.pop %v6469
    %v6471 = vmul.f32 %v6271, %v6470
    %v6472 = vmul.f32 %v6272, %v6470
    %v6473 = vmul.f32 %v6273, %v6470
    %v6474 = vmul.f32 %v6274, %v6470
    %v6475 = vmul.f32 %v6275, %v6470
    %v6476 = vmul.f32 %v6276, %v6470
    %v6477 = vmul.f32 %v6277, %v6470
    %v6478 = vmul.f32 %v6278, %v6470
    %v6479 = vmul.f32 %v6279, %v6470
    %v6480 = vmul.f32 %v6280, %v6470
    %v6481 = vmul.f32 %v6281, %v6470
    %v6482 = vmul.f32 %v6282, %v6470
    %v6483 = vmul.f32 %v6283, %v6470
    %v6484 = vmul.f32 %v6284, %v6470
    %v6485 = vmul.f32 %v6285, %v6470
    %v6486 = vmul.f32 %v6286, %v6470
    %v6487 = vmul.f32 %v6287, %v6470
    %v6488 = vmul.f32 %v6288, %v6470
    %v6489 = vmul.f32 %v6289, %v6470
    %v6490 = vmul.f32 %v6290, %v6470
    %v6491 = vmul.f32 %v6291, %v6470
    %v6492 = vmul.f32 %v6292, %v6470
    %v6493 = vmul.f32 %v6293, %v6470
    %v6494 = vmul.f32 %v6294, %v6470
    %v6495 = vmul.f32 %v6295, %v6470
    %v6496 = vmul.f32 %v6296, %v6470
    %v6497 = vmul.f32 %v6297, %v6470
    %v6498 = vmul.f32 %v6298, %v6470
    %v6499 = vmul.f32 %v6299, %v6470
    %v6500 = vmul.f32 %v6300, %v6470
    %v6501 = vmul.f32 %v6301, %v6470
    %v6502 = vmul.f32 %v6302, %v6470
    %v6503 = vmul.f32 %v6303, %v6470
    %v6504 = vmul.f32 %v6304, %v6470
    %v6505 = vmul.f32 %v6305, %v6470
    %v6506 = vmul.f32 %v6306, %v6470
    %v6507 = vmul.f32 %v6307, %v6470
    %v6508 = vmul.f32 %v6308, %v6470
    %v6509 = vmul.f32 %v6309, %v6470
    %v6510 = vmul.f32 %v6310, %v6470
    %v6511 = vmul.f32 %v6311, %v6470
    %v6512 = vmul.f32 %v6312, %v6470
    %v6513 = vmul.f32 %v6313, %v6470
    %v6514 = vmul.f32 %v6314, %v6470
    %v6515 = vmul.f32 %v6315, %v6470
    %v6516 = vmul.f32 %v6316, %v6470
    %v6517 = vmul.f32 %v6317, %v6470
    %v6518 = vmul.f32 %v6318, %v6470
    %v6519 = vmul.f32 %v6319, %v6470
    %v6520 = vmul.f32 %v6320, %v6470
    %v6521 = vmul.f32 %v6321, %v6470
    %v6522 = vmul.f32 %v6322, %v6470
    %v6523 = vmul.f32 %v6323, %v6470
    %v6524 = vmul.f32 %v6324, %v6470
    %v6525 = vmul.f32 %v6325, %v6470
    %v6526 = vmul.f32 %v6326, %v6470
    %v6527 = vmul.f32 %v6327, %v6470
    %v6528 = vmul.f32 %v6328, %v6470
    %v6529 = vmul.f32 %v6329, %v6470
    %v6530 = vmul.f32 %v6330, %v6470
    %v6531 = vmul.f32 %v6331, %v6470
    %v6532 = vmul.f32 %v6332, %v6470
    %v6533 = vmul.f32 %v6333, %v6470
    %v6534 = vmul.f32 %v6334, %v6470
    %v6535 = vld [vmem:[%s5] sm:$0x1]
    %v6537 = vlaneseq
    %v6538 = vshrl.u32 %v6537, 7
    %v6539 = vsub.s32 0, %v6538
    %v6540 = vrot.slane %v6535, %v6539
    %v6542 = vmul.f32 %v6471, %v6540
    %v6543 = vmul.f32 %v6472, %v6540
    %v6544 = vmul.f32 %v6473, %v6540
    %v6545 = vmul.f32 %v6474, %v6540
    %v6546 = vmul.f32 %v6475, %v6540
    %v6547 = vmul.f32 %v6476, %v6540
    %v6548 = vmul.f32 %v6477, %v6540
    %v6549 = vmul.f32 %v6478, %v6540
    %v6550 = vmul.f32 %v6479, %v6540
    %v6551 = vmul.f32 %v6480, %v6540
    %v6552 = vmul.f32 %v6481, %v6540
    %v6553 = vmul.f32 %v6482, %v6540
    %v6554 = vmul.f32 %v6483, %v6540
    %v6555 = vmul.f32 %v6484, %v6540
    %v6556 = vmul.f32 %v6485, %v6540
    %v6557 = vmul.f32 %v6486, %v6540
    %v6558 = vmul.f32 %v6487, %v6540
    %v6559 = vmul.f32 %v6488, %v6540
    %v6560 = vmul.f32 %v6489, %v6540
    %v6561 = vmul.f32 %v6490, %v6540
    %v6562 = vmul.f32 %v6491, %v6540
    %v6563 = vmul.f32 %v6492, %v6540
    %v6564 = vmul.f32 %v6493, %v6540
    %v6565 = vmul.f32 %v6494, %v6540
    %v6566 = vmul.f32 %v6495, %v6540
    %v6567 = vmul.f32 %v6496, %v6540
    %v6568 = vmul.f32 %v6497, %v6540
    %v6569 = vmul.f32 %v6498, %v6540
    %v6570 = vmul.f32 %v6499, %v6540
    %v6571 = vmul.f32 %v6500, %v6540
    %v6572 = vmul.f32 %v6501, %v6540
    %v6573 = vmul.f32 %v6502, %v6540
    %v6574 = vmul.f32 %v6503, %v6540
    %v6575 = vmul.f32 %v6504, %v6540
    %v6576 = vmul.f32 %v6505, %v6540
    %v6577 = vmul.f32 %v6506, %v6540
    %v6578 = vmul.f32 %v6507, %v6540
    %v6579 = vmul.f32 %v6508, %v6540
    %v6580 = vmul.f32 %v6509, %v6540
    %v6581 = vmul.f32 %v6510, %v6540
    %v6582 = vmul.f32 %v6511, %v6540
    %v6583 = vmul.f32 %v6512, %v6540
    %v6584 = vmul.f32 %v6513, %v6540
    %v6585 = vmul.f32 %v6514, %v6540
    %v6586 = vmul.f32 %v6515, %v6540
    %v6587 = vmul.f32 %v6516, %v6540
    %v6588 = vmul.f32 %v6517, %v6540
    %v6589 = vmul.f32 %v6518, %v6540
    %v6590 = vmul.f32 %v6519, %v6540
    %v6591 = vmul.f32 %v6520, %v6540
    %v6592 = vmul.f32 %v6521, %v6540
    %v6593 = vmul.f32 %v6522, %v6540
    %v6594 = vmul.f32 %v6523, %v6540
    %v6595 = vmul.f32 %v6524, %v6540
    %v6596 = vmul.f32 %v6525, %v6540
    %v6597 = vmul.f32 %v6526, %v6540
    %v6598 = vmul.f32 %v6527, %v6540
    %v6599 = vmul.f32 %v6528, %v6540
    %v6600 = vmul.f32 %v6529, %v6540
    %v6601 = vmul.f32 %v6530, %v6540
    %v6602 = vmul.f32 %v6531, %v6540
    %v6603 = vmul.f32 %v6532, %v6540
    %v6604 = vmul.f32 %v6533, %v6540
    %v6605 = vmul.f32 %v6534, %v6540
    %v6606 = vld [vmem:[%s6] sm:$0x1]
    %v6608 = vlaneseq
    %v6609 = vshrl.u32 %v6608, 7
    %v6610 = vsub.s32 0, %v6609
    %v6611 = vrot.slane %v6606, %v6610
    %v6613 = vadd.f32 %v6542, %v6611
    %v6614 = vadd.f32 %v6543, %v6611
    %v6615 = vadd.f32 %v6544, %v6611
    %v6616 = vadd.f32 %v6545, %v6611
    %v6617 = vadd.f32 %v6546, %v6611
    %v6618 = vadd.f32 %v6547, %v6611
    %v6619 = vadd.f32 %v6548, %v6611
    %v6620 = vadd.f32 %v6549, %v6611
    %v6621 = vadd.f32 %v6550, %v6611
    %v6622 = vadd.f32 %v6551, %v6611
    %v6623 = vadd.f32 %v6552, %v6611
    %v6624 = vadd.f32 %v6553, %v6611
    %v6625 = vadd.f32 %v6554, %v6611
    %v6626 = vadd.f32 %v6555, %v6611
    %v6627 = vadd.f32 %v6556, %v6611
    %v6628 = vadd.f32 %v6557, %v6611
    %v6629 = vadd.f32 %v6558, %v6611
    %v6630 = vadd.f32 %v6559, %v6611
    %v6631 = vadd.f32 %v6560, %v6611
    %v6632 = vadd.f32 %v6561, %v6611
    %v6633 = vadd.f32 %v6562, %v6611
    %v6634 = vadd.f32 %v6563, %v6611
    %v6635 = vadd.f32 %v6564, %v6611
    %v6636 = vadd.f32 %v6565, %v6611
    %v6637 = vadd.f32 %v6566, %v6611
    %v6638 = vadd.f32 %v6567, %v6611
    %v6639 = vadd.f32 %v6568, %v6611
    %v6640 = vadd.f32 %v6569, %v6611
    %v6641 = vadd.f32 %v6570, %v6611
    %v6642 = vadd.f32 %v6571, %v6611
    %v6643 = vadd.f32 %v6572, %v6611
    %v6644 = vadd.f32 %v6573, %v6611
    %v6645 = vadd.f32 %v6574, %v6611
    %v6646 = vadd.f32 %v6575, %v6611
    %v6647 = vadd.f32 %v6576, %v6611
    %v6648 = vadd.f32 %v6577, %v6611
    %v6649 = vadd.f32 %v6578, %v6611
    %v6650 = vadd.f32 %v6579, %v6611
    %v6651 = vadd.f32 %v6580, %v6611
    %v6652 = vadd.f32 %v6581, %v6611
    %v6653 = vadd.f32 %v6582, %v6611
    %v6654 = vadd.f32 %v6583, %v6611
    %v6655 = vadd.f32 %v6584, %v6611
    %v6656 = vadd.f32 %v6585, %v6611
    %v6657 = vadd.f32 %v6586, %v6611
    %v6658 = vadd.f32 %v6587, %v6611
    %v6659 = vadd.f32 %v6588, %v6611
    %v6660 = vadd.f32 %v6589, %v6611
    %v6661 = vadd.f32 %v6590, %v6611
    %v6662 = vadd.f32 %v6591, %v6611
    %v6663 = vadd.f32 %v6592, %v6611
    %v6664 = vadd.f32 %v6593, %v6611
    %v6665 = vadd.f32 %v6594, %v6611
    %v6666 = vadd.f32 %v6595, %v6611
    %v6667 = vadd.f32 %v6596, %v6611
    %v6668 = vadd.f32 %v6597, %v6611
    %v6669 = vadd.f32 %v6598, %v6611
    %v6670 = vadd.f32 %v6599, %v6611
    %v6671 = vadd.f32 %v6600, %v6611
    %v6672 = vadd.f32 %v6601, %v6611
    %v6673 = vadd.f32 %v6602, %v6611
    %v6674 = vadd.f32 %v6603, %v6611
    %v6675 = vadd.f32 %v6604, %v6611
    %v6676 = vadd.f32 %v6605, %v6611
    %v6677 = vadd.f32 %v6613, %v176
    %v6678 = vadd.f32 %v6614, %v177
    %v6679 = vadd.f32 %v6615, %v178
    %v6680 = vadd.f32 %v6616, %v179
    %v6681 = vadd.f32 %v6617, %v180
    %v6682 = vadd.f32 %v6618, %v181
    %v6683 = vadd.f32 %v6619, %v182
    %v6684 = vadd.f32 %v6620, %v183
    %v6685 = vadd.f32 %v6621, %v184
    %v6686 = vadd.f32 %v6622, %v185
    %v6687 = vadd.f32 %v6623, %v186
    %v6688 = vadd.f32 %v6624, %v187
    %v6689 = vadd.f32 %v6625, %v188
    %v6690 = vadd.f32 %v6626, %v189
    %v6691 = vadd.f32 %v6627, %v190
    %v6692 = vadd.f32 %v6628, %v191
    %v6693 = vadd.f32 %v6629, %v192
    %v6694 = vadd.f32 %v6630, %v193
    %v6695 = vadd.f32 %v6631, %v194
    %v6696 = vadd.f32 %v6632, %v195
    %v6697 = vadd.f32 %v6633, %v196
    %v6698 = vadd.f32 %v6634, %v197
    %v6699 = vadd.f32 %v6635, %v198
    %v6700 = vadd.f32 %v6636, %v199
    %v6701 = vadd.f32 %v6637, %v200
    %v6702 = vadd.f32 %v6638, %v201
    %v6703 = vadd.f32 %v6639, %v202
    %v6704 = vadd.f32 %v6640, %v203
    %v6705 = vadd.f32 %v6641, %v204
    %v6706 = vadd.f32 %v6642, %v205
    %v6707 = vadd.f32 %v6643, %v206
    %v6708 = vadd.f32 %v6644, %v207
    %v6709 = vadd.f32 %v6645, %v208
    %v6710 = vadd.f32 %v6646, %v209
    %v6711 = vadd.f32 %v6647, %v210
    %v6712 = vadd.f32 %v6648, %v211
    %v6713 = vadd.f32 %v6649, %v212
    %v6714 = vadd.f32 %v6650, %v213
    %v6715 = vadd.f32 %v6651, %v214
    %v6716 = vadd.f32 %v6652, %v215
    %v6717 = vadd.f32 %v6653, %v216
    %v6718 = vadd.f32 %v6654, %v217
    %v6719 = vadd.f32 %v6655, %v218
    %v6720 = vadd.f32 %v6656, %v219
    %v6721 = vadd.f32 %v6657, %v220
    %v6722 = vadd.f32 %v6658, %v221
    %v6723 = vadd.f32 %v6659, %v222
    %v6724 = vadd.f32 %v6660, %v223
    %v6725 = vadd.f32 %v6661, %v224
    %v6726 = vadd.f32 %v6662, %v225
    %v6727 = vadd.f32 %v6663, %v226
    %v6728 = vadd.f32 %v6664, %v227
    %v6729 = vadd.f32 %v6665, %v228
    %v6730 = vadd.f32 %v6666, %v229
    %v6731 = vadd.f32 %v6667, %v230
    %v6732 = vadd.f32 %v6668, %v231
    %v6733 = vadd.f32 %v6669, %v232
    %v6734 = vadd.f32 %v6670, %v233
    %v6735 = vadd.f32 %v6671, %v234
    %v6736 = vadd.f32 %v6672, %v235
    %v6737 = vadd.f32 %v6673, %v236
    %v6738 = vadd.f32 %v6674, %v237
    %v6739 = vadd.f32 %v6675, %v238
    %v6740 = vadd.f32 %v6676, %v239
    %v6741 = vmax.f32 %v6677, 0.0
    %v6742 = vmax.f32 %v6678, 0.0
    %v6743 = vmax.f32 %v6679, 0.0
    %v6744 = vmax.f32 %v6680, 0.0
    %v6745 = vmax.f32 %v6681, 0.0
    %v6746 = vmax.f32 %v6682, 0.0
    %v6747 = vmax.f32 %v6683, 0.0
    %v6748 = vmax.f32 %v6684, 0.0
    %v6749 = vmax.f32 %v6685, 0.0
    %v6750 = vmax.f32 %v6686, 0.0
    %v6751 = vmax.f32 %v6687, 0.0
    %v6752 = vmax.f32 %v6688, 0.0
    %v6753 = vmax.f32 %v6689, 0.0
    %v6754 = vmax.f32 %v6690, 0.0
    %v6755 = vmax.f32 %v6691, 0.0
    %v6756 = vmax.f32 %v6692, 0.0
    %v6757 = vmax.f32 %v6693, 0.0
    %v6758 = vmax.f32 %v6694, 0.0
    %v6759 = vmax.f32 %v6695, 0.0
    %v6760 = vmax.f32 %v6696, 0.0
    %v6761 = vmax.f32 %v6697, 0.0
    %v6762 = vmax.f32 %v6698, 0.0
    %v6763 = vmax.f32 %v6699, 0.0
    %v6764 = vmax.f32 %v6700, 0.0
    %v6765 = vmax.f32 %v6701, 0.0
    %v6766 = vmax.f32 %v6702, 0.0
    %v6767 = vmax.f32 %v6703, 0.0
    %v6768 = vmax.f32 %v6704, 0.0
    %v6769 = vmax.f32 %v6705, 0.0
    %v6770 = vmax.f32 %v6706, 0.0
    %v6771 = vmax.f32 %v6707, 0.0
    %v6772 = vmax.f32 %v6708, 0.0
    %v6773 = vmax.f32 %v6709, 0.0
    %v6774 = vmax.f32 %v6710, 0.0
    %v6775 = vmax.f32 %v6711, 0.0
    %v6776 = vmax.f32 %v6712, 0.0
    %v6777 = vmax.f32 %v6713, 0.0
    %v6778 = vmax.f32 %v6714, 0.0
    %v6779 = vmax.f32 %v6715, 0.0
    %v6780 = vmax.f32 %v6716, 0.0
    %v6781 = vmax.f32 %v6717, 0.0
    %v6782 = vmax.f32 %v6718, 0.0
    %v6783 = vmax.f32 %v6719, 0.0
    %v6784 = vmax.f32 %v6720, 0.0
    %v6785 = vmax.f32 %v6721, 0.0
    %v6786 = vmax.f32 %v6722, 0.0
    %v6787 = vmax.f32 %v6723, 0.0
    %v6788 = vmax.f32 %v6724, 0.0
    %v6789 = vmax.f32 %v6725, 0.0
    %v6790 = vmax.f32 %v6726, 0.0
    %v6791 = vmax.f32 %v6727, 0.0
    %v6792 = vmax.f32 %v6728, 0.0
    %v6793 = vmax.f32 %v6729, 0.0
    %v6794 = vmax.f32 %v6730, 0.0
    %v6795 = vmax.f32 %v6731, 0.0
    %v6796 = vmax.f32 %v6732, 0.0
    %v6797 = vmax.f32 %v6733, 0.0
    %v6798 = vmax.f32 %v6734, 0.0
    %v6799 = vmax.f32 %v6735, 0.0
    %v6800 = vmax.f32 %v6736, 0.0
    %v6801 = vmax.f32 %v6737, 0.0
    %v6802 = vmax.f32 %v6738, 0.0
    %v6803 = vmax.f32 %v6739, 0.0
    %v6804 = vmax.f32 %v6740, 0.0
    %6805 = vst [vmem:[#allocation9] sm:$0xff] %v6741
    %6806 = vst [vmem:[#allocation9 + $0x8] sm:$0xff] %v6742
    %6807 = vst [vmem:[#allocation9 + $0x10] sm:$0xff] %v6743
    %6808 = vst [vmem:[#allocation9 + $0x18] sm:$0xff] %v6744
    %6809 = vst [vmem:[#allocation9 + $0x20] sm:$0xff] %v6745
    %6810 = vst [vmem:[#allocation9 + $0x28] sm:$0xff] %v6746
    %6811 = vst [vmem:[#allocation9 + $0x30] sm:$0xff] %v6747
    %6812 = vst [vmem:[#allocation9 + $0x38] sm:$0xff] %v6748
    %6813 = vst [vmem:[#allocation9 + $0x40] sm:$0xff] %v6749
    %6814 = vst [vmem:[#allocation9 + $0x48] sm:$0xff] %v6750
    %6815 = vst [vmem:[#allocation9 + $0x50] sm:$0xff] %v6751
    %6816 = vst [vmem:[#allocation9 + $0x58] sm:$0xff] %v6752
    %6817 = vst [vmem:[#allocation9 + $0x60] sm:$0xff] %v6753
    %6818 = vst [vmem:[#allocation9 + $0x68] sm:$0xff] %v6754
    %6819 = vst [vmem:[#allocation9 + $0x70] sm:$0xff] %v6755
    %6820 = vst [vmem:[#allocation9 + $0x78] sm:$0xff] %v6756
    %6821 = vst [vmem:[#allocation9 + $0x80] sm:$0xff] %v6757
    %6822 = vst [vmem:[#allocation9 + $0x88] sm:$0xff] %v6758
    %6823 = vst [vmem:[#allocation9 + $0x90] sm:$0xff] %v6759
    %6824 = vst [vmem:[#allocation9 + $0x98] sm:$0xff] %v6760
    %6825 = vst [vmem:[#allocation9 + $0xa0] sm:$0xff] %v6761
    %6826 = vst [vmem:[#allocation9 + $0xa8] sm:$0xff] %v6762
    %6827 = vst [vmem:[#allocation9 + $0xb0] sm:$0xff] %v6763
    %6828 = vst [vmem:[#allocation9 + $0xb8] sm:$0xff] %v6764
    %6829 = vst [vmem:[#allocation9 + $0xc0] sm:$0xff] %v6765
    %6830 = vst [vmem:[#allocation9 + $0xc8] sm:$0xff] %v6766
    %6831 = vst [vmem:[#allocation9 + $0xd0] sm:$0xff] %v6767
    %6832 = vst [vmem:[#allocation9 + $0xd8] sm:$0xff] %v6768
    %6833 = vst [vmem:[#allocation9 + $0xe0] sm:$0xff] %v6769
    %6834 = vst [vmem:[#allocation9 + $0xe8] sm:$0xff] %v6770
    %6835 = vst [vmem:[#allocation9 + $0xf0] sm:$0xff] %v6771
    %6836 = vst [vmem:[#allocation9 + $0xf8] sm:$0xff] %v6772
    %6837 = vst [vmem:[#allocation9 + $0x100] sm:$0xff] %v6773
    %6838 = vst [vmem:[#allocation9 + $0x108] sm:$0xff] %v6774
    %6839 = vst [vmem:[#allocation9 + $0x110] sm:$0xff] %v6775
    %6840 = vst [vmem:[#allocation9 + $0x118] sm:$0xff] %v6776
    %6841 = vst [vmem:[#allocation9 + $0x120] sm:$0xff] %v6777
    %6842 = vst [vmem:[#allocation9 + $0x128] sm:$0xff] %v6778
    %6843 = vst [vmem:[#allocation9 + $0x130] sm:$0xff] %v6779
    %6844 = vst [vmem:[#allocation9 + $0x138] sm:$0xff] %v6780
    %6845 = vst [vmem:[#allocation9 + $0x140] sm:$0xff] %v6781
    %6846 = vst [vmem:[#allocation9 + $0x148] sm:$0xff] %v6782
    %6847 = vst [vmem:[#allocation9 + $0x150] sm:$0xff] %v6783
    %6848 = vst [vmem:[#allocation9 + $0x158] sm:$0xff] %v6784
    %6849 = vst [vmem:[#allocation9 + $0x160] sm:$0xff] %v6785
    %6850 = vst [vmem:[#allocation9 + $0x168] sm:$0xff] %v6786
    %6851 = vst [vmem:[#allocation9 + $0x170] sm:$0xff] %v6787
    %6852 = vst [vmem:[#allocation9 + $0x178] sm:$0xff] %v6788
    %6853 = vst [vmem:[#allocation9 + $0x180] sm:$0xff] %v6789
    %6854 = vst [vmem:[#allocation9 + $0x188] sm:$0xff] %v6790
    %6855 = vst [vmem:[#allocation9 + $0x190] sm:$0xff] %v6791
    %6856 = vst [vmem:[#allocation9 + $0x198] sm:$0xff] %v6792
    %6857 = vst [vmem:[#allocation9 + $0x1a0] sm:$0xff] %v6793
    %6858 = vst [vmem:[#allocation9 + $0x1a8] sm:$0xff] %v6794
    %6859 = vst [vmem:[#allocation9 + $0x1b0] sm:$0xff] %v6795
    %6860 = vst [vmem:[#allocation9 + $0x1b8] sm:$0xff] %v6796
    %6861 = vst [vmem:[#allocation9 + $0x1c0] sm:$0xff] %v6797
    %6862 = vst [vmem:[#allocation9 + $0x1c8] sm:$0xff] %v6798
    %6863 = vst [vmem:[#allocation9 + $0x1d0] sm:$0xff] %v6799
    %6864 = vst [vmem:[#allocation9 + $0x1d8] sm:$0xff] %v6800
    %6865 = vst [vmem:[#allocation9 + $0x1e0] sm:$0xff] %v6801
    %6866 = vst [vmem:[#allocation9 + $0x1e8] sm:$0xff] %v6802
    %6867 = vst [vmem:[#allocation9 + $0x1f0] sm:$0xff] %v6803
    %6868 = vst [vmem:[#allocation9 + $0x1f8] sm:$0xff] %v6804
    // Predicated region
    $region42: #{tpu_custom_call.1} parent=1 // pred_check
      _
    $region43: #{tpu_custom_call.1} parent=1 // pred_check_branch
      %6870 = sbr.rel (0) target = $region45
    $region44: #{tpu_custom_call.1} parent=1 // pred_region
      %s6872 = ssub.s32 8192, 8192
      %6873 = vsyncadd [#allocation5], %s6872
      %s6874 = sshll.u32 [#allocation9], 4
      %s6875 = int_to_ptr.vmem [resolvable:$true] %s6874
      %6880 = dma.vmem_to_hbm [thread:$0]  %s6875, 8192, %s7, [#allocation5], 128, 128, 8
    $region45: #{tpu_custom_call.1} parent=1 // pred_fallthru
      _
    // Predicated region
    $region46: #{tpu_custom_call.1} parent=1 // pred_check
      _
    $region47: #{tpu_custom_call.1} parent=1 // pred_check_branch
      %6882 = sbr.rel (0) target = $region49
    $region48: #{tpu_custom_call.1} parent=1 // pred_region
      %6883 = dma.done [#allocation5], 8192
    $region49: #{tpu_custom_call.1} parent=1 // pred_fallthru
      _
    %6884 = vsyncpa [#allocation4], 1
    %6885 = vsyncpa [#allocation7], 1
    %6886 = vsyncpa [#allocation5], 1

</llo_original>
